<compile_context>
chip_gen: v6e
topology: v6e:2x2x1
jax: 0.10.0
libtpu: 0.0.40
codegen_flags: <defaults>
</compile_context>

<pallas_src>
import numpy as np

import jax
import jax.numpy as jnp
from jax.experimental import pallas as pl
from jax.experimental.pallas import tpu as pltpu

_LANE = 128


def _round_up(v, m):
    return (v + m - 1) // m * m


# ---------------------------------------------------------------------------
# Parameter init (deterministic, PyTorch-like uniform fan-in scaling)
# ---------------------------------------------------------------------------
def _init_conv(key, cin, cout, k=3):
    kw_, kb_ = jax.random.split(key)
    bound = 1.0 / (cin * k * k) ** 0.5
    w = jax.random.uniform(kw_, (cout, cin, k, k), jnp.float32, -bound, bound)
    b = jax.random.uniform(kb_, (cout,), jnp.float32, -bound, bound)
    return w, b


def _init_convT(key, cin, cout, k=3):
    kw_, kb_ = jax.random.split(key)
    bound = 1.0 / (cout * k * k) ** 0.5
    w = jax.random.uniform(kw_, (cin, cout, k, k), jnp.float32, -bound, bound)
    b = jax.random.uniform(kb_, (cout,), jnp.float32, -bound, bound)
    return w, b


def init_autoencoder_params(key):
    enc_ch = [(3, 16), (16, 32), (32, 64), (64, 128), (128, 256)]
    dec_ch = [(256, 128), (128, 64), (64, 32), (32, 16), (16, 3)]
    keys = jax.random.split(key, len(enc_ch) + len(dec_ch))
    enc = [_init_conv(keys[i], ci, co) for i, (ci, co) in enumerate(enc_ch)]
    dec = [_init_convT(keys[len(enc_ch) + i], ci, co)
           for i, (ci, co) in enumerate(dec_ch)]
    return {"enc": enc, "dec": dec}


# ---------------------------------------------------------------------------
# Host-side weight preprocessing: banded weight matrices (width structure and the
# 3 kernel-row taps folded into K) and tiled biases.
# ---------------------------------------------------------------------------
def _encoder_tables(w, b, h_in, w_in):
    """Conv2d(k3,s2,p1).  w: (Cout,Cin,3,3).  band: (3*K_pad, L_pad), one matmul/layer.
    lhs row for output row ho = [x_{2ho-1} | x_{2ho} | x_{2ho+1}] (zeros out of range)."""
    w = np.asarray(w, np.float32)
    b = np.asarray(b, np.float32)
    cout, cin = int(w.shape[0]), int(w.shape[1])
    h_out, w_out = h_in // 2, w_in // 2
    k_pad = _round_up(w_in * cin, _LANE)
    l_pad = _round_up(w_out * cout, _LANE)

    band = np.zeros((3 * k_pad, l_pad), np.float32)
    for kh in range(3):
        for wo in range(w_out):
            for kw in range(3):
                wi_ = 2 * wo + kw - 1
                if 0 <= wi_ < w_in:
                    band[kh * k_pad + wi_ * cin: kh * k_pad + (wi_ + 1) * cin,
                         wo * cout:(wo + 1) * cout] = w[:, :, kh, kw].T

    bias = np.zeros((1, l_pad), np.float32)
    bias[0, :w_out * cout] = np.tile(b, w_out)
    return band, bias, h_out, w_out, k_pad, l_pad


def _decoder_tables(w, b, h_in, w_in):
    """ConvTranspose2d(k3,s2,p1,op1), sub-pixel split.  w: (Cin,Cout,3,3).
    even output row 2j   = x_j        @ band_e          (kh=1 only)
    odd  output row 2j+1 = [x_{j+1}|x_j] @ band_o       (kh=0 on x_{j+1}, kh=2 on x_j)."""
    w = np.asarray(w, np.float32)
    b = np.asarray(b, np.float32)
    cin, cout = int(w.shape[0]), int(w.shape[1])
    h_out, w_out = 2 * h_in, 2 * w_in
    k_pad = _round_up(w_in * cin, _LANE)
    l_pad = _round_up(w_out * cout, _LANE)

    band_e = np.zeros((k_pad, l_pad), np.float32)
    band_o = np.zeros((2 * k_pad, l_pad), np.float32)
    for wc in range(w_in):
        for kw in range(3):
            q = 2 * wc - 1 + kw
            if 0 <= q < w_out:
                band_e[wc * cin:(wc + 1) * cin, q * cout:(q + 1) * cout] = w[:, :, 1, kw]
                band_o[wc * cin:(wc + 1) * cin, q * cout:(q + 1) * cout] = w[:, :, 0, kw]
                band_o[k_pad + wc * cin: k_pad + (wc + 1) * cin,
                       q * cout:(q + 1) * cout] = w[:, :, 2, kw]

    bias = np.zeros((1, l_pad), np.float32)
    bias[0, :w_out * cout] = np.tile(b, w_out)
    return band_e, band_o, bias, h_out, w_out, k_pad, l_pad


# ---------------------------------------------------------------------------
# The fused Pallas kernel: whole autoencoder for one block of B images per step.
# Activations live as values: per image-row pieces of shape (B, lanes), f32.
# ---------------------------------------------------------------------------
def _build_kernel(kinds, n_wrefs, block_b):
    B = block_b
    n_layers = len(kinds)

    def kernel(x_ref, *rest):
        w_refs = rest[:n_wrefs]
        out_ref = rest[n_wrefs]

        x = x_ref[...]                                  # (H0*B, in_lanes) f32
        h_rows = x.shape[0] // B
        rows = [x[r * B:(r + 1) * B, :] for r in range(h_rows)]

        wi = 0
        for li, kind in enumerate(kinds):
            h_in = len(rows)
            zero_row = jnp.zeros_like(rows[0])

            if kind == "enc":
                band_ref, bias_ref = w_refs[wi], w_refs[wi + 1]
                wi += 2
                h_out = h_in // 2

                def get(r):
                    return rows[r] if 0 <= r < h_in else zero_row

                # one K-concatenated lhs (M = B*h_out, K = 3*K_pad), one matmul
                lhs = jnp.concatenate(
                    [jnp.concatenate(
                        [get(2 * ho - 1), get(2 * ho), get(2 * ho + 1)], axis=1)
                     for ho in range(h_out)], axis=0).astype(jnp.bfloat16)
                acc = jnp.dot(lhs, band_ref[...],
                              preferred_element_type=jnp.float32)
                acc = jnp.maximum(acc + bias_ref[...], 0.0)
                rows = [acc[ho * B:(ho + 1) * B, :] for ho in range(h_out)]

            else:  # decoder layer (sub-pixel even/odd split)
                be_ref, bo_ref, bias_ref = (w_refs[wi], w_refs[wi + 1],
                                            w_refs[wi + 2])
                wi += 3
                xs = jnp.concatenate(rows, axis=0)                      # x_j
                xn = jnp.concatenate(rows[1:] + [zero_row], axis=0)     # x_{j+1}
                lhs_e = xs.astype(jnp.bfloat16)
                lhs_o = jnp.concatenate([xn, xs], axis=1).astype(jnp.bfloat16)
                pre_e = jnp.dot(lhs_e, be_ref[...],
                                preferred_element_type=jnp.float32) + bias_ref[...]
                pre_o = jnp.dot(lhs_o, bo_ref[...],
                                preferred_element_type=jnp.float32) + bias_ref[...]

                if li == n_layers - 1:
                    # final layer: sigmoid, store [even-row block ; odd-row block]
                    out_ref[...] = jnp.concatenate(
                        [jax.nn.sigmoid(pre_e), jax.nn.sigmoid(pre_o)], axis=0)
                else:
                    acc_e = jnp.maximum(pre_e, 0.0)
                    acc_o = jnp.maximum(pre_o, 0.0)
                    new_rows = []
                    for j in range(h_in):
                        new_rows.append(acc_e[j * B:(j + 1) * B, :])    # row 2j
                        new_rows.append(acc_o[j * B:(j + 1) * B, :])    # row 2j+1
                    rows = new_rows

    return kernel


# ---------------------------------------------------------------------------
# Wrapper: NCHW -> lane-dense 2-D slabs, single pallas_call, output decode.
# ---------------------------------------------------------------------------
def make_fused_forward(params, image_hw=32, block_batch=8):
    cin0 = params["enc"][0][0].shape[1]
    in_lanes = _round_up(image_hw * cin0, _LANE)

    flat, kinds = [], []
    h = w_sp = image_hw
    prev_lanes = in_lanes
    for wt, bs in params["enc"]:
        band, bias, h, w_sp, k_pad, l_pad = _encoder_tables(wt, bs, h, w_sp)
        assert k_pad == prev_lanes
        flat += [jnp.asarray(band, jnp.bfloat16), jnp.asarray(bias, jnp.float32)]
        kinds.append("enc")
        prev_lanes = l_pad
    for wt, bs in params["dec"]:
        band_e, band_o, bias, h, w_sp, k_pad, l_pad = _decoder_tables(wt, bs, h, w_sp)
        assert k_pad == prev_lanes
        flat += [jnp.asarray(band_e, jnp.bfloat16),
                 jnp.asarray(band_o, jnp.bfloat16),
                 jnp.asarray(bias, jnp.float32)]
        kinds.append("dec")
        prev_lanes = l_pad

    out_h, out_w = h, w_sp                              # 32, 32
    cout_last = params["dec"][-1][0].shape[1]           # 3
    out_lanes = _round_up(out_w * cout_last, _LANE)     # 128
    rows_per_block = out_h * block_batch                # 32 * B
    half = out_h // 2
    n_wrefs = len(flat)

    kernel = _build_kernel(kinds, n_wrefs, block_batch)

    in_specs = [pl.BlockSpec((image_hw * block_batch, in_lanes), lambda i: (i, 0))]
    in_specs += [pl.BlockSpec(a.shape, lambda i: (0, 0)) for a in flat]
    out_spec = pl.BlockSpec((rows_per_block, out_lanes), lambda i: (i, 0))

    def forward(x_nchw):
        n = x_nchw.shape[0]
        n_pad = _round_up(max(n, 1), block_batch)
        n_blocks = n_pad // block_batch

        # NCHW -> per-block [row-major, batch-minor] lane-dense slab
        xr = jnp.transpose(x_nchw, (0, 2, 3, 1)).reshape(n, image_hw,
                                                         image_hw * cin0)
        xr = jnp.pad(xr, ((0, n_pad - n), (0, 0),
                          (0, in_lanes - image_hw * cin0))).astype(jnp.float32)
        xr = xr.reshape(n_blocks, block_batch, image_hw, in_lanes)
        xr = jnp.transpose(xr, (0, 2, 1, 3)).reshape(
            n_blocks * image_hw * block_batch, in_lanes)

        out2d = pl.pallas_call(
            kernel,
            out_shape=jax.ShapeDtypeStruct(
                (n_blocks * rows_per_block, out_lanes), jnp.float32),
            grid=(n_blocks,),
            in_specs=in_specs,
            out_specs=out_spec,
            compiler_params=pltpu.CompilerParams(
                dimension_semantics=("parallel",)),
        )(xr, *flat)

        # decode: block rows = [even rows (j-major, b-minor) ; odd rows]
        out = out2d.reshape(n_blocks, 2, half, block_batch, out_lanes)
        out = out[..., :out_w * cout_last]
        out = out.reshape(n_blocks, 2, half, block_batch, out_w, cout_last)
        out = jnp.transpose(out, (0, 3, 5, 2, 1, 4))    # blk, b, c, j, parity, w
        out = out.reshape(n_blocks * block_batch, cout_last, out_h, out_w)
        return out[:n]

    return forward


# ---------------------------------------------------------------------------
# Pure-XLA reference (f32) for a numerical cross-check
# ---------------------------------------------------------------------------
def reference_forward(x_nchw, params):
    dn = ("NHWC", "HWIO", "NHWC")
    x = jnp.transpose(x_nchw, (0, 2, 3, 1))
    for wt, bs in params["enc"]:
        k = jnp.transpose(wt, (2, 3, 1, 0))
        x = jax.lax.conv_general_dilated(x, k, (2, 2), ((1, 1), (1, 1)),
                                         dimension_numbers=dn)
        x = jnp.maximum(x + bs, 0.0)
    n_dec = len(params["dec"])
    for i, (wt, bs) in enumerate(params["dec"]):
        k = jnp.transpose(jnp.flip(wt, (2, 3)), (2, 3, 0, 1))
        x = jax.lax.conv_general_dilated(x, k, (1, 1), ((1, 2), (1, 2)),
                                         lhs_dilation=(2, 2), dimension_numbers=dn)
        x = x + bs
        x = jax.nn.sigmoid(x) if i == n_dec - 1 else jnp.maximum(x, 0.0)
    return jnp.transpose(x, (0, 3, 1, 2))


if __name__ == "__main__":
    key = jax.random.PRNGKey(0)
    k_param, k_x = jax.random.split(key)
    params = init_autoencoder_params(k_param)

    # spatial=32 so the 5 stride-2 encoder layers reach a 1x1 bottleneck;
    # batch=16 with 8 images per grid step -> grid=(2,) (both v7x TCs busy, M<=128)
    x = jax.random.uniform(k_x, (16, 3, 32, 32), jnp.float32)

    fwd = jax.jit(make_fused_forward(params, image_hw=32, block_batch=8))
    out = fwd(x)
    jax.block_until_ready(out)

    assert out.shape == (16, 3, 32, 32), out.shape
    assert out.dtype == jnp.float32
    assert bool(jnp.all((out >= 0.0) & (out <= 1.0)))  # sigmoid output range

    # cross-check the fused bf16-weight kernel against the f32 XLA reference
    ref = jax.jit(lambda inp: reference_forward(inp, params))(x)
    max_err = float(jnp.max(jnp.abs(out - ref)))
    assert max_err < 0.1, f"kernel/reference mismatch: {max_err}"
    print("KERNEL_OK")
</pallas_src>

<mosaic_0001>
module attributes {stable_mosaic.version = 11 : i64} {
  func.func @kernel(%arg0: i32, %arg1: memref<256x128xf32, #tpu.memory_space<vmem>>, %arg2: memref<384x256xbf16, #tpu.memory_space<vmem>>, %arg3: memref<1x256xf32, #tpu.memory_space<vmem>>, %arg4: memref<768x256xbf16, #tpu.memory_space<vmem>>, %arg5: memref<1x256xf32, #tpu.memory_space<vmem>>, %arg6: memref<768x256xbf16, #tpu.memory_space<vmem>>, %arg7: memref<1x256xf32, #tpu.memory_space<vmem>>, %arg8: memref<768x256xbf16, #tpu.memory_space<vmem>>, %arg9: memref<1x256xf32, #tpu.memory_space<vmem>>, %arg10: memref<768x256xbf16, #tpu.memory_space<vmem>>, %arg11: memref<1x256xf32, #tpu.memory_space<vmem>>, %arg12: memref<256x256xbf16, #tpu.memory_space<vmem>>, %arg13: memref<512x256xbf16, #tpu.memory_space<vmem>>, %arg14: memref<1x256xf32, #tpu.memory_space<vmem>>, %arg15: memref<256x256xbf16, #tpu.memory_space<vmem>>, %arg16: memref<512x256xbf16, #tpu.memory_space<vmem>>, %arg17: memref<1x256xf32, #tpu.memory_space<vmem>>, %arg18: memref<256x256xbf16, #tpu.memory_space<vmem>>, %arg19: memref<512x256xbf16, #tpu.memory_space<vmem>>, %arg20: memref<1x256xf32, #tpu.memory_space<vmem>>, %arg21: memref<256x256xbf16, #tpu.memory_space<vmem>>, %arg22: memref<512x256xbf16, #tpu.memory_space<vmem>>, %arg23: memref<1x256xf32, #tpu.memory_space<vmem>>, %arg24: memref<256x128xbf16, #tpu.memory_space<vmem>>, %arg25: memref<512x128xbf16, #tpu.memory_space<vmem>>, %arg26: memref<1x128xf32, #tpu.memory_space<vmem>>, %arg27: memref<256x128xf32, #tpu.memory_space<vmem>>) attributes {dimension_semantics = [#tpu.dimension_semantics<parallel>], iteration_bounds = array<i64: 2>, scalar_prefetch = 0 : i64, scratch_operands = 0 : i64, tpu.core_type = #tpu.core_type<tc>, window_params = [{transform_indices = @transform_0, window_bounds = array<i64: 256, 128>}, {pipeline_mode = #tpu.pipeline_mode<synchronous>, transform_indices = @transform_1, window_bounds = array<i64: 384, 256>}, {pipeline_mode = #tpu.pipeline_mode<synchronous>, transform_indices = @transform_2, window_bounds = array<i64: 1, 256>}, {pipeline_mode = #tpu.pipeline_mode<synchronous>, transform_indices = @transform_3, window_bounds = array<i64: 768, 256>}, {pipeline_mode = #tpu.pipeline_mode<synchronous>, transform_indices = @transform_4, window_bounds = array<i64: 1, 256>}, {pipeline_mode = #tpu.pipeline_mode<synchronous>, transform_indices = @transform_5, window_bounds = array<i64: 768, 256>}, {pipeline_mode = #tpu.pipeline_mode<synchronous>, transform_indices = @transform_6, window_bounds = array<i64: 1, 256>}, {pipeline_mode = #tpu.pipeline_mode<synchronous>, transform_indices = @transform_7, window_bounds = array<i64: 768, 256>}, {pipeline_mode = #tpu.pipeline_mode<synchronous>, transform_indices = @transform_8, window_bounds = array<i64: 1, 256>}, {pipeline_mode = #tpu.pipeline_mode<synchronous>, transform_indices = @transform_9, window_bounds = array<i64: 768, 256>}, {pipeline_mode = #tpu.pipeline_mode<synchronous>, transform_indices = @transform_10, window_bounds = array<i64: 1, 256>}, {pipeline_mode = #tpu.pipeline_mode<synchronous>, transform_indices = @transform_11, window_bounds = array<i64: 256, 256>}, {pipeline_mode = #tpu.pipeline_mode<synchronous>, transform_indices = @transform_12, window_bounds = array<i64: 512, 256>}, {pipeline_mode = #tpu.pipeline_mode<synchronous>, transform_indices = @transform_13, window_bounds = array<i64: 1, 256>}, {pipeline_mode = #tpu.pipeline_mode<synchronous>, transform_indices = @transform_14, window_bounds = array<i64: 256, 256>}, {pipeline_mode = #tpu.pipeline_mode<synchronous>, transform_indices = @transform_15, window_bounds = array<i64: 512, 256>}, {pipeline_mode = #tpu.pipeline_mode<synchronous>, transform_indices = @transform_16, window_bounds = array<i64: 1, 256>}, {pipeline_mode = #tpu.pipeline_mode<synchronous>, transform_indices = @transform_17, window_bounds = array<i64: 256, 256>}, {pipeline_mode = #tpu.pipeline_mode<synchronous>, transform_indices = @transform_18, window_bounds = array<i64: 512, 256>}, {pipeline_mode = #tpu.pipeline_mode<synchronous>, transform_indices = @transform_19, window_bounds = array<i64: 1, 256>}, {pipeline_mode = #tpu.pipeline_mode<synchronous>, transform_indices = @transform_20, window_bounds = array<i64: 256, 256>}, {pipeline_mode = #tpu.pipeline_mode<synchronous>, transform_indices = @transform_21, window_bounds = array<i64: 512, 256>}, {pipeline_mode = #tpu.pipeline_mode<synchronous>, transform_indices = @transform_22, window_bounds = array<i64: 1, 256>}, {pipeline_mode = #tpu.pipeline_mode<synchronous>, transform_indices = @transform_23, window_bounds = array<i64: 256, 128>}, {pipeline_mode = #tpu.pipeline_mode<synchronous>, transform_indices = @transform_24, window_bounds = array<i64: 512, 128>}, {pipeline_mode = #tpu.pipeline_mode<synchronous>, transform_indices = @transform_25, window_bounds = array<i64: 1, 128>}, {transform_indices = @transform_26, window_bounds = array<i64: 256, 128>}]} {
    %c0 = arith.constant 0 : index
    %c0_0 = arith.constant 0 : index
    %0 = vector.load %arg1[%c0, %c0_0] : memref<256x128xf32, #tpu.memory_space<vmem>>, vector<256x128xf32>
    %1 = vector.extract_strided_slice %0 {offsets = [0, 0], sizes = [8, 128], strides = [1, 1]} : vector<256x128xf32> to vector<8x128xf32>
    %2 = vector.extract_strided_slice %0 {offsets = [8, 0], sizes = [8, 128], strides = [1, 1]} : vector<256x128xf32> to vector<8x128xf32>
    %3 = vector.extract_strided_slice %0 {offsets = [16, 0], sizes = [8, 128], strides = [1, 1]} : vector<256x128xf32> to vector<8x128xf32>
    %4 = vector.extract_strided_slice %0 {offsets = [24, 0], sizes = [8, 128], strides = [1, 1]} : vector<256x128xf32> to vector<8x128xf32>
    %5 = vector.extract_strided_slice %0 {offsets = [32, 0], sizes = [8, 128], strides = [1, 1]} : vector<256x128xf32> to vector<8x128xf32>
    %6 = vector.extract_strided_slice %0 {offsets = [40, 0], sizes = [8, 128], strides = [1, 1]} : vector<256x128xf32> to vector<8x128xf32>
    %7 = vector.extract_strided_slice %0 {offsets = [48, 0], sizes = [8, 128], strides = [1, 1]} : vector<256x128xf32> to vector<8x128xf32>
    %8 = vector.extract_strided_slice %0 {offsets = [56, 0], sizes = [8, 128], strides = [1, 1]} : vector<256x128xf32> to vector<8x128xf32>
    %9 = vector.extract_strided_slice %0 {offsets = [64, 0], sizes = [8, 128], strides = [1, 1]} : vector<256x128xf32> to vector<8x128xf32>
    %10 = vector.extract_strided_slice %0 {offsets = [72, 0], sizes = [8, 128], strides = [1, 1]} : vector<256x128xf32> to vector<8x128xf32>
    %11 = vector.extract_strided_slice %0 {offsets = [80, 0], sizes = [8, 128], strides = [1, 1]} : vector<256x128xf32> to vector<8x128xf32>
    %12 = vector.extract_strided_slice %0 {offsets = [88, 0], sizes = [8, 128], strides = [1, 1]} : vector<256x128xf32> to vector<8x128xf32>
    %13 = vector.extract_strided_slice %0 {offsets = [96, 0], sizes = [8, 128], strides = [1, 1]} : vector<256x128xf32> to vector<8x128xf32>
    %14 = vector.extract_strided_slice %0 {offsets = [104, 0], sizes = [8, 128], strides = [1, 1]} : vector<256x128xf32> to vector<8x128xf32>
    %15 = vector.extract_strided_slice %0 {offsets = [112, 0], sizes = [8, 128], strides = [1, 1]} : vector<256x128xf32> to vector<8x128xf32>
    %16 = vector.extract_strided_slice %0 {offsets = [120, 0], sizes = [8, 128], strides = [1, 1]} : vector<256x128xf32> to vector<8x128xf32>
    %17 = vector.extract_strided_slice %0 {offsets = [128, 0], sizes = [8, 128], strides = [1, 1]} : vector<256x128xf32> to vector<8x128xf32>
    %18 = vector.extract_strided_slice %0 {offsets = [136, 0], sizes = [8, 128], strides = [1, 1]} : vector<256x128xf32> to vector<8x128xf32>
    %19 = vector.extract_strided_slice %0 {offsets = [144, 0], sizes = [8, 128], strides = [1, 1]} : vector<256x128xf32> to vector<8x128xf32>
    %20 = vector.extract_strided_slice %0 {offsets = [152, 0], sizes = [8, 128], strides = [1, 1]} : vector<256x128xf32> to vector<8x128xf32>
    %21 = vector.extract_strided_slice %0 {offsets = [160, 0], sizes = [8, 128], strides = [1, 1]} : vector<256x128xf32> to vector<8x128xf32>
    %22 = vector.extract_strided_slice %0 {offsets = [168, 0], sizes = [8, 128], strides = [1, 1]} : vector<256x128xf32> to vector<8x128xf32>
    %23 = vector.extract_strided_slice %0 {offsets = [176, 0], sizes = [8, 128], strides = [1, 1]} : vector<256x128xf32> to vector<8x128xf32>
    %24 = vector.extract_strided_slice %0 {offsets = [184, 0], sizes = [8, 128], strides = [1, 1]} : vector<256x128xf32> to vector<8x128xf32>
    %25 = vector.extract_strided_slice %0 {offsets = [192, 0], sizes = [8, 128], strides = [1, 1]} : vector<256x128xf32> to vector<8x128xf32>
    %26 = vector.extract_strided_slice %0 {offsets = [200, 0], sizes = [8, 128], strides = [1, 1]} : vector<256x128xf32> to vector<8x128xf32>
    %27 = vector.extract_strided_slice %0 {offsets = [208, 0], sizes = [8, 128], strides = [1, 1]} : vector<256x128xf32> to vector<8x128xf32>
    %28 = vector.extract_strided_slice %0 {offsets = [216, 0], sizes = [8, 128], strides = [1, 1]} : vector<256x128xf32> to vector<8x128xf32>
    %29 = vector.extract_strided_slice %0 {offsets = [224, 0], sizes = [8, 128], strides = [1, 1]} : vector<256x128xf32> to vector<8x128xf32>
    %30 = vector.extract_strided_slice %0 {offsets = [232, 0], sizes = [8, 128], strides = [1, 1]} : vector<256x128xf32> to vector<8x128xf32>
    %31 = vector.extract_strided_slice %0 {offsets = [240, 0], sizes = [8, 128], strides = [1, 1]} : vector<256x128xf32> to vector<8x128xf32>
    %32 = vector.extract_strided_slice %0 {offsets = [248, 0], sizes = [8, 128], strides = [1, 1]} : vector<256x128xf32> to vector<8x128xf32>
    %cst = arith.constant 0.000000e+00 : f32
    %33 = vector.broadcast %cst : f32 to vector<8x128xf32>
    %34 = tpu.concatenate %33, %1, %2 in 1 : vector<8x128xf32>, vector<8x128xf32>, vector<8x128xf32> -> vector<8x384xf32>
    %35 = tpu.concatenate %2, %3, %4 in 1 : vector<8x128xf32>, vector<8x128xf32>, vector<8x128xf32> -> vector<8x384xf32>
    %36 = tpu.concatenate %4, %5, %6 in 1 : vector<8x128xf32>, vector<8x128xf32>, vector<8x128xf32> -> vector<8x384xf32>
    %37 = tpu.concatenate %6, %7, %8 in 1 : vector<8x128xf32>, vector<8x128xf32>, vector<8x128xf32> -> vector<8x384xf32>
    %38 = tpu.concatenate %8, %9, %10 in 1 : vector<8x128xf32>, vector<8x128xf32>, vector<8x128xf32> -> vector<8x384xf32>
    %39 = tpu.concatenate %10, %11, %12 in 1 : vector<8x128xf32>, vector<8x128xf32>, vector<8x128xf32> -> vector<8x384xf32>
    %40 = tpu.concatenate %12, %13, %14 in 1 : vector<8x128xf32>, vector<8x128xf32>, vector<8x128xf32> -> vector<8x384xf32>
    %41 = tpu.concatenate %14, %15, %16 in 1 : vector<8x128xf32>, vector<8x128xf32>, vector<8x128xf32> -> vector<8x384xf32>
    %42 = tpu.concatenate %16, %17, %18 in 1 : vector<8x128xf32>, vector<8x128xf32>, vector<8x128xf32> -> vector<8x384xf32>
    %43 = tpu.concatenate %18, %19, %20 in 1 : vector<8x128xf32>, vector<8x128xf32>, vector<8x128xf32> -> vector<8x384xf32>
    %44 = tpu.concatenate %20, %21, %22 in 1 : vector<8x128xf32>, vector<8x128xf32>, vector<8x128xf32> -> vector<8x384xf32>
    %45 = tpu.concatenate %22, %23, %24 in 1 : vector<8x128xf32>, vector<8x128xf32>, vector<8x128xf32> -> vector<8x384xf32>
    %46 = tpu.concatenate %24, %25, %26 in 1 : vector<8x128xf32>, vector<8x128xf32>, vector<8x128xf32> -> vector<8x384xf32>
    %47 = tpu.concatenate %26, %27, %28 in 1 : vector<8x128xf32>, vector<8x128xf32>, vector<8x128xf32> -> vector<8x384xf32>
    %48 = tpu.concatenate %28, %29, %30 in 1 : vector<8x128xf32>, vector<8x128xf32>, vector<8x128xf32> -> vector<8x384xf32>
    %49 = tpu.concatenate %30, %31, %32 in 1 : vector<8x128xf32>, vector<8x128xf32>, vector<8x128xf32> -> vector<8x384xf32>
    %50 = tpu.concatenate %34, %35, %36, %37, %38, %39, %40, %41, %42, %43, %44, %45, %46, %47, %48, %49 in 0 : vector<8x384xf32>, vector<8x384xf32>, vector<8x384xf32>, vector<8x384xf32>, vector<8x384xf32>, vector<8x384xf32>, vector<8x384xf32>, vector<8x384xf32>, vector<8x384xf32>, vector<8x384xf32>, vector<8x384xf32>, vector<8x384xf32>, vector<8x384xf32>, vector<8x384xf32>, vector<8x384xf32>, vector<8x384xf32> -> vector<128x384xf32>
    %51 = arith.truncf %50 : vector<128x384xf32> to vector<128x384xbf16>
    %c0_1 = arith.constant 0 : index
    %c0_2 = arith.constant 0 : index
    %52 = vector.load %arg2[%c0_1, %c0_2] : memref<384x256xbf16, #tpu.memory_space<vmem>>, vector<384x256xbf16>
    %cst_3 = arith.constant dense<0.000000e+00> : vector<128x256xf32>
    %53 = tpu.matmul %51, %52, %cst_3 {dimension_numbers = #tpu.dot_dimension_numbers<[1], [0], [0], [1], [0, 0, 1, 1], [], []>} : vector<128x384xbf16>, vector<384x256xbf16>, vector<128x256xf32> -> vector<128x256xf32>
    %c0_4 = arith.constant 0 : index
    %c0_5 = arith.constant 0 : index
    %54 = vector.load %arg3[%c0_4, %c0_5] : memref<1x256xf32, #tpu.memory_space<vmem>>, vector<1x256xf32>
    %55 = vector.broadcast %54 : vector<1x256xf32> to vector<128x256xf32>
    %56 = arith.addf %53, %55 : vector<128x256xf32>
    %cst_6 = arith.constant 0.000000e+00 : f32
    %57 = vector.broadcast %cst_6 : f32 to vector<128x256xf32>
    %58 = arith.maximumf %56, %57 : vector<128x256xf32>
    %59 = vector.extract_strided_slice %58 {offsets = [0, 0], sizes = [8, 256], strides = [1, 1]} : vector<128x256xf32> to vector<8x256xf32>
    %60 = vector.extract_strided_slice %58 {offsets = [8, 0], sizes = [8, 256], strides = [1, 1]} : vector<128x256xf32> to vector<8x256xf32>
    %61 = vector.extract_strided_slice %58 {offsets = [16, 0], sizes = [8, 256], strides = [1, 1]} : vector<128x256xf32> to vector<8x256xf32>
    %62 = vector.extract_strided_slice %58 {offsets = [24, 0], sizes = [8, 256], strides = [1, 1]} : vector<128x256xf32> to vector<8x256xf32>
    %63 = vector.extract_strided_slice %58 {offsets = [32, 0], sizes = [8, 256], strides = [1, 1]} : vector<128x256xf32> to vector<8x256xf32>
    %64 = vector.extract_strided_slice %58 {offsets = [40, 0], sizes = [8, 256], strides = [1, 1]} : vector<128x256xf32> to vector<8x256xf32>
    %65 = vector.extract_strided_slice %58 {offsets = [48, 0], sizes = [8, 256], strides = [1, 1]} : vector<128x256xf32> to vector<8x256xf32>
    %66 = vector.extract_strided_slice %58 {offsets = [56, 0], sizes = [8, 256], strides = [1, 1]} : vector<128x256xf32> to vector<8x256xf32>
    %67 = vector.extract_strided_slice %58 {offsets = [64, 0], sizes = [8, 256], strides = [1, 1]} : vector<128x256xf32> to vector<8x256xf32>
    %68 = vector.extract_strided_slice %58 {offsets = [72, 0], sizes = [8, 256], strides = [1, 1]} : vector<128x256xf32> to vector<8x256xf32>
    %69 = vector.extract_strided_slice %58 {offsets = [80, 0], sizes = [8, 256], strides = [1, 1]} : vector<128x256xf32> to vector<8x256xf32>
    %70 = vector.extract_strided_slice %58 {offsets = [88, 0], sizes = [8, 256], strides = [1, 1]} : vector<128x256xf32> to vector<8x256xf32>
    %71 = vector.extract_strided_slice %58 {offsets = [96, 0], sizes = [8, 256], strides = [1, 1]} : vector<128x256xf32> to vector<8x256xf32>
    %72 = vector.extract_strided_slice %58 {offsets = [104, 0], sizes = [8, 256], strides = [1, 1]} : vector<128x256xf32> to vector<8x256xf32>
    %73 = vector.extract_strided_slice %58 {offsets = [112, 0], sizes = [8, 256], strides = [1, 1]} : vector<128x256xf32> to vector<8x256xf32>
    %74 = vector.extract_strided_slice %58 {offsets = [120, 0], sizes = [8, 256], strides = [1, 1]} : vector<128x256xf32> to vector<8x256xf32>
    %cst_7 = arith.constant 0.000000e+00 : f32
    %75 = vector.broadcast %cst_7 : f32 to vector<8x256xf32>
    %76 = tpu.concatenate %75, %59, %60 in 1 : vector<8x256xf32>, vector<8x256xf32>, vector<8x256xf32> -> vector<8x768xf32>
    %77 = tpu.concatenate %60, %61, %62 in 1 : vector<8x256xf32>, vector<8x256xf32>, vector<8x256xf32> -> vector<8x768xf32>
    %78 = tpu.concatenate %62, %63, %64 in 1 : vector<8x256xf32>, vector<8x256xf32>, vector<8x256xf32> -> vector<8x768xf32>
    %79 = tpu.concatenate %64, %65, %66 in 1 : vector<8x256xf32>, vector<8x256xf32>, vector<8x256xf32> -> vector<8x768xf32>
    %80 = tpu.concatenate %66, %67, %68 in 1 : vector<8x256xf32>, vector<8x256xf32>, vector<8x256xf32> -> vector<8x768xf32>
    %81 = tpu.concatenate %68, %69, %70 in 1 : vector<8x256xf32>, vector<8x256xf32>, vector<8x256xf32> -> vector<8x768xf32>
    %82 = tpu.concatenate %70, %71, %72 in 1 : vector<8x256xf32>, vector<8x256xf32>, vector<8x256xf32> -> vector<8x768xf32>
    %83 = tpu.concatenate %72, %73, %74 in 1 : vector<8x256xf32>, vector<8x256xf32>, vector<8x256xf32> -> vector<8x768xf32>
    %84 = tpu.concatenate %76, %77, %78, %79, %80, %81, %82, %83 in 0 : vector<8x768xf32>, vector<8x768xf32>, vector<8x768xf32>, vector<8x768xf32>, vector<8x768xf32>, vector<8x768xf32>, vector<8x768xf32>, vector<8x768xf32> -> vector<64x768xf32>
    %85 = arith.truncf %84 : vector<64x768xf32> to vector<64x768xbf16>
    %c0_8 = arith.constant 0 : index
    %c0_9 = arith.constant 0 : index
    %86 = vector.load %arg4[%c0_8, %c0_9] : memref<768x256xbf16, #tpu.memory_space<vmem>>, vector<768x256xbf16>
    %cst_10 = arith.constant dense<0.000000e+00> : vector<64x256xf32>
    %87 = tpu.matmul %85, %86, %cst_10 {dimension_numbers = #tpu.dot_dimension_numbers<[1], [0], [0], [1], [0, 0, 1, 1], [], []>} : vector<64x768xbf16>, vector<768x256xbf16>, vector<64x256xf32> -> vector<64x256xf32>
    %c0_11 = arith.constant 0 : index
    %c0_12 = arith.constant 0 : index
    %88 = vector.load %arg5[%c0_11, %c0_12] : memref<1x256xf32, #tpu.memory_space<vmem>>, vector<1x256xf32>
    %89 = vector.broadcast %88 : vector<1x256xf32> to vector<64x256xf32>
    %90 = arith.addf %87, %89 : vector<64x256xf32>
    %cst_13 = arith.constant 0.000000e+00 : f32
    %91 = vector.broadcast %cst_13 : f32 to vector<64x256xf32>
    %92 = arith.maximumf %90, %91 : vector<64x256xf32>
    %93 = vector.extract_strided_slice %92 {offsets = [0, 0], sizes = [8, 256], strides = [1, 1]} : vector<64x256xf32> to vector<8x256xf32>
    %94 = vector.extract_strided_slice %92 {offsets = [8, 0], sizes = [8, 256], strides = [1, 1]} : vector<64x256xf32> to vector<8x256xf32>
    %95 = vector.extract_strided_slice %92 {offsets = [16, 0], sizes = [8, 256], strides = [1, 1]} : vector<64x256xf32> to vector<8x256xf32>
    %96 = vector.extract_strided_slice %92 {offsets = [24, 0], sizes = [8, 256], strides = [1, 1]} : vector<64x256xf32> to vector<8x256xf32>
    %97 = vector.extract_strided_slice %92 {offsets = [32, 0], sizes = [8, 256], strides = [1, 1]} : vector<64x256xf32> to vector<8x256xf32>
    %98 = vector.extract_strided_slice %92 {offsets = [40, 0], sizes = [8, 256], strides = [1, 1]} : vector<64x256xf32> to vector<8x256xf32>
    %99 = vector.extract_strided_slice %92 {offsets = [48, 0], sizes = [8, 256], strides = [1, 1]} : vector<64x256xf32> to vector<8x256xf32>
    %100 = vector.extract_strided_slice %92 {offsets = [56, 0], sizes = [8, 256], strides = [1, 1]} : vector<64x256xf32> to vector<8x256xf32>
    %cst_14 = arith.constant 0.000000e+00 : f32
    %101 = vector.broadcast %cst_14 : f32 to vector<8x256xf32>
    %102 = tpu.concatenate %101, %93, %94 in 1 : vector<8x256xf32>, vector<8x256xf32>, vector<8x256xf32> -> vector<8x768xf32>
    %103 = tpu.concatenate %94, %95, %96 in 1 : vector<8x256xf32>, vector<8x256xf32>, vector<8x256xf32> -> vector<8x768xf32>
    %104 = tpu.concatenate %96, %97, %98 in 1 : vector<8x256xf32>, vector<8x256xf32>, vector<8x256xf32> -> vector<8x768xf32>
    %105 = tpu.concatenate %98, %99, %100 in 1 : vector<8x256xf32>, vector<8x256xf32>, vector<8x256xf32> -> vector<8x768xf32>
    %106 = tpu.concatenate %102, %103, %104, %105 in 0 : vector<8x768xf32>, vector<8x768xf32>, vector<8x768xf32>, vector<8x768xf32> -> vector<32x768xf32>
    %107 = arith.truncf %106 : vector<32x768xf32> to vector<32x768xbf16>
    %c0_15 = arith.constant 0 : index
    %c0_16 = arith.constant 0 : index
    %108 = vector.load %arg6[%c0_15, %c0_16] : memref<768x256xbf16, #tpu.memory_space<vmem>>, vector<768x256xbf16>
    %cst_17 = arith.constant dense<0.000000e+00> : vector<32x256xf32>
    %109 = tpu.matmul %107, %108, %cst_17 {dimension_numbers = #tpu.dot_dimension_numbers<[1], [0], [0], [1], [0, 0, 1, 1], [], []>} : vector<32x768xbf16>, vector<768x256xbf16>, vector<32x256xf32> -> vector<32x256xf32>
    %c0_18 = arith.constant 0 : index
    %c0_19 = arith.constant 0 : index
    %110 = vector.load %arg7[%c0_18, %c0_19] : memref<1x256xf32, #tpu.memory_space<vmem>>, vector<1x256xf32>
    %111 = vector.broadcast %110 : vector<1x256xf32> to vector<32x256xf32>
    %112 = arith.addf %109, %111 : vector<32x256xf32>
    %cst_20 = arith.constant 0.000000e+00 : f32
    %113 = vector.broadcast %cst_20 : f32 to vector<32x256xf32>
    %114 = arith.maximumf %112, %113 : vector<32x256xf32>
    %115 = vector.extract_strided_slice %114 {offsets = [0, 0], sizes = [8, 256], strides = [1, 1]} : vector<32x256xf32> to vector<8x256xf32>
    %116 = vector.extract_strided_slice %114 {offsets = [8, 0], sizes = [8, 256], strides = [1, 1]} : vector<32x256xf32> to vector<8x256xf32>
    %117 = vector.extract_strided_slice %114 {offsets = [16, 0], sizes = [8, 256], strides = [1, 1]} : vector<32x256xf32> to vector<8x256xf32>
    %118 = vector.extract_strided_slice %114 {offsets = [24, 0], sizes = [8, 256], strides = [1, 1]} : vector<32x256xf32> to vector<8x256xf32>
    %cst_21 = arith.constant 0.000000e+00 : f32
    %119 = vector.broadcast %cst_21 : f32 to vector<8x256xf32>
    %120 = tpu.concatenate %119, %115, %116 in 1 : vector<8x256xf32>, vector<8x256xf32>, vector<8x256xf32> -> vector<8x768xf32>
    %121 = tpu.concatenate %116, %117, %118 in 1 : vector<8x256xf32>, vector<8x256xf32>, vector<8x256xf32> -> vector<8x768xf32>
    %122 = tpu.concatenate %120, %121 in 0 : vector<8x768xf32>, vector<8x768xf32> -> vector<16x768xf32>
    %123 = arith.truncf %122 : vector<16x768xf32> to vector<16x768xbf16>
    %c0_22 = arith.constant 0 : index
    %c0_23 = arith.constant 0 : index
    %124 = vector.load %arg8[%c0_22, %c0_23] : memref<768x256xbf16, #tpu.memory_space<vmem>>, vector<768x256xbf16>
    %cst_24 = arith.constant dense<0.000000e+00> : vector<16x256xf32>
    %125 = tpu.matmul %123, %124, %cst_24 {dimension_numbers = #tpu.dot_dimension_numbers<[1], [0], [0], [1], [0, 0, 1, 1], [], []>} : vector<16x768xbf16>, vector<768x256xbf16>, vector<16x256xf32> -> vector<16x256xf32>
    %c0_25 = arith.constant 0 : index
    %c0_26 = arith.constant 0 : index
    %126 = vector.load %arg9[%c0_25, %c0_26] : memref<1x256xf32, #tpu.memory_space<vmem>>, vector<1x256xf32>
    %127 = vector.broadcast %126 : vector<1x256xf32> to vector<16x256xf32>
    %128 = arith.addf %125, %127 : vector<16x256xf32>
    %cst_27 = arith.constant 0.000000e+00 : f32
    %129 = vector.broadcast %cst_27 : f32 to vector<16x256xf32>
    %130 = arith.maximumf %128, %129 : vector<16x256xf32>
    %131 = vector.extract_strided_slice %130 {offsets = [0, 0], sizes = [8, 256], strides = [1, 1]} : vector<16x256xf32> to vector<8x256xf32>
    %132 = vector.extract_strided_slice %130 {offsets = [8, 0], sizes = [8, 256], strides = [1, 1]} : vector<16x256xf32> to vector<8x256xf32>
    %cst_28 = arith.constant 0.000000e+00 : f32
    %133 = vector.broadcast %cst_28 : f32 to vector<8x256xf32>
    %134 = tpu.concatenate %133, %131, %132 in 1 : vector<8x256xf32>, vector<8x256xf32>, vector<8x256xf32> -> vector<8x768xf32>
    %135 = arith.truncf %134 : vector<8x768xf32> to vector<8x768xbf16>
    %c0_29 = arith.constant 0 : index
    %c0_30 = arith.constant 0 : index
    %136 = vector.load %arg10[%c0_29, %c0_30] : memref<768x256xbf16, #tpu.memory_space<vmem>>, vector<768x256xbf16>
    %cst_31 = arith.constant dense<0.000000e+00> : vector<8x256xf32>
    %137 = tpu.matmul %135, %136, %cst_31 {dimension_numbers = #tpu.dot_dimension_numbers<[1], [0], [0], [1], [0, 0, 1, 1], [], []>} : vector<8x768xbf16>, vector<768x256xbf16>, vector<8x256xf32> -> vector<8x256xf32>
    %c0_32 = arith.constant 0 : index
    %c0_33 = arith.constant 0 : index
    %138 = vector.load %arg11[%c0_32, %c0_33] : memref<1x256xf32, #tpu.memory_space<vmem>>, vector<1x256xf32>
    %139 = vector.broadcast %138 : vector<1x256xf32> to vector<8x256xf32>
    %140 = arith.addf %137, %139 : vector<8x256xf32>
    %cst_34 = arith.constant 0.000000e+00 : f32
    %141 = vector.broadcast %cst_34 : f32 to vector<8x256xf32>
    %142 = arith.maximumf %140, %141 : vector<8x256xf32>
    %cst_35 = arith.constant 0.000000e+00 : f32
    %143 = vector.broadcast %cst_35 : f32 to vector<8x256xf32>
    %144 = arith.truncf %142 : vector<8x256xf32> to vector<8x256xbf16>
    %145 = tpu.concatenate %143, %142 in 1 : vector<8x256xf32>, vector<8x256xf32> -> vector<8x512xf32>
    %146 = arith.truncf %145 : vector<8x512xf32> to vector<8x512xbf16>
    %c0_36 = arith.constant 0 : index
    %c0_37 = arith.constant 0 : index
    %147 = vector.load %arg12[%c0_36, %c0_37] : memref<256x256xbf16, #tpu.memory_space<vmem>>, vector<256x256xbf16>
    %cst_38 = arith.constant dense<0.000000e+00> : vector<8x256xf32>
    %148 = tpu.matmul %144, %147, %cst_38 {dimension_numbers = #tpu.dot_dimension_numbers<[1], [0], [0], [1], [0, 0, 1, 1], [], []>} : vector<8x256xbf16>, vector<256x256xbf16>, vector<8x256xf32> -> vector<8x256xf32>
    %c0_39 = arith.constant 0 : index
    %c0_40 = arith.constant 0 : index
    %149 = vector.load %arg14[%c0_39, %c0_40] : memref<1x256xf32, #tpu.memory_space<vmem>>, vector<1x256xf32>
    %150 = vector.broadcast %149 : vector<1x256xf32> to vector<8x256xf32>
    %151 = arith.addf %148, %150 : vector<8x256xf32>
    %c0_41 = arith.constant 0 : index
    %c0_42 = arith.constant 0 : index
    %152 = vector.load %arg13[%c0_41, %c0_42] : memref<512x256xbf16, #tpu.memory_space<vmem>>, vector<512x256xbf16>
    %cst_43 = arith.constant dense<0.000000e+00> : vector<8x256xf32>
    %153 = tpu.matmul %146, %152, %cst_43 {dimension_numbers = #tpu.dot_dimension_numbers<[1], [0], [0], [1], [0, 0, 1, 1], [], []>} : vector<8x512xbf16>, vector<512x256xbf16>, vector<8x256xf32> -> vector<8x256xf32>
    %c0_44 = arith.constant 0 : index
    %c0_45 = arith.constant 0 : index
    %154 = vector.load %arg14[%c0_44, %c0_45] : memref<1x256xf32, #tpu.memory_space<vmem>>, vector<1x256xf32>
    %155 = vector.broadcast %154 : vector<1x256xf32> to vector<8x256xf32>
    %156 = arith.addf %153, %155 : vector<8x256xf32>
    %cst_46 = arith.constant 0.000000e+00 : f32
    %157 = vector.broadcast %cst_46 : f32 to vector<8x256xf32>
    %158 = arith.maximumf %151, %157 : vector<8x256xf32>
    %cst_47 = arith.constant 0.000000e+00 : f32
    %159 = vector.broadcast %cst_47 : f32 to vector<8x256xf32>
    %160 = arith.maximumf %156, %159 : vector<8x256xf32>
    %cst_48 = arith.constant 0.000000e+00 : f32
    %161 = vector.broadcast %cst_48 : f32 to vector<8x256xf32>
    %162 = tpu.concatenate %158, %160 in 0 : vector<8x256xf32>, vector<8x256xf32> -> vector<16x256xf32>
    %163 = tpu.concatenate %160, %161 in 0 : vector<8x256xf32>, vector<8x256xf32> -> vector<16x256xf32>
    %164 = arith.truncf %162 : vector<16x256xf32> to vector<16x256xbf16>
    %165 = tpu.concatenate %163, %162 in 1 : vector<16x256xf32>, vector<16x256xf32> -> vector<16x512xf32>
    %166 = arith.truncf %165 : vector<16x512xf32> to vector<16x512xbf16>
    %c0_49 = arith.constant 0 : index
    %c0_50 = arith.constant 0 : index
    %167 = vector.load %arg15[%c0_49, %c0_50] : memref<256x256xbf16, #tpu.memory_space<vmem>>, vector<256x256xbf16>
    %cst_51 = arith.constant dense<0.000000e+00> : vector<16x256xf32>
    %168 = tpu.matmul %164, %167, %cst_51 {dimension_numbers = #tpu.dot_dimension_numbers<[1], [0], [0], [1], [0, 0, 1, 1], [], []>} : vector<16x256xbf16>, vector<256x256xbf16>, vector<16x256xf32> -> vector<16x256xf32>
    %c0_52 = arith.constant 0 : index
    %c0_53 = arith.constant 0 : index
    %169 = vector.load %arg17[%c0_52, %c0_53] : memref<1x256xf32, #tpu.memory_space<vmem>>, vector<1x256xf32>
    %170 = vector.broadcast %169 : vector<1x256xf32> to vector<16x256xf32>
    %171 = arith.addf %168, %170 : vector<16x256xf32>
    %c0_54 = arith.constant 0 : index
    %c0_55 = arith.constant 0 : index
    %172 = vector.load %arg16[%c0_54, %c0_55] : memref<512x256xbf16, #tpu.memory_space<vmem>>, vector<512x256xbf16>
    %cst_56 = arith.constant dense<0.000000e+00> : vector<16x256xf32>
    %173 = tpu.matmul %166, %172, %cst_56 {dimension_numbers = #tpu.dot_dimension_numbers<[1], [0], [0], [1], [0, 0, 1, 1], [], []>} : vector<16x512xbf16>, vector<512x256xbf16>, vector<16x256xf32> -> vector<16x256xf32>
    %c0_57 = arith.constant 0 : index
    %c0_58 = arith.constant 0 : index
    %174 = vector.load %arg17[%c0_57, %c0_58] : memref<1x256xf32, #tpu.memory_space<vmem>>, vector<1x256xf32>
    %175 = vector.broadcast %174 : vector<1x256xf32> to vector<16x256xf32>
    %176 = arith.addf %173, %175 : vector<16x256xf32>
    %cst_59 = arith.constant 0.000000e+00 : f32
    %177 = vector.broadcast %cst_59 : f32 to vector<16x256xf32>
    %178 = arith.maximumf %171, %177 : vector<16x256xf32>
    %cst_60 = arith.constant 0.000000e+00 : f32
    %179 = vector.broadcast %cst_60 : f32 to vector<16x256xf32>
    %180 = arith.maximumf %176, %179 : vector<16x256xf32>
    %181 = vector.extract_strided_slice %178 {offsets = [0, 0], sizes = [8, 256], strides = [1, 1]} : vector<16x256xf32> to vector<8x256xf32>
    %182 = vector.extract_strided_slice %180 {offsets = [0, 0], sizes = [8, 256], strides = [1, 1]} : vector<16x256xf32> to vector<8x256xf32>
    %183 = vector.extract_strided_slice %178 {offsets = [8, 0], sizes = [8, 256], strides = [1, 1]} : vector<16x256xf32> to vector<8x256xf32>
    %184 = vector.extract_strided_slice %180 {offsets = [8, 0], sizes = [8, 256], strides = [1, 1]} : vector<16x256xf32> to vector<8x256xf32>
    %cst_61 = arith.constant 0.000000e+00 : f32
    %185 = vector.broadcast %cst_61 : f32 to vector<8x256xf32>
    %186 = tpu.concatenate %181, %182, %183, %184 in 0 : vector<8x256xf32>, vector<8x256xf32>, vector<8x256xf32>, vector<8x256xf32> -> vector<32x256xf32>
    %187 = tpu.concatenate %182, %183, %184, %185 in 0 : vector<8x256xf32>, vector<8x256xf32>, vector<8x256xf32>, vector<8x256xf32> -> vector<32x256xf32>
    %188 = arith.truncf %186 : vector<32x256xf32> to vector<32x256xbf16>
    %189 = tpu.concatenate %187, %186 in 1 : vector<32x256xf32>, vector<32x256xf32> -> vector<32x512xf32>
    %190 = arith.truncf %189 : vector<32x512xf32> to vector<32x512xbf16>
    %c0_62 = arith.constant 0 : index
    %c0_63 = arith.constant 0 : index
    %191 = vector.load %arg18[%c0_62, %c0_63] : memref<256x256xbf16, #tpu.memory_space<vmem>>, vector<256x256xbf16>
    %cst_64 = arith.constant dense<0.000000e+00> : vector<32x256xf32>
    %192 = tpu.matmul %188, %191, %cst_64 {dimension_numbers = #tpu.dot_dimension_numbers<[1], [0], [0], [1], [0, 0, 1, 1], [], []>} : vector<32x256xbf16>, vector<256x256xbf16>, vector<32x256xf32> -> vector<32x256xf32>
    %c0_65 = arith.constant 0 : index
    %c0_66 = arith.constant 0 : index
    %193 = vector.load %arg20[%c0_65, %c0_66] : memref<1x256xf32, #tpu.memory_space<vmem>>, vector<1x256xf32>
    %194 = vector.broadcast %193 : vector<1x256xf32> to vector<32x256xf32>
    %195 = arith.addf %192, %194 : vector<32x256xf32>
    %c0_67 = arith.constant 0 : index
    %c0_68 = arith.constant 0 : index
    %196 = vector.load %arg19[%c0_67, %c0_68] : memref<512x256xbf16, #tpu.memory_space<vmem>>, vector<512x256xbf16>
    %cst_69 = arith.constant dense<0.000000e+00> : vector<32x256xf32>
    %197 = tpu.matmul %190, %196, %cst_69 {dimension_numbers = #tpu.dot_dimension_numbers<[1], [0], [0], [1], [0, 0, 1, 1], [], []>} : vector<32x512xbf16>, vector<512x256xbf16>, vector<32x256xf32> -> vector<32x256xf32>
    %c0_70 = arith.constant 0 : index
    %c0_71 = arith.constant 0 : index
    %198 = vector.load %arg20[%c0_70, %c0_71] : memref<1x256xf32, #tpu.memory_space<vmem>>, vector<1x256xf32>
    %199 = vector.broadcast %198 : vector<1x256xf32> to vector<32x256xf32>
    %200 = arith.addf %197, %199 : vector<32x256xf32>
    %cst_72 = arith.constant 0.000000e+00 : f32
    %201 = vector.broadcast %cst_72 : f32 to vector<32x256xf32>
    %202 = arith.maximumf %195, %201 : vector<32x256xf32>
    %cst_73 = arith.constant 0.000000e+00 : f32
    %203 = vector.broadcast %cst_73 : f32 to vector<32x256xf32>
    %204 = arith.maximumf %200, %203 : vector<32x256xf32>
    %205 = vector.extract_strided_slice %202 {offsets = [0, 0], sizes = [8, 256], strides = [1, 1]} : vector<32x256xf32> to vector<8x256xf32>
    %206 = vector.extract_strided_slice %204 {offsets = [0, 0], sizes = [8, 256], strides = [1, 1]} : vector<32x256xf32> to vector<8x256xf32>
    %207 = vector.extract_strided_slice %202 {offsets = [8, 0], sizes = [8, 256], strides = [1, 1]} : vector<32x256xf32> to vector<8x256xf32>
    %208 = vector.extract_strided_slice %204 {offsets = [8, 0], sizes = [8, 256], strides = [1, 1]} : vector<32x256xf32> to vector<8x256xf32>
    %209 = vector.extract_strided_slice %202 {offsets = [16, 0], sizes = [8, 256], strides = [1, 1]} : vector<32x256xf32> to vector<8x256xf32>
    %210 = vector.extract_strided_slice %204 {offsets = [16, 0], sizes = [8, 256], strides = [1, 1]} : vector<32x256xf32> to vector<8x256xf32>
    %211 = vector.extract_strided_slice %202 {offsets = [24, 0], sizes = [8, 256], strides = [1, 1]} : vector<32x256xf32> to vector<8x256xf32>
    %212 = vector.extract_strided_slice %204 {offsets = [24, 0], sizes = [8, 256], strides = [1, 1]} : vector<32x256xf32> to vector<8x256xf32>
    %cst_74 = arith.constant 0.000000e+00 : f32
    %213 = vector.broadcast %cst_74 : f32 to vector<8x256xf32>
    %214 = tpu.concatenate %205, %206, %207, %208, %209, %210, %211, %212 in 0 : vector<8x256xf32>, vector<8x256xf32>, vector<8x256xf32>, vector<8x256xf32>, vector<8x256xf32>, vector<8x256xf32>, vector<8x256xf32>, vector<8x256xf32> -> vector<64x256xf32>
    %215 = tpu.concatenate %206, %207, %208, %209, %210, %211, %212, %213 in 0 : vector<8x256xf32>, vector<8x256xf32>, vector<8x256xf32>, vector<8x256xf32>, vector<8x256xf32>, vector<8x256xf32>, vector<8x256xf32>, vector<8x256xf32> -> vector<64x256xf32>
    %216 = arith.truncf %214 : vector<64x256xf32> to vector<64x256xbf16>
    %217 = tpu.concatenate %215, %214 in 1 : vector<64x256xf32>, vector<64x256xf32> -> vector<64x512xf32>
    %218 = arith.truncf %217 : vector<64x512xf32> to vector<64x512xbf16>
    %c0_75 = arith.constant 0 : index
    %c0_76 = arith.constant 0 : index
    %219 = vector.load %arg21[%c0_75, %c0_76] : memref<256x256xbf16, #tpu.memory_space<vmem>>, vector<256x256xbf16>
    %cst_77 = arith.constant dense<0.000000e+00> : vector<64x256xf32>
    %220 = tpu.matmul %216, %219, %cst_77 {dimension_numbers = #tpu.dot_dimension_numbers<[1], [0], [0], [1], [0, 0, 1, 1], [], []>} : vector<64x256xbf16>, vector<256x256xbf16>, vector<64x256xf32> -> vector<64x256xf32>
    %c0_78 = arith.constant 0 : index
    %c0_79 = arith.constant 0 : index
    %221 = vector.load %arg23[%c0_78, %c0_79] : memref<1x256xf32, #tpu.memory_space<vmem>>, vector<1x256xf32>
    %222 = vector.broadcast %221 : vector<1x256xf32> to vector<64x256xf32>
    %223 = arith.addf %220, %222 : vector<64x256xf32>
    %c0_80 = arith.constant 0 : index
    %c0_81 = arith.constant 0 : index
    %224 = vector.load %arg22[%c0_80, %c0_81] : memref<512x256xbf16, #tpu.memory_space<vmem>>, vector<512x256xbf16>
    %cst_82 = arith.constant dense<0.000000e+00> : vector<64x256xf32>
    %225 = tpu.matmul %218, %224, %cst_82 {dimension_numbers = #tpu.dot_dimension_numbers<[1], [0], [0], [1], [0, 0, 1, 1], [], []>} : vector<64x512xbf16>, vector<512x256xbf16>, vector<64x256xf32> -> vector<64x256xf32>
    %c0_83 = arith.constant 0 : index
    %c0_84 = arith.constant 0 : index
    %226 = vector.load %arg23[%c0_83, %c0_84] : memref<1x256xf32, #tpu.memory_space<vmem>>, vector<1x256xf32>
    %227 = vector.broadcast %226 : vector<1x256xf32> to vector<64x256xf32>
    %228 = arith.addf %225, %227 : vector<64x256xf32>
    %cst_85 = arith.constant 0.000000e+00 : f32
    %229 = vector.broadcast %cst_85 : f32 to vector<64x256xf32>
    %230 = arith.maximumf %223, %229 : vector<64x256xf32>
    %cst_86 = arith.constant 0.000000e+00 : f32
    %231 = vector.broadcast %cst_86 : f32 to vector<64x256xf32>
    %232 = arith.maximumf %228, %231 : vector<64x256xf32>
    %233 = vector.extract_strided_slice %230 {offsets = [0, 0], sizes = [8, 256], strides = [1, 1]} : vector<64x256xf32> to vector<8x256xf32>
    %234 = vector.extract_strided_slice %232 {offsets = [0, 0], sizes = [8, 256], strides = [1, 1]} : vector<64x256xf32> to vector<8x256xf32>
    %235 = vector.extract_strided_slice %230 {offsets = [8, 0], sizes = [8, 256], strides = [1, 1]} : vector<64x256xf32> to vector<8x256xf32>
    %236 = vector.extract_strided_slice %232 {offsets = [8, 0], sizes = [8, 256], strides = [1, 1]} : vector<64x256xf32> to vector<8x256xf32>
    %237 = vector.extract_strided_slice %230 {offsets = [16, 0], sizes = [8, 256], strides = [1, 1]} : vector<64x256xf32> to vector<8x256xf32>
    %238 = vector.extract_strided_slice %232 {offsets = [16, 0], sizes = [8, 256], strides = [1, 1]} : vector<64x256xf32> to vector<8x256xf32>
    %239 = vector.extract_strided_slice %230 {offsets = [24, 0], sizes = [8, 256], strides = [1, 1]} : vector<64x256xf32> to vector<8x256xf32>
    %240 = vector.extract_strided_slice %232 {offsets = [24, 0], sizes = [8, 256], strides = [1, 1]} : vector<64x256xf32> to vector<8x256xf32>
    %241 = vector.extract_strided_slice %230 {offsets = [32, 0], sizes = [8, 256], strides = [1, 1]} : vector<64x256xf32> to vector<8x256xf32>
    %242 = vector.extract_strided_slice %232 {offsets = [32, 0], sizes = [8, 256], strides = [1, 1]} : vector<64x256xf32> to vector<8x256xf32>
    %243 = vector.extract_strided_slice %230 {offsets = [40, 0], sizes = [8, 256], strides = [1, 1]} : vector<64x256xf32> to vector<8x256xf32>
    %244 = vector.extract_strided_slice %232 {offsets = [40, 0], sizes = [8, 256], strides = [1, 1]} : vector<64x256xf32> to vector<8x256xf32>
    %245 = vector.extract_strided_slice %230 {offsets = [48, 0], sizes = [8, 256], strides = [1, 1]} : vector<64x256xf32> to vector<8x256xf32>
    %246 = vector.extract_strided_slice %232 {offsets = [48, 0], sizes = [8, 256], strides = [1, 1]} : vector<64x256xf32> to vector<8x256xf32>
    %247 = vector.extract_strided_slice %230 {offsets = [56, 0], sizes = [8, 256], strides = [1, 1]} : vector<64x256xf32> to vector<8x256xf32>
    %248 = vector.extract_strided_slice %232 {offsets = [56, 0], sizes = [8, 256], strides = [1, 1]} : vector<64x256xf32> to vector<8x256xf32>
    %cst_87 = arith.constant 0.000000e+00 : f32
    %249 = vector.broadcast %cst_87 : f32 to vector<8x256xf32>
    %250 = tpu.concatenate %233, %234, %235, %236, %237, %238, %239, %240, %241, %242, %243, %244, %245, %246, %247, %248 in 0 : vector<8x256xf32>, vector<8x256xf32>, vector<8x256xf32>, vector<8x256xf32>, vector<8x256xf32>, vector<8x256xf32>, vector<8x256xf32>, vector<8x256xf32>, vector<8x256xf32>, vector<8x256xf32>, vector<8x256xf32>, vector<8x256xf32>, vector<8x256xf32>, vector<8x256xf32>, vector<8x256xf32>, vector<8x256xf32> -> vector<128x256xf32>
    %251 = tpu.concatenate %234, %235, %236, %237, %238, %239, %240, %241, %242, %243, %244, %245, %246, %247, %248, %249 in 0 : vector<8x256xf32>, vector<8x256xf32>, vector<8x256xf32>, vector<8x256xf32>, vector<8x256xf32>, vector<8x256xf32>, vector<8x256xf32>, vector<8x256xf32>, vector<8x256xf32>, vector<8x256xf32>, vector<8x256xf32>, vector<8x256xf32>, vector<8x256xf32>, vector<8x256xf32>, vector<8x256xf32>, vector<8x256xf32> -> vector<128x256xf32>
    %252 = arith.truncf %250 : vector<128x256xf32> to vector<128x256xbf16>
    %253 = tpu.concatenate %251, %250 in 1 : vector<128x256xf32>, vector<128x256xf32> -> vector<128x512xf32>
    %254 = arith.truncf %253 : vector<128x512xf32> to vector<128x512xbf16>
    %c0_88 = arith.constant 0 : index
    %c0_89 = arith.constant 0 : index
    %255 = vector.load %arg24[%c0_88, %c0_89] : memref<256x128xbf16, #tpu.memory_space<vmem>>, vector<256x128xbf16>
    %cst_90 = arith.constant dense<0.000000e+00> : vector<128x128xf32>
    %256 = tpu.matmul %252, %255, %cst_90 {dimension_numbers = #tpu.dot_dimension_numbers<[1], [0], [0], [1], [0, 0, 1, 1], [], []>} : vector<128x256xbf16>, vector<256x128xbf16>, vector<128x128xf32> -> vector<128x128xf32>
    %c0_91 = arith.constant 0 : index
    %c0_92 = arith.constant 0 : index
    %257 = vector.load %arg26[%c0_91, %c0_92] : memref<1x128xf32, #tpu.memory_space<vmem>>, vector<1x128xf32>
    %258 = vector.broadcast %257 : vector<1x128xf32> to vector<128x128xf32>
    %259 = arith.addf %256, %258 : vector<128x128xf32>
    %c0_93 = arith.constant 0 : index
    %c0_94 = arith.constant 0 : index
    %260 = vector.load %arg25[%c0_93, %c0_94] : memref<512x128xbf16, #tpu.memory_space<vmem>>, vector<512x128xbf16>
    %cst_95 = arith.constant dense<0.000000e+00> : vector<128x128xf32>
    %261 = tpu.matmul %254, %260, %cst_95 {dimension_numbers = #tpu.dot_dimension_numbers<[1], [0], [0], [1], [0, 0, 1, 1], [], []>} : vector<128x512xbf16>, vector<512x128xbf16>, vector<128x128xf32> -> vector<128x128xf32>
    %c0_96 = arith.constant 0 : index
    %c0_97 = arith.constant 0 : index
    %262 = vector.load %arg26[%c0_96, %c0_97] : memref<1x128xf32, #tpu.memory_space<vmem>>, vector<1x128xf32>
    %263 = vector.broadcast %262 : vector<1x128xf32> to vector<128x128xf32>
    %264 = arith.addf %261, %263 : vector<128x128xf32>
    %265 = arith.negf %259 : vector<128x128xf32>
    %266 = math.exp %265 : vector<128x128xf32>
    %cst_98 = arith.constant 1.000000e+00 : f32
    %267 = vector.broadcast %cst_98 : f32 to vector<128x128xf32>
    %268 = arith.addf %267, %266 : vector<128x128xf32>
    %269 = arith.divf %267, %268 : vector<128x128xf32>
    %270 = arith.negf %264 : vector<128x128xf32>
    %271 = math.exp %270 : vector<128x128xf32>
    %cst_99 = arith.constant 1.000000e+00 : f32
    %272 = vector.broadcast %cst_99 : f32 to vector<128x128xf32>
    %273 = arith.addf %272, %271 : vector<128x128xf32>
    %274 = arith.divf %272, %273 : vector<128x128xf32>
    %275 = tpu.concatenate %269, %274 in 0 : vector<128x128xf32>, vector<128x128xf32> -> vector<256x128xf32>
    %c0_100 = arith.constant 0 : index
    %c0_101 = arith.constant 0 : index
    %276 = vector.load %arg27[%c0_100, %c0_101] : memref<256x128xf32, #tpu.memory_space<vmem>>, vector<256x128xf32>
    tpu.vector_store %arg27[%c0_100, %c0_101], %275 {strides = array<i32>} : memref<256x128xf32, #tpu.memory_space<vmem>>, vector<256x128xf32>,
    return
  }
  func.func @transform_0(%arg0: i32) -> (i32, i32) {
    %c0_i32 = arith.constant 0 : i32
    %c0_i32_0 = arith.constant 0 : i32
    return %arg0, %c0_i32 : i32, i32
  }
  func.func @transform_1(%arg0: i32) -> (i32, i32) {
    %c0_i32 = arith.constant 0 : i32
    %c0_i32_0 = arith.constant 0 : i32
    %c0_i32_1 = arith.constant 0 : i32
    return %c0_i32, %c0_i32_0 : i32, i32
  }
  func.func @transform_2(%arg0: i32) -> (i32, i32) {
    %c0_i32 = arith.constant 0 : i32
    %c0_i32_0 = arith.constant 0 : i32
    %c0_i32_1 = arith.constant 0 : i32
    return %c0_i32, %c0_i32_0 : i32, i32
  }
  func.func @transform_3(%arg0: i32) -> (i32, i32) {
    %c0_i32 = arith.constant 0 : i32
    %c0_i32_0 = arith.constant 0 : i32
    %c0_i32_1 = arith.constant 0 : i32
    return %c0_i32, %c0_i32_0 : i32, i32
  }
  func.func @transform_4(%arg0: i32) -> (i32, i32) {
    %c0_i32 = arith.constant 0 : i32
    %c0_i32_0 = arith.constant 0 : i32
    %c0_i32_1 = arith.constant 0 : i32
    return %c0_i32, %c0_i32_0 : i32, i32
  }
  func.func @transform_5(%arg0: i32) -> (i32, i32) {
    %c0_i32 = arith.constant 0 : i32
    %c0_i32_0 = arith.constant 0 : i32
    %c0_i32_1 = arith.constant 0 : i32
    return %c0_i32, %c0_i32_0 : i32, i32
  }
  func.func @transform_6(%arg0: i32) -> (i32, i32) {
    %c0_i32 = arith.constant 0 : i32
    %c0_i32_0 = arith.constant 0 : i32
    %c0_i32_1 = arith.constant 0 : i32
    return %c0_i32, %c0_i32_0 : i32, i32
  }
  func.func @transform_7(%arg0: i32) -> (i32, i32) {
    %c0_i32 = arith.constant 0 : i32
    %c0_i32_0 = arith.constant 0 : i32
    %c0_i32_1 = arith.constant 0 : i32
    return %c0_i32, %c0_i32_0 : i32, i32
  }
  func.func @transform_8(%arg0: i32) -> (i32, i32) {
    %c0_i32 = arith.constant 0 : i32
    %c0_i32_0 = arith.constant 0 : i32
    %c0_i32_1 = arith.constant 0 : i32
    return %c0_i32, %c0_i32_0 : i32, i32
  }
  func.func @transform_9(%arg0: i32) -> (i32, i32) {
    %c0_i32 = arith.constant 0 : i32
    %c0_i32_0 = arith.constant 0 : i32
    %c0_i32_1 = arith.constant 0 : i32
    return %c0_i32, %c0_i32_0 : i32, i32
  }
  func.func @transform_10(%arg0: i32) -> (i32, i32) {
    %c0_i32 = arith.constant 0 : i32
    %c0_i32_0 = arith.constant 0 : i32
    %c0_i32_1 = arith.constant 0 : i32
    return %c0_i32, %c0_i32_0 : i32, i32
  }
  func.func @transform_11(%arg0: i32) -> (i32, i32) {
    %c0_i32 = arith.constant 0 : i32
    %c0_i32_0 = arith.constant 0 : i32
    %c0_i32_1 = arith.constant 0 : i32
    return %c0_i32, %c0_i32_0 : i32, i32
  }
  func.func @transform_12(%arg0: i32) -> (i32, i32) {
    %c0_i32 = arith.constant 0 : i32
    %c0_i32_0 = arith.constant 0 : i32
    %c0_i32_1 = arith.constant 0 : i32
    return %c0_i32, %c0_i32_0 : i32, i32
  }
  func.func @transform_13(%arg0: i32) -> (i32, i32) {
    %c0_i32 = arith.constant 0 : i32
    %c0_i32_0 = arith.constant 0 : i32
    %c0_i32_1 = arith.constant 0 : i32
    return %c0_i32, %c0_i32_0 : i32, i32
  }
  func.func @transform_14(%arg0: i32) -> (i32, i32) {
    %c0_i32 = arith.constant 0 : i32
    %c0_i32_0 = arith.constant 0 : i32
    %c0_i32_1 = arith.constant 0 : i32
    return %c0_i32, %c0_i32_0 : i32, i32
  }
  func.func @transform_15(%arg0: i32) -> (i32, i32) {
    %c0_i32 = arith.constant 0 : i32
    %c0_i32_0 = arith.constant 0 : i32
    %c0_i32_1 = arith.constant 0 : i32
    return %c0_i32, %c0_i32_0 : i32, i32
  }
  func.func @transform_16(%arg0: i32) -> (i32, i32) {
    %c0_i32 = arith.constant 0 : i32
    %c0_i32_0 = arith.constant 0 : i32
    %c0_i32_1 = arith.constant 0 : i32
    return %c0_i32, %c0_i32_0 : i32, i32
  }
  func.func @transform_17(%arg0: i32) -> (i32, i32) {
    %c0_i32 = arith.constant 0 : i32
    %c0_i32_0 = arith.constant 0 : i32
    %c0_i32_1 = arith.constant 0 : i32
    return %c0_i32, %c0_i32_0 : i32, i32
  }
  func.func @transform_18(%arg0: i32) -> (i32, i32) {
    %c0_i32 = arith.constant 0 : i32
    %c0_i32_0 = arith.constant 0 : i32
    %c0_i32_1 = arith.constant 0 : i32
    return %c0_i32, %c0_i32_0 : i32, i32
  }
  func.func @transform_19(%arg0: i32) -> (i32, i32) {
    %c0_i32 = arith.constant 0 : i32
    %c0_i32_0 = arith.constant 0 : i32
    %c0_i32_1 = arith.constant 0 : i32
    return %c0_i32, %c0_i32_0 : i32, i32
  }
  func.func @transform_20(%arg0: i32) -> (i32, i32) {
    %c0_i32 = arith.constant 0 : i32
    %c0_i32_0 = arith.constant 0 : i32
    %c0_i32_1 = arith.constant 0 : i32
    return %c0_i32, %c0_i32_0 : i32, i32
  }
  func.func @transform_21(%arg0: i32) -> (i32, i32) {
    %c0_i32 = arith.constant 0 : i32
    %c0_i32_0 = arith.constant 0 : i32
    %c0_i32_1 = arith.constant 0 : i32
    return %c0_i32, %c0_i32_0 : i32, i32
  }
  func.func @transform_22(%arg0: i32) -> (i32, i32) {
    %c0_i32 = arith.constant 0 : i32
    %c0_i32_0 = arith.constant 0 : i32
    %c0_i32_1 = arith.constant 0 : i32
    return %c0_i32, %c0_i32_0 : i32, i32
  }
  func.func @transform_23(%arg0: i32) -> (i32, i32) {
    %c0_i32 = arith.constant 0 : i32
    %c0_i32_0 = arith.constant 0 : i32
    %c0_i32_1 = arith.constant 0 : i32
    return %c0_i32, %c0_i32_0 : i32, i32
  }
  func.func @transform_24(%arg0: i32) -> (i32, i32) {
    %c0_i32 = arith.constant 0 : i32
    %c0_i32_0 = arith.constant 0 : i32
    %c0_i32_1 = arith.constant 0 : i32
    return %c0_i32, %c0_i32_0 : i32, i32
  }
  func.func @transform_25(%arg0: i32) -> (i32, i32) {
    %c0_i32 = arith.constant 0 : i32
    %c0_i32_0 = arith.constant 0 : i32
    %c0_i32_1 = arith.constant 0 : i32
    return %c0_i32, %c0_i32_0 : i32, i32
  }
  func.func @transform_26(%arg0: i32) -> (i32, i32) {
    %c0_i32 = arith.constant 0 : i32
    %c0_i32_0 = arith.constant 0 : i32
    return %arg0, %c0_i32 : i32, i32
  }
}

</mosaic_0001>

<llo_original>
// kernel: forward.1
$region0: #{forward.1}
  #allocation0 [shape = 'u32[]', space=smem, size = 0x4, offset = 0x4, fixed_abs, tag = 'smem constant byte address 0x4 - core index']
  #allocation1 [shape = 'u32[144,128]{1,0:T(1,128)}', space=vmem, size = 0x12000, scoped, tag = 'internal scratch']
  %s0 = inlined_call_operand.vmem [shape: f32[512,128], index: 0, kind: input, shape index: {}]
  %s1 = inlined_call_operand.vmem [shape: bf16[384,256], index: 1, kind: input, shape index: {}]
  %s2 = inlined_call_operand.vmem [shape: f32[1,256], index: 2, kind: input, shape index: {}]
  %s3 = inlined_call_operand.vmem [shape: bf16[768,256], index: 3, kind: input, shape index: {}]
  %s4 = inlined_call_operand.vmem [shape: f32[1,256], index: 4, kind: input, shape index: {}]
  %s5 = inlined_call_operand.vmem [shape: bf16[768,256], index: 5, kind: input, shape index: {}]
  %s6 = inlined_call_operand.vmem [shape: f32[1,256], index: 6, kind: input, shape index: {}]
  %s7 = inlined_call_operand.vmem [shape: bf16[768,256], index: 7, kind: input, shape index: {}]
  %s8 = inlined_call_operand.vmem [shape: f32[1,256], index: 8, kind: input, shape index: {}]
  %s9 = inlined_call_operand.vmem [shape: bf16[768,256], index: 9, kind: input, shape index: {}]
  %s10 = inlined_call_operand.vmem [shape: f32[1,256], index: 10, kind: input, shape index: {}]
  %s11 = inlined_call_operand.vmem [shape: bf16[256,256], index: 11, kind: input, shape index: {}]
  %s12 = inlined_call_operand.vmem [shape: bf16[512,256], index: 12, kind: input, shape index: {}]
  %s13 = inlined_call_operand.vmem [shape: f32[1,256], index: 13, kind: input, shape index: {}]
  %s14 = inlined_call_operand.vmem [shape: bf16[256,256], index: 14, kind: input, shape index: {}]
  %s15 = inlined_call_operand.vmem [shape: bf16[512,256], index: 15, kind: input, shape index: {}]
  %s16 = inlined_call_operand.vmem [shape: f32[1,256], index: 16, kind: input, shape index: {}]
  %s17 = inlined_call_operand.vmem [shape: bf16[256,256], index: 17, kind: input, shape index: {}]
  %s18 = inlined_call_operand.vmem [shape: bf16[512,256], index: 18, kind: input, shape index: {}]
  %s19 = inlined_call_operand.vmem [shape: f32[1,256], index: 19, kind: input, shape index: {}]
  %s20 = inlined_call_operand.vmem [shape: bf16[256,256], index: 20, kind: input, shape index: {}]
  %s21 = inlined_call_operand.vmem [shape: bf16[512,256], index: 21, kind: input, shape index: {}]
  %s22 = inlined_call_operand.vmem [shape: f32[1,256], index: 22, kind: input, shape index: {}]
  %s23 = inlined_call_operand.vmem [shape: bf16[256,128], index: 23, kind: input, shape index: {}]
  %s24 = inlined_call_operand.vmem [shape: bf16[512,128], index: 24, kind: input, shape index: {}]
  %s25 = inlined_call_operand.vmem [shape: f32[1,128], index: 25, kind: input, shape index: {}]
  %s26 = inlined_call_operand.vmem [shape: f32[512,128], index: 26, kind: output, shape index: {}]
  %s27 = sld [smem:[#allocation0]]
  $region137: #{forward.1} parent=0
    _
  %s29 = ssub.s32 1, %s27
  %s30 = scalar_select 0, %s29, %s27
  loop: start=0, step=1, limit=4
  $region2: #{forward.1} parent=0 // loop_pre_header
    _
  $region3: #{forward.1} parent=0 // loop_header
    %s32 = sphi 0, %s36
    %p33 = scmp.ge.s32.totalorder %s32, 4
    %s42 = sphi 0, %s44
    %s45 = sphi 0, %s42
    %s46 = sphi 0, %s45
    %s62 = sphi 0, %s46
    %s66 = sphi 0, %s66
    %s68 = sphi 0, %s66
    %s69 = sphi 0, %s68
    %s83 = sphi 0, %s69
    %s87 = sphi 0, %s87
    %s89 = sphi 0, %s87
    %s90 = sphi 0, %s89
    %s104 = sphi 0, %s90
    %s108 = sphi 0, %s108
    %s110 = sphi 0, %s108
    %s111 = sphi 0, %s110
    %s125 = sphi 0, %s111
    %s129 = sphi 0, %s129
    %s131 = sphi 0, %s129
    %s132 = sphi 0, %s131
    %s146 = sphi 0, %s132
    %s150 = sphi 0, %s150
    %s152 = sphi 0, %s150
    %s153 = sphi 0, %s152
    %s167 = sphi 0, %s153
    %s171 = sphi 0, %s171
    %s173 = sphi 0, %s171
    %s174 = sphi 0, %s173
    %s188 = sphi 0, %s174
    %s192 = sphi 0, %s192
    %s194 = sphi 0, %s192
    %s195 = sphi 0, %s194
    %s209 = sphi 0, %s195
    %s213 = sphi 0, %s213
    %s215 = sphi 0, %s213
    %s216 = sphi 0, %s215
    %s230 = sphi 0, %s216
    %s234 = sphi 0, %s234
    %s236 = sphi 0, %s234
    %s237 = sphi 0, %s236
    %s251 = sphi 0, %s237
    %s255 = sphi 0, %s255
    %s257 = sphi 0, %s255
    %s258 = sphi 0, %s257
    %s272 = sphi 0, %s258
    %s276 = sphi 0, %s276
    %s278 = sphi 0, %s276
    %s279 = sphi 0, %s278
    %s293 = sphi 0, %s279
    %s297 = sphi 0, %s297
    %s299 = sphi 0, %s297
    %s300 = sphi 0, %s299
    %s314 = sphi 0, %s300
    %s318 = sphi 0, %s318
    %s320 = sphi 0, %s318
    %s321 = sphi 0, %s320
    %s335 = sphi 0, %s321
    %s339 = sphi 0, %s339
    %s341 = sphi 0, %s339
    %s342 = sphi 0, %s341
    %s356 = sphi 0, %s342
    %s360 = sphi 0, %s360
    %s362 = sphi 0, %s360
    %s363 = sphi 0, %s362
    %s377 = sphi 0, %s363
    %s381 = sphi 0, %s381
    %s383 = sphi 0, %s381
    %s384 = sphi 0, %s383
    %s398 = sphi 0, %s384
    %s402 = sphi 0, %s402
    %s404 = sphi 0, %s402
    %s405 = sphi 0, %s404
    %s419 = sphi 0, %s405
    %s423 = sphi 0, %s423
    %s425 = sphi 0, %s423
    %s426 = sphi 0, %s425
    %s440 = sphi 0, %s426
    %s444 = sphi 0, %s444
    %s446 = sphi 0, %s444
    %s447 = sphi 0, %s446
    %s461 = sphi 0, %s447
    %s465 = sphi 0, %s465
    %s467 = sphi 0, %s465
    %s468 = sphi 0, %s467
    %s482 = sphi 0, %s468
    %s486 = sphi 0, %s486
    %s488 = sphi 0, %s486
    %s489 = sphi 0, %s488
    %s503 = sphi 0, %s489
    %s507 = sphi 0, %s507
    %s509 = sphi 0, %s507
    %s510 = sphi 0, %s509
    %s524 = sphi 0, %s510
    %s528 = sphi 0, %s528
    %s530 = sphi 0, %s528
    %s531 = sphi 0, %s530
    %s545 = sphi 0, %s531
    %s549 = sphi 0, %s549
    %s551 = sphi 0, %s549
    %s552 = sphi 0, %s551
    %s566 = sphi 0, %s552
    %s570 = sphi 0, %s570
    %s572 = sphi 0, %s570
    %s573 = sphi 0, %s572
    %s587 = sphi 0, %s573
    %s593 = sphi 0, %s595
    %s596 = sphi 0, %s593
    %s597 = sphi 0, %s596
    %s613 = sphi 0, %s597
  $region4: #{forward.1} parent=0 // loop_header_branch
    %35 = sbr.rel (%p33) target = $region8
  $region5: #{forward.1} parent=0 // loop_body
    %s37 = ssub.s32 %s32, 1
    %s38 = ssub.s32 %s32, 2
    %s39 = sadd.s32 %s32, 1
    %s40 = ssub.s32 %s32, %s39
    %p41 = scmp.eq.s32.totalorder %s40, 0
    %s43 = sadd.s32 %s42, 1
    %s44 = scalar_select %p41, %s42, %s43
    %p47 = pneg %p41
    %p48 = scmp.eq.s32.totalorder %s32, 1
    %p49 = por %p47, %p48
    %p50 = scmp.ne.s32.totalorder %s42, %s45
    %p51 = scmp.eq.s32.totalorder %s32, 0
    %p52 = por %p50, %p51
    %p53 = scmp.ne.s32.totalorder %s42, %s45
    %p54 = scmp.eq.s32.totalorder %s37, 1
    %p55 = por %p53, %p54
    %p56 = scmp.ne.s32.totalorder %s45, %s46
    %p57 = scmp.eq.s32.totalorder %s37, 0
    %p58 = por %p56, %p57
    %p59 = scmp.ne.s32.totalorder %s45, %s46
    %p60 = scmp.eq.s32.totalorder %s38, 1
    %p61 = por %p59, %p60
    %p63 = scmp.ne.s32.totalorder %s46, %s62
    %p64 = scmp.eq.s32.totalorder %s38, 0
    %p65 = por %p63, %p64
    %s67 = sadd.s32 %s66, 1
    %p70 = scmp.eq.s32.totalorder %s32, 1
    %p71 = scmp.ne.s32.totalorder %s66, %s68
    %p72 = scmp.eq.s32.totalorder %s32, 0
    %p73 = por %p71, %p72
    %p74 = scmp.ne.s32.totalorder %s66, %s68
    %p75 = scmp.eq.s32.totalorder %s37, 1
    %p76 = por %p74, %p75
    %p77 = scmp.ne.s32.totalorder %s68, %s69
    %p78 = scmp.eq.s32.totalorder %s37, 0
    %p79 = por %p77, %p78
    %p80 = scmp.ne.s32.totalorder %s68, %s69
    %p81 = scmp.eq.s32.totalorder %s38, 1
    %p82 = por %p80, %p81
    %p84 = scmp.ne.s32.totalorder %s69, %s83
    %p85 = scmp.eq.s32.totalorder %s38, 0
    %p86 = por %p84, %p85
    %s88 = sadd.s32 %s87, 1
    %p91 = scmp.eq.s32.totalorder %s32, 1
    %p92 = scmp.ne.s32.totalorder %s87, %s89
    %p93 = scmp.eq.s32.totalorder %s32, 0
    %p94 = por %p92, %p93
    %p95 = scmp.ne.s32.totalorder %s87, %s89
    %p96 = scmp.eq.s32.totalorder %s37, 1
    %p97 = por %p95, %p96
    %p98 = scmp.ne.s32.totalorder %s89, %s90
    %p99 = scmp.eq.s32.totalorder %s37, 0
    %p100 = por %p98, %p99
    %p101 = scmp.ne.s32.totalorder %s89, %s90
    %p102 = scmp.eq.s32.totalorder %s38, 1
    %p103 = por %p101, %p102
    %p105 = scmp.ne.s32.totalorder %s90, %s104
    %p106 = scmp.eq.s32.totalorder %s38, 0
    %p107 = por %p105, %p106
    %s109 = sadd.s32 %s108, 1
    %p112 = scmp.eq.s32.totalorder %s32, 1
    %p113 = scmp.ne.s32.totalorder %s108, %s110
    %p114 = scmp.eq.s32.totalorder %s32, 0
    %p115 = por %p113, %p114
    %p116 = scmp.ne.s32.totalorder %s108, %s110
    %p117 = scmp.eq.s32.totalorder %s37, 1
    %p118 = por %p116, %p117
    %p119 = scmp.ne.s32.totalorder %s110, %s111
    %p120 = scmp.eq.s32.totalorder %s37, 0
    %p121 = por %p119, %p120
    %p122 = scmp.ne.s32.totalorder %s110, %s111
    %p123 = scmp.eq.s32.totalorder %s38, 1
    %p124 = por %p122, %p123
    %p126 = scmp.ne.s32.totalorder %s111, %s125
    %p127 = scmp.eq.s32.totalorder %s38, 0
    %p128 = por %p126, %p127
    %s130 = sadd.s32 %s129, 1
    %p133 = scmp.eq.s32.totalorder %s32, 1
    %p134 = scmp.ne.s32.totalorder %s129, %s131
    %p135 = scmp.eq.s32.totalorder %s32, 0
    %p136 = por %p134, %p135
    %p137 = scmp.ne.s32.totalorder %s129, %s131
    %p138 = scmp.eq.s32.totalorder %s37, 1
    %p139 = por %p137, %p138
    %p140 = scmp.ne.s32.totalorder %s131, %s132
    %p141 = scmp.eq.s32.totalorder %s37, 0
    %p142 = por %p140, %p141
    %p143 = scmp.ne.s32.totalorder %s131, %s132
    %p144 = scmp.eq.s32.totalorder %s38, 1
    %p145 = por %p143, %p144
    %p147 = scmp.ne.s32.totalorder %s132, %s146
    %p148 = scmp.eq.s32.totalorder %s38, 0
    %p149 = por %p147, %p148
    %s151 = sadd.s32 %s150, 1
    %p154 = scmp.eq.s32.totalorder %s32, 1
    %p155 = scmp.ne.s32.totalorder %s150, %s152
    %p156 = scmp.eq.s32.totalorder %s32, 0
    %p157 = por %p155, %p156
    %p158 = scmp.ne.s32.totalorder %s150, %s152
    %p159 = scmp.eq.s32.totalorder %s37, 1
    %p160 = por %p158, %p159
    %p161 = scmp.ne.s32.totalorder %s152, %s153
    %p162 = scmp.eq.s32.totalorder %s37, 0
    %p163 = por %p161, %p162
    %p164 = scmp.ne.s32.totalorder %s152, %s153
    %p165 = scmp.eq.s32.totalorder %s38, 1
    %p166 = por %p164, %p165
    %p168 = scmp.ne.s32.totalorder %s153, %s167
    %p169 = scmp.eq.s32.totalorder %s38, 0
    %p170 = por %p168, %p169
    %s172 = sadd.s32 %s171, 1
    %p175 = scmp.eq.s32.totalorder %s32, 1
    %p176 = scmp.ne.s32.totalorder %s171, %s173
    %p177 = scmp.eq.s32.totalorder %s32, 0
    %p178 = por %p176, %p177
    %p179 = scmp.ne.s32.totalorder %s171, %s173
    %p180 = scmp.eq.s32.totalorder %s37, 1
    %p181 = por %p179, %p180
    %p182 = scmp.ne.s32.totalorder %s173, %s174
    %p183 = scmp.eq.s32.totalorder %s37, 0
    %p184 = por %p182, %p183
    %p185 = scmp.ne.s32.totalorder %s173, %s174
    %p186 = scmp.eq.s32.totalorder %s38, 1
    %p187 = por %p185, %p186
    %p189 = scmp.ne.s32.totalorder %s174, %s188
    %p190 = scmp.eq.s32.totalorder %s38, 0
    %p191 = por %p189, %p190
    %s193 = sadd.s32 %s192, 1
    %p196 = scmp.eq.s32.totalorder %s32, 1
    %p197 = scmp.ne.s32.totalorder %s192, %s194
    %p198 = scmp.eq.s32.totalorder %s32, 0
    %p199 = por %p197, %p198
    %p200 = scmp.ne.s32.totalorder %s192, %s194
    %p201 = scmp.eq.s32.totalorder %s37, 1
    %p202 = por %p200, %p201
    %p203 = scmp.ne.s32.totalorder %s194, %s195
    %p204 = scmp.eq.s32.totalorder %s37, 0
    %p205 = por %p203, %p204
    %p206 = scmp.ne.s32.totalorder %s194, %s195
    %p207 = scmp.eq.s32.totalorder %s38, 1
    %p208 = por %p206, %p207
    %p210 = scmp.ne.s32.totalorder %s195, %s209
    %p211 = scmp.eq.s32.totalorder %s38, 0
    %p212 = por %p210, %p211
    %s214 = sadd.s32 %s213, 1
    %p217 = scmp.eq.s32.totalorder %s32, 1
    %p218 = scmp.ne.s32.totalorder %s213, %s215
    %p219 = scmp.eq.s32.totalorder %s32, 0
    %p220 = por %p218, %p219
    %p221 = scmp.ne.s32.totalorder %s213, %s215
    %p222 = scmp.eq.s32.totalorder %s37, 1
    %p223 = por %p221, %p222
    %p224 = scmp.ne.s32.totalorder %s215, %s216
    %p225 = scmp.eq.s32.totalorder %s37, 0
    %p226 = por %p224, %p225
    %p227 = scmp.ne.s32.totalorder %s215, %s216
    %p228 = scmp.eq.s32.totalorder %s38, 1
    %p229 = por %p227, %p228
    %p231 = scmp.ne.s32.totalorder %s216, %s230
    %p232 = scmp.eq.s32.totalorder %s38, 0
    %p233 = por %p231, %p232
    %s235 = sadd.s32 %s234, 1
    %p238 = scmp.eq.s32.totalorder %s32, 1
    %p239 = scmp.ne.s32.totalorder %s234, %s236
    %p240 = scmp.eq.s32.totalorder %s32, 0
    %p241 = por %p239, %p240
    %p242 = scmp.ne.s32.totalorder %s234, %s236
    %p243 = scmp.eq.s32.totalorder %s37, 1
    %p244 = por %p242, %p243
    %p245 = scmp.ne.s32.totalorder %s236, %s237
    %p246 = scmp.eq.s32.totalorder %s37, 0
    %p247 = por %p245, %p246
    %p248 = scmp.ne.s32.totalorder %s236, %s237
    %p249 = scmp.eq.s32.totalorder %s38, 1
    %p250 = por %p248, %p249
    %p252 = scmp.ne.s32.totalorder %s237, %s251
    %p253 = scmp.eq.s32.totalorder %s38, 0
    %p254 = por %p252, %p253
    %s256 = sadd.s32 %s255, 1
    %p259 = scmp.eq.s32.totalorder %s32, 1
    %p260 = scmp.ne.s32.totalorder %s255, %s257
    %p261 = scmp.eq.s32.totalorder %s32, 0
    %p262 = por %p260, %p261
    %p263 = scmp.ne.s32.totalorder %s255, %s257
    %p264 = scmp.eq.s32.totalorder %s37, 1
    %p265 = por %p263, %p264
    %p266 = scmp.ne.s32.totalorder %s257, %s258
    %p267 = scmp.eq.s32.totalorder %s37, 0
    %p268 = por %p266, %p267
    %p269 = scmp.ne.s32.totalorder %s257, %s258
    %p270 = scmp.eq.s32.totalorder %s38, 1
    %p271 = por %p269, %p270
    %p273 = scmp.ne.s32.totalorder %s258, %s272
    %p274 = scmp.eq.s32.totalorder %s38, 0
    %p275 = por %p273, %p274
    %s277 = sadd.s32 %s276, 1
    %p280 = scmp.eq.s32.totalorder %s32, 1
    %p281 = scmp.ne.s32.totalorder %s276, %s278
    %p282 = scmp.eq.s32.totalorder %s32, 0
    %p283 = por %p281, %p282
    %p284 = scmp.ne.s32.totalorder %s276, %s278
    %p285 = scmp.eq.s32.totalorder %s37, 1
    %p286 = por %p284, %p285
    %p287 = scmp.ne.s32.totalorder %s278, %s279
    %p288 = scmp.eq.s32.totalorder %s37, 0
    %p289 = por %p287, %p288
    %p290 = scmp.ne.s32.totalorder %s278, %s279
    %p291 = scmp.eq.s32.totalorder %s38, 1
    %p292 = por %p290, %p291
    %p294 = scmp.ne.s32.totalorder %s279, %s293
    %p295 = scmp.eq.s32.totalorder %s38, 0
    %p296 = por %p294, %p295
    %s298 = sadd.s32 %s297, 1
    %p301 = scmp.eq.s32.totalorder %s32, 1
    %p302 = scmp.ne.s32.totalorder %s297, %s299
    %p303 = scmp.eq.s32.totalorder %s32, 0
    %p304 = por %p302, %p303
    %p305 = scmp.ne.s32.totalorder %s297, %s299
    %p306 = scmp.eq.s32.totalorder %s37, 1
    %p307 = por %p305, %p306
    %p308 = scmp.ne.s32.totalorder %s299, %s300
    %p309 = scmp.eq.s32.totalorder %s37, 0
    %p310 = por %p308, %p309
    %p311 = scmp.ne.s32.totalorder %s299, %s300
    %p312 = scmp.eq.s32.totalorder %s38, 1
    %p313 = por %p311, %p312
    %p315 = scmp.ne.s32.totalorder %s300, %s314
    %p316 = scmp.eq.s32.totalorder %s38, 0
    %p317 = por %p315, %p316
    %s319 = sadd.s32 %s318, 1
    %p322 = scmp.eq.s32.totalorder %s32, 1
    %p323 = scmp.ne.s32.totalorder %s318, %s320
    %p324 = scmp.eq.s32.totalorder %s32, 0
    %p325 = por %p323, %p324
    %p326 = scmp.ne.s32.totalorder %s318, %s320
    %p327 = scmp.eq.s32.totalorder %s37, 1
    %p328 = por %p326, %p327
    %p329 = scmp.ne.s32.totalorder %s320, %s321
    %p330 = scmp.eq.s32.totalorder %s37, 0
    %p331 = por %p329, %p330
    %p332 = scmp.ne.s32.totalorder %s320, %s321
    %p333 = scmp.eq.s32.totalorder %s38, 1
    %p334 = por %p332, %p333
    %p336 = scmp.ne.s32.totalorder %s321, %s335
    %p337 = scmp.eq.s32.totalorder %s38, 0
    %p338 = por %p336, %p337
    %s340 = sadd.s32 %s339, 1
    %p343 = scmp.eq.s32.totalorder %s32, 1
    %p344 = scmp.ne.s32.totalorder %s339, %s341
    %p345 = scmp.eq.s32.totalorder %s32, 0
    %p346 = por %p344, %p345
    %p347 = scmp.ne.s32.totalorder %s339, %s341
    %p348 = scmp.eq.s32.totalorder %s37, 1
    %p349 = por %p347, %p348
    %p350 = scmp.ne.s32.totalorder %s341, %s342
    %p351 = scmp.eq.s32.totalorder %s37, 0
    %p352 = por %p350, %p351
    %p353 = scmp.ne.s32.totalorder %s341, %s342
    %p354 = scmp.eq.s32.totalorder %s38, 1
    %p355 = por %p353, %p354
    %p357 = scmp.ne.s32.totalorder %s342, %s356
    %p358 = scmp.eq.s32.totalorder %s38, 0
    %p359 = por %p357, %p358
    %s361 = sadd.s32 %s360, 1
    %p364 = scmp.eq.s32.totalorder %s32, 1
    %p365 = scmp.ne.s32.totalorder %s360, %s362
    %p366 = scmp.eq.s32.totalorder %s32, 0
    %p367 = por %p365, %p366
    %p368 = scmp.ne.s32.totalorder %s360, %s362
    %p369 = scmp.eq.s32.totalorder %s37, 1
    %p370 = por %p368, %p369
    %p371 = scmp.ne.s32.totalorder %s362, %s363
    %p372 = scmp.eq.s32.totalorder %s37, 0
    %p373 = por %p371, %p372
    %p374 = scmp.ne.s32.totalorder %s362, %s363
    %p375 = scmp.eq.s32.totalorder %s38, 1
    %p376 = por %p374, %p375
    %p378 = scmp.ne.s32.totalorder %s363, %s377
    %p379 = scmp.eq.s32.totalorder %s38, 0
    %p380 = por %p378, %p379
    %s382 = sadd.s32 %s381, 1
    %p385 = scmp.eq.s32.totalorder %s32, 1
    %p386 = scmp.ne.s32.totalorder %s381, %s383
    %p387 = scmp.eq.s32.totalorder %s32, 0
    %p388 = por %p386, %p387
    %p389 = scmp.ne.s32.totalorder %s381, %s383
    %p390 = scmp.eq.s32.totalorder %s37, 1
    %p391 = por %p389, %p390
    %p392 = scmp.ne.s32.totalorder %s383, %s384
    %p393 = scmp.eq.s32.totalorder %s37, 0
    %p394 = por %p392, %p393
    %p395 = scmp.ne.s32.totalorder %s383, %s384
    %p396 = scmp.eq.s32.totalorder %s38, 1
    %p397 = por %p395, %p396
    %p399 = scmp.ne.s32.totalorder %s384, %s398
    %p400 = scmp.eq.s32.totalorder %s38, 0
    %p401 = por %p399, %p400
    %s403 = sadd.s32 %s402, 1
    %p406 = scmp.eq.s32.totalorder %s32, 1
    %p407 = scmp.ne.s32.totalorder %s402, %s404
    %p408 = scmp.eq.s32.totalorder %s32, 0
    %p409 = por %p407, %p408
    %p410 = scmp.ne.s32.totalorder %s402, %s404
    %p411 = scmp.eq.s32.totalorder %s37, 1
    %p412 = por %p410, %p411
    %p413 = scmp.ne.s32.totalorder %s404, %s405
    %p414 = scmp.eq.s32.totalorder %s37, 0
    %p415 = por %p413, %p414
    %p416 = scmp.ne.s32.totalorder %s404, %s405
    %p417 = scmp.eq.s32.totalorder %s38, 1
    %p418 = por %p416, %p417
    %p420 = scmp.ne.s32.totalorder %s405, %s419
    %p421 = scmp.eq.s32.totalorder %s38, 0
    %p422 = por %p420, %p421
    %s424 = sadd.s32 %s423, 1
    %p427 = scmp.eq.s32.totalorder %s32, 1
    %p428 = scmp.ne.s32.totalorder %s423, %s425
    %p429 = scmp.eq.s32.totalorder %s32, 0
    %p430 = por %p428, %p429
    %p431 = scmp.ne.s32.totalorder %s423, %s425
    %p432 = scmp.eq.s32.totalorder %s37, 1
    %p433 = por %p431, %p432
    %p434 = scmp.ne.s32.totalorder %s425, %s426
    %p435 = scmp.eq.s32.totalorder %s37, 0
    %p436 = por %p434, %p435
    %p437 = scmp.ne.s32.totalorder %s425, %s426
    %p438 = scmp.eq.s32.totalorder %s38, 1
    %p439 = por %p437, %p438
    %p441 = scmp.ne.s32.totalorder %s426, %s440
    %p442 = scmp.eq.s32.totalorder %s38, 0
    %p443 = por %p441, %p442
    %s445 = sadd.s32 %s444, 1
    %p448 = scmp.eq.s32.totalorder %s32, 1
    %p449 = scmp.ne.s32.totalorder %s444, %s446
    %p450 = scmp.eq.s32.totalorder %s32, 0
    %p451 = por %p449, %p450
    %p452 = scmp.ne.s32.totalorder %s444, %s446
    %p453 = scmp.eq.s32.totalorder %s37, 1
    %p454 = por %p452, %p453
    %p455 = scmp.ne.s32.totalorder %s446, %s447
    %p456 = scmp.eq.s32.totalorder %s37, 0
    %p457 = por %p455, %p456
    %p458 = scmp.ne.s32.totalorder %s446, %s447
    %p459 = scmp.eq.s32.totalorder %s38, 1
    %p460 = por %p458, %p459
    %p462 = scmp.ne.s32.totalorder %s447, %s461
    %p463 = scmp.eq.s32.totalorder %s38, 0
    %p464 = por %p462, %p463
    %s466 = sadd.s32 %s465, 1
    %p469 = scmp.eq.s32.totalorder %s32, 1
    %p470 = scmp.ne.s32.totalorder %s465, %s467
    %p471 = scmp.eq.s32.totalorder %s32, 0
    %p472 = por %p470, %p471
    %p473 = scmp.ne.s32.totalorder %s465, %s467
    %p474 = scmp.eq.s32.totalorder %s37, 1
    %p475 = por %p473, %p474
    %p476 = scmp.ne.s32.totalorder %s467, %s468
    %p477 = scmp.eq.s32.totalorder %s37, 0
    %p478 = por %p476, %p477
    %p479 = scmp.ne.s32.totalorder %s467, %s468
    %p480 = scmp.eq.s32.totalorder %s38, 1
    %p481 = por %p479, %p480
    %p483 = scmp.ne.s32.totalorder %s468, %s482
    %p484 = scmp.eq.s32.totalorder %s38, 0
    %p485 = por %p483, %p484
    %s487 = sadd.s32 %s486, 1
    %p490 = scmp.eq.s32.totalorder %s32, 1
    %p491 = scmp.ne.s32.totalorder %s486, %s488
    %p492 = scmp.eq.s32.totalorder %s32, 0
    %p493 = por %p491, %p492
    %p494 = scmp.ne.s32.totalorder %s486, %s488
    %p495 = scmp.eq.s32.totalorder %s37, 1
    %p496 = por %p494, %p495
    %p497 = scmp.ne.s32.totalorder %s488, %s489
    %p498 = scmp.eq.s32.totalorder %s37, 0
    %p499 = por %p497, %p498
    %p500 = scmp.ne.s32.totalorder %s488, %s489
    %p501 = scmp.eq.s32.totalorder %s38, 1
    %p502 = por %p500, %p501
    %p504 = scmp.ne.s32.totalorder %s489, %s503
    %p505 = scmp.eq.s32.totalorder %s38, 0
    %p506 = por %p504, %p505
    %s508 = sadd.s32 %s507, 1
    %p511 = scmp.eq.s32.totalorder %s32, 1
    %p512 = scmp.ne.s32.totalorder %s507, %s509
    %p513 = scmp.eq.s32.totalorder %s32, 0
    %p514 = por %p512, %p513
    %p515 = scmp.ne.s32.totalorder %s507, %s509
    %p516 = scmp.eq.s32.totalorder %s37, 1
    %p517 = por %p515, %p516
    %p518 = scmp.ne.s32.totalorder %s509, %s510
    %p519 = scmp.eq.s32.totalorder %s37, 0
    %p520 = por %p518, %p519
    %p521 = scmp.ne.s32.totalorder %s509, %s510
    %p522 = scmp.eq.s32.totalorder %s38, 1
    %p523 = por %p521, %p522
    %p525 = scmp.ne.s32.totalorder %s510, %s524
    %p526 = scmp.eq.s32.totalorder %s38, 0
    %p527 = por %p525, %p526
    %s529 = sadd.s32 %s528, 1
    %p532 = scmp.eq.s32.totalorder %s32, 1
    %p533 = scmp.ne.s32.totalorder %s528, %s530
    %p534 = scmp.eq.s32.totalorder %s32, 0
    %p535 = por %p533, %p534
    %p536 = scmp.ne.s32.totalorder %s528, %s530
    %p537 = scmp.eq.s32.totalorder %s37, 1
    %p538 = por %p536, %p537
    %p539 = scmp.ne.s32.totalorder %s530, %s531
    %p540 = scmp.eq.s32.totalorder %s37, 0
    %p541 = por %p539, %p540
    %p542 = scmp.ne.s32.totalorder %s530, %s531
    %p543 = scmp.eq.s32.totalorder %s38, 1
    %p544 = por %p542, %p543
    %p546 = scmp.ne.s32.totalorder %s531, %s545
    %p547 = scmp.eq.s32.totalorder %s38, 0
    %p548 = por %p546, %p547
    %s550 = sadd.s32 %s549, 1
    %p553 = scmp.eq.s32.totalorder %s32, 1
    %p554 = scmp.ne.s32.totalorder %s549, %s551
    %p555 = scmp.eq.s32.totalorder %s32, 0
    %p556 = por %p554, %p555
    %p557 = scmp.ne.s32.totalorder %s549, %s551
    %p558 = scmp.eq.s32.totalorder %s37, 1
    %p559 = por %p557, %p558
    %p560 = scmp.ne.s32.totalorder %s551, %s552
    %p561 = scmp.eq.s32.totalorder %s37, 0
    %p562 = por %p560, %p561
    %p563 = scmp.ne.s32.totalorder %s551, %s552
    %p564 = scmp.eq.s32.totalorder %s38, 1
    %p565 = por %p563, %p564
    %p567 = scmp.ne.s32.totalorder %s552, %s566
    %p568 = scmp.eq.s32.totalorder %s38, 0
    %p569 = por %p567, %p568
    %s571 = sadd.s32 %s570, 1
    %p574 = scmp.eq.s32.totalorder %s32, 1
    %p575 = scmp.ne.s32.totalorder %s570, %s572
    %p576 = scmp.eq.s32.totalorder %s32, 0
    %p577 = por %p575, %p576
    %p578 = scmp.ne.s32.totalorder %s570, %s572
    %p579 = scmp.eq.s32.totalorder %s37, 1
    %p580 = por %p578, %p579
    %p581 = scmp.ne.s32.totalorder %s572, %s573
    %p582 = scmp.eq.s32.totalorder %s37, 0
    %p583 = por %p581, %p582
    %p584 = scmp.ne.s32.totalorder %s572, %s573
    %p585 = scmp.eq.s32.totalorder %s38, 1
    %p586 = por %p584, %p585
    %p588 = scmp.ne.s32.totalorder %s573, %s587
    %p589 = scmp.eq.s32.totalorder %s38, 0
    %p590 = por %p588, %p589
    %s591 = ssub.s32 %s32, %s39
    %p592 = scmp.eq.s32.totalorder %s591, 0
    %s594 = sadd.s32 %s593, 1
    %s595 = scalar_select %p592, %s593, %s594
    %p598 = pneg %p592
    %p599 = scmp.eq.s32.totalorder %s32, 1
    %p600 = por %p598, %p599
    %p601 = scmp.ne.s32.totalorder %s593, %s596
    %p602 = scmp.eq.s32.totalorder %s32, 0
    %p603 = por %p601, %p602
    %p604 = scmp.ne.s32.totalorder %s593, %s596
    %p605 = scmp.eq.s32.totalorder %s37, 1
    %p606 = por %p604, %p605
    %p607 = scmp.ne.s32.totalorder %s596, %s597
    %p608 = scmp.eq.s32.totalorder %s37, 0
    %p609 = por %p607, %p608
    %p610 = scmp.ne.s32.totalorder %s596, %s597
    %p611 = scmp.eq.s32.totalorder %s38, 1
    %p612 = por %p610, %p611
    %p614 = scmp.ne.s32.totalorder %s597, %s613
    %p615 = scmp.eq.s32.totalorder %s38, 0
    %p616 = por %p614, %p615
    %p617 = scmp.le.s32.totalorder 1, %s32
    %p618 = scmp.lt.s32.totalorder %s32, 3
    %p619 = pnand %p617, %p618
    %p620 = pneg %p619
    // Predicated region
    $region9: #{forward.1} parent=5 // pred_check
      _
    $region10: #{forward.1} parent=5 // pred_check_branch
      %622 = sbr.rel (%p619) target = $region12
    $region11: #{forward.1} parent=5 // pred_region
      %s623 = ssub.s32 %s32, 1
      // Predicated region
      $region13: #{forward.1} parent=11 // pred_check
        %p624 = pneg %p79
      $region14: #{forward.1} parent=11 // pred_check_branch
        %626 = sbr.rel (%p624) target = $region16
      $region15: #{forward.1} parent=11 // pred_region
        _
      $region16: #{forward.1} parent=11 // pred_fallthru
        _
      // Predicated region
      $region17: #{forward.1} parent=11 // pred_check
        %p627 = pneg %p100
      $region18: #{forward.1} parent=11 // pred_check_branch
        %629 = sbr.rel (%p627) target = $region20
      $region19: #{forward.1} parent=11 // pred_region
        _
      $region20: #{forward.1} parent=11 // pred_fallthru
        _
      // Predicated region
      $region21: #{forward.1} parent=11 // pred_check
        %p630 = pneg %p121
      $region22: #{forward.1} parent=11 // pred_check_branch
        %632 = sbr.rel (%p630) target = $region24
      $region23: #{forward.1} parent=11 // pred_region
        _
      $region24: #{forward.1} parent=11 // pred_fallthru
        _
      // Predicated region
      $region25: #{forward.1} parent=11 // pred_check
        %p633 = pneg %p142
      $region26: #{forward.1} parent=11 // pred_check_branch
        %635 = sbr.rel (%p633) target = $region28
      $region27: #{forward.1} parent=11 // pred_region
        _
      $region28: #{forward.1} parent=11 // pred_fallthru
        _
      // Predicated region
      $region29: #{forward.1} parent=11 // pred_check
        %p636 = pneg %p163
      $region30: #{forward.1} parent=11 // pred_check_branch
        %638 = sbr.rel (%p636) target = $region32
      $region31: #{forward.1} parent=11 // pred_region
        _
      $region32: #{forward.1} parent=11 // pred_fallthru
        _
      // Predicated region
      $region33: #{forward.1} parent=11 // pred_check
        %p639 = pneg %p184
      $region34: #{forward.1} parent=11 // pred_check_branch
        %641 = sbr.rel (%p639) target = $region36
      $region35: #{forward.1} parent=11 // pred_region
        _
      $region36: #{forward.1} parent=11 // pred_fallthru
        _
      // Predicated region
      $region37: #{forward.1} parent=11 // pred_check
        %p642 = pneg %p205
      $region38: #{forward.1} parent=11 // pred_check_branch
        %644 = sbr.rel (%p642) target = $region40
      $region39: #{forward.1} parent=11 // pred_region
        _
      $region40: #{forward.1} parent=11 // pred_fallthru
        _
      // Predicated region
      $region41: #{forward.1} parent=11 // pred_check
        %p645 = pneg %p226
      $region42: #{forward.1} parent=11 // pred_check_branch
        %647 = sbr.rel (%p645) target = $region44
      $region43: #{forward.1} parent=11 // pred_region
        _
      $region44: #{forward.1} parent=11 // pred_fallthru
        _
      // Predicated region
      $region45: #{forward.1} parent=11 // pred_check
        %p648 = pneg %p247
      $region46: #{forward.1} parent=11 // pred_check_branch
        %650 = sbr.rel (%p648) target = $region48
      $region47: #{forward.1} parent=11 // pred_region
        _
      $region48: #{forward.1} parent=11 // pred_fallthru
        _
      // Predicated region
      $region49: #{forward.1} parent=11 // pred_check
        %p651 = pneg %p268
      $region50: #{forward.1} parent=11 // pred_check_branch
        %653 = sbr.rel (%p651) target = $region52
      $region51: #{forward.1} parent=11 // pred_region
        _
      $region52: #{forward.1} parent=11 // pred_fallthru
        _
      // Predicated region
      $region53: #{forward.1} parent=11 // pred_check
        %p654 = pneg %p289
      $region54: #{forward.1} parent=11 // pred_check_branch
        %656 = sbr.rel (%p654) target = $region56
      $region55: #{forward.1} parent=11 // pred_region
        _
      $region56: #{forward.1} parent=11 // pred_fallthru
        _
      // Predicated region
      $region57: #{forward.1} parent=11 // pred_check
        %p657 = pneg %p310
      $region58: #{forward.1} parent=11 // pred_check_branch
        %659 = sbr.rel (%p657) target = $region60
      $region59: #{forward.1} parent=11 // pred_region
        _
      $region60: #{forward.1} parent=11 // pred_fallthru
        _
      // Predicated region
      $region61: #{forward.1} parent=11 // pred_check
        %p660 = pneg %p331
      $region62: #{forward.1} parent=11 // pred_check_branch
        %662 = sbr.rel (%p660) target = $region64
      $region63: #{forward.1} parent=11 // pred_region
        _
      $region64: #{forward.1} parent=11 // pred_fallthru
        _
      // Predicated region
      $region65: #{forward.1} parent=11 // pred_check
        %p663 = pneg %p352
      $region66: #{forward.1} parent=11 // pred_check_branch
        %665 = sbr.rel (%p663) target = $region68
      $region67: #{forward.1} parent=11 // pred_region
        _
      $region68: #{forward.1} parent=11 // pred_fallthru
        _
      // Predicated region
      $region69: #{forward.1} parent=11 // pred_check
        %p666 = pneg %p373
      $region70: #{forward.1} parent=11 // pred_check_branch
        %668 = sbr.rel (%p666) target = $region72
      $region71: #{forward.1} parent=11 // pred_region
        _
      $region72: #{forward.1} parent=11 // pred_fallthru
        _
      // Predicated region
      $region73: #{forward.1} parent=11 // pred_check
        %p669 = pneg %p394
      $region74: #{forward.1} parent=11 // pred_check_branch
        %671 = sbr.rel (%p669) target = $region76
      $region75: #{forward.1} parent=11 // pred_region
        _
      $region76: #{forward.1} parent=11 // pred_fallthru
        _
      // Predicated region
      $region77: #{forward.1} parent=11 // pred_check
        %p672 = pneg %p415
      $region78: #{forward.1} parent=11 // pred_check_branch
        %674 = sbr.rel (%p672) target = $region80
      $region79: #{forward.1} parent=11 // pred_region
        _
      $region80: #{forward.1} parent=11 // pred_fallthru
        _
      // Predicated region
      $region81: #{forward.1} parent=11 // pred_check
        %p675 = pneg %p436
      $region82: #{forward.1} parent=11 // pred_check_branch
        %677 = sbr.rel (%p675) target = $region84
      $region83: #{forward.1} parent=11 // pred_region
        _
      $region84: #{forward.1} parent=11 // pred_fallthru
        _
      // Predicated region
      $region85: #{forward.1} parent=11 // pred_check
        %p678 = pneg %p457
      $region86: #{forward.1} parent=11 // pred_check_branch
        %680 = sbr.rel (%p678) target = $region88
      $region87: #{forward.1} parent=11 // pred_region
        _
      $region88: #{forward.1} parent=11 // pred_fallthru
        _
      // Predicated region
      $region89: #{forward.1} parent=11 // pred_check
        %p681 = pneg %p478
      $region90: #{forward.1} parent=11 // pred_check_branch
        %683 = sbr.rel (%p681) target = $region92
      $region91: #{forward.1} parent=11 // pred_region
        _
      $region92: #{forward.1} parent=11 // pred_fallthru
        _
      // Predicated region
      $region93: #{forward.1} parent=11 // pred_check
        %p684 = pneg %p499
      $region94: #{forward.1} parent=11 // pred_check_branch
        %686 = sbr.rel (%p684) target = $region96
      $region95: #{forward.1} parent=11 // pred_region
        _
      $region96: #{forward.1} parent=11 // pred_fallthru
        _
      // Predicated region
      $region97: #{forward.1} parent=11 // pred_check
        %p687 = pneg %p520
      $region98: #{forward.1} parent=11 // pred_check_branch
        %689 = sbr.rel (%p687) target = $region100
      $region99: #{forward.1} parent=11 // pred_region
        _
      $region100: #{forward.1} parent=11 // pred_fallthru
        _
      // Predicated region
      $region101: #{forward.1} parent=11 // pred_check
        %p690 = pneg %p541
      $region102: #{forward.1} parent=11 // pred_check_branch
        %692 = sbr.rel (%p690) target = $region104
      $region103: #{forward.1} parent=11 // pred_region
        _
      $region104: #{forward.1} parent=11 // pred_fallthru
        _
      // Predicated region
      $region105: #{forward.1} parent=11 // pred_check
        %p693 = pneg %p562
      $region106: #{forward.1} parent=11 // pred_check_branch
        %695 = sbr.rel (%p693) target = $region108
      $region107: #{forward.1} parent=11 // pred_region
        _
      $region108: #{forward.1} parent=11 // pred_fallthru
        _
      // Predicated region
      $region109: #{forward.1} parent=11 // pred_check
        %p696 = pneg %p583
      $region110: #{forward.1} parent=11 // pred_check_branch
        %698 = sbr.rel (%p696) target = $region112
      $region111: #{forward.1} parent=11 // pred_region
        _
      $region112: #{forward.1} parent=11 // pred_fallthru
        _
    $region12: #{forward.1} parent=5 // pred_fallthru
      _
    %p699 = scmp.lt.s32.totalorder %s32, 2
    // Predicated region
    $region113: #{forward.1} parent=5 // pred_check
      %p700 = pneg %p699
    $region114: #{forward.1} parent=5 // pred_check_branch
      %702 = sbr.rel (%p700) target = $region116
    $region115: #{forward.1} parent=5 // pred_region
      // Predicated region
      $region117: #{forward.1} parent=115 // pred_check
        %p703 = pneg %p52
      $region118: #{forward.1} parent=115 // pred_check_branch
        %705 = sbr.rel (%p703) target = $region120
      $region119: #{forward.1} parent=115 // pred_region
        %s706 = smul.u32 32, %s32
        %p707 = scmp.lt.s32.totalorder %s706, 63
        %s708 = scalar_select %p707, %s706, 63
        %s709 = smul.addr %s708, 8
        %s710 = scalar_lea.vmem %s0, %s709
        %s711 = smul.u32 32, %s32
      $region120: #{forward.1} parent=115 // pred_fallthru
        _
    $region116: #{forward.1} parent=5 // pred_fallthru
      _
    %p712 = scmp.le.s32.totalorder 1, %s32
    %p713 = scmp.lt.s32.totalorder %s32, 3
    %p714 = pnand %p712, %p713
    %p715 = pneg %p714
    // Predicated region
    $region121: #{forward.1} parent=5 // pred_check
      _
    $region122: #{forward.1} parent=5 // pred_check_branch
      %717 = sbr.rel (%p714) target = $region124
    $region123: #{forward.1} parent=5 // pred_region
      %s718 = ssub.s32 %s32, 1
      %s719 = smul.u32 32, %s37
      %p720 = scmp.lt.s32.totalorder %s719, 63
      %s721 = scalar_select %p720, %s719, 63
      %s722 = smul.addr %s721, 8
      %s723 = scalar_lea.vmem %s0, %s722
      %p724 = pneg %p58
      %p725 = pneg %p55
      %p726 = pneg %p79
      %p727 = pneg %p76
      %p728 = pneg %p100
      %p729 = pneg %p97
      %p730 = pneg %p121
      %p731 = pneg %p118
      %p732 = pneg %p142
      %p733 = pneg %p139
      %p734 = pneg %p163
      %p735 = pneg %p160
      %p736 = pneg %p184
      %p737 = pneg %p181
      %p738 = pneg %p205
      %p739 = pneg %p202
      %p740 = pneg %p226
      %p741 = pneg %p223
      %p742 = pneg %p247
      %p743 = pneg %p244
      %p744 = pneg %p268
      %p745 = pneg %p265
      %p746 = pneg %p289
      %p747 = pneg %p286
      %p748 = pneg %p310
      %p749 = pneg %p307
      %p750 = pneg %p331
      %p751 = pneg %p328
      %p752 = pneg %p352
      %p753 = pneg %p349
      %p754 = pneg %p373
      %p755 = pneg %p370
      %p756 = pneg %p394
      %p757 = pneg %p391
      %p758 = pneg %p415
      %p759 = pneg %p412
      %p760 = pneg %p436
      %p761 = pneg %p433
      %p762 = pneg %p457
      %p763 = pneg %p454
      %p764 = pneg %p478
      %p765 = pneg %p475
      %p766 = pneg %p499
      %p767 = pneg %p496
      %p768 = pneg %p520
      %p769 = pneg %p517
      %p770 = pneg %p541
      %p771 = pneg %p538
      %p772 = pneg %p562
      %p773 = pneg %p559
      %p774 = pneg %p583
      %p775 = pneg %p580
      %p776 = pneg %p609
      %p777 = pneg %p606
      %s778 = smul.u32 32, %s37
      %p779 = scmp.lt.s32.totalorder %s778, 63
      %s780 = scalar_select %p779, %s778, 63
      %s781 = smul.addr %s780, 8
      %s782 = scalar_lea.vmem %s26, %s781
      %s783 = smul.u32 32, %s37
      %p784 = scmp.lt.s32.totalorder %s783, 63
      %s785 = scalar_select %p784, %s783, 63
      %s786 = smul.addr %s785, 8
      %s787 = scalar_lea.vmem %s0, %s786
      %s788 = smul.u32 32, %s37
      %s789 = smul.u32 32, %s37
      %p790 = scmp.lt.s32.totalorder %s789, 63
      %s791 = scalar_select %p790, %s789, 63
      %s792 = smul.addr %s791, 8
      %s793 = scalar_lea.vmem %s26, %s792
      %s794 = smul.u32 32, %s37
      %v796 = vld [vmem:[%s787] sm:$0xff]
      %v797 = vld [vmem:[%s787 + $0x8] sm:$0xff]
      %v798 = vld [vmem:[%s787 + $0x10] sm:$0xff]
      %v799 = vld [vmem:[%s787 + $0x18] sm:$0xff]
      %v800 = vld [vmem:[%s787 + $0x20] sm:$0xff]
      %v801 = vld [vmem:[%s787 + $0x28] sm:$0xff]
      %v802 = vld [vmem:[%s787 + $0x30] sm:$0xff]
      %v803 = vld [vmem:[%s787 + $0x38] sm:$0xff]
      %v804 = vld [vmem:[%s787 + $0x40] sm:$0xff]
      %v805 = vld [vmem:[%s787 + $0x48] sm:$0xff]
      %v806 = vld [vmem:[%s787 + $0x50] sm:$0xff]
      %v807 = vld [vmem:[%s787 + $0x58] sm:$0xff]
      %v808 = vld [vmem:[%s787 + $0x60] sm:$0xff]
      %v809 = vld [vmem:[%s787 + $0x68] sm:$0xff]
      %v810 = vld [vmem:[%s787 + $0x70] sm:$0xff]
      %v811 = vld [vmem:[%s787 + $0x78] sm:$0xff]
      %v812 = vld [vmem:[%s787 + $0x80] sm:$0xff]
      %v813 = vld [vmem:[%s787 + $0x88] sm:$0xff]
      %v814 = vld [vmem:[%s787 + $0x90] sm:$0xff]
      %v815 = vld [vmem:[%s787 + $0x98] sm:$0xff]
      %v816 = vld [vmem:[%s787 + $0xa0] sm:$0xff]
      %v817 = vld [vmem:[%s787 + $0xa8] sm:$0xff]
      %v818 = vld [vmem:[%s787 + $0xb0] sm:$0xff]
      %v819 = vld [vmem:[%s787 + $0xb8] sm:$0xff]
      %v820 = vld [vmem:[%s787 + $0xc0] sm:$0xff]
      %v821 = vld [vmem:[%s787 + $0xc8] sm:$0xff]
      %v822 = vld [vmem:[%s787 + $0xd0] sm:$0xff]
      %v823 = vld [vmem:[%s787 + $0xd8] sm:$0xff]
      %v824 = vld [vmem:[%s787 + $0xe0] sm:$0xff]
      %v825 = vld [vmem:[%s787 + $0xe8] sm:$0xff]
      %v826 = vld [vmem:[%s787 + $0xf0] sm:$0xff]
      %v827 = vld [vmem:[%s787 + $0xf8] sm:$0xff]
      %v828 = vpack.c.bf16 %v797, 0.0
      %v829 = vpack.c.bf16 %v798, %v796
      %v830 = vpack.c.bf16 %v799, %v797
      %v831 = vpack.c.bf16 %v801, %v799
      %v832 = vpack.c.bf16 %v802, %v800
      %v833 = vpack.c.bf16 %v803, %v801
      %v834 = vpack.c.bf16 %v805, %v803
      %v835 = vpack.c.bf16 %v806, %v804
      %v836 = vpack.c.bf16 %v807, %v805
      %v837 = vpack.c.bf16 %v809, %v807
      %v838 = vpack.c.bf16 %v810, %v808
      %v839 = vpack.c.bf16 %v811, %v809
      %v840 = vpack.c.bf16 %v813, %v811
      %v841 = vpack.c.bf16 %v814, %v812
      %v842 = vpack.c.bf16 %v815, %v813
      %v843 = vpack.c.bf16 %v817, %v815
      %v844 = vpack.c.bf16 %v818, %v816
      %v845 = vpack.c.bf16 %v819, %v817
      %v846 = vpack.c.bf16 %v821, %v819
      %v847 = vpack.c.bf16 %v822, %v820
      %v848 = vpack.c.bf16 %v823, %v821
      %v849 = vpack.c.bf16 %v825, %v823
      %v850 = vpack.c.bf16 %v826, %v824
      %v851 = vpack.c.bf16 %v827, %v825
      %v852 = vld [vmem:[%s1] sm:$0xff]
      %v853 = vld [vmem:[%s1 + $0x8] sm:$0xff]
      %v854 = vld [vmem:[%s1 + $0x10] sm:$0xff]
      %v855 = vld [vmem:[%s1 + $0x18] sm:$0xff]
      %v856 = vld [vmem:[%s1 + $0x20] sm:$0xff]
      %v857 = vld [vmem:[%s1 + $0x28] sm:$0xff]
      %v858 = vld [vmem:[%s1 + $0x30] sm:$0xff]
      %v859 = vld [vmem:[%s1 + $0x38] sm:$0xff]
      %v860 = vld [vmem:[%s1 + $0x40] sm:$0xff]
      %v861 = vld [vmem:[%s1 + $0x48] sm:$0xff]
      %v862 = vld [vmem:[%s1 + $0x50] sm:$0xff]
      %v863 = vld [vmem:[%s1 + $0x58] sm:$0xff]
      %v864 = vld [vmem:[%s1 + $0x60] sm:$0xff]
      %v865 = vld [vmem:[%s1 + $0x68] sm:$0xff]
      %v866 = vld [vmem:[%s1 + $0x70] sm:$0xff]
      %v867 = vld [vmem:[%s1 + $0x78] sm:$0xff]
      %v868 = vld [vmem:[%s1 + $0x80] sm:$0xff]
      %v869 = vld [vmem:[%s1 + $0x88] sm:$0xff]
      %v870 = vld [vmem:[%s1 + $0x90] sm:$0xff]
      %v871 = vld [vmem:[%s1 + $0x98] sm:$0xff]
      %v872 = vld [vmem:[%s1 + $0xa0] sm:$0xff]
      %v873 = vld [vmem:[%s1 + $0xa8] sm:$0xff]
      %v874 = vld [vmem:[%s1 + $0xb0] sm:$0xff]
      %v875 = vld [vmem:[%s1 + $0xb8] sm:$0xff]
      %v876 = vld [vmem:[%s1 + $0xc0] sm:$0xff]
      %v877 = vld [vmem:[%s1 + $0xc8] sm:$0xff]
      %v878 = vld [vmem:[%s1 + $0xd0] sm:$0xff]
      %v879 = vld [vmem:[%s1 + $0xd8] sm:$0xff]
      %v880 = vld [vmem:[%s1 + $0xe0] sm:$0xff]
      %v881 = vld [vmem:[%s1 + $0xe8] sm:$0xff]
      %v882 = vld [vmem:[%s1 + $0xf0] sm:$0xff]
      %v883 = vld [vmem:[%s1 + $0xf8] sm:$0xff]
      %v884 = vld [vmem:[%s1 + $0x100] sm:$0xff]
      %v885 = vld [vmem:[%s1 + $0x108] sm:$0xff]
      %v886 = vld [vmem:[%s1 + $0x110] sm:$0xff]
      %v887 = vld [vmem:[%s1 + $0x118] sm:$0xff]
      %v888 = vld [vmem:[%s1 + $0x120] sm:$0xff]
      %v889 = vld [vmem:[%s1 + $0x128] sm:$0xff]
      %v890 = vld [vmem:[%s1 + $0x130] sm:$0xff]
      %v891 = vld [vmem:[%s1 + $0x138] sm:$0xff]
      %v892 = vld [vmem:[%s1 + $0x140] sm:$0xff]
      %v893 = vld [vmem:[%s1 + $0x148] sm:$0xff]
      %v894 = vld [vmem:[%s1 + $0x150] sm:$0xff]
      %v895 = vld [vmem:[%s1 + $0x158] sm:$0xff]
      %v896 = vld [vmem:[%s1 + $0x160] sm:$0xff]
      %v897 = vld [vmem:[%s1 + $0x168] sm:$0xff]
      %v898 = vld [vmem:[%s1 + $0x170] sm:$0xff]
      %v899 = vld [vmem:[%s1 + $0x178] sm:$0xff]
      %v900 = vld [vmem:[%s2] sm:$0x3]
      %v902 = vlaneseq
      %v903 = vshrl.u32 %v902, 7
      %v904 = vsub.s32 0, %v903
      %v905 = vrot.slane %v900, %v904
      %v906 = vlaneseq
      %v907 = vshrl.u32 %v906, 7
      %v908 = vsub.s32 1, %v907
      %v909 = vrot.slane %v900, %v908
      %v960 = vunpack.c.l.b16 %v852
      %v961 = vunpack.c.h.b16 %v852
      %v962 = vunpack.c.l.b16 %v853
      %v963 = vunpack.c.h.b16 %v853
      %v964 = vunpack.c.l.b16 %v854
      %v965 = vunpack.c.h.b16 %v854
      %v966 = vunpack.c.l.b16 %v855
      %v967 = vunpack.c.h.b16 %v855
      %v968 = vunpack.c.l.b16 %v856
      %v969 = vunpack.c.h.b16 %v856
      %v970 = vunpack.c.l.b16 %v857
      %v971 = vunpack.c.h.b16 %v857
      %v972 = vunpack.c.l.b16 %v858
      %v973 = vunpack.c.h.b16 %v858
      %v974 = vunpack.c.l.b16 %v859
      %v975 = vunpack.c.h.b16 %v859
      %v976 = vunpack.c.l.b16 %v860
      %v977 = vunpack.c.h.b16 %v860
      %v978 = vunpack.c.l.b16 %v861
      %v979 = vunpack.c.h.b16 %v861
      %v980 = vunpack.c.l.b16 %v862
      %v981 = vunpack.c.h.b16 %v862
      %v982 = vunpack.c.l.b16 %v863
      %v983 = vunpack.c.h.b16 %v863
      %v984 = vunpack.c.l.b16 %v864
      %v985 = vunpack.c.h.b16 %v864
      %v986 = vunpack.c.l.b16 %v865
      %v987 = vunpack.c.h.b16 %v865
      %v988 = vunpack.c.l.b16 %v866
      %v989 = vunpack.c.h.b16 %v866
      %v990 = vunpack.c.l.b16 %v867
      %v991 = vunpack.c.h.b16 %v867
      %v992 = vunpack.c.l.b16 %v868
      %v993 = vunpack.c.h.b16 %v868
      %v994 = vunpack.c.l.b16 %v869
      %v995 = vunpack.c.h.b16 %v869
      %v996 = vunpack.c.l.b16 %v870
      %v997 = vunpack.c.h.b16 %v870
      %v998 = vunpack.c.l.b16 %v871
      %v999 = vunpack.c.h.b16 %v871
      %v1000 = vunpack.c.l.b16 %v872
      %v1001 = vunpack.c.h.b16 %v872
      %v1002 = vunpack.c.l.b16 %v873
      %v1003 = vunpack.c.h.b16 %v873
      %v1004 = vunpack.c.l.b16 %v874
      %v1005 = vunpack.c.h.b16 %v874
      %v1006 = vunpack.c.l.b16 %v875
      %v1007 = vunpack.c.h.b16 %v875
      %v1008 = vunpack.c.l.b16 %v876
      %v1009 = vunpack.c.h.b16 %v876
      %v1010 = vunpack.c.l.b16 %v877
      %v1011 = vunpack.c.h.b16 %v877
      %v1012 = vunpack.c.l.b16 %v878
      %v1013 = vunpack.c.h.b16 %v878
      %v1014 = vunpack.c.l.b16 %v879
      %v1015 = vunpack.c.h.b16 %v879
      %v1016 = vunpack.c.l.b16 %v880
      %v1017 = vunpack.c.h.b16 %v880
      %v1018 = vunpack.c.l.b16 %v881
      %v1019 = vunpack.c.h.b16 %v881
      %v1020 = vunpack.c.l.b16 %v882
      %v1021 = vunpack.c.h.b16 %v882
      %v1022 = vunpack.c.l.b16 %v883
      %v1023 = vunpack.c.h.b16 %v883
      %v1024 = vunpack.c.l.b16 %v884
      %v1025 = vunpack.c.h.b16 %v884
      %v1026 = vunpack.c.l.b16 %v885
      %v1027 = vunpack.c.h.b16 %v885
      %v1028 = vunpack.c.l.b16 %v886
      %v1029 = vunpack.c.h.b16 %v886
      %v1030 = vunpack.c.l.b16 %v887
      %v1031 = vunpack.c.h.b16 %v887
      %v1032 = vunpack.c.l.b16 %v888
      %v1033 = vunpack.c.h.b16 %v888
      %v1034 = vunpack.c.l.b16 %v889
      %v1035 = vunpack.c.h.b16 %v889
      %v1036 = vunpack.c.l.b16 %v890
      %v1037 = vunpack.c.h.b16 %v890
      %v1038 = vunpack.c.l.b16 %v891
      %v1039 = vunpack.c.h.b16 %v891
      %v1040 = vunpack.c.l.b16 %v892
      %v1041 = vunpack.c.h.b16 %v892
      %v1042 = vunpack.c.l.b16 %v893
      %v1043 = vunpack.c.h.b16 %v893
      %v1044 = vunpack.c.l.b16 %v894
      %v1045 = vunpack.c.h.b16 %v894
      %v1046 = vunpack.c.l.b16 %v895
      %v1047 = vunpack.c.h.b16 %v895
      %v1048 = vunpack.c.l.b16 %v896
      %v1049 = vunpack.c.h.b16 %v896
      %v1050 = vunpack.c.l.b16 %v897
      %v1051 = vunpack.c.h.b16 %v897
      %v1052 = vunpack.c.l.b16 %v898
      %v1053 = vunpack.c.h.b16 %v898
      %v1054 = vunpack.c.l.b16 %v899
      %v1055 = vunpack.c.h.b16 %v899
      %v1056 = vpack.c.b16 %v962, %v960
      %v1057 = vpack.c.b16 %v963, %v961
      %v1058 = vpack.c.b16 %v966, %v964
      %v1059 = vpack.c.b16 %v967, %v965
      %v1060 = vpack.c.b16 %v970, %v968
      %v1061 = vpack.c.b16 %v971, %v969
      %v1062 = vpack.c.b16 %v974, %v972
      %v1063 = vpack.c.b16 %v975, %v973
      %v1064 = vpack.c.b16 %v978, %v976
      %v1065 = vpack.c.b16 %v979, %v977
      %v1066 = vpack.c.b16 %v982, %v980
      %v1067 = vpack.c.b16 %v983, %v981
      %v1068 = vpack.c.b16 %v986, %v984
      %v1069 = vpack.c.b16 %v987, %v985
      %v1070 = vpack.c.b16 %v990, %v988
      %v1071 = vpack.c.b16 %v991, %v989
      %v1072 = vpack.c.b16 %v994, %v992
      %v1073 = vpack.c.b16 %v995, %v993
      %v1074 = vpack.c.b16 %v998, %v996
      %v1075 = vpack.c.b16 %v999, %v997
      %v1076 = vpack.c.b16 %v1002, %v1000
      %v1077 = vpack.c.b16 %v1003, %v1001
      %v1078 = vpack.c.b16 %v1006, %v1004
      %v1079 = vpack.c.b16 %v1007, %v1005
      %v1080 = vpack.c.b16 %v1010, %v1008
      %v1081 = vpack.c.b16 %v1011, %v1009
      %v1082 = vpack.c.b16 %v1014, %v1012
      %v1083 = vpack.c.b16 %v1015, %v1013
      %v1084 = vpack.c.b16 %v1018, %v1016
      %v1085 = vpack.c.b16 %v1019, %v1017
      %v1086 = vpack.c.b16 %v1022, %v1020
      %v1087 = vpack.c.b16 %v1023, %v1021
      %v1088 = vpack.c.b16 %v1026, %v1024
      %v1089 = vpack.c.b16 %v1027, %v1025
      %v1090 = vpack.c.b16 %v1030, %v1028
      %v1091 = vpack.c.b16 %v1031, %v1029
      %v1092 = vpack.c.b16 %v1034, %v1032
      %v1093 = vpack.c.b16 %v1035, %v1033
      %v1094 = vpack.c.b16 %v1038, %v1036
      %v1095 = vpack.c.b16 %v1039, %v1037
      %v1096 = vpack.c.b16 %v1042, %v1040
      %v1097 = vpack.c.b16 %v1043, %v1041
      %v1098 = vpack.c.b16 %v1046, %v1044
      %v1099 = vpack.c.b16 %v1047, %v1045
      %v1100 = vpack.c.b16 %v1050, %v1048
      %v1101 = vpack.c.b16 %v1051, %v1049
      %v1102 = vpack.c.b16 %v1054, %v1052
      %v1103 = vpack.c.b16 %v1055, %v1053
      %1152 = vmatprep.subr.bf16.mxu0 %v1071
      %1153 = vmatpush1.bf16.msra.mxu0 %v1070
      %1154 = vmatprep.subr.bf16.mxu0 %v1069
      %1155 = vmatpush1.bf16.msra.mxu0 %v1068
      %1156 = vmatprep.subr.bf16.mxu0 %v1067
      %1157 = vmatpush1.bf16.msra.mxu0 %v1066
      %1158 = vmatprep.subr.bf16.mxu0 %v1065
      %1159 = vmatpush1.bf16.msra.mxu0 %v1064
      %1160 = vmatprep.subr.bf16.mxu0 %v1063
      %1161 = vmatpush1.bf16.msra.mxu0 %v1062
      %1162 = vmatprep.subr.bf16.mxu0 %v1061
      %1163 = vmatpush1.bf16.msra.mxu0 %v1060
      %1164 = vmatprep.subr.bf16.mxu0 %v1059
      %1165 = vmatpush1.bf16.msra.mxu0 %v1058
      %1166 = vmatprep.subr.bf16.mxu0 %v1057
      %1167 = vmatpush1.bf16.msra.mxu0 %v1056
      %1168 = vmatprep.subr.bf16.mxu0 %v1087
      %1169 = vmatpush2.bf16.msra.mxu0 %v1086
      %1170 = vmatprep.subr.bf16.mxu0 %v1085
      %1171 = vmatpush2.bf16.msra.mxu0 %v1084
      %1172 = vmatprep.subr.bf16.mxu0 %v1083
      %1173 = vmatpush2.bf16.msra.mxu0 %v1082
      %1174 = vmatprep.subr.bf16.mxu0 %v1081
      %1175 = vmatpush2.bf16.msra.mxu0 %v1080
      %1176 = vmatprep.subr.bf16.mxu0 %v1079
      %1177 = vmatpush2.bf16.msra.mxu0 %v1078
      %1178 = vmatprep.subr.bf16.mxu0 %v1077
      %1179 = vmatpush2.bf16.msra.mxu0 %v1076
      %1180 = vmatprep.subr.bf16.mxu0 %v1075
      %1181 = vmatpush2.bf16.msra.mxu0 %v1074
      %1182 = vmatprep.subr.bf16.mxu0 %v1073
      %1183 = vmatpush2.bf16.msra.mxu0 %v1072
      %1184 = vmatprep.mubr.bf16.mxu0 %v829
      %1185 = vmatmul.mubr.bf16.gmra.mxu0 %v828
      %v1186 = vpop.f32.mrf.mxu0
      %v1187 = vadd.f32 %v905, %v1186
      %v1188 = vpop.f32.mrf.mxu0
      %v1189 = vadd.f32 %v909, %v1188
      %v1190 = vpop.f32.mrf.mxu0
      %v1191 = vadd.f32 %v905, %v1190
      %v1192 = vpop.f32.mrf.mxu0
      %v1193 = vadd.f32 %v909, %v1192
      %1194 = vmatprep.mubr.bf16.mxu0 %v832
      %1195 = vmatmul.mubr.bf16.gmra.mxu0 %v831
      %v1196 = vpop.f32.mrf.mxu0
      %v1197 = vadd.f32 %v905, %v1196
      %v1198 = vpop.f32.mrf.mxu0
      %v1199 = vadd.f32 %v909, %v1198
      %v1200 = vpop.f32.mrf.mxu0
      %v1201 = vadd.f32 %v905, %v1200
      %v1202 = vpop.f32.mrf.mxu0
      %v1203 = vadd.f32 %v909, %v1202
      %1204 = vmatprep.mubr.bf16.mxu0 %v835
      %1205 = vmatmul.mubr.bf16.gmra.mxu0 %v834
      %v1206 = vpop.f32.mrf.mxu0
      %v1207 = vadd.f32 %v905, %v1206
      %v1208 = vpop.f32.mrf.mxu0
      %v1209 = vadd.f32 %v909, %v1208
      %v1210 = vpop.f32.mrf.mxu0
      %v1211 = vadd.f32 %v905, %v1210
      %v1212 = vpop.f32.mrf.mxu0
      %v1213 = vadd.f32 %v909, %v1212
      %1214 = vmatprep.mubr.bf16.mxu0 %v838
      %1215 = vmatmul.mubr.bf16.gmra.mxu0 %v837
      %v1216 = vpop.f32.mrf.mxu0
      %v1217 = vadd.f32 %v905, %v1216
      %v1218 = vpop.f32.mrf.mxu0
      %v1219 = vadd.f32 %v909, %v1218
      %v1220 = vpop.f32.mrf.mxu0
      %v1221 = vadd.f32 %v905, %v1220
      %v1222 = vpop.f32.mrf.mxu0
      %v1223 = vadd.f32 %v909, %v1222
      %1224 = vmatprep.mubr.bf16.mxu0 %v841
      %1225 = vmatmul.mubr.bf16.gmra.mxu0 %v840
      %v1226 = vpop.f32.mrf.mxu0
      %v1227 = vadd.f32 %v905, %v1226
      %v1228 = vpop.f32.mrf.mxu0
      %v1229 = vadd.f32 %v909, %v1228
      %v1230 = vpop.f32.mrf.mxu0
      %v1231 = vadd.f32 %v905, %v1230
      %v1232 = vpop.f32.mrf.mxu0
      %v1233 = vadd.f32 %v909, %v1232
      %1234 = vmatprep.mubr.bf16.mxu0 %v844
      %1235 = vmatmul.mubr.bf16.gmra.mxu0 %v843
      %v1236 = vpop.f32.mrf.mxu0
      %v1237 = vadd.f32 %v905, %v1236
      %v1238 = vpop.f32.mrf.mxu0
      %v1239 = vadd.f32 %v909, %v1238
      %v1240 = vpop.f32.mrf.mxu0
      %v1241 = vadd.f32 %v905, %v1240
      %v1242 = vpop.f32.mrf.mxu0
      %v1243 = vadd.f32 %v909, %v1242
      %1244 = vmatprep.mubr.bf16.mxu0 %v847
      %1245 = vmatmul.mubr.bf16.gmra.mxu0 %v846
      %v1246 = vpop.f32.mrf.mxu0
      %v1247 = vadd.f32 %v905, %v1246
      %v1248 = vpop.f32.mrf.mxu0
      %v1249 = vadd.f32 %v909, %v1248
      %v1250 = vpop.f32.mrf.mxu0
      %v1251 = vadd.f32 %v905, %v1250
      %v1252 = vpop.f32.mrf.mxu0
      %v1253 = vadd.f32 %v909, %v1252
      %1254 = vmatprep.mubr.bf16.mxu0 %v850
      %1255 = vmatmul.mubr.bf16.gmra.mxu0 %v849
      %v1256 = vpop.f32.mrf.mxu0
      %v1257 = vadd.f32 %v905, %v1256
      %v1258 = vpop.f32.mrf.mxu0
      %v1259 = vadd.f32 %v909, %v1258
      %v1260 = vpop.f32.mrf.mxu0
      %v1261 = vadd.f32 %v905, %v1260
      %v1262 = vpop.f32.mrf.mxu0
      %v1263 = vadd.f32 %v909, %v1262
      %1264 = vdwg.mxu0
      %1265 = vmatprep.subr.bf16.mxu0 %v1103
      %1266 = vmatpush1.bf16.msra.mxu0 %v1102
      %1267 = vmatprep.subr.bf16.mxu0 %v1101
      %1268 = vmatpush1.bf16.msra.mxu0 %v1100
      %1269 = vmatprep.subr.bf16.mxu0 %v1099
      %1270 = vmatpush1.bf16.msra.mxu0 %v1098
      %1271 = vmatprep.subr.bf16.mxu0 %v1097
      %1272 = vmatpush1.bf16.msra.mxu0 %v1096
      %1273 = vmatprep.subr.bf16.mxu0 %v1095
      %1274 = vmatpush1.bf16.msra.mxu0 %v1094
      %1275 = vmatprep.subr.bf16.mxu0 %v1093
      %1276 = vmatpush1.bf16.msra.mxu0 %v1092
      %1277 = vmatprep.subr.bf16.mxu0 %v1091
      %1278 = vmatpush1.bf16.msra.mxu0 %v1090
      %1279 = vmatprep.subr.bf16.mxu0 %v1089
      %1280 = vmatpush1.bf16.msra.mxu0 %v1088
      %1281 = vmatprep.subr.bf16.mxu0 0
      %1282 = vmatpush2.bf16.msra.mxu0 0
      %1283 = vmatprep.subr.bf16.mxu0 0
      %1284 = vmatpush2.bf16.msra.mxu0 0
      %1285 = vmatprep.subr.bf16.mxu0 0
      %1286 = vmatpush2.bf16.msra.mxu0 0
      %1287 = vmatprep.subr.bf16.mxu0 0
      %1288 = vmatpush2.bf16.msra.mxu0 0
      %1289 = vmatprep.subr.bf16.mxu0 0
      %1290 = vmatpush2.bf16.msra.mxu0 0
      %1291 = vmatprep.subr.bf16.mxu0 0
      %1292 = vmatpush2.bf16.msra.mxu0 0
      %1293 = vmatprep.subr.bf16.mxu0 0
      %1294 = vmatpush2.bf16.msra.mxu0 0
      %1295 = vmatprep.subr.bf16.mxu0 0
      %1296 = vmatpush2.bf16.msra.mxu0 0
      %1297 = vmatprep.mubr.bf16.mxu0 0
      %1298 = vmatmul.mubr.bf16.gmra.mxu0 %v830
      %v1299 = vpop.f32.mrf.mxu0
      %v1300 = vadd.f32 %v1187, %v1299
      %v1301 = vpop.f32.mrf.mxu0
      %v1302 = vadd.f32 %v1189, %v1301
      %v1303 = vpop.f32.mrf.mxu0
      %v1304 = vadd.f32 %v1191, %v1303
      %v1305 = vpop.f32.mrf.mxu0
      %v1306 = vadd.f32 %v1193, %v1305
      %1307 = vmatprep.mubr.bf16.mxu0 0
      %1308 = vmatmul.mubr.bf16.gmra.mxu0 %v833
      %v1309 = vpop.f32.mrf.mxu0
      %v1310 = vadd.f32 %v1197, %v1309
      %v1311 = vpop.f32.mrf.mxu0
      %v1312 = vadd.f32 %v1199, %v1311
      %v1313 = vpop.f32.mrf.mxu0
      %v1314 = vadd.f32 %v1201, %v1313
      %v1315 = vpop.f32.mrf.mxu0
      %v1316 = vadd.f32 %v1203, %v1315
      %1317 = vmatprep.mubr.bf16.mxu0 0
      %1318 = vmatmul.mubr.bf16.gmra.mxu0 %v836
      %v1319 = vpop.f32.mrf.mxu0
      %v1320 = vadd.f32 %v1207, %v1319
      %v1321 = vpop.f32.mrf.mxu0
      %v1322 = vadd.f32 %v1209, %v1321
      %v1323 = vpop.f32.mrf.mxu0
      %v1324 = vadd.f32 %v1211, %v1323
      %v1325 = vpop.f32.mrf.mxu0
      %v1326 = vadd.f32 %v1213, %v1325
      %1327 = vmatprep.mubr.bf16.mxu0 0
      %1328 = vmatmul.mubr.bf16.gmra.mxu0 %v839
      %v1329 = vpop.f32.mrf.mxu0
      %v1330 = vadd.f32 %v1217, %v1329
      %v1331 = vpop.f32.mrf.mxu0
      %v1332 = vadd.f32 %v1219, %v1331
      %v1333 = vpop.f32.mrf.mxu0
      %v1334 = vadd.f32 %v1221, %v1333
      %v1335 = vpop.f32.mrf.mxu0
      %v1336 = vadd.f32 %v1223, %v1335
      %1337 = vmatprep.mubr.bf16.mxu0 0
      %1338 = vmatmul.mubr.bf16.gmra.mxu0 %v842
      %v1339 = vpop.f32.mrf.mxu0
      %v1340 = vadd.f32 %v1227, %v1339
      %v1341 = vpop.f32.mrf.mxu0
      %v1342 = vadd.f32 %v1229, %v1341
      %v1343 = vpop.f32.mrf.mxu0
      %v1344 = vadd.f32 %v1231, %v1343
      %v1345 = vpop.f32.mrf.mxu0
      %v1346 = vadd.f32 %v1233, %v1345
      %1347 = vmatprep.mubr.bf16.mxu0 0
      %1348 = vmatmul.mubr.bf16.gmra.mxu0 %v845
      %v1349 = vpop.f32.mrf.mxu0
      %v1350 = vadd.f32 %v1237, %v1349
      %v1351 = vpop.f32.mrf.mxu0
      %v1352 = vadd.f32 %v1239, %v1351
      %v1353 = vpop.f32.mrf.mxu0
      %v1354 = vadd.f32 %v1241, %v1353
      %v1355 = vpop.f32.mrf.mxu0
      %v1356 = vadd.f32 %v1243, %v1355
      %1357 = vmatprep.mubr.bf16.mxu0 0
      %1358 = vmatmul.mubr.bf16.gmra.mxu0 %v848
      %v1359 = vpop.f32.mrf.mxu0
      %v1360 = vadd.f32 %v1247, %v1359
      %v1361 = vpop.f32.mrf.mxu0
      %v1362 = vadd.f32 %v1249, %v1361
      %v1363 = vpop.f32.mrf.mxu0
      %v1364 = vadd.f32 %v1251, %v1363
      %v1365 = vpop.f32.mrf.mxu0
      %v1366 = vadd.f32 %v1253, %v1365
      %1367 = vmatprep.mubr.bf16.mxu0 0
      %1368 = vmatmul.mubr.bf16.gmra.mxu0 %v851
      %v1369 = vpop.f32.mrf.mxu0
      %v1370 = vadd.f32 %v1257, %v1369
      %v1371 = vpop.f32.mrf.mxu0
      %v1372 = vadd.f32 %v1259, %v1371
      %v1373 = vpop.f32.mrf.mxu0
      %v1374 = vadd.f32 %v1261, %v1373
      %v1375 = vpop.f32.mrf.mxu0
      %v1376 = vadd.f32 %v1263, %v1375
      %1377 = vdwg.mxu0
      %v1378 = vmax.f32 %v1300, 0.0
      %v1379 = vmax.f32 %v1302, 0.0
      %v1380 = vmax.f32 %v1304, 0.0
      %v1381 = vmax.f32 %v1306, 0.0
      %v1382 = vmax.f32 %v1310, 0.0
      %v1383 = vmax.f32 %v1312, 0.0
      %v1384 = vmax.f32 %v1314, 0.0
      %v1385 = vmax.f32 %v1316, 0.0
      %v1386 = vmax.f32 %v1320, 0.0
      %v1387 = vmax.f32 %v1322, 0.0
      %v1388 = vmax.f32 %v1324, 0.0
      %v1389 = vmax.f32 %v1326, 0.0
      %v1390 = vmax.f32 %v1330, 0.0
      %v1391 = vmax.f32 %v1332, 0.0
      %v1392 = vmax.f32 %v1334, 0.0
      %v1393 = vmax.f32 %v1336, 0.0
      %v1394 = vmax.f32 %v1340, 0.0
      %v1395 = vmax.f32 %v1342, 0.0
      %v1396 = vmax.f32 %v1344, 0.0
      %v1397 = vmax.f32 %v1346, 0.0
      %v1398 = vmax.f32 %v1350, 0.0
      %v1399 = vmax.f32 %v1352, 0.0
      %v1400 = vmax.f32 %v1354, 0.0
      %v1401 = vmax.f32 %v1356, 0.0
      %v1402 = vmax.f32 %v1360, 0.0
      %v1403 = vmax.f32 %v1362, 0.0
      %v1404 = vmax.f32 %v1364, 0.0
      %v1405 = vmax.f32 %v1366, 0.0
      %v1406 = vmax.f32 %v1370, 0.0
      %v1407 = vmax.f32 %v1372, 0.0
      %v1408 = vmax.f32 %v1374, 0.0
      %v1409 = vmax.f32 %v1376, 0.0
      %v1410 = vpack.c.bf16 %v1380, 0.0
      %v1411 = vpack.c.bf16 %v1381, 0.0
      %v1412 = vpack.c.bf16 %v1382, %v1378
      %v1413 = vpack.c.bf16 %v1383, %v1379
      %v1414 = vpack.c.bf16 %v1384, %v1380
      %v1415 = vpack.c.bf16 %v1385, %v1381
      %v1416 = vpack.c.bf16 %v1388, %v1384
      %v1417 = vpack.c.bf16 %v1389, %v1385
      %v1418 = vpack.c.bf16 %v1390, %v1386
      %v1419 = vpack.c.bf16 %v1391, %v1387
      %v1420 = vpack.c.bf16 %v1392, %v1388
      %v1421 = vpack.c.bf16 %v1393, %v1389
      %v1422 = vpack.c.bf16 %v1396, %v1392
      %v1423 = vpack.c.bf16 %v1397, %v1393
      %v1424 = vpack.c.bf16 %v1398, %v1394
      %v1425 = vpack.c.bf16 %v1399, %v1395
      %v1426 = vpack.c.bf16 %v1400, %v1396
      %v1427 = vpack.c.bf16 %v1401, %v1397
      %v1428 = vpack.c.bf16 %v1404, %v1400
      %v1429 = vpack.c.bf16 %v1405, %v1401
      %v1430 = vpack.c.bf16 %v1406, %v1402
      %v1431 = vpack.c.bf16 %v1407, %v1403
      %v1432 = vpack.c.bf16 %v1408, %v1404
      %v1433 = vpack.c.bf16 %v1409, %v1405
      %v1434 = vld [vmem:[%s3] sm:$0xff]
      %v1435 = vld [vmem:[%s3 + $0x8] sm:$0xff]
      %v1436 = vld [vmem:[%s3 + $0x10] sm:$0xff]
      %v1437 = vld [vmem:[%s3 + $0x18] sm:$0xff]
      %v1438 = vld [vmem:[%s3 + $0x20] sm:$0xff]
      %v1439 = vld [vmem:[%s3 + $0x28] sm:$0xff]
      %v1440 = vld [vmem:[%s3 + $0x30] sm:$0xff]
      %v1441 = vld [vmem:[%s3 + $0x38] sm:$0xff]
      %v1442 = vld [vmem:[%s3 + $0x40] sm:$0xff]
      %v1443 = vld [vmem:[%s3 + $0x48] sm:$0xff]
      %v1444 = vld [vmem:[%s3 + $0x50] sm:$0xff]
      %v1445 = vld [vmem:[%s3 + $0x58] sm:$0xff]
      %v1446 = vld [vmem:[%s3 + $0x60] sm:$0xff]
      %v1447 = vld [vmem:[%s3 + $0x68] sm:$0xff]
      %v1448 = vld [vmem:[%s3 + $0x70] sm:$0xff]
      %v1449 = vld [vmem:[%s3 + $0x78] sm:$0xff]
      %v1450 = vld [vmem:[%s3 + $0x80] sm:$0xff]
      %v1451 = vld [vmem:[%s3 + $0x88] sm:$0xff]
      %v1452 = vld [vmem:[%s3 + $0x90] sm:$0xff]
      %v1453 = vld [vmem:[%s3 + $0x98] sm:$0xff]
      %v1454 = vld [vmem:[%s3 + $0xa0] sm:$0xff]
      %v1455 = vld [vmem:[%s3 + $0xa8] sm:$0xff]
      %v1456 = vld [vmem:[%s3 + $0xb0] sm:$0xff]
      %v1457 = vld [vmem:[%s3 + $0xb8] sm:$0xff]
      %v1458 = vld [vmem:[%s3 + $0xc0] sm:$0xff]
      %v1459 = vld [vmem:[%s3 + $0xc8] sm:$0xff]
      %v1460 = vld [vmem:[%s3 + $0xd0] sm:$0xff]
      %v1461 = vld [vmem:[%s3 + $0xd8] sm:$0xff]
      %v1462 = vld [vmem:[%s3 + $0xe0] sm:$0xff]
      %v1463 = vld [vmem:[%s3 + $0xe8] sm:$0xff]
      %v1464 = vld [vmem:[%s3 + $0xf0] sm:$0xff]
      %v1465 = vld [vmem:[%s3 + $0xf8] sm:$0xff]
      %v1466 = vld [vmem:[%s3 + $0x100] sm:$0xff]
      %v1467 = vld [vmem:[%s3 + $0x108] sm:$0xff]
      %v1468 = vld [vmem:[%s3 + $0x110] sm:$0xff]
      %v1469 = vld [vmem:[%s3 + $0x118] sm:$0xff]
      %v1470 = vld [vmem:[%s3 + $0x120] sm:$0xff]
      %v1471 = vld [vmem:[%s3 + $0x128] sm:$0xff]
      %v1472 = vld [vmem:[%s3 + $0x130] sm:$0xff]
      %v1473 = vld [vmem:[%s3 + $0x138] sm:$0xff]
      %v1474 = vld [vmem:[%s3 + $0x140] sm:$0xff]
      %v1475 = vld [vmem:[%s3 + $0x148] sm:$0xff]
      %v1476 = vld [vmem:[%s3 + $0x150] sm:$0xff]
      %v1477 = vld [vmem:[%s3 + $0x158] sm:$0xff]
      %v1478 = vld [vmem:[%s3 + $0x160] sm:$0xff]
      %v1479 = vld [vmem:[%s3 + $0x168] sm:$0xff]
      %v1480 = vld [vmem:[%s3 + $0x170] sm:$0xff]
      %v1481 = vld [vmem:[%s3 + $0x178] sm:$0xff]
      %v1482 = vld [vmem:[%s3 + $0x180] sm:$0xff]
      %v1483 = vld [vmem:[%s3 + $0x188] sm:$0xff]
      %v1484 = vld [vmem:[%s3 + $0x190] sm:$0xff]
      %v1485 = vld [vmem:[%s3 + $0x198] sm:$0xff]
      %v1486 = vld [vmem:[%s3 + $0x1a0] sm:$0xff]
      %v1487 = vld [vmem:[%s3 + $0x1a8] sm:$0xff]
      %v1488 = vld [vmem:[%s3 + $0x1b0] sm:$0xff]
      %v1489 = vld [vmem:[%s3 + $0x1b8] sm:$0xff]
      %v1490 = vld [vmem:[%s3 + $0x1c0] sm:$0xff]
      %v1491 = vld [vmem:[%s3 + $0x1c8] sm:$0xff]
      %v1492 = vld [vmem:[%s3 + $0x1d0] sm:$0xff]
      %v1493 = vld [vmem:[%s3 + $0x1d8] sm:$0xff]
      %v1494 = vld [vmem:[%s3 + $0x1e0] sm:$0xff]
      %v1495 = vld [vmem:[%s3 + $0x1e8] sm:$0xff]
      %v1496 = vld [vmem:[%s3 + $0x1f0] sm:$0xff]
      %v1497 = vld [vmem:[%s3 + $0x1f8] sm:$0xff]
      %v1498 = vld [vmem:[%s3 + $0x200] sm:$0xff]
      %v1499 = vld [vmem:[%s3 + $0x208] sm:$0xff]
      %v1500 = vld [vmem:[%s3 + $0x210] sm:$0xff]
      %v1501 = vld [vmem:[%s3 + $0x218] sm:$0xff]
      %v1502 = vld [vmem:[%s3 + $0x220] sm:$0xff]
      %v1503 = vld [vmem:[%s3 + $0x228] sm:$0xff]
      %v1504 = vld [vmem:[%s3 + $0x230] sm:$0xff]
      %v1505 = vld [vmem:[%s3 + $0x238] sm:$0xff]
      %v1506 = vld [vmem:[%s3 + $0x240] sm:$0xff]
      %v1507 = vld [vmem:[%s3 + $0x248] sm:$0xff]
      %v1508 = vld [vmem:[%s3 + $0x250] sm:$0xff]
      %v1509 = vld [vmem:[%s3 + $0x258] sm:$0xff]
      %v1510 = vld [vmem:[%s3 + $0x260] sm:$0xff]
      %v1511 = vld [vmem:[%s3 + $0x268] sm:$0xff]
      %v1512 = vld [vmem:[%s3 + $0x270] sm:$0xff]
      %v1513 = vld [vmem:[%s3 + $0x278] sm:$0xff]
      %v1514 = vld [vmem:[%s3 + $0x280] sm:$0xff]
      %v1515 = vld [vmem:[%s3 + $0x288] sm:$0xff]
      %v1516 = vld [vmem:[%s3 + $0x290] sm:$0xff]
      %v1517 = vld [vmem:[%s3 + $0x298] sm:$0xff]
      %v1518 = vld [vmem:[%s3 + $0x2a0] sm:$0xff]
      %v1519 = vld [vmem:[%s3 + $0x2a8] sm:$0xff]
      %v1520 = vld [vmem:[%s3 + $0x2b0] sm:$0xff]
      %v1521 = vld [vmem:[%s3 + $0x2b8] sm:$0xff]
      %v1522 = vld [vmem:[%s3 + $0x2c0] sm:$0xff]
      %v1523 = vld [vmem:[%s3 + $0x2c8] sm:$0xff]
      %v1524 = vld [vmem:[%s3 + $0x2d0] sm:$0xff]
      %v1525 = vld [vmem:[%s3 + $0x2d8] sm:$0xff]
      %v1526 = vld [vmem:[%s3 + $0x2e0] sm:$0xff]
      %v1527 = vld [vmem:[%s3 + $0x2e8] sm:$0xff]
      %v1528 = vld [vmem:[%s3 + $0x2f0] sm:$0xff]
      %v1529 = vld [vmem:[%s3 + $0x2f8] sm:$0xff]
      %v1530 = vld [vmem:[%s4] sm:$0x3]
      %v1532 = vlaneseq
      %v1533 = vshrl.u32 %v1532, 7
      %v1534 = vsub.s32 0, %v1533
      %v1535 = vrot.slane %v1530, %v1534
      %v1536 = vlaneseq
      %v1537 = vshrl.u32 %v1536, 7
      %v1538 = vsub.s32 1, %v1537
      %v1539 = vrot.slane %v1530, %v1538
      %v1638 = vunpack.c.l.b16 %v1434
      %v1639 = vunpack.c.h.b16 %v1434
      %v1640 = vunpack.c.l.b16 %v1435
      %v1641 = vunpack.c.h.b16 %v1435
      %v1642 = vunpack.c.l.b16 %v1436
      %v1643 = vunpack.c.h.b16 %v1436
      %v1644 = vunpack.c.l.b16 %v1437
      %v1645 = vunpack.c.h.b16 %v1437
      %v1646 = vunpack.c.l.b16 %v1438
      %v1647 = vunpack.c.h.b16 %v1438
      %v1648 = vunpack.c.l.b16 %v1439
      %v1649 = vunpack.c.h.b16 %v1439
      %v1650 = vunpack.c.l.b16 %v1440
      %v1651 = vunpack.c.h.b16 %v1440
      %v1652 = vunpack.c.l.b16 %v1441
      %v1653 = vunpack.c.h.b16 %v1441
      %v1654 = vunpack.c.l.b16 %v1442
      %v1655 = vunpack.c.h.b16 %v1442
      %v1656 = vunpack.c.l.b16 %v1443
      %v1657 = vunpack.c.h.b16 %v1443
      %v1658 = vunpack.c.l.b16 %v1444
      %v1659 = vunpack.c.h.b16 %v1444
      %v1660 = vunpack.c.l.b16 %v1445
      %v1661 = vunpack.c.h.b16 %v1445
      %v1662 = vunpack.c.l.b16 %v1446
      %v1663 = vunpack.c.h.b16 %v1446
      %v1664 = vunpack.c.l.b16 %v1447
      %v1665 = vunpack.c.h.b16 %v1447
      %v1666 = vunpack.c.l.b16 %v1448
      %v1667 = vunpack.c.h.b16 %v1448
      %v1668 = vunpack.c.l.b16 %v1449
      %v1669 = vunpack.c.h.b16 %v1449
      %v1670 = vunpack.c.l.b16 %v1450
      %v1671 = vunpack.c.h.b16 %v1450
      %v1672 = vunpack.c.l.b16 %v1451
      %v1673 = vunpack.c.h.b16 %v1451
      %v1674 = vunpack.c.l.b16 %v1452
      %v1675 = vunpack.c.h.b16 %v1452
      %v1676 = vunpack.c.l.b16 %v1453
      %v1677 = vunpack.c.h.b16 %v1453
      %v1678 = vunpack.c.l.b16 %v1454
      %v1679 = vunpack.c.h.b16 %v1454
      %v1680 = vunpack.c.l.b16 %v1455
      %v1681 = vunpack.c.h.b16 %v1455
      %v1682 = vunpack.c.l.b16 %v1456
      %v1683 = vunpack.c.h.b16 %v1456
      %v1684 = vunpack.c.l.b16 %v1457
      %v1685 = vunpack.c.h.b16 %v1457
      %v1686 = vunpack.c.l.b16 %v1458
      %v1687 = vunpack.c.h.b16 %v1458
      %v1688 = vunpack.c.l.b16 %v1459
      %v1689 = vunpack.c.h.b16 %v1459
      %v1690 = vunpack.c.l.b16 %v1460
      %v1691 = vunpack.c.h.b16 %v1460
      %v1692 = vunpack.c.l.b16 %v1461
      %v1693 = vunpack.c.h.b16 %v1461
      %v1694 = vunpack.c.l.b16 %v1462
      %v1695 = vunpack.c.h.b16 %v1462
      %v1696 = vunpack.c.l.b16 %v1463
      %v1697 = vunpack.c.h.b16 %v1463
      %v1698 = vunpack.c.l.b16 %v1464
      %v1699 = vunpack.c.h.b16 %v1464
      %v1700 = vunpack.c.l.b16 %v1465
      %v1701 = vunpack.c.h.b16 %v1465
      %v1702 = vunpack.c.l.b16 %v1466
      %v1703 = vunpack.c.h.b16 %v1466
      %v1704 = vunpack.c.l.b16 %v1467
      %v1705 = vunpack.c.h.b16 %v1467
      %v1706 = vunpack.c.l.b16 %v1468
      %v1707 = vunpack.c.h.b16 %v1468
      %v1708 = vunpack.c.l.b16 %v1469
      %v1709 = vunpack.c.h.b16 %v1469
      %v1710 = vunpack.c.l.b16 %v1470
      %v1711 = vunpack.c.h.b16 %v1470
      %v1712 = vunpack.c.l.b16 %v1471
      %v1713 = vunpack.c.h.b16 %v1471
      %v1714 = vunpack.c.l.b16 %v1472
      %v1715 = vunpack.c.h.b16 %v1472
      %v1716 = vunpack.c.l.b16 %v1473
      %v1717 = vunpack.c.h.b16 %v1473
      %v1718 = vunpack.c.l.b16 %v1474
      %v1719 = vunpack.c.h.b16 %v1474
      %v1720 = vunpack.c.l.b16 %v1475
      %v1721 = vunpack.c.h.b16 %v1475
      %v1722 = vunpack.c.l.b16 %v1476
      %v1723 = vunpack.c.h.b16 %v1476
      %v1724 = vunpack.c.l.b16 %v1477
      %v1725 = vunpack.c.h.b16 %v1477
      %v1726 = vunpack.c.l.b16 %v1478
      %v1727 = vunpack.c.h.b16 %v1478
      %v1728 = vunpack.c.l.b16 %v1479
      %v1729 = vunpack.c.h.b16 %v1479
      %v1730 = vunpack.c.l.b16 %v1480
      %v1731 = vunpack.c.h.b16 %v1480
      %v1732 = vunpack.c.l.b16 %v1481
      %v1733 = vunpack.c.h.b16 %v1481
      %v1734 = vunpack.c.l.b16 %v1482
      %v1735 = vunpack.c.h.b16 %v1482
      %v1736 = vunpack.c.l.b16 %v1483
      %v1737 = vunpack.c.h.b16 %v1483
      %v1738 = vunpack.c.l.b16 %v1484
      %v1739 = vunpack.c.h.b16 %v1484
      %v1740 = vunpack.c.l.b16 %v1485
      %v1741 = vunpack.c.h.b16 %v1485
      %v1742 = vunpack.c.l.b16 %v1486
      %v1743 = vunpack.c.h.b16 %v1486
      %v1744 = vunpack.c.l.b16 %v1487
      %v1745 = vunpack.c.h.b16 %v1487
      %v1746 = vunpack.c.l.b16 %v1488
      %v1747 = vunpack.c.h.b16 %v1488
      %v1748 = vunpack.c.l.b16 %v1489
      %v1749 = vunpack.c.h.b16 %v1489
      %v1750 = vunpack.c.l.b16 %v1490
      %v1751 = vunpack.c.h.b16 %v1490
      %v1752 = vunpack.c.l.b16 %v1491
      %v1753 = vunpack.c.h.b16 %v1491
      %v1754 = vunpack.c.l.b16 %v1492
      %v1755 = vunpack.c.h.b16 %v1492
      %v1756 = vunpack.c.l.b16 %v1493
      %v1757 = vunpack.c.h.b16 %v1493
      %v1758 = vunpack.c.l.b16 %v1494
      %v1759 = vunpack.c.h.b16 %v1494
      %v1760 = vunpack.c.l.b16 %v1495
      %v1761 = vunpack.c.h.b16 %v1495
      %v1762 = vunpack.c.l.b16 %v1496
      %v1763 = vunpack.c.h.b16 %v1496
      %v1764 = vunpack.c.l.b16 %v1497
      %v1765 = vunpack.c.h.b16 %v1497
      %v1766 = vunpack.c.l.b16 %v1498
      %v1767 = vunpack.c.h.b16 %v1498
      %v1768 = vunpack.c.l.b16 %v1499
      %v1769 = vunpack.c.h.b16 %v1499
      %v1770 = vunpack.c.l.b16 %v1500
      %v1771 = vunpack.c.h.b16 %v1500
      %v1772 = vunpack.c.l.b16 %v1501
      %v1773 = vunpack.c.h.b16 %v1501
      %v1774 = vunpack.c.l.b16 %v1502
      %v1775 = vunpack.c.h.b16 %v1502
      %v1776 = vunpack.c.l.b16 %v1503
      %v1777 = vunpack.c.h.b16 %v1503
      %v1778 = vunpack.c.l.b16 %v1504
      %v1779 = vunpack.c.h.b16 %v1504
      %v1780 = vunpack.c.l.b16 %v1505
      %v1781 = vunpack.c.h.b16 %v1505
      %v1782 = vunpack.c.l.b16 %v1506
      %v1783 = vunpack.c.h.b16 %v1506
      %v1784 = vunpack.c.l.b16 %v1507
      %v1785 = vunpack.c.h.b16 %v1507
      %v1786 = vunpack.c.l.b16 %v1508
      %v1787 = vunpack.c.h.b16 %v1508
      %v1788 = vunpack.c.l.b16 %v1509
      %v1789 = vunpack.c.h.b16 %v1509
      %v1790 = vunpack.c.l.b16 %v1510
      %v1791 = vunpack.c.h.b16 %v1510
      %v1792 = vunpack.c.l.b16 %v1511
      %v1793 = vunpack.c.h.b16 %v1511
      %v1794 = vunpack.c.l.b16 %v1512
      %v1795 = vunpack.c.h.b16 %v1512
      %v1796 = vunpack.c.l.b16 %v1513
      %v1797 = vunpack.c.h.b16 %v1513
      %v1798 = vunpack.c.l.b16 %v1514
      %v1799 = vunpack.c.h.b16 %v1514
      %v1800 = vunpack.c.l.b16 %v1515
      %v1801 = vunpack.c.h.b16 %v1515
      %v1802 = vunpack.c.l.b16 %v1516
      %v1803 = vunpack.c.h.b16 %v1516
      %v1804 = vunpack.c.l.b16 %v1517
      %v1805 = vunpack.c.h.b16 %v1517
      %v1806 = vunpack.c.l.b16 %v1518
      %v1807 = vunpack.c.h.b16 %v1518
      %v1808 = vunpack.c.l.b16 %v1519
      %v1809 = vunpack.c.h.b16 %v1519
      %v1810 = vunpack.c.l.b16 %v1520
      %v1811 = vunpack.c.h.b16 %v1520
      %v1812 = vunpack.c.l.b16 %v1521
      %v1813 = vunpack.c.h.b16 %v1521
      %v1814 = vunpack.c.l.b16 %v1522
      %v1815 = vunpack.c.h.b16 %v1522
      %v1816 = vunpack.c.l.b16 %v1523
      %v1817 = vunpack.c.h.b16 %v1523
      %v1818 = vunpack.c.l.b16 %v1524
      %v1819 = vunpack.c.h.b16 %v1524
      %v1820 = vunpack.c.l.b16 %v1525
      %v1821 = vunpack.c.h.b16 %v1525
      %v1822 = vunpack.c.l.b16 %v1526
      %v1823 = vunpack.c.h.b16 %v1526
      %v1824 = vunpack.c.l.b16 %v1527
      %v1825 = vunpack.c.h.b16 %v1527
      %v1826 = vunpack.c.l.b16 %v1528
      %v1827 = vunpack.c.h.b16 %v1528
      %v1828 = vunpack.c.l.b16 %v1529
      %v1829 = vunpack.c.h.b16 %v1529
      %v1830 = vpack.c.b16 %v1640, %v1638
      %v1831 = vpack.c.b16 %v1641, %v1639
      %v1832 = vpack.c.b16 %v1644, %v1642
      %v1833 = vpack.c.b16 %v1645, %v1643
      %v1834 = vpack.c.b16 %v1648, %v1646
      %v1835 = vpack.c.b16 %v1649, %v1647
      %v1836 = vpack.c.b16 %v1652, %v1650
      %v1837 = vpack.c.b16 %v1653, %v1651
      %v1838 = vpack.c.b16 %v1656, %v1654
      %v1839 = vpack.c.b16 %v1657, %v1655
      %v1840 = vpack.c.b16 %v1660, %v1658
      %v1841 = vpack.c.b16 %v1661, %v1659
      %v1842 = vpack.c.b16 %v1664, %v1662
      %v1843 = vpack.c.b16 %v1665, %v1663
      %v1844 = vpack.c.b16 %v1668, %v1666
      %v1845 = vpack.c.b16 %v1669, %v1667
      %v1846 = vpack.c.b16 %v1672, %v1670
      %v1847 = vpack.c.b16 %v1673, %v1671
      %v1848 = vpack.c.b16 %v1676, %v1674
      %v1849 = vpack.c.b16 %v1677, %v1675
      %v1850 = vpack.c.b16 %v1680, %v1678
      %v1851 = vpack.c.b16 %v1681, %v1679
      %v1852 = vpack.c.b16 %v1684, %v1682
      %v1853 = vpack.c.b16 %v1685, %v1683
      %v1854 = vpack.c.b16 %v1688, %v1686
      %v1855 = vpack.c.b16 %v1689, %v1687
      %v1856 = vpack.c.b16 %v1692, %v1690
      %v1857 = vpack.c.b16 %v1693, %v1691
      %v1858 = vpack.c.b16 %v1696, %v1694
      %v1859 = vpack.c.b16 %v1697, %v1695
      %v1860 = vpack.c.b16 %v1700, %v1698
      %v1861 = vpack.c.b16 %v1701, %v1699
      %v1862 = vpack.c.b16 %v1704, %v1702
      %v1863 = vpack.c.b16 %v1705, %v1703
      %v1864 = vpack.c.b16 %v1708, %v1706
      %v1865 = vpack.c.b16 %v1709, %v1707
      %v1866 = vpack.c.b16 %v1712, %v1710
      %v1867 = vpack.c.b16 %v1713, %v1711
      %v1868 = vpack.c.b16 %v1716, %v1714
      %v1869 = vpack.c.b16 %v1717, %v1715
      %v1870 = vpack.c.b16 %v1720, %v1718
      %v1871 = vpack.c.b16 %v1721, %v1719
      %v1872 = vpack.c.b16 %v1724, %v1722
      %v1873 = vpack.c.b16 %v1725, %v1723
      %v1874 = vpack.c.b16 %v1728, %v1726
      %v1875 = vpack.c.b16 %v1729, %v1727
      %v1876 = vpack.c.b16 %v1732, %v1730
      %v1877 = vpack.c.b16 %v1733, %v1731
      %v1878 = vpack.c.b16 %v1736, %v1734
      %v1879 = vpack.c.b16 %v1737, %v1735
      %v1880 = vpack.c.b16 %v1740, %v1738
      %v1881 = vpack.c.b16 %v1741, %v1739
      %v1882 = vpack.c.b16 %v1744, %v1742
      %v1883 = vpack.c.b16 %v1745, %v1743
      %v1884 = vpack.c.b16 %v1748, %v1746
      %v1885 = vpack.c.b16 %v1749, %v1747
      %v1886 = vpack.c.b16 %v1752, %v1750
      %v1887 = vpack.c.b16 %v1753, %v1751
      %v1888 = vpack.c.b16 %v1756, %v1754
      %v1889 = vpack.c.b16 %v1757, %v1755
      %v1890 = vpack.c.b16 %v1760, %v1758
      %v1891 = vpack.c.b16 %v1761, %v1759
      %v1892 = vpack.c.b16 %v1764, %v1762
      %v1893 = vpack.c.b16 %v1765, %v1763
      %v1894 = vpack.c.b16 %v1768, %v1766
      %v1895 = vpack.c.b16 %v1769, %v1767
      %v1896 = vpack.c.b16 %v1772, %v1770
      %v1897 = vpack.c.b16 %v1773, %v1771
      %v1898 = vpack.c.b16 %v1776, %v1774
      %v1899 = vpack.c.b16 %v1777, %v1775
      %v1900 = vpack.c.b16 %v1780, %v1778
      %v1901 = vpack.c.b16 %v1781, %v1779
      %v1902 = vpack.c.b16 %v1784, %v1782
      %v1903 = vpack.c.b16 %v1785, %v1783
      %v1904 = vpack.c.b16 %v1788, %v1786
      %v1905 = vpack.c.b16 %v1789, %v1787
      %v1906 = vpack.c.b16 %v1792, %v1790
      %v1907 = vpack.c.b16 %v1793, %v1791
      %v1908 = vpack.c.b16 %v1796, %v1794
      %v1909 = vpack.c.b16 %v1797, %v1795
      %v1910 = vpack.c.b16 %v1800, %v1798
      %v1911 = vpack.c.b16 %v1801, %v1799
      %v1912 = vpack.c.b16 %v1804, %v1802
      %v1913 = vpack.c.b16 %v1805, %v1803
      %v1914 = vpack.c.b16 %v1808, %v1806
      %v1915 = vpack.c.b16 %v1809, %v1807
      %v1916 = vpack.c.b16 %v1812, %v1810
      %v1917 = vpack.c.b16 %v1813, %v1811
      %v1918 = vpack.c.b16 %v1816, %v1814
      %v1919 = vpack.c.b16 %v1817, %v1815
      %v1920 = vpack.c.b16 %v1820, %v1818
      %v1921 = vpack.c.b16 %v1821, %v1819
      %v1922 = vpack.c.b16 %v1824, %v1822
      %v1923 = vpack.c.b16 %v1825, %v1823
      %v1924 = vpack.c.b16 %v1828, %v1826
      %v1925 = vpack.c.b16 %v1829, %v1827
      %2022 = vmatprep.subr.bf16.mxu0 %v1845
      %2023 = vmatpush1.bf16.msra.mxu0 %v1844
      %2024 = vmatprep.subr.bf16.mxu0 %v1843
      %2025 = vmatpush1.bf16.msra.mxu0 %v1842
      %2026 = vmatprep.subr.bf16.mxu0 %v1841
      %2027 = vmatpush1.bf16.msra.mxu0 %v1840
      %2028 = vmatprep.subr.bf16.mxu0 %v1839
      %2029 = vmatpush1.bf16.msra.mxu0 %v1838
      %2030 = vmatprep.subr.bf16.mxu0 %v1837
      %2031 = vmatpush1.bf16.msra.mxu0 %v1836
      %2032 = vmatprep.subr.bf16.mxu0 %v1835
      %2033 = vmatpush1.bf16.msra.mxu0 %v1834
      %2034 = vmatprep.subr.bf16.mxu0 %v1833
      %2035 = vmatpush1.bf16.msra.mxu0 %v1832
      %2036 = vmatprep.subr.bf16.mxu0 %v1831
      %2037 = vmatpush1.bf16.msra.mxu0 %v1830
      %2038 = vmatprep.subr.bf16.mxu0 %v1861
      %2039 = vmatpush2.bf16.msra.mxu0 %v1860
      %2040 = vmatprep.subr.bf16.mxu0 %v1859
      %2041 = vmatpush2.bf16.msra.mxu0 %v1858
      %2042 = vmatprep.subr.bf16.mxu0 %v1857
      %2043 = vmatpush2.bf16.msra.mxu0 %v1856
      %2044 = vmatprep.subr.bf16.mxu0 %v1855
      %2045 = vmatpush2.bf16.msra.mxu0 %v1854
      %2046 = vmatprep.subr.bf16.mxu0 %v1853
      %2047 = vmatpush2.bf16.msra.mxu0 %v1852
      %2048 = vmatprep.subr.bf16.mxu0 %v1851
      %2049 = vmatpush2.bf16.msra.mxu0 %v1850
      %2050 = vmatprep.subr.bf16.mxu0 %v1849
      %2051 = vmatpush2.bf16.msra.mxu0 %v1848
      %2052 = vmatprep.subr.bf16.mxu0 %v1847
      %2053 = vmatpush2.bf16.msra.mxu0 %v1846
      %2054 = vmatprep.mubr.bf16.mxu0 %v1411
      %2055 = vmatmul.mubr.bf16.gmra.mxu0 %v1410
      %v2056 = vpop.f32.mrf.mxu0
      %v2057 = vadd.f32 %v1535, %v2056
      %v2058 = vpop.f32.mrf.mxu0
      %v2059 = vadd.f32 %v1539, %v2058
      %v2060 = vpop.f32.mrf.mxu0
      %v2061 = vadd.f32 %v1535, %v2060
      %v2062 = vpop.f32.mrf.mxu0
      %v2063 = vadd.f32 %v1539, %v2062
      %2064 = vmatprep.mubr.bf16.mxu0 %v1417
      %2065 = vmatmul.mubr.bf16.gmra.mxu0 %v1416
      %v2066 = vpop.f32.mrf.mxu0
      %v2067 = vadd.f32 %v1535, %v2066
      %v2068 = vpop.f32.mrf.mxu0
      %v2069 = vadd.f32 %v1539, %v2068
      %v2070 = vpop.f32.mrf.mxu0
      %v2071 = vadd.f32 %v1535, %v2070
      %v2072 = vpop.f32.mrf.mxu0
      %v2073 = vadd.f32 %v1539, %v2072
      %2074 = vmatprep.mubr.bf16.mxu0 %v1423
      %2075 = vmatmul.mubr.bf16.gmra.mxu0 %v1422
      %v2076 = vpop.f32.mrf.mxu0
      %v2077 = vadd.f32 %v1535, %v2076
      %v2078 = vpop.f32.mrf.mxu0
      %v2079 = vadd.f32 %v1539, %v2078
      %v2080 = vpop.f32.mrf.mxu0
      %v2081 = vadd.f32 %v1535, %v2080
      %v2082 = vpop.f32.mrf.mxu0
      %v2083 = vadd.f32 %v1539, %v2082
      %2084 = vmatprep.mubr.bf16.mxu0 %v1429
      %2085 = vmatmul.mubr.bf16.gmra.mxu0 %v1428
      %v2086 = vpop.f32.mrf.mxu0
      %v2087 = vadd.f32 %v1535, %v2086
      %v2088 = vpop.f32.mrf.mxu0
      %v2089 = vadd.f32 %v1539, %v2088
      %v2090 = vpop.f32.mrf.mxu0
      %v2091 = vadd.f32 %v1535, %v2090
      %v2092 = vpop.f32.mrf.mxu0
      %v2093 = vadd.f32 %v1539, %v2092
      %2094 = vdwg.mxu0
      %2095 = vmatprep.subr.bf16.mxu0 %v1877
      %2096 = vmatpush1.bf16.msra.mxu0 %v1876
      %2097 = vmatprep.subr.bf16.mxu0 %v1875
      %2098 = vmatpush1.bf16.msra.mxu0 %v1874
      %2099 = vmatprep.subr.bf16.mxu0 %v1873
      %2100 = vmatpush1.bf16.msra.mxu0 %v1872
      %2101 = vmatprep.subr.bf16.mxu0 %v1871
      %2102 = vmatpush1.bf16.msra.mxu0 %v1870
      %2103 = vmatprep.subr.bf16.mxu0 %v1869
      %2104 = vmatpush1.bf16.msra.mxu0 %v1868
      %2105 = vmatprep.subr.bf16.mxu0 %v1867
      %2106 = vmatpush1.bf16.msra.mxu0 %v1866
      %2107 = vmatprep.subr.bf16.mxu0 %v1865
      %2108 = vmatpush1.bf16.msra.mxu0 %v1864
      %2109 = vmatprep.subr.bf16.mxu0 %v1863
      %2110 = vmatpush1.bf16.msra.mxu0 %v1862
      %2111 = vmatprep.subr.bf16.mxu0 %v1893
      %2112 = vmatpush2.bf16.msra.mxu0 %v1892
      %2113 = vmatprep.subr.bf16.mxu0 %v1891
      %2114 = vmatpush2.bf16.msra.mxu0 %v1890
      %2115 = vmatprep.subr.bf16.mxu0 %v1889
      %2116 = vmatpush2.bf16.msra.mxu0 %v1888
      %2117 = vmatprep.subr.bf16.mxu0 %v1887
      %2118 = vmatpush2.bf16.msra.mxu0 %v1886
      %2119 = vmatprep.subr.bf16.mxu0 %v1885
      %2120 = vmatpush2.bf16.msra.mxu0 %v1884
      %2121 = vmatprep.subr.bf16.mxu0 %v1883
      %2122 = vmatpush2.bf16.msra.mxu0 %v1882
      %2123 = vmatprep.subr.bf16.mxu0 %v1881
      %2124 = vmatpush2.bf16.msra.mxu0 %v1880
      %2125 = vmatprep.subr.bf16.mxu0 %v1879
      %2126 = vmatpush2.bf16.msra.mxu0 %v1878
      %2127 = vmatprep.mubr.bf16.mxu0 %v1413
      %2128 = vmatmul.mubr.bf16.gmra.mxu0 %v1412
      %v2129 = vpop.f32.mrf.mxu0
      %v2130 = vadd.f32 %v2057, %v2129
      %v2131 = vpop.f32.mrf.mxu0
      %v2132 = vadd.f32 %v2059, %v2131
      %v2133 = vpop.f32.mrf.mxu0
      %v2134 = vadd.f32 %v2061, %v2133
      %v2135 = vpop.f32.mrf.mxu0
      %v2136 = vadd.f32 %v2063, %v2135
      %2137 = vmatprep.mubr.bf16.mxu0 %v1419
      %2138 = vmatmul.mubr.bf16.gmra.mxu0 %v1418
      %v2139 = vpop.f32.mrf.mxu0
      %v2140 = vadd.f32 %v2067, %v2139
      %v2141 = vpop.f32.mrf.mxu0
      %v2142 = vadd.f32 %v2069, %v2141
      %v2143 = vpop.f32.mrf.mxu0
      %v2144 = vadd.f32 %v2071, %v2143
      %v2145 = vpop.f32.mrf.mxu0
      %v2146 = vadd.f32 %v2073, %v2145
      %2147 = vmatprep.mubr.bf16.mxu0 %v1425
      %2148 = vmatmul.mubr.bf16.gmra.mxu0 %v1424
      %v2149 = vpop.f32.mrf.mxu0
      %v2150 = vadd.f32 %v2077, %v2149
      %v2151 = vpop.f32.mrf.mxu0
      %v2152 = vadd.f32 %v2079, %v2151
      %v2153 = vpop.f32.mrf.mxu0
      %v2154 = vadd.f32 %v2081, %v2153
      %v2155 = vpop.f32.mrf.mxu0
      %v2156 = vadd.f32 %v2083, %v2155
      %2157 = vmatprep.mubr.bf16.mxu0 %v1431
      %2158 = vmatmul.mubr.bf16.gmra.mxu0 %v1430
      %v2159 = vpop.f32.mrf.mxu0
      %v2160 = vadd.f32 %v2087, %v2159
      %v2161 = vpop.f32.mrf.mxu0
      %v2162 = vadd.f32 %v2089, %v2161
      %v2163 = vpop.f32.mrf.mxu0
      %v2164 = vadd.f32 %v2091, %v2163
      %v2165 = vpop.f32.mrf.mxu0
      %v2166 = vadd.f32 %v2093, %v2165
      %2167 = vdwg.mxu0
      %2168 = vmatprep.subr.bf16.mxu0 %v1909
      %2169 = vmatpush1.bf16.msra.mxu0 %v1908
      %2170 = vmatprep.subr.bf16.mxu0 %v1907
      %2171 = vmatpush1.bf16.msra.mxu0 %v1906
      %2172 = vmatprep.subr.bf16.mxu0 %v1905
      %2173 = vmatpush1.bf16.msra.mxu0 %v1904
      %2174 = vmatprep.subr.bf16.mxu0 %v1903
      %2175 = vmatpush1.bf16.msra.mxu0 %v1902
      %2176 = vmatprep.subr.bf16.mxu0 %v1901
      %2177 = vmatpush1.bf16.msra.mxu0 %v1900
      %2178 = vmatprep.subr.bf16.mxu0 %v1899
      %2179 = vmatpush1.bf16.msra.mxu0 %v1898
      %2180 = vmatprep.subr.bf16.mxu0 %v1897
      %2181 = vmatpush1.bf16.msra.mxu0 %v1896
      %2182 = vmatprep.subr.bf16.mxu0 %v1895
      %2183 = vmatpush1.bf16.msra.mxu0 %v1894
      %2184 = vmatprep.subr.bf16.mxu0 %v1925
      %2185 = vmatpush2.bf16.msra.mxu0 %v1924
      %2186 = vmatprep.subr.bf16.mxu0 %v1923
      %2187 = vmatpush2.bf16.msra.mxu0 %v1922
      %2188 = vmatprep.subr.bf16.mxu0 %v1921
      %2189 = vmatpush2.bf16.msra.mxu0 %v1920
      %2190 = vmatprep.subr.bf16.mxu0 %v1919
      %2191 = vmatpush2.bf16.msra.mxu0 %v1918
      %2192 = vmatprep.subr.bf16.mxu0 %v1917
      %2193 = vmatpush2.bf16.msra.mxu0 %v1916
      %2194 = vmatprep.subr.bf16.mxu0 %v1915
      %2195 = vmatpush2.bf16.msra.mxu0 %v1914
      %2196 = vmatprep.subr.bf16.mxu0 %v1913
      %2197 = vmatpush2.bf16.msra.mxu0 %v1912
      %2198 = vmatprep.subr.bf16.mxu0 %v1911
      %2199 = vmatpush2.bf16.msra.mxu0 %v1910
      %2200 = vmatprep.mubr.bf16.mxu0 %v1415
      %2201 = vmatmul.mubr.bf16.gmra.mxu0 %v1414
      %v2202 = vpop.f32.mrf.mxu0
      %v2203 = vadd.f32 %v2130, %v2202
      %v2204 = vpop.f32.mrf.mxu0
      %v2205 = vadd.f32 %v2132, %v2204
      %v2206 = vpop.f32.mrf.mxu0
      %v2207 = vadd.f32 %v2134, %v2206
      %v2208 = vpop.f32.mrf.mxu0
      %v2209 = vadd.f32 %v2136, %v2208
      %2210 = vmatprep.mubr.bf16.mxu0 %v1421
      %2211 = vmatmul.mubr.bf16.gmra.mxu0 %v1420
      %v2212 = vpop.f32.mrf.mxu0
      %v2213 = vadd.f32 %v2140, %v2212
      %v2214 = vpop.f32.mrf.mxu0
      %v2215 = vadd.f32 %v2142, %v2214
      %v2216 = vpop.f32.mrf.mxu0
      %v2217 = vadd.f32 %v2144, %v2216
      %v2218 = vpop.f32.mrf.mxu0
      %v2219 = vadd.f32 %v2146, %v2218
      %2220 = vmatprep.mubr.bf16.mxu0 %v1427
      %2221 = vmatmul.mubr.bf16.gmra.mxu0 %v1426
      %v2222 = vpop.f32.mrf.mxu0
      %v2223 = vadd.f32 %v2150, %v2222
      %v2224 = vpop.f32.mrf.mxu0
      %v2225 = vadd.f32 %v2152, %v2224
      %v2226 = vpop.f32.mrf.mxu0
      %v2227 = vadd.f32 %v2154, %v2226
      %v2228 = vpop.f32.mrf.mxu0
      %v2229 = vadd.f32 %v2156, %v2228
      %2230 = vmatprep.mubr.bf16.mxu0 %v1433
      %2231 = vmatmul.mubr.bf16.gmra.mxu0 %v1432
      %v2232 = vpop.f32.mrf.mxu0
      %v2233 = vadd.f32 %v2160, %v2232
      %v2234 = vpop.f32.mrf.mxu0
      %v2235 = vadd.f32 %v2162, %v2234
      %v2236 = vpop.f32.mrf.mxu0
      %v2237 = vadd.f32 %v2164, %v2236
      %v2238 = vpop.f32.mrf.mxu0
      %v2239 = vadd.f32 %v2166, %v2238
      %2240 = vdwg.mxu0
      %v2241 = vmax.f32 %v2203, 0.0
      %v2242 = vmax.f32 %v2205, 0.0
      %v2243 = vmax.f32 %v2207, 0.0
      %v2244 = vmax.f32 %v2209, 0.0
      %v2245 = vmax.f32 %v2213, 0.0
      %v2246 = vmax.f32 %v2215, 0.0
      %v2247 = vmax.f32 %v2217, 0.0
      %v2248 = vmax.f32 %v2219, 0.0
      %v2249 = vmax.f32 %v2223, 0.0
      %v2250 = vmax.f32 %v2225, 0.0
      %v2251 = vmax.f32 %v2227, 0.0
      %v2252 = vmax.f32 %v2229, 0.0
      %v2253 = vmax.f32 %v2233, 0.0
      %v2254 = vmax.f32 %v2235, 0.0
      %v2255 = vmax.f32 %v2237, 0.0
      %v2256 = vmax.f32 %v2239, 0.0
      %v2257 = vpack.c.bf16 %v2243, 0.0
      %v2258 = vpack.c.bf16 %v2244, 0.0
      %v2259 = vpack.c.bf16 %v2245, %v2241
      %v2260 = vpack.c.bf16 %v2246, %v2242
      %v2261 = vpack.c.bf16 %v2247, %v2243
      %v2262 = vpack.c.bf16 %v2248, %v2244
      %v2263 = vpack.c.bf16 %v2251, %v2247
      %v2264 = vpack.c.bf16 %v2252, %v2248
      %v2265 = vpack.c.bf16 %v2253, %v2249
      %v2266 = vpack.c.bf16 %v2254, %v2250
      %v2267 = vpack.c.bf16 %v2255, %v2251
      %v2268 = vpack.c.bf16 %v2256, %v2252
      %v2269 = vld [vmem:[%s5] sm:$0xff]
      %v2270 = vld [vmem:[%s5 + $0x8] sm:$0xff]
      %v2271 = vld [vmem:[%s5 + $0x10] sm:$0xff]
      %v2272 = vld [vmem:[%s5 + $0x18] sm:$0xff]
      %v2273 = vld [vmem:[%s5 + $0x20] sm:$0xff]
      %v2274 = vld [vmem:[%s5 + $0x28] sm:$0xff]
      %v2275 = vld [vmem:[%s5 + $0x30] sm:$0xff]
      %v2276 = vld [vmem:[%s5 + $0x38] sm:$0xff]
      %v2277 = vld [vmem:[%s5 + $0x40] sm:$0xff]
      %v2278 = vld [vmem:[%s5 + $0x48] sm:$0xff]
      %v2279 = vld [vmem:[%s5 + $0x50] sm:$0xff]
      %v2280 = vld [vmem:[%s5 + $0x58] sm:$0xff]
      %v2281 = vld [vmem:[%s5 + $0x60] sm:$0xff]
      %v2282 = vld [vmem:[%s5 + $0x68] sm:$0xff]
      %v2283 = vld [vmem:[%s5 + $0x70] sm:$0xff]
      %v2284 = vld [vmem:[%s5 + $0x78] sm:$0xff]
      %v2285 = vld [vmem:[%s5 + $0x80] sm:$0xff]
      %v2286 = vld [vmem:[%s5 + $0x88] sm:$0xff]
      %v2287 = vld [vmem:[%s5 + $0x90] sm:$0xff]
      %v2288 = vld [vmem:[%s5 + $0x98] sm:$0xff]
      %v2289 = vld [vmem:[%s5 + $0xa0] sm:$0xff]
      %v2290 = vld [vmem:[%s5 + $0xa8] sm:$0xff]
      %v2291 = vld [vmem:[%s5 + $0xb0] sm:$0xff]
      %v2292 = vld [vmem:[%s5 + $0xb8] sm:$0xff]
      %v2293 = vld [vmem:[%s5 + $0xc0] sm:$0xff]
      %v2294 = vld [vmem:[%s5 + $0xc8] sm:$0xff]
      %v2295 = vld [vmem:[%s5 + $0xd0] sm:$0xff]
      %v2296 = vld [vmem:[%s5 + $0xd8] sm:$0xff]
      %v2297 = vld [vmem:[%s5 + $0xe0] sm:$0xff]
      %v2298 = vld [vmem:[%s5 + $0xe8] sm:$0xff]
      %v2299 = vld [vmem:[%s5 + $0xf0] sm:$0xff]
      %v2300 = vld [vmem:[%s5 + $0xf8] sm:$0xff]
      %v2301 = vld [vmem:[%s5 + $0x100] sm:$0xff]
      %v2302 = vld [vmem:[%s5 + $0x108] sm:$0xff]
      %v2303 = vld [vmem:[%s5 + $0x110] sm:$0xff]
      %v2304 = vld [vmem:[%s5 + $0x118] sm:$0xff]
      %v2305 = vld [vmem:[%s5 + $0x120] sm:$0xff]
      %v2306 = vld [vmem:[%s5 + $0x128] sm:$0xff]
      %v2307 = vld [vmem:[%s5 + $0x130] sm:$0xff]
      %v2308 = vld [vmem:[%s5 + $0x138] sm:$0xff]
      %v2309 = vld [vmem:[%s5 + $0x140] sm:$0xff]
      %v2310 = vld [vmem:[%s5 + $0x148] sm:$0xff]
      %v2311 = vld [vmem:[%s5 + $0x150] sm:$0xff]
      %v2312 = vld [vmem:[%s5 + $0x158] sm:$0xff]
      %v2313 = vld [vmem:[%s5 + $0x160] sm:$0xff]
      %v2314 = vld [vmem:[%s5 + $0x168] sm:$0xff]
      %v2315 = vld [vmem:[%s5 + $0x170] sm:$0xff]
      %v2316 = vld [vmem:[%s5 + $0x178] sm:$0xff]
      %v2317 = vld [vmem:[%s5 + $0x180] sm:$0xff]
      %v2318 = vld [vmem:[%s5 + $0x188] sm:$0xff]
      %v2319 = vld [vmem:[%s5 + $0x190] sm:$0xff]
      %v2320 = vld [vmem:[%s5 + $0x198] sm:$0xff]
      %v2321 = vld [vmem:[%s5 + $0x1a0] sm:$0xff]
      %v2322 = vld [vmem:[%s5 + $0x1a8] sm:$0xff]
      %v2323 = vld [vmem:[%s5 + $0x1b0] sm:$0xff]
      %v2324 = vld [vmem:[%s5 + $0x1b8] sm:$0xff]
      %v2325 = vld [vmem:[%s5 + $0x1c0] sm:$0xff]
      %v2326 = vld [vmem:[%s5 + $0x1c8] sm:$0xff]
      %v2327 = vld [vmem:[%s5 + $0x1d0] sm:$0xff]
      %v2328 = vld [vmem:[%s5 + $0x1d8] sm:$0xff]
      %v2329 = vld [vmem:[%s5 + $0x1e0] sm:$0xff]
      %v2330 = vld [vmem:[%s5 + $0x1e8] sm:$0xff]
      %v2331 = vld [vmem:[%s5 + $0x1f0] sm:$0xff]
      %v2332 = vld [vmem:[%s5 + $0x1f8] sm:$0xff]
      %v2333 = vld [vmem:[%s5 + $0x200] sm:$0xff]
      %v2334 = vld [vmem:[%s5 + $0x208] sm:$0xff]
      %v2335 = vld [vmem:[%s5 + $0x210] sm:$0xff]
      %v2336 = vld [vmem:[%s5 + $0x218] sm:$0xff]
      %v2337 = vld [vmem:[%s5 + $0x220] sm:$0xff]
      %v2338 = vld [vmem:[%s5 + $0x228] sm:$0xff]
      %v2339 = vld [vmem:[%s5 + $0x230] sm:$0xff]
      %v2340 = vld [vmem:[%s5 + $0x238] sm:$0xff]
      %v2341 = vld [vmem:[%s5 + $0x240] sm:$0xff]
      %v2342 = vld [vmem:[%s5 + $0x248] sm:$0xff]
      %v2343 = vld [vmem:[%s5 + $0x250] sm:$0xff]
      %v2344 = vld [vmem:[%s5 + $0x258] sm:$0xff]
      %v2345 = vld [vmem:[%s5 + $0x260] sm:$0xff]
      %v2346 = vld [vmem:[%s5 + $0x268] sm:$0xff]
      %v2347 = vld [vmem:[%s5 + $0x270] sm:$0xff]
      %v2348 = vld [vmem:[%s5 + $0x278] sm:$0xff]
      %v2349 = vld [vmem:[%s5 + $0x280] sm:$0xff]
      %v2350 = vld [vmem:[%s5 + $0x288] sm:$0xff]
      %v2351 = vld [vmem:[%s5 + $0x290] sm:$0xff]
      %v2352 = vld [vmem:[%s5 + $0x298] sm:$0xff]
      %v2353 = vld [vmem:[%s5 + $0x2a0] sm:$0xff]
      %v2354 = vld [vmem:[%s5 + $0x2a8] sm:$0xff]
      %v2355 = vld [vmem:[%s5 + $0x2b0] sm:$0xff]
      %v2356 = vld [vmem:[%s5 + $0x2b8] sm:$0xff]
      %v2357 = vld [vmem:[%s5 + $0x2c0] sm:$0xff]
      %v2358 = vld [vmem:[%s5 + $0x2c8] sm:$0xff]
      %v2359 = vld [vmem:[%s5 + $0x2d0] sm:$0xff]
      %v2360 = vld [vmem:[%s5 + $0x2d8] sm:$0xff]
      %v2361 = vld [vmem:[%s5 + $0x2e0] sm:$0xff]
      %v2362 = vld [vmem:[%s5 + $0x2e8] sm:$0xff]
      %v2363 = vld [vmem:[%s5 + $0x2f0] sm:$0xff]
      %v2364 = vld [vmem:[%s5 + $0x2f8] sm:$0xff]
      %v2365 = vld [vmem:[%s6] sm:$0x3]
      %v2367 = vlaneseq
      %v2368 = vshrl.u32 %v2367, 7
      %v2369 = vsub.s32 0, %v2368
      %v2370 = vrot.slane %v2365, %v2369
      %v2371 = vlaneseq
      %v2372 = vshrl.u32 %v2371, 7
      %v2373 = vsub.s32 1, %v2372
      %v2374 = vrot.slane %v2365, %v2373
      %v2473 = vunpack.c.l.b16 %v2269
      %v2474 = vunpack.c.h.b16 %v2269
      %v2475 = vunpack.c.l.b16 %v2270
      %v2476 = vunpack.c.h.b16 %v2270
      %v2477 = vunpack.c.l.b16 %v2271
      %v2478 = vunpack.c.h.b16 %v2271
      %v2479 = vunpack.c.l.b16 %v2272
      %v2480 = vunpack.c.h.b16 %v2272
      %v2481 = vunpack.c.l.b16 %v2273
      %v2482 = vunpack.c.h.b16 %v2273
      %v2483 = vunpack.c.l.b16 %v2274
      %v2484 = vunpack.c.h.b16 %v2274
      %v2485 = vunpack.c.l.b16 %v2275
      %v2486 = vunpack.c.h.b16 %v2275
      %v2487 = vunpack.c.l.b16 %v2276
      %v2488 = vunpack.c.h.b16 %v2276
      %v2489 = vunpack.c.l.b16 %v2277
      %v2490 = vunpack.c.h.b16 %v2277
      %v2491 = vunpack.c.l.b16 %v2278
      %v2492 = vunpack.c.h.b16 %v2278
      %v2493 = vunpack.c.l.b16 %v2279
      %v2494 = vunpack.c.h.b16 %v2279
      %v2495 = vunpack.c.l.b16 %v2280
      %v2496 = vunpack.c.h.b16 %v2280
      %v2497 = vunpack.c.l.b16 %v2281
      %v2498 = vunpack.c.h.b16 %v2281
      %v2499 = vunpack.c.l.b16 %v2282
      %v2500 = vunpack.c.h.b16 %v2282
      %v2501 = vunpack.c.l.b16 %v2283
      %v2502 = vunpack.c.h.b16 %v2283
      %v2503 = vunpack.c.l.b16 %v2284
      %v2504 = vunpack.c.h.b16 %v2284
      %v2505 = vunpack.c.l.b16 %v2285
      %v2506 = vunpack.c.h.b16 %v2285
      %v2507 = vunpack.c.l.b16 %v2286
      %v2508 = vunpack.c.h.b16 %v2286
      %v2509 = vunpack.c.l.b16 %v2287
      %v2510 = vunpack.c.h.b16 %v2287
      %v2511 = vunpack.c.l.b16 %v2288
      %v2512 = vunpack.c.h.b16 %v2288
      %v2513 = vunpack.c.l.b16 %v2289
      %v2514 = vunpack.c.h.b16 %v2289
      %v2515 = vunpack.c.l.b16 %v2290
      %v2516 = vunpack.c.h.b16 %v2290
      %v2517 = vunpack.c.l.b16 %v2291
      %v2518 = vunpack.c.h.b16 %v2291
      %v2519 = vunpack.c.l.b16 %v2292
      %v2520 = vunpack.c.h.b16 %v2292
      %v2521 = vunpack.c.l.b16 %v2293
      %v2522 = vunpack.c.h.b16 %v2293
      %v2523 = vunpack.c.l.b16 %v2294
      %v2524 = vunpack.c.h.b16 %v2294
      %v2525 = vunpack.c.l.b16 %v2295
      %v2526 = vunpack.c.h.b16 %v2295
      %v2527 = vunpack.c.l.b16 %v2296
      %v2528 = vunpack.c.h.b16 %v2296
      %v2529 = vunpack.c.l.b16 %v2297
      %v2530 = vunpack.c.h.b16 %v2297
      %v2531 = vunpack.c.l.b16 %v2298
      %v2532 = vunpack.c.h.b16 %v2298
      %v2533 = vunpack.c.l.b16 %v2299
      %v2534 = vunpack.c.h.b16 %v2299
      %v2535 = vunpack.c.l.b16 %v2300
      %v2536 = vunpack.c.h.b16 %v2300
      %v2537 = vunpack.c.l.b16 %v2301
      %v2538 = vunpack.c.h.b16 %v2301
      %v2539 = vunpack.c.l.b16 %v2302
      %v2540 = vunpack.c.h.b16 %v2302
      %v2541 = vunpack.c.l.b16 %v2303
      %v2542 = vunpack.c.h.b16 %v2303
      %v2543 = vunpack.c.l.b16 %v2304
      %v2544 = vunpack.c.h.b16 %v2304
      %v2545 = vunpack.c.l.b16 %v2305
      %v2546 = vunpack.c.h.b16 %v2305
      %v2547 = vunpack.c.l.b16 %v2306
      %v2548 = vunpack.c.h.b16 %v2306
      %v2549 = vunpack.c.l.b16 %v2307
      %v2550 = vunpack.c.h.b16 %v2307
      %v2551 = vunpack.c.l.b16 %v2308
      %v2552 = vunpack.c.h.b16 %v2308
      %v2553 = vunpack.c.l.b16 %v2309
      %v2554 = vunpack.c.h.b16 %v2309
      %v2555 = vunpack.c.l.b16 %v2310
      %v2556 = vunpack.c.h.b16 %v2310
      %v2557 = vunpack.c.l.b16 %v2311
      %v2558 = vunpack.c.h.b16 %v2311
      %v2559 = vunpack.c.l.b16 %v2312
      %v2560 = vunpack.c.h.b16 %v2312
      %v2561 = vunpack.c.l.b16 %v2313
      %v2562 = vunpack.c.h.b16 %v2313
      %v2563 = vunpack.c.l.b16 %v2314
      %v2564 = vunpack.c.h.b16 %v2314
      %v2565 = vunpack.c.l.b16 %v2315
      %v2566 = vunpack.c.h.b16 %v2315
      %v2567 = vunpack.c.l.b16 %v2316
      %v2568 = vunpack.c.h.b16 %v2316
      %v2569 = vunpack.c.l.b16 %v2317
      %v2570 = vunpack.c.h.b16 %v2317
      %v2571 = vunpack.c.l.b16 %v2318
      %v2572 = vunpack.c.h.b16 %v2318
      %v2573 = vunpack.c.l.b16 %v2319
      %v2574 = vunpack.c.h.b16 %v2319
      %v2575 = vunpack.c.l.b16 %v2320
      %v2576 = vunpack.c.h.b16 %v2320
      %v2577 = vunpack.c.l.b16 %v2321
      %v2578 = vunpack.c.h.b16 %v2321
      %v2579 = vunpack.c.l.b16 %v2322
      %v2580 = vunpack.c.h.b16 %v2322
      %v2581 = vunpack.c.l.b16 %v2323
      %v2582 = vunpack.c.h.b16 %v2323
      %v2583 = vunpack.c.l.b16 %v2324
      %v2584 = vunpack.c.h.b16 %v2324
      %v2585 = vunpack.c.l.b16 %v2325
      %v2586 = vunpack.c.h.b16 %v2325
      %v2587 = vunpack.c.l.b16 %v2326
      %v2588 = vunpack.c.h.b16 %v2326
      %v2589 = vunpack.c.l.b16 %v2327
      %v2590 = vunpack.c.h.b16 %v2327
      %v2591 = vunpack.c.l.b16 %v2328
      %v2592 = vunpack.c.h.b16 %v2328
      %v2593 = vunpack.c.l.b16 %v2329
      %v2594 = vunpack.c.h.b16 %v2329
      %v2595 = vunpack.c.l.b16 %v2330
      %v2596 = vunpack.c.h.b16 %v2330
      %v2597 = vunpack.c.l.b16 %v2331
      %v2598 = vunpack.c.h.b16 %v2331
      %v2599 = vunpack.c.l.b16 %v2332
      %v2600 = vunpack.c.h.b16 %v2332
      %v2601 = vunpack.c.l.b16 %v2333
      %v2602 = vunpack.c.h.b16 %v2333
      %v2603 = vunpack.c.l.b16 %v2334
      %v2604 = vunpack.c.h.b16 %v2334
      %v2605 = vunpack.c.l.b16 %v2335
      %v2606 = vunpack.c.h.b16 %v2335
      %v2607 = vunpack.c.l.b16 %v2336
      %v2608 = vunpack.c.h.b16 %v2336
      %v2609 = vunpack.c.l.b16 %v2337
      %v2610 = vunpack.c.h.b16 %v2337
      %v2611 = vunpack.c.l.b16 %v2338
      %v2612 = vunpack.c.h.b16 %v2338
      %v2613 = vunpack.c.l.b16 %v2339
      %v2614 = vunpack.c.h.b16 %v2339
      %v2615 = vunpack.c.l.b16 %v2340
      %v2616 = vunpack.c.h.b16 %v2340
      %v2617 = vunpack.c.l.b16 %v2341
      %v2618 = vunpack.c.h.b16 %v2341
      %v2619 = vunpack.c.l.b16 %v2342
      %v2620 = vunpack.c.h.b16 %v2342
      %v2621 = vunpack.c.l.b16 %v2343
      %v2622 = vunpack.c.h.b16 %v2343
      %v2623 = vunpack.c.l.b16 %v2344
      %v2624 = vunpack.c.h.b16 %v2344
      %v2625 = vunpack.c.l.b16 %v2345
      %v2626 = vunpack.c.h.b16 %v2345
      %v2627 = vunpack.c.l.b16 %v2346
      %v2628 = vunpack.c.h.b16 %v2346
      %v2629 = vunpack.c.l.b16 %v2347
      %v2630 = vunpack.c.h.b16 %v2347
      %v2631 = vunpack.c.l.b16 %v2348
      %v2632 = vunpack.c.h.b16 %v2348
      %v2633 = vunpack.c.l.b16 %v2349
      %v2634 = vunpack.c.h.b16 %v2349
      %v2635 = vunpack.c.l.b16 %v2350
      %v2636 = vunpack.c.h.b16 %v2350
      %v2637 = vunpack.c.l.b16 %v2351
      %v2638 = vunpack.c.h.b16 %v2351
      %v2639 = vunpack.c.l.b16 %v2352
      %v2640 = vunpack.c.h.b16 %v2352
      %v2641 = vunpack.c.l.b16 %v2353
      %v2642 = vunpack.c.h.b16 %v2353
      %v2643 = vunpack.c.l.b16 %v2354
      %v2644 = vunpack.c.h.b16 %v2354
      %v2645 = vunpack.c.l.b16 %v2355
      %v2646 = vunpack.c.h.b16 %v2355
      %v2647 = vunpack.c.l.b16 %v2356
      %v2648 = vunpack.c.h.b16 %v2356
      %v2649 = vunpack.c.l.b16 %v2357
      %v2650 = vunpack.c.h.b16 %v2357
      %v2651 = vunpack.c.l.b16 %v2358
      %v2652 = vunpack.c.h.b16 %v2358
      %v2653 = vunpack.c.l.b16 %v2359
      %v2654 = vunpack.c.h.b16 %v2359
      %v2655 = vunpack.c.l.b16 %v2360
      %v2656 = vunpack.c.h.b16 %v2360
      %v2657 = vunpack.c.l.b16 %v2361
      %v2658 = vunpack.c.h.b16 %v2361
      %v2659 = vunpack.c.l.b16 %v2362
      %v2660 = vunpack.c.h.b16 %v2362
      %v2661 = vunpack.c.l.b16 %v2363
      %v2662 = vunpack.c.h.b16 %v2363
      %v2663 = vunpack.c.l.b16 %v2364
      %v2664 = vunpack.c.h.b16 %v2364
      %v2665 = vpack.c.b16 %v2475, %v2473
      %v2666 = vpack.c.b16 %v2476, %v2474
      %v2667 = vpack.c.b16 %v2479, %v2477
      %v2668 = vpack.c.b16 %v2480, %v2478
      %v2669 = vpack.c.b16 %v2483, %v2481
      %v2670 = vpack.c.b16 %v2484, %v2482
      %v2671 = vpack.c.b16 %v2487, %v2485
      %v2672 = vpack.c.b16 %v2488, %v2486
      %v2673 = vpack.c.b16 %v2491, %v2489
      %v2674 = vpack.c.b16 %v2492, %v2490
      %v2675 = vpack.c.b16 %v2495, %v2493
      %v2676 = vpack.c.b16 %v2496, %v2494
      %v2677 = vpack.c.b16 %v2499, %v2497
      %v2678 = vpack.c.b16 %v2500, %v2498
      %v2679 = vpack.c.b16 %v2503, %v2501
      %v2680 = vpack.c.b16 %v2504, %v2502
      %v2681 = vpack.c.b16 %v2507, %v2505
      %v2682 = vpack.c.b16 %v2508, %v2506
      %v2683 = vpack.c.b16 %v2511, %v2509
      %v2684 = vpack.c.b16 %v2512, %v2510
      %v2685 = vpack.c.b16 %v2515, %v2513
      %v2686 = vpack.c.b16 %v2516, %v2514
      %v2687 = vpack.c.b16 %v2519, %v2517
      %v2688 = vpack.c.b16 %v2520, %v2518
      %v2689 = vpack.c.b16 %v2523, %v2521
      %v2690 = vpack.c.b16 %v2524, %v2522
      %v2691 = vpack.c.b16 %v2527, %v2525
      %v2692 = vpack.c.b16 %v2528, %v2526
      %v2693 = vpack.c.b16 %v2531, %v2529
      %v2694 = vpack.c.b16 %v2532, %v2530
      %v2695 = vpack.c.b16 %v2535, %v2533
      %v2696 = vpack.c.b16 %v2536, %v2534
      %v2697 = vpack.c.b16 %v2539, %v2537
      %v2698 = vpack.c.b16 %v2540, %v2538
      %v2699 = vpack.c.b16 %v2543, %v2541
      %v2700 = vpack.c.b16 %v2544, %v2542
      %v2701 = vpack.c.b16 %v2547, %v2545
      %v2702 = vpack.c.b16 %v2548, %v2546
      %v2703 = vpack.c.b16 %v2551, %v2549
      %v2704 = vpack.c.b16 %v2552, %v2550
      %v2705 = vpack.c.b16 %v2555, %v2553
      %v2706 = vpack.c.b16 %v2556, %v2554
      %v2707 = vpack.c.b16 %v2559, %v2557
      %v2708 = vpack.c.b16 %v2560, %v2558
      %v2709 = vpack.c.b16 %v2563, %v2561
      %v2710 = vpack.c.b16 %v2564, %v2562
      %v2711 = vpack.c.b16 %v2567, %v2565
      %v2712 = vpack.c.b16 %v2568, %v2566
      %v2713 = vpack.c.b16 %v2571, %v2569
      %v2714 = vpack.c.b16 %v2572, %v2570
      %v2715 = vpack.c.b16 %v2575, %v2573
      %v2716 = vpack.c.b16 %v2576, %v2574
      %v2717 = vpack.c.b16 %v2579, %v2577
      %v2718 = vpack.c.b16 %v2580, %v2578
      %v2719 = vpack.c.b16 %v2583, %v2581
      %v2720 = vpack.c.b16 %v2584, %v2582
      %v2721 = vpack.c.b16 %v2587, %v2585
      %v2722 = vpack.c.b16 %v2588, %v2586
      %v2723 = vpack.c.b16 %v2591, %v2589
      %v2724 = vpack.c.b16 %v2592, %v2590
      %v2725 = vpack.c.b16 %v2595, %v2593
      %v2726 = vpack.c.b16 %v2596, %v2594
      %v2727 = vpack.c.b16 %v2599, %v2597
      %v2728 = vpack.c.b16 %v2600, %v2598
      %v2729 = vpack.c.b16 %v2603, %v2601
      %v2730 = vpack.c.b16 %v2604, %v2602
      %v2731 = vpack.c.b16 %v2607, %v2605
      %v2732 = vpack.c.b16 %v2608, %v2606
      %v2733 = vpack.c.b16 %v2611, %v2609
      %v2734 = vpack.c.b16 %v2612, %v2610
      %v2735 = vpack.c.b16 %v2615, %v2613
      %v2736 = vpack.c.b16 %v2616, %v2614
      %v2737 = vpack.c.b16 %v2619, %v2617
      %v2738 = vpack.c.b16 %v2620, %v2618
      %v2739 = vpack.c.b16 %v2623, %v2621
      %v2740 = vpack.c.b16 %v2624, %v2622
      %v2741 = vpack.c.b16 %v2627, %v2625
      %v2742 = vpack.c.b16 %v2628, %v2626
      %v2743 = vpack.c.b16 %v2631, %v2629
      %v2744 = vpack.c.b16 %v2632, %v2630
      %v2745 = vpack.c.b16 %v2635, %v2633
      %v2746 = vpack.c.b16 %v2636, %v2634
      %v2747 = vpack.c.b16 %v2639, %v2637
      %v2748 = vpack.c.b16 %v2640, %v2638
      %v2749 = vpack.c.b16 %v2643, %v2641
      %v2750 = vpack.c.b16 %v2644, %v2642
      %v2751 = vpack.c.b16 %v2647, %v2645
      %v2752 = vpack.c.b16 %v2648, %v2646
      %v2753 = vpack.c.b16 %v2651, %v2649
      %v2754 = vpack.c.b16 %v2652, %v2650
      %v2755 = vpack.c.b16 %v2655, %v2653
      %v2756 = vpack.c.b16 %v2656, %v2654
      %v2757 = vpack.c.b16 %v2659, %v2657
      %v2758 = vpack.c.b16 %v2660, %v2658
      %v2759 = vpack.c.b16 %v2663, %v2661
      %v2760 = vpack.c.b16 %v2664, %v2662
      %2857 = vmatprep.subr.bf16.mxu0 %v2680
      %2858 = vmatpush1.bf16.msra.mxu0 %v2679
      %2859 = vmatprep.subr.bf16.mxu0 %v2678
      %2860 = vmatpush1.bf16.msra.mxu0 %v2677
      %2861 = vmatprep.subr.bf16.mxu0 %v2676
      %2862 = vmatpush1.bf16.msra.mxu0 %v2675
      %2863 = vmatprep.subr.bf16.mxu0 %v2674
      %2864 = vmatpush1.bf16.msra.mxu0 %v2673
      %2865 = vmatprep.subr.bf16.mxu0 %v2672
      %2866 = vmatpush1.bf16.msra.mxu0 %v2671
      %2867 = vmatprep.subr.bf16.mxu0 %v2670
      %2868 = vmatpush1.bf16.msra.mxu0 %v2669
      %2869 = vmatprep.subr.bf16.mxu0 %v2668
      %2870 = vmatpush1.bf16.msra.mxu0 %v2667
      %2871 = vmatprep.subr.bf16.mxu0 %v2666
      %2872 = vmatpush1.bf16.msra.mxu0 %v2665
      %2873 = vmatprep.subr.bf16.mxu0 %v2696
      %2874 = vmatpush2.bf16.msra.mxu0 %v2695
      %2875 = vmatprep.subr.bf16.mxu0 %v2694
      %2876 = vmatpush2.bf16.msra.mxu0 %v2693
      %2877 = vmatprep.subr.bf16.mxu0 %v2692
      %2878 = vmatpush2.bf16.msra.mxu0 %v2691
      %2879 = vmatprep.subr.bf16.mxu0 %v2690
      %2880 = vmatpush2.bf16.msra.mxu0 %v2689
      %2881 = vmatprep.subr.bf16.mxu0 %v2688
      %2882 = vmatpush2.bf16.msra.mxu0 %v2687
      %2883 = vmatprep.subr.bf16.mxu0 %v2686
      %2884 = vmatpush2.bf16.msra.mxu0 %v2685
      %2885 = vmatprep.subr.bf16.mxu0 %v2684
      %2886 = vmatpush2.bf16.msra.mxu0 %v2683
      %2887 = vmatprep.subr.bf16.mxu0 %v2682
      %2888 = vmatpush2.bf16.msra.mxu0 %v2681
      %2889 = vmatprep.mubr.bf16.mxu0 %v2258
      %2890 = vmatmul.mubr.bf16.gmra.mxu0 %v2257
      %v2891 = vpop.f32.mrf.mxu0
      %v2892 = vadd.f32 %v2370, %v2891
      %v2893 = vpop.f32.mrf.mxu0
      %v2894 = vadd.f32 %v2374, %v2893
      %v2895 = vpop.f32.mrf.mxu0
      %v2896 = vadd.f32 %v2370, %v2895
      %v2897 = vpop.f32.mrf.mxu0
      %v2898 = vadd.f32 %v2374, %v2897
      %2899 = vmatprep.mubr.bf16.mxu0 %v2264
      %2900 = vmatmul.mubr.bf16.gmra.mxu0 %v2263
      %v2901 = vpop.f32.mrf.mxu0
      %v2902 = vadd.f32 %v2370, %v2901
      %v2903 = vpop.f32.mrf.mxu0
      %v2904 = vadd.f32 %v2374, %v2903
      %v2905 = vpop.f32.mrf.mxu0
      %v2906 = vadd.f32 %v2370, %v2905
      %v2907 = vpop.f32.mrf.mxu0
      %v2908 = vadd.f32 %v2374, %v2907
      %2909 = vdwg.mxu0
      %2910 = vmatprep.subr.bf16.mxu0 %v2712
      %2911 = vmatpush1.bf16.msra.mxu0 %v2711
      %2912 = vmatprep.subr.bf16.mxu0 %v2710
      %2913 = vmatpush1.bf16.msra.mxu0 %v2709
      %2914 = vmatprep.subr.bf16.mxu0 %v2708
      %2915 = vmatpush1.bf16.msra.mxu0 %v2707
      %2916 = vmatprep.subr.bf16.mxu0 %v2706
      %2917 = vmatpush1.bf16.msra.mxu0 %v2705
      %2918 = vmatprep.subr.bf16.mxu0 %v2704
      %2919 = vmatpush1.bf16.msra.mxu0 %v2703
      %2920 = vmatprep.subr.bf16.mxu0 %v2702
      %2921 = vmatpush1.bf16.msra.mxu0 %v2701
      %2922 = vmatprep.subr.bf16.mxu0 %v2700
      %2923 = vmatpush1.bf16.msra.mxu0 %v2699
      %2924 = vmatprep.subr.bf16.mxu0 %v2698
      %2925 = vmatpush1.bf16.msra.mxu0 %v2697
      %2926 = vmatprep.subr.bf16.mxu0 %v2728
      %2927 = vmatpush2.bf16.msra.mxu0 %v2727
      %2928 = vmatprep.subr.bf16.mxu0 %v2726
      %2929 = vmatpush2.bf16.msra.mxu0 %v2725
      %2930 = vmatprep.subr.bf16.mxu0 %v2724
      %2931 = vmatpush2.bf16.msra.mxu0 %v2723
      %2932 = vmatprep.subr.bf16.mxu0 %v2722
      %2933 = vmatpush2.bf16.msra.mxu0 %v2721
      %2934 = vmatprep.subr.bf16.mxu0 %v2720
      %2935 = vmatpush2.bf16.msra.mxu0 %v2719
      %2936 = vmatprep.subr.bf16.mxu0 %v2718
      %2937 = vmatpush2.bf16.msra.mxu0 %v2717
      %2938 = vmatprep.subr.bf16.mxu0 %v2716
      %2939 = vmatpush2.bf16.msra.mxu0 %v2715
      %2940 = vmatprep.subr.bf16.mxu0 %v2714
      %2941 = vmatpush2.bf16.msra.mxu0 %v2713
      %2942 = vmatprep.mubr.bf16.mxu0 %v2260
      %2943 = vmatmul.mubr.bf16.gmra.mxu0 %v2259
      %v2944 = vpop.f32.mrf.mxu0
      %v2945 = vadd.f32 %v2892, %v2944
      %v2946 = vpop.f32.mrf.mxu0
      %v2947 = vadd.f32 %v2894, %v2946
      %v2948 = vpop.f32.mrf.mxu0
      %v2949 = vadd.f32 %v2896, %v2948
      %v2950 = vpop.f32.mrf.mxu0
      %v2951 = vadd.f32 %v2898, %v2950
      %2952 = vmatprep.mubr.bf16.mxu0 %v2266
      %2953 = vmatmul.mubr.bf16.gmra.mxu0 %v2265
      %v2954 = vpop.f32.mrf.mxu0
      %v2955 = vadd.f32 %v2902, %v2954
      %v2956 = vpop.f32.mrf.mxu0
      %v2957 = vadd.f32 %v2904, %v2956
      %v2958 = vpop.f32.mrf.mxu0
      %v2959 = vadd.f32 %v2906, %v2958
      %v2960 = vpop.f32.mrf.mxu0
      %v2961 = vadd.f32 %v2908, %v2960
      %2962 = vdwg.mxu0
      %2963 = vmatprep.subr.bf16.mxu0 %v2744
      %2964 = vmatpush1.bf16.msra.mxu0 %v2743
      %2965 = vmatprep.subr.bf16.mxu0 %v2742
      %2966 = vmatpush1.bf16.msra.mxu0 %v2741
      %2967 = vmatprep.subr.bf16.mxu0 %v2740
      %2968 = vmatpush1.bf16.msra.mxu0 %v2739
      %2969 = vmatprep.subr.bf16.mxu0 %v2738
      %2970 = vmatpush1.bf16.msra.mxu0 %v2737
      %2971 = vmatprep.subr.bf16.mxu0 %v2736
      %2972 = vmatpush1.bf16.msra.mxu0 %v2735
      %2973 = vmatprep.subr.bf16.mxu0 %v2734
      %2974 = vmatpush1.bf16.msra.mxu0 %v2733
      %2975 = vmatprep.subr.bf16.mxu0 %v2732
      %2976 = vmatpush1.bf16.msra.mxu0 %v2731
      %2977 = vmatprep.subr.bf16.mxu0 %v2730
      %2978 = vmatpush1.bf16.msra.mxu0 %v2729
      %2979 = vmatprep.subr.bf16.mxu0 %v2760
      %2980 = vmatpush2.bf16.msra.mxu0 %v2759
      %2981 = vmatprep.subr.bf16.mxu0 %v2758
      %2982 = vmatpush2.bf16.msra.mxu0 %v2757
      %2983 = vmatprep.subr.bf16.mxu0 %v2756
      %2984 = vmatpush2.bf16.msra.mxu0 %v2755
      %2985 = vmatprep.subr.bf16.mxu0 %v2754
      %2986 = vmatpush2.bf16.msra.mxu0 %v2753
      %2987 = vmatprep.subr.bf16.mxu0 %v2752
      %2988 = vmatpush2.bf16.msra.mxu0 %v2751
      %2989 = vmatprep.subr.bf16.mxu0 %v2750
      %2990 = vmatpush2.bf16.msra.mxu0 %v2749
      %2991 = vmatprep.subr.bf16.mxu0 %v2748
      %2992 = vmatpush2.bf16.msra.mxu0 %v2747
      %2993 = vmatprep.subr.bf16.mxu0 %v2746
      %2994 = vmatpush2.bf16.msra.mxu0 %v2745
      %2995 = vmatprep.mubr.bf16.mxu0 %v2262
      %2996 = vmatmul.mubr.bf16.gmra.mxu0 %v2261
      %v2997 = vpop.f32.mrf.mxu0
      %v2998 = vadd.f32 %v2945, %v2997
      %v2999 = vpop.f32.mrf.mxu0
      %v3000 = vadd.f32 %v2947, %v2999
      %v3001 = vpop.f32.mrf.mxu0
      %v3002 = vadd.f32 %v2949, %v3001
      %v3003 = vpop.f32.mrf.mxu0
      %v3004 = vadd.f32 %v2951, %v3003
      %3005 = vmatprep.mubr.bf16.mxu0 %v2268
      %3006 = vmatmul.mubr.bf16.gmra.mxu0 %v2267
      %v3007 = vpop.f32.mrf.mxu0
      %v3008 = vadd.f32 %v2955, %v3007
      %v3009 = vpop.f32.mrf.mxu0
      %v3010 = vadd.f32 %v2957, %v3009
      %v3011 = vpop.f32.mrf.mxu0
      %v3012 = vadd.f32 %v2959, %v3011
      %v3013 = vpop.f32.mrf.mxu0
      %v3014 = vadd.f32 %v2961, %v3013
      %3015 = vdwg.mxu0
      %v3016 = vmax.f32 %v2998, 0.0
      %v3017 = vmax.f32 %v3000, 0.0
      %v3018 = vmax.f32 %v3002, 0.0
      %v3019 = vmax.f32 %v3004, 0.0
      %v3020 = vmax.f32 %v3008, 0.0
      %v3021 = vmax.f32 %v3010, 0.0
      %v3022 = vmax.f32 %v3012, 0.0
      %v3023 = vmax.f32 %v3014, 0.0
      %v3024 = vpack.c.bf16 %v3018, 0.0
      %v3025 = vpack.c.bf16 %v3019, 0.0
      %v3026 = vpack.c.bf16 %v3020, %v3016
      %v3027 = vpack.c.bf16 %v3021, %v3017
      %v3028 = vpack.c.bf16 %v3022, %v3018
      %v3029 = vpack.c.bf16 %v3023, %v3019
      %v3030 = vld [vmem:[%s7] sm:$0xff]
      %v3031 = vld [vmem:[%s7 + $0x8] sm:$0xff]
      %v3032 = vld [vmem:[%s7 + $0x10] sm:$0xff]
      %v3033 = vld [vmem:[%s7 + $0x18] sm:$0xff]
      %v3034 = vld [vmem:[%s7 + $0x20] sm:$0xff]
      %v3035 = vld [vmem:[%s7 + $0x28] sm:$0xff]
      %v3036 = vld [vmem:[%s7 + $0x30] sm:$0xff]
      %v3037 = vld [vmem:[%s7 + $0x38] sm:$0xff]
      %v3038 = vld [vmem:[%s7 + $0x40] sm:$0xff]
      %v3039 = vld [vmem:[%s7 + $0x48] sm:$0xff]
      %v3040 = vld [vmem:[%s7 + $0x50] sm:$0xff]
      %v3041 = vld [vmem:[%s7 + $0x58] sm:$0xff]
      %v3042 = vld [vmem:[%s7 + $0x60] sm:$0xff]
      %v3043 = vld [vmem:[%s7 + $0x68] sm:$0xff]
      %v3044 = vld [vmem:[%s7 + $0x70] sm:$0xff]
      %v3045 = vld [vmem:[%s7 + $0x78] sm:$0xff]
      %v3046 = vld [vmem:[%s7 + $0x80] sm:$0xff]
      %v3047 = vld [vmem:[%s7 + $0x88] sm:$0xff]
      %v3048 = vld [vmem:[%s7 + $0x90] sm:$0xff]
      %v3049 = vld [vmem:[%s7 + $0x98] sm:$0xff]
      %v3050 = vld [vmem:[%s7 + $0xa0] sm:$0xff]
      %v3051 = vld [vmem:[%s7 + $0xa8] sm:$0xff]
      %v3052 = vld [vmem:[%s7 + $0xb0] sm:$0xff]
      %v3053 = vld [vmem:[%s7 + $0xb8] sm:$0xff]
      %v3054 = vld [vmem:[%s7 + $0xc0] sm:$0xff]
      %v3055 = vld [vmem:[%s7 + $0xc8] sm:$0xff]
      %v3056 = vld [vmem:[%s7 + $0xd0] sm:$0xff]
      %v3057 = vld [vmem:[%s7 + $0xd8] sm:$0xff]
      %v3058 = vld [vmem:[%s7 + $0xe0] sm:$0xff]
      %v3059 = vld [vmem:[%s7 + $0xe8] sm:$0xff]
      %v3060 = vld [vmem:[%s7 + $0xf0] sm:$0xff]
      %v3061 = vld [vmem:[%s7 + $0xf8] sm:$0xff]
      %v3062 = vld [vmem:[%s7 + $0x100] sm:$0xff]
      %v3063 = vld [vmem:[%s7 + $0x108] sm:$0xff]
      %v3064 = vld [vmem:[%s7 + $0x110] sm:$0xff]
      %v3065 = vld [vmem:[%s7 + $0x118] sm:$0xff]
      %v3066 = vld [vmem:[%s7 + $0x120] sm:$0xff]
      %v3067 = vld [vmem:[%s7 + $0x128] sm:$0xff]
      %v3068 = vld [vmem:[%s7 + $0x130] sm:$0xff]
      %v3069 = vld [vmem:[%s7 + $0x138] sm:$0xff]
      %v3070 = vld [vmem:[%s7 + $0x140] sm:$0xff]
      %v3071 = vld [vmem:[%s7 + $0x148] sm:$0xff]
      %v3072 = vld [vmem:[%s7 + $0x150] sm:$0xff]
      %v3073 = vld [vmem:[%s7 + $0x158] sm:$0xff]
      %v3074 = vld [vmem:[%s7 + $0x160] sm:$0xff]
      %v3075 = vld [vmem:[%s7 + $0x168] sm:$0xff]
      %v3076 = vld [vmem:[%s7 + $0x170] sm:$0xff]
      %v3077 = vld [vmem:[%s7 + $0x178] sm:$0xff]
      %v3078 = vld [vmem:[%s7 + $0x180] sm:$0xff]
      %v3079 = vld [vmem:[%s7 + $0x188] sm:$0xff]
      %v3080 = vld [vmem:[%s7 + $0x190] sm:$0xff]
      %v3081 = vld [vmem:[%s7 + $0x198] sm:$0xff]
      %v3082 = vld [vmem:[%s7 + $0x1a0] sm:$0xff]
      %v3083 = vld [vmem:[%s7 + $0x1a8] sm:$0xff]
      %v3084 = vld [vmem:[%s7 + $0x1b0] sm:$0xff]
      %v3085 = vld [vmem:[%s7 + $0x1b8] sm:$0xff]
      %v3086 = vld [vmem:[%s7 + $0x1c0] sm:$0xff]
      %v3087 = vld [vmem:[%s7 + $0x1c8] sm:$0xff]
      %v3088 = vld [vmem:[%s7 + $0x1d0] sm:$0xff]
      %v3089 = vld [vmem:[%s7 + $0x1d8] sm:$0xff]
      %v3090 = vld [vmem:[%s7 + $0x1e0] sm:$0xff]
      %v3091 = vld [vmem:[%s7 + $0x1e8] sm:$0xff]
      %v3092 = vld [vmem:[%s7 + $0x1f0] sm:$0xff]
      %v3093 = vld [vmem:[%s7 + $0x1f8] sm:$0xff]
      %v3094 = vld [vmem:[%s7 + $0x200] sm:$0xff]
      %v3095 = vld [vmem:[%s7 + $0x208] sm:$0xff]
      %v3096 = vld [vmem:[%s7 + $0x210] sm:$0xff]
      %v3097 = vld [vmem:[%s7 + $0x218] sm:$0xff]
      %v3098 = vld [vmem:[%s7 + $0x220] sm:$0xff]
      %v3099 = vld [vmem:[%s7 + $0x228] sm:$0xff]
      %v3100 = vld [vmem:[%s7 + $0x230] sm:$0xff]
      %v3101 = vld [vmem:[%s7 + $0x238] sm:$0xff]
      %v3102 = vld [vmem:[%s7 + $0x240] sm:$0xff]
      %v3103 = vld [vmem:[%s7 + $0x248] sm:$0xff]
      %v3104 = vld [vmem:[%s7 + $0x250] sm:$0xff]
      %v3105 = vld [vmem:[%s7 + $0x258] sm:$0xff]
      %v3106 = vld [vmem:[%s7 + $0x260] sm:$0xff]
      %v3107 = vld [vmem:[%s7 + $0x268] sm:$0xff]
      %v3108 = vld [vmem:[%s7 + $0x270] sm:$0xff]
      %v3109 = vld [vmem:[%s7 + $0x278] sm:$0xff]
      %v3110 = vld [vmem:[%s7 + $0x280] sm:$0xff]
      %v3111 = vld [vmem:[%s7 + $0x288] sm:$0xff]
      %v3112 = vld [vmem:[%s7 + $0x290] sm:$0xff]
      %v3113 = vld [vmem:[%s7 + $0x298] sm:$0xff]
      %v3114 = vld [vmem:[%s7 + $0x2a0] sm:$0xff]
      %v3115 = vld [vmem:[%s7 + $0x2a8] sm:$0xff]
      %v3116 = vld [vmem:[%s7 + $0x2b0] sm:$0xff]
      %v3117 = vld [vmem:[%s7 + $0x2b8] sm:$0xff]
      %v3118 = vld [vmem:[%s7 + $0x2c0] sm:$0xff]
      %v3119 = vld [vmem:[%s7 + $0x2c8] sm:$0xff]
      %v3120 = vld [vmem:[%s7 + $0x2d0] sm:$0xff]
      %v3121 = vld [vmem:[%s7 + $0x2d8] sm:$0xff]
      %v3122 = vld [vmem:[%s7 + $0x2e0] sm:$0xff]
      %v3123 = vld [vmem:[%s7 + $0x2e8] sm:$0xff]
      %v3124 = vld [vmem:[%s7 + $0x2f0] sm:$0xff]
      %v3125 = vld [vmem:[%s7 + $0x2f8] sm:$0xff]
      %v3126 = vld [vmem:[%s8] sm:$0x3]
      %v3128 = vlaneseq
      %v3129 = vshrl.u32 %v3128, 7
      %v3130 = vsub.s32 0, %v3129
      %v3131 = vrot.slane %v3126, %v3130
      %v3132 = vlaneseq
      %v3133 = vshrl.u32 %v3132, 7
      %v3134 = vsub.s32 1, %v3133
      %v3135 = vrot.slane %v3126, %v3134
      %v3234 = vunpack.c.l.b16 %v3030
      %v3235 = vunpack.c.h.b16 %v3030
      %v3236 = vunpack.c.l.b16 %v3031
      %v3237 = vunpack.c.h.b16 %v3031
      %v3238 = vunpack.c.l.b16 %v3032
      %v3239 = vunpack.c.h.b16 %v3032
      %v3240 = vunpack.c.l.b16 %v3033
      %v3241 = vunpack.c.h.b16 %v3033
      %v3242 = vunpack.c.l.b16 %v3034
      %v3243 = vunpack.c.h.b16 %v3034
      %v3244 = vunpack.c.l.b16 %v3035
      %v3245 = vunpack.c.h.b16 %v3035
      %v3246 = vunpack.c.l.b16 %v3036
      %v3247 = vunpack.c.h.b16 %v3036
      %v3248 = vunpack.c.l.b16 %v3037
      %v3249 = vunpack.c.h.b16 %v3037
      %v3250 = vunpack.c.l.b16 %v3038
      %v3251 = vunpack.c.h.b16 %v3038
      %v3252 = vunpack.c.l.b16 %v3039
      %v3253 = vunpack.c.h.b16 %v3039
      %v3254 = vunpack.c.l.b16 %v3040
      %v3255 = vunpack.c.h.b16 %v3040
      %v3256 = vunpack.c.l.b16 %v3041
      %v3257 = vunpack.c.h.b16 %v3041
      %v3258 = vunpack.c.l.b16 %v3042
      %v3259 = vunpack.c.h.b16 %v3042
      %v3260 = vunpack.c.l.b16 %v3043
      %v3261 = vunpack.c.h.b16 %v3043
      %v3262 = vunpack.c.l.b16 %v3044
      %v3263 = vunpack.c.h.b16 %v3044
      %v3264 = vunpack.c.l.b16 %v3045
      %v3265 = vunpack.c.h.b16 %v3045
      %v3266 = vunpack.c.l.b16 %v3046
      %v3267 = vunpack.c.h.b16 %v3046
      %v3268 = vunpack.c.l.b16 %v3047
      %v3269 = vunpack.c.h.b16 %v3047
      %v3270 = vunpack.c.l.b16 %v3048
      %v3271 = vunpack.c.h.b16 %v3048
      %v3272 = vunpack.c.l.b16 %v3049
      %v3273 = vunpack.c.h.b16 %v3049
      %v3274 = vunpack.c.l.b16 %v3050
      %v3275 = vunpack.c.h.b16 %v3050
      %v3276 = vunpack.c.l.b16 %v3051
      %v3277 = vunpack.c.h.b16 %v3051
      %v3278 = vunpack.c.l.b16 %v3052
      %v3279 = vunpack.c.h.b16 %v3052
      %v3280 = vunpack.c.l.b16 %v3053
      %v3281 = vunpack.c.h.b16 %v3053
      %v3282 = vunpack.c.l.b16 %v3054
      %v3283 = vunpack.c.h.b16 %v3054
      %v3284 = vunpack.c.l.b16 %v3055
      %v3285 = vunpack.c.h.b16 %v3055
      %v3286 = vunpack.c.l.b16 %v3056
      %v3287 = vunpack.c.h.b16 %v3056
      %v3288 = vunpack.c.l.b16 %v3057
      %v3289 = vunpack.c.h.b16 %v3057
      %v3290 = vunpack.c.l.b16 %v3058
      %v3291 = vunpack.c.h.b16 %v3058
      %v3292 = vunpack.c.l.b16 %v3059
      %v3293 = vunpack.c.h.b16 %v3059
      %v3294 = vunpack.c.l.b16 %v3060
      %v3295 = vunpack.c.h.b16 %v3060
      %v3296 = vunpack.c.l.b16 %v3061
      %v3297 = vunpack.c.h.b16 %v3061
      %v3298 = vunpack.c.l.b16 %v3062
      %v3299 = vunpack.c.h.b16 %v3062
      %v3300 = vunpack.c.l.b16 %v3063
      %v3301 = vunpack.c.h.b16 %v3063
      %v3302 = vunpack.c.l.b16 %v3064
      %v3303 = vunpack.c.h.b16 %v3064
      %v3304 = vunpack.c.l.b16 %v3065
      %v3305 = vunpack.c.h.b16 %v3065
      %v3306 = vunpack.c.l.b16 %v3066
      %v3307 = vunpack.c.h.b16 %v3066
      %v3308 = vunpack.c.l.b16 %v3067
      %v3309 = vunpack.c.h.b16 %v3067
      %v3310 = vunpack.c.l.b16 %v3068
      %v3311 = vunpack.c.h.b16 %v3068
      %v3312 = vunpack.c.l.b16 %v3069
      %v3313 = vunpack.c.h.b16 %v3069
      %v3314 = vunpack.c.l.b16 %v3070
      %v3315 = vunpack.c.h.b16 %v3070
      %v3316 = vunpack.c.l.b16 %v3071
      %v3317 = vunpack.c.h.b16 %v3071
      %v3318 = vunpack.c.l.b16 %v3072
      %v3319 = vunpack.c.h.b16 %v3072
      %v3320 = vunpack.c.l.b16 %v3073
      %v3321 = vunpack.c.h.b16 %v3073
      %v3322 = vunpack.c.l.b16 %v3074
      %v3323 = vunpack.c.h.b16 %v3074
      %v3324 = vunpack.c.l.b16 %v3075
      %v3325 = vunpack.c.h.b16 %v3075
      %v3326 = vunpack.c.l.b16 %v3076
      %v3327 = vunpack.c.h.b16 %v3076
      %v3328 = vunpack.c.l.b16 %v3077
      %v3329 = vunpack.c.h.b16 %v3077
      %v3330 = vunpack.c.l.b16 %v3078
      %v3331 = vunpack.c.h.b16 %v3078
      %v3332 = vunpack.c.l.b16 %v3079
      %v3333 = vunpack.c.h.b16 %v3079
      %v3334 = vunpack.c.l.b16 %v3080
      %v3335 = vunpack.c.h.b16 %v3080
      %v3336 = vunpack.c.l.b16 %v3081
      %v3337 = vunpack.c.h.b16 %v3081
      %v3338 = vunpack.c.l.b16 %v3082
      %v3339 = vunpack.c.h.b16 %v3082
      %v3340 = vunpack.c.l.b16 %v3083
      %v3341 = vunpack.c.h.b16 %v3083
      %v3342 = vunpack.c.l.b16 %v3084
      %v3343 = vunpack.c.h.b16 %v3084
      %v3344 = vunpack.c.l.b16 %v3085
      %v3345 = vunpack.c.h.b16 %v3085
      %v3346 = vunpack.c.l.b16 %v3086
      %v3347 = vunpack.c.h.b16 %v3086
      %v3348 = vunpack.c.l.b16 %v3087
      %v3349 = vunpack.c.h.b16 %v3087
      %v3350 = vunpack.c.l.b16 %v3088
      %v3351 = vunpack.c.h.b16 %v3088
      %v3352 = vunpack.c.l.b16 %v3089
      %v3353 = vunpack.c.h.b16 %v3089
      %v3354 = vunpack.c.l.b16 %v3090
      %v3355 = vunpack.c.h.b16 %v3090
      %v3356 = vunpack.c.l.b16 %v3091
      %v3357 = vunpack.c.h.b16 %v3091
      %v3358 = vunpack.c.l.b16 %v3092
      %v3359 = vunpack.c.h.b16 %v3092
      %v3360 = vunpack.c.l.b16 %v3093
      %v3361 = vunpack.c.h.b16 %v3093
      %v3362 = vunpack.c.l.b16 %v3094
      %v3363 = vunpack.c.h.b16 %v3094
      %v3364 = vunpack.c.l.b16 %v3095
      %v3365 = vunpack.c.h.b16 %v3095
      %v3366 = vunpack.c.l.b16 %v3096
      %v3367 = vunpack.c.h.b16 %v3096
      %v3368 = vunpack.c.l.b16 %v3097
      %v3369 = vunpack.c.h.b16 %v3097
      %v3370 = vunpack.c.l.b16 %v3098
      %v3371 = vunpack.c.h.b16 %v3098
      %v3372 = vunpack.c.l.b16 %v3099
      %v3373 = vunpack.c.h.b16 %v3099
      %v3374 = vunpack.c.l.b16 %v3100
      %v3375 = vunpack.c.h.b16 %v3100
      %v3376 = vunpack.c.l.b16 %v3101
      %v3377 = vunpack.c.h.b16 %v3101
      %v3378 = vunpack.c.l.b16 %v3102
      %v3379 = vunpack.c.h.b16 %v3102
      %v3380 = vunpack.c.l.b16 %v3103
      %v3381 = vunpack.c.h.b16 %v3103
      %v3382 = vunpack.c.l.b16 %v3104
      %v3383 = vunpack.c.h.b16 %v3104
      %v3384 = vunpack.c.l.b16 %v3105
      %v3385 = vunpack.c.h.b16 %v3105
      %v3386 = vunpack.c.l.b16 %v3106
      %v3387 = vunpack.c.h.b16 %v3106
      %v3388 = vunpack.c.l.b16 %v3107
      %v3389 = vunpack.c.h.b16 %v3107
      %v3390 = vunpack.c.l.b16 %v3108
      %v3391 = vunpack.c.h.b16 %v3108
      %v3392 = vunpack.c.l.b16 %v3109
      %v3393 = vunpack.c.h.b16 %v3109
      %v3394 = vunpack.c.l.b16 %v3110
      %v3395 = vunpack.c.h.b16 %v3110
      %v3396 = vunpack.c.l.b16 %v3111
      %v3397 = vunpack.c.h.b16 %v3111
      %v3398 = vunpack.c.l.b16 %v3112
      %v3399 = vunpack.c.h.b16 %v3112
      %v3400 = vunpack.c.l.b16 %v3113
      %v3401 = vunpack.c.h.b16 %v3113
      %v3402 = vunpack.c.l.b16 %v3114
      %v3403 = vunpack.c.h.b16 %v3114
      %v3404 = vunpack.c.l.b16 %v3115
      %v3405 = vunpack.c.h.b16 %v3115
      %v3406 = vunpack.c.l.b16 %v3116
      %v3407 = vunpack.c.h.b16 %v3116
      %v3408 = vunpack.c.l.b16 %v3117
      %v3409 = vunpack.c.h.b16 %v3117
      %v3410 = vunpack.c.l.b16 %v3118
      %v3411 = vunpack.c.h.b16 %v3118
      %v3412 = vunpack.c.l.b16 %v3119
      %v3413 = vunpack.c.h.b16 %v3119
      %v3414 = vunpack.c.l.b16 %v3120
      %v3415 = vunpack.c.h.b16 %v3120
      %v3416 = vunpack.c.l.b16 %v3121
      %v3417 = vunpack.c.h.b16 %v3121
      %v3418 = vunpack.c.l.b16 %v3122
      %v3419 = vunpack.c.h.b16 %v3122
      %v3420 = vunpack.c.l.b16 %v3123
      %v3421 = vunpack.c.h.b16 %v3123
      %v3422 = vunpack.c.l.b16 %v3124
      %v3423 = vunpack.c.h.b16 %v3124
      %v3424 = vunpack.c.l.b16 %v3125
      %v3425 = vunpack.c.h.b16 %v3125
      %v3426 = vpack.c.b16 %v3236, %v3234
      %v3427 = vpack.c.b16 %v3237, %v3235
      %v3428 = vpack.c.b16 %v3240, %v3238
      %v3429 = vpack.c.b16 %v3241, %v3239
      %v3430 = vpack.c.b16 %v3244, %v3242
      %v3431 = vpack.c.b16 %v3245, %v3243
      %v3432 = vpack.c.b16 %v3248, %v3246
      %v3433 = vpack.c.b16 %v3249, %v3247
      %v3434 = vpack.c.b16 %v3252, %v3250
      %v3435 = vpack.c.b16 %v3253, %v3251
      %v3436 = vpack.c.b16 %v3256, %v3254
      %v3437 = vpack.c.b16 %v3257, %v3255
      %v3438 = vpack.c.b16 %v3260, %v3258
      %v3439 = vpack.c.b16 %v3261, %v3259
      %v3440 = vpack.c.b16 %v3264, %v3262
      %v3441 = vpack.c.b16 %v3265, %v3263
      %v3442 = vpack.c.b16 %v3268, %v3266
      %v3443 = vpack.c.b16 %v3269, %v3267
      %v3444 = vpack.c.b16 %v3272, %v3270
      %v3445 = vpack.c.b16 %v3273, %v3271
      %v3446 = vpack.c.b16 %v3276, %v3274
      %v3447 = vpack.c.b16 %v3277, %v3275
      %v3448 = vpack.c.b16 %v3280, %v3278
      %v3449 = vpack.c.b16 %v3281, %v3279
      %v3450 = vpack.c.b16 %v3284, %v3282
      %v3451 = vpack.c.b16 %v3285, %v3283
      %v3452 = vpack.c.b16 %v3288, %v3286
      %v3453 = vpack.c.b16 %v3289, %v3287
      %v3454 = vpack.c.b16 %v3292, %v3290
      %v3455 = vpack.c.b16 %v3293, %v3291
      %v3456 = vpack.c.b16 %v3296, %v3294
      %v3457 = vpack.c.b16 %v3297, %v3295
      %v3458 = vpack.c.b16 %v3300, %v3298
      %v3459 = vpack.c.b16 %v3301, %v3299
      %v3460 = vpack.c.b16 %v3304, %v3302
      %v3461 = vpack.c.b16 %v3305, %v3303
      %v3462 = vpack.c.b16 %v3308, %v3306
      %v3463 = vpack.c.b16 %v3309, %v3307
      %v3464 = vpack.c.b16 %v3312, %v3310
      %v3465 = vpack.c.b16 %v3313, %v3311
      %v3466 = vpack.c.b16 %v3316, %v3314
      %v3467 = vpack.c.b16 %v3317, %v3315
      %v3468 = vpack.c.b16 %v3320, %v3318
      %v3469 = vpack.c.b16 %v3321, %v3319
      %v3470 = vpack.c.b16 %v3324, %v3322
      %v3471 = vpack.c.b16 %v3325, %v3323
      %v3472 = vpack.c.b16 %v3328, %v3326
      %v3473 = vpack.c.b16 %v3329, %v3327
      %v3474 = vpack.c.b16 %v3332, %v3330
      %v3475 = vpack.c.b16 %v3333, %v3331
      %v3476 = vpack.c.b16 %v3336, %v3334
      %v3477 = vpack.c.b16 %v3337, %v3335
      %v3478 = vpack.c.b16 %v3340, %v3338
      %v3479 = vpack.c.b16 %v3341, %v3339
      %v3480 = vpack.c.b16 %v3344, %v3342
      %v3481 = vpack.c.b16 %v3345, %v3343
      %v3482 = vpack.c.b16 %v3348, %v3346
      %v3483 = vpack.c.b16 %v3349, %v3347
      %v3484 = vpack.c.b16 %v3352, %v3350
      %v3485 = vpack.c.b16 %v3353, %v3351
      %v3486 = vpack.c.b16 %v3356, %v3354
      %v3487 = vpack.c.b16 %v3357, %v3355
      %v3488 = vpack.c.b16 %v3360, %v3358
      %v3489 = vpack.c.b16 %v3361, %v3359
      %v3490 = vpack.c.b16 %v3364, %v3362
      %v3491 = vpack.c.b16 %v3365, %v3363
      %v3492 = vpack.c.b16 %v3368, %v3366
      %v3493 = vpack.c.b16 %v3369, %v3367
      %v3494 = vpack.c.b16 %v3372, %v3370
      %v3495 = vpack.c.b16 %v3373, %v3371
      %v3496 = vpack.c.b16 %v3376, %v3374
      %v3497 = vpack.c.b16 %v3377, %v3375
      %v3498 = vpack.c.b16 %v3380, %v3378
      %v3499 = vpack.c.b16 %v3381, %v3379
      %v3500 = vpack.c.b16 %v3384, %v3382
      %v3501 = vpack.c.b16 %v3385, %v3383
      %v3502 = vpack.c.b16 %v3388, %v3386
      %v3503 = vpack.c.b16 %v3389, %v3387
      %v3504 = vpack.c.b16 %v3392, %v3390
      %v3505 = vpack.c.b16 %v3393, %v3391
      %v3506 = vpack.c.b16 %v3396, %v3394
      %v3507 = vpack.c.b16 %v3397, %v3395
      %v3508 = vpack.c.b16 %v3400, %v3398
      %v3509 = vpack.c.b16 %v3401, %v3399
      %v3510 = vpack.c.b16 %v3404, %v3402
      %v3511 = vpack.c.b16 %v3405, %v3403
      %v3512 = vpack.c.b16 %v3408, %v3406
      %v3513 = vpack.c.b16 %v3409, %v3407
      %v3514 = vpack.c.b16 %v3412, %v3410
      %v3515 = vpack.c.b16 %v3413, %v3411
      %v3516 = vpack.c.b16 %v3416, %v3414
      %v3517 = vpack.c.b16 %v3417, %v3415
      %v3518 = vpack.c.b16 %v3420, %v3418
      %v3519 = vpack.c.b16 %v3421, %v3419
      %v3520 = vpack.c.b16 %v3424, %v3422
      %v3521 = vpack.c.b16 %v3425, %v3423
      %3618 = vmatprep.subr.bf16.mxu0 %v3441
      %3619 = vmatpush1.bf16.msra.mxu0 %v3440
      %3620 = vmatprep.subr.bf16.mxu0 %v3439
      %3621 = vmatpush1.bf16.msra.mxu0 %v3438
      %3622 = vmatprep.subr.bf16.mxu0 %v3437
      %3623 = vmatpush1.bf16.msra.mxu0 %v3436
      %3624 = vmatprep.subr.bf16.mxu0 %v3435
      %3625 = vmatpush1.bf16.msra.mxu0 %v3434
      %3626 = vmatprep.subr.bf16.mxu0 %v3433
      %3627 = vmatpush1.bf16.msra.mxu0 %v3432
      %3628 = vmatprep.subr.bf16.mxu0 %v3431
      %3629 = vmatpush1.bf16.msra.mxu0 %v3430
      %3630 = vmatprep.subr.bf16.mxu0 %v3429
      %3631 = vmatpush1.bf16.msra.mxu0 %v3428
      %3632 = vmatprep.subr.bf16.mxu0 %v3427
      %3633 = vmatpush1.bf16.msra.mxu0 %v3426
      %3634 = vmatprep.subr.bf16.mxu0 %v3457
      %3635 = vmatpush2.bf16.msra.mxu0 %v3456
      %3636 = vmatprep.subr.bf16.mxu0 %v3455
      %3637 = vmatpush2.bf16.msra.mxu0 %v3454
      %3638 = vmatprep.subr.bf16.mxu0 %v3453
      %3639 = vmatpush2.bf16.msra.mxu0 %v3452
      %3640 = vmatprep.subr.bf16.mxu0 %v3451
      %3641 = vmatpush2.bf16.msra.mxu0 %v3450
      %3642 = vmatprep.subr.bf16.mxu0 %v3449
      %3643 = vmatpush2.bf16.msra.mxu0 %v3448
      %3644 = vmatprep.subr.bf16.mxu0 %v3447
      %3645 = vmatpush2.bf16.msra.mxu0 %v3446
      %3646 = vmatprep.subr.bf16.mxu0 %v3445
      %3647 = vmatpush2.bf16.msra.mxu0 %v3444
      %3648 = vmatprep.subr.bf16.mxu0 %v3443
      %3649 = vmatpush2.bf16.msra.mxu0 %v3442
      %3650 = vmatprep.mubr.bf16.mxu0 %v3025
      %3651 = vmatmul.mubr.bf16.gmra.mxu0 %v3024
      %v3652 = vpop.f32.mrf.mxu0
      %v3653 = vadd.f32 %v3131, %v3652
      %v3654 = vpop.f32.mrf.mxu0
      %v3655 = vadd.f32 %v3135, %v3654
      %v3656 = vpop.f32.mrf.mxu0
      %v3657 = vadd.f32 %v3131, %v3656
      %v3658 = vpop.f32.mrf.mxu0
      %v3659 = vadd.f32 %v3135, %v3658
      %3660 = vdwg.mxu0
      %3661 = vmatprep.subr.bf16.mxu0 %v3473
      %3662 = vmatpush1.bf16.msra.mxu0 %v3472
      %3663 = vmatprep.subr.bf16.mxu0 %v3471
      %3664 = vmatpush1.bf16.msra.mxu0 %v3470
      %3665 = vmatprep.subr.bf16.mxu0 %v3469
      %3666 = vmatpush1.bf16.msra.mxu0 %v3468
      %3667 = vmatprep.subr.bf16.mxu0 %v3467
      %3668 = vmatpush1.bf16.msra.mxu0 %v3466
      %3669 = vmatprep.subr.bf16.mxu0 %v3465
      %3670 = vmatpush1.bf16.msra.mxu0 %v3464
      %3671 = vmatprep.subr.bf16.mxu0 %v3463
      %3672 = vmatpush1.bf16.msra.mxu0 %v3462
      %3673 = vmatprep.subr.bf16.mxu0 %v3461
      %3674 = vmatpush1.bf16.msra.mxu0 %v3460
      %3675 = vmatprep.subr.bf16.mxu0 %v3459
      %3676 = vmatpush1.bf16.msra.mxu0 %v3458
      %3677 = vmatprep.subr.bf16.mxu0 %v3489
      %3678 = vmatpush2.bf16.msra.mxu0 %v3488
      %3679 = vmatprep.subr.bf16.mxu0 %v3487
      %3680 = vmatpush2.bf16.msra.mxu0 %v3486
      %3681 = vmatprep.subr.bf16.mxu0 %v3485
      %3682 = vmatpush2.bf16.msra.mxu0 %v3484
      %3683 = vmatprep.subr.bf16.mxu0 %v3483
      %3684 = vmatpush2.bf16.msra.mxu0 %v3482
      %3685 = vmatprep.subr.bf16.mxu0 %v3481
      %3686 = vmatpush2.bf16.msra.mxu0 %v3480
      %3687 = vmatprep.subr.bf16.mxu0 %v3479
      %3688 = vmatpush2.bf16.msra.mxu0 %v3478
      %3689 = vmatprep.subr.bf16.mxu0 %v3477
      %3690 = vmatpush2.bf16.msra.mxu0 %v3476
      %3691 = vmatprep.subr.bf16.mxu0 %v3475
      %3692 = vmatpush2.bf16.msra.mxu0 %v3474
      %3693 = vmatprep.mubr.bf16.mxu0 %v3027
      %3694 = vmatmul.mubr.bf16.gmra.mxu0 %v3026
      %v3695 = vpop.f32.mrf.mxu0
      %v3696 = vadd.f32 %v3653, %v3695
      %v3697 = vpop.f32.mrf.mxu0
      %v3698 = vadd.f32 %v3655, %v3697
      %v3699 = vpop.f32.mrf.mxu0
      %v3700 = vadd.f32 %v3657, %v3699
      %v3701 = vpop.f32.mrf.mxu0
      %v3702 = vadd.f32 %v3659, %v3701
      %3703 = vdwg.mxu0
      %3704 = vmatprep.subr.bf16.mxu0 %v3505
      %3705 = vmatpush1.bf16.msra.mxu0 %v3504
      %3706 = vmatprep.subr.bf16.mxu0 %v3503
      %3707 = vmatpush1.bf16.msra.mxu0 %v3502
      %3708 = vmatprep.subr.bf16.mxu0 %v3501
      %3709 = vmatpush1.bf16.msra.mxu0 %v3500
      %3710 = vmatprep.subr.bf16.mxu0 %v3499
      %3711 = vmatpush1.bf16.msra.mxu0 %v3498
      %3712 = vmatprep.subr.bf16.mxu0 %v3497
      %3713 = vmatpush1.bf16.msra.mxu0 %v3496
      %3714 = vmatprep.subr.bf16.mxu0 %v3495
      %3715 = vmatpush1.bf16.msra.mxu0 %v3494
      %3716 = vmatprep.subr.bf16.mxu0 %v3493
      %3717 = vmatpush1.bf16.msra.mxu0 %v3492
      %3718 = vmatprep.subr.bf16.mxu0 %v3491
      %3719 = vmatpush1.bf16.msra.mxu0 %v3490
      %3720 = vmatprep.subr.bf16.mxu0 %v3521
      %3721 = vmatpush2.bf16.msra.mxu0 %v3520
      %3722 = vmatprep.subr.bf16.mxu0 %v3519
      %3723 = vmatpush2.bf16.msra.mxu0 %v3518
      %3724 = vmatprep.subr.bf16.mxu0 %v3517
      %3725 = vmatpush2.bf16.msra.mxu0 %v3516
      %3726 = vmatprep.subr.bf16.mxu0 %v3515
      %3727 = vmatpush2.bf16.msra.mxu0 %v3514
      %3728 = vmatprep.subr.bf16.mxu0 %v3513
      %3729 = vmatpush2.bf16.msra.mxu0 %v3512
      %3730 = vmatprep.subr.bf16.mxu0 %v3511
      %3731 = vmatpush2.bf16.msra.mxu0 %v3510
      %3732 = vmatprep.subr.bf16.mxu0 %v3509
      %3733 = vmatpush2.bf16.msra.mxu0 %v3508
      %3734 = vmatprep.subr.bf16.mxu0 %v3507
      %3735 = vmatpush2.bf16.msra.mxu0 %v3506
      %3736 = vmatprep.mubr.bf16.mxu0 %v3029
      %3737 = vmatmul.mubr.bf16.gmra.mxu0 %v3028
      %v3738 = vpop.f32.mrf.mxu0
      %v3739 = vadd.f32 %v3696, %v3738
      %v3740 = vpop.f32.mrf.mxu0
      %v3741 = vadd.f32 %v3698, %v3740
      %v3742 = vpop.f32.mrf.mxu0
      %v3743 = vadd.f32 %v3700, %v3742
      %v3744 = vpop.f32.mrf.mxu0
      %v3745 = vadd.f32 %v3702, %v3744
      %3746 = vdwg.mxu0
      %v3747 = vmax.f32 %v3739, 0.0
      %v3748 = vmax.f32 %v3741, 0.0
      %v3749 = vmax.f32 %v3743, 0.0
      %v3750 = vmax.f32 %v3745, 0.0
      %v3751 = vpack.c.bf16 0.0, 0.0
      %v3752 = vpack.c.bf16 %v3747, %v3747
      %v3753 = vpack.c.bf16 %v3748, %v3748
      %v3754 = vpack.c.bf16 %v3749, %v3749
      %v3755 = vpack.c.bf16 %v3750, %v3750
      %v3756 = vld [vmem:[%s9] sm:$0xff]
      %v3757 = vld [vmem:[%s9 + $0x8] sm:$0xff]
      %v3758 = vld [vmem:[%s9 + $0x10] sm:$0xff]
      %v3759 = vld [vmem:[%s9 + $0x18] sm:$0xff]
      %v3760 = vld [vmem:[%s9 + $0x20] sm:$0xff]
      %v3761 = vld [vmem:[%s9 + $0x28] sm:$0xff]
      %v3762 = vld [vmem:[%s9 + $0x30] sm:$0xff]
      %v3763 = vld [vmem:[%s9 + $0x38] sm:$0xff]
      %v3764 = vld [vmem:[%s9 + $0x40] sm:$0xff]
      %v3765 = vld [vmem:[%s9 + $0x48] sm:$0xff]
      %v3766 = vld [vmem:[%s9 + $0x50] sm:$0xff]
      %v3767 = vld [vmem:[%s9 + $0x58] sm:$0xff]
      %v3768 = vld [vmem:[%s9 + $0x60] sm:$0xff]
      %v3769 = vld [vmem:[%s9 + $0x68] sm:$0xff]
      %v3770 = vld [vmem:[%s9 + $0x70] sm:$0xff]
      %v3771 = vld [vmem:[%s9 + $0x78] sm:$0xff]
      %v3772 = vld [vmem:[%s9 + $0x80] sm:$0xff]
      %v3773 = vld [vmem:[%s9 + $0x88] sm:$0xff]
      %v3774 = vld [vmem:[%s9 + $0x90] sm:$0xff]
      %v3775 = vld [vmem:[%s9 + $0x98] sm:$0xff]
      %v3776 = vld [vmem:[%s9 + $0xa0] sm:$0xff]
      %v3777 = vld [vmem:[%s9 + $0xa8] sm:$0xff]
      %v3778 = vld [vmem:[%s9 + $0xb0] sm:$0xff]
      %v3779 = vld [vmem:[%s9 + $0xb8] sm:$0xff]
      %v3780 = vld [vmem:[%s9 + $0xc0] sm:$0xff]
      %v3781 = vld [vmem:[%s9 + $0xc8] sm:$0xff]
      %v3782 = vld [vmem:[%s9 + $0xd0] sm:$0xff]
      %v3783 = vld [vmem:[%s9 + $0xd8] sm:$0xff]
      %v3784 = vld [vmem:[%s9 + $0xe0] sm:$0xff]
      %v3785 = vld [vmem:[%s9 + $0xe8] sm:$0xff]
      %v3786 = vld [vmem:[%s9 + $0xf0] sm:$0xff]
      %v3787 = vld [vmem:[%s9 + $0xf8] sm:$0xff]
      %v3788 = vld [vmem:[%s9 + $0x100] sm:$0xff]
      %v3789 = vld [vmem:[%s9 + $0x108] sm:$0xff]
      %v3790 = vld [vmem:[%s9 + $0x110] sm:$0xff]
      %v3791 = vld [vmem:[%s9 + $0x118] sm:$0xff]
      %v3792 = vld [vmem:[%s9 + $0x120] sm:$0xff]
      %v3793 = vld [vmem:[%s9 + $0x128] sm:$0xff]
      %v3794 = vld [vmem:[%s9 + $0x130] sm:$0xff]
      %v3795 = vld [vmem:[%s9 + $0x138] sm:$0xff]
      %v3796 = vld [vmem:[%s9 + $0x140] sm:$0xff]
      %v3797 = vld [vmem:[%s9 + $0x148] sm:$0xff]
      %v3798 = vld [vmem:[%s9 + $0x150] sm:$0xff]
      %v3799 = vld [vmem:[%s9 + $0x158] sm:$0xff]
      %v3800 = vld [vmem:[%s9 + $0x160] sm:$0xff]
      %v3801 = vld [vmem:[%s9 + $0x168] sm:$0xff]
      %v3802 = vld [vmem:[%s9 + $0x170] sm:$0xff]
      %v3803 = vld [vmem:[%s9 + $0x178] sm:$0xff]
      %v3804 = vld [vmem:[%s9 + $0x180] sm:$0xff]
      %v3805 = vld [vmem:[%s9 + $0x188] sm:$0xff]
      %v3806 = vld [vmem:[%s9 + $0x190] sm:$0xff]
      %v3807 = vld [vmem:[%s9 + $0x198] sm:$0xff]
      %v3808 = vld [vmem:[%s9 + $0x1a0] sm:$0xff]
      %v3809 = vld [vmem:[%s9 + $0x1a8] sm:$0xff]
      %v3810 = vld [vmem:[%s9 + $0x1b0] sm:$0xff]
      %v3811 = vld [vmem:[%s9 + $0x1b8] sm:$0xff]
      %v3812 = vld [vmem:[%s9 + $0x1c0] sm:$0xff]
      %v3813 = vld [vmem:[%s9 + $0x1c8] sm:$0xff]
      %v3814 = vld [vmem:[%s9 + $0x1d0] sm:$0xff]
      %v3815 = vld [vmem:[%s9 + $0x1d8] sm:$0xff]
      %v3816 = vld [vmem:[%s9 + $0x1e0] sm:$0xff]
      %v3817 = vld [vmem:[%s9 + $0x1e8] sm:$0xff]
      %v3818 = vld [vmem:[%s9 + $0x1f0] sm:$0xff]
      %v3819 = vld [vmem:[%s9 + $0x1f8] sm:$0xff]
      %v3820 = vld [vmem:[%s9 + $0x200] sm:$0xff]
      %v3821 = vld [vmem:[%s9 + $0x208] sm:$0xff]
      %v3822 = vld [vmem:[%s9 + $0x210] sm:$0xff]
      %v3823 = vld [vmem:[%s9 + $0x218] sm:$0xff]
      %v3824 = vld [vmem:[%s9 + $0x220] sm:$0xff]
      %v3825 = vld [vmem:[%s9 + $0x228] sm:$0xff]
      %v3826 = vld [vmem:[%s9 + $0x230] sm:$0xff]
      %v3827 = vld [vmem:[%s9 + $0x238] sm:$0xff]
      %v3828 = vld [vmem:[%s9 + $0x240] sm:$0xff]
      %v3829 = vld [vmem:[%s9 + $0x248] sm:$0xff]
      %v3830 = vld [vmem:[%s9 + $0x250] sm:$0xff]
      %v3831 = vld [vmem:[%s9 + $0x258] sm:$0xff]
      %v3832 = vld [vmem:[%s9 + $0x260] sm:$0xff]
      %v3833 = vld [vmem:[%s9 + $0x268] sm:$0xff]
      %v3834 = vld [vmem:[%s9 + $0x270] sm:$0xff]
      %v3835 = vld [vmem:[%s9 + $0x278] sm:$0xff]
      %v3836 = vld [vmem:[%s9 + $0x280] sm:$0xff]
      %v3837 = vld [vmem:[%s9 + $0x288] sm:$0xff]
      %v3838 = vld [vmem:[%s9 + $0x290] sm:$0xff]
      %v3839 = vld [vmem:[%s9 + $0x298] sm:$0xff]
      %v3840 = vld [vmem:[%s9 + $0x2a0] sm:$0xff]
      %v3841 = vld [vmem:[%s9 + $0x2a8] sm:$0xff]
      %v3842 = vld [vmem:[%s9 + $0x2b0] sm:$0xff]
      %v3843 = vld [vmem:[%s9 + $0x2b8] sm:$0xff]
      %v3844 = vld [vmem:[%s9 + $0x2c0] sm:$0xff]
      %v3845 = vld [vmem:[%s9 + $0x2c8] sm:$0xff]
      %v3846 = vld [vmem:[%s9 + $0x2d0] sm:$0xff]
      %v3847 = vld [vmem:[%s9 + $0x2d8] sm:$0xff]
      %v3848 = vld [vmem:[%s9 + $0x2e0] sm:$0xff]
      %v3849 = vld [vmem:[%s9 + $0x2e8] sm:$0xff]
      %v3850 = vld [vmem:[%s9 + $0x2f0] sm:$0xff]
      %v3851 = vld [vmem:[%s9 + $0x2f8] sm:$0xff]
      %v3852 = vld [vmem:[%s10] sm:$0x3]
      %v3854 = vlaneseq
      %v3855 = vshrl.u32 %v3854, 7
      %v3856 = vsub.s32 0, %v3855
      %v3857 = vrot.slane %v3852, %v3856
      %v3858 = vlaneseq
      %v3859 = vshrl.u32 %v3858, 7
      %v3860 = vsub.s32 1, %v3859
      %v3861 = vrot.slane %v3852, %v3860
      %v3960 = vunpack.c.l.b16 %v3756
      %v3961 = vunpack.c.h.b16 %v3756
      %v3962 = vunpack.c.l.b16 %v3757
      %v3963 = vunpack.c.h.b16 %v3757
      %v3964 = vunpack.c.l.b16 %v3758
      %v3965 = vunpack.c.h.b16 %v3758
      %v3966 = vunpack.c.l.b16 %v3759
      %v3967 = vunpack.c.h.b16 %v3759
      %v3968 = vunpack.c.l.b16 %v3760
      %v3969 = vunpack.c.h.b16 %v3760
      %v3970 = vunpack.c.l.b16 %v3761
      %v3971 = vunpack.c.h.b16 %v3761
      %v3972 = vunpack.c.l.b16 %v3762
      %v3973 = vunpack.c.h.b16 %v3762
      %v3974 = vunpack.c.l.b16 %v3763
      %v3975 = vunpack.c.h.b16 %v3763
      %v3976 = vunpack.c.l.b16 %v3764
      %v3977 = vunpack.c.h.b16 %v3764
      %v3978 = vunpack.c.l.b16 %v3765
      %v3979 = vunpack.c.h.b16 %v3765
      %v3980 = vunpack.c.l.b16 %v3766
      %v3981 = vunpack.c.h.b16 %v3766
      %v3982 = vunpack.c.l.b16 %v3767
      %v3983 = vunpack.c.h.b16 %v3767
      %v3984 = vunpack.c.l.b16 %v3768
      %v3985 = vunpack.c.h.b16 %v3768
      %v3986 = vunpack.c.l.b16 %v3769
      %v3987 = vunpack.c.h.b16 %v3769
      %v3988 = vunpack.c.l.b16 %v3770
      %v3989 = vunpack.c.h.b16 %v3770
      %v3990 = vunpack.c.l.b16 %v3771
      %v3991 = vunpack.c.h.b16 %v3771
      %v3992 = vunpack.c.l.b16 %v3772
      %v3993 = vunpack.c.h.b16 %v3772
      %v3994 = vunpack.c.l.b16 %v3773
      %v3995 = vunpack.c.h.b16 %v3773
      %v3996 = vunpack.c.l.b16 %v3774
      %v3997 = vunpack.c.h.b16 %v3774
      %v3998 = vunpack.c.l.b16 %v3775
      %v3999 = vunpack.c.h.b16 %v3775
      %v4000 = vunpack.c.l.b16 %v3776
      %v4001 = vunpack.c.h.b16 %v3776
      %v4002 = vunpack.c.l.b16 %v3777
      %v4003 = vunpack.c.h.b16 %v3777
      %v4004 = vunpack.c.l.b16 %v3778
      %v4005 = vunpack.c.h.b16 %v3778
      %v4006 = vunpack.c.l.b16 %v3779
      %v4007 = vunpack.c.h.b16 %v3779
      %v4008 = vunpack.c.l.b16 %v3780
      %v4009 = vunpack.c.h.b16 %v3780
      %v4010 = vunpack.c.l.b16 %v3781
      %v4011 = vunpack.c.h.b16 %v3781
      %v4012 = vunpack.c.l.b16 %v3782
      %v4013 = vunpack.c.h.b16 %v3782
      %v4014 = vunpack.c.l.b16 %v3783
      %v4015 = vunpack.c.h.b16 %v3783
      %v4016 = vunpack.c.l.b16 %v3784
      %v4017 = vunpack.c.h.b16 %v3784
      %v4018 = vunpack.c.l.b16 %v3785
      %v4019 = vunpack.c.h.b16 %v3785
      %v4020 = vunpack.c.l.b16 %v3786
      %v4021 = vunpack.c.h.b16 %v3786
      %v4022 = vunpack.c.l.b16 %v3787
      %v4023 = vunpack.c.h.b16 %v3787
      %v4024 = vunpack.c.l.b16 %v3788
      %v4025 = vunpack.c.h.b16 %v3788
      %v4026 = vunpack.c.l.b16 %v3789
      %v4027 = vunpack.c.h.b16 %v3789
      %v4028 = vunpack.c.l.b16 %v3790
      %v4029 = vunpack.c.h.b16 %v3790
      %v4030 = vunpack.c.l.b16 %v3791
      %v4031 = vunpack.c.h.b16 %v3791
      %v4032 = vunpack.c.l.b16 %v3792
      %v4033 = vunpack.c.h.b16 %v3792
      %v4034 = vunpack.c.l.b16 %v3793
      %v4035 = vunpack.c.h.b16 %v3793
      %v4036 = vunpack.c.l.b16 %v3794
      %v4037 = vunpack.c.h.b16 %v3794
      %v4038 = vunpack.c.l.b16 %v3795
      %v4039 = vunpack.c.h.b16 %v3795
      %v4040 = vunpack.c.l.b16 %v3796
      %v4041 = vunpack.c.h.b16 %v3796
      %v4042 = vunpack.c.l.b16 %v3797
      %v4043 = vunpack.c.h.b16 %v3797
      %v4044 = vunpack.c.l.b16 %v3798
      %v4045 = vunpack.c.h.b16 %v3798
      %v4046 = vunpack.c.l.b16 %v3799
      %v4047 = vunpack.c.h.b16 %v3799
      %v4048 = vunpack.c.l.b16 %v3800
      %v4049 = vunpack.c.h.b16 %v3800
      %v4050 = vunpack.c.l.b16 %v3801
      %v4051 = vunpack.c.h.b16 %v3801
      %v4052 = vunpack.c.l.b16 %v3802
      %v4053 = vunpack.c.h.b16 %v3802
      %v4054 = vunpack.c.l.b16 %v3803
      %v4055 = vunpack.c.h.b16 %v3803
      %v4056 = vunpack.c.l.b16 %v3804
      %v4057 = vunpack.c.h.b16 %v3804
      %v4058 = vunpack.c.l.b16 %v3805
      %v4059 = vunpack.c.h.b16 %v3805
      %v4060 = vunpack.c.l.b16 %v3806
      %v4061 = vunpack.c.h.b16 %v3806
      %v4062 = vunpack.c.l.b16 %v3807
      %v4063 = vunpack.c.h.b16 %v3807
      %v4064 = vunpack.c.l.b16 %v3808
      %v4065 = vunpack.c.h.b16 %v3808
      %v4066 = vunpack.c.l.b16 %v3809
      %v4067 = vunpack.c.h.b16 %v3809
      %v4068 = vunpack.c.l.b16 %v3810
      %v4069 = vunpack.c.h.b16 %v3810
      %v4070 = vunpack.c.l.b16 %v3811
      %v4071 = vunpack.c.h.b16 %v3811
      %v4072 = vunpack.c.l.b16 %v3812
      %v4073 = vunpack.c.h.b16 %v3812
      %v4074 = vunpack.c.l.b16 %v3813
      %v4075 = vunpack.c.h.b16 %v3813
      %v4076 = vunpack.c.l.b16 %v3814
      %v4077 = vunpack.c.h.b16 %v3814
      %v4078 = vunpack.c.l.b16 %v3815
      %v4079 = vunpack.c.h.b16 %v3815
      %v4080 = vunpack.c.l.b16 %v3816
      %v4081 = vunpack.c.h.b16 %v3816
      %v4082 = vunpack.c.l.b16 %v3817
      %v4083 = vunpack.c.h.b16 %v3817
      %v4084 = vunpack.c.l.b16 %v3818
      %v4085 = vunpack.c.h.b16 %v3818
      %v4086 = vunpack.c.l.b16 %v3819
      %v4087 = vunpack.c.h.b16 %v3819
      %v4088 = vunpack.c.l.b16 %v3820
      %v4089 = vunpack.c.h.b16 %v3820
      %v4090 = vunpack.c.l.b16 %v3821
      %v4091 = vunpack.c.h.b16 %v3821
      %v4092 = vunpack.c.l.b16 %v3822
      %v4093 = vunpack.c.h.b16 %v3822
      %v4094 = vunpack.c.l.b16 %v3823
      %v4095 = vunpack.c.h.b16 %v3823
      %v4096 = vunpack.c.l.b16 %v3824
      %v4097 = vunpack.c.h.b16 %v3824
      %v4098 = vunpack.c.l.b16 %v3825
      %v4099 = vunpack.c.h.b16 %v3825
      %v4100 = vunpack.c.l.b16 %v3826
      %v4101 = vunpack.c.h.b16 %v3826
      %v4102 = vunpack.c.l.b16 %v3827
      %v4103 = vunpack.c.h.b16 %v3827
      %v4104 = vunpack.c.l.b16 %v3828
      %v4105 = vunpack.c.h.b16 %v3828
      %v4106 = vunpack.c.l.b16 %v3829
      %v4107 = vunpack.c.h.b16 %v3829
      %v4108 = vunpack.c.l.b16 %v3830
      %v4109 = vunpack.c.h.b16 %v3830
      %v4110 = vunpack.c.l.b16 %v3831
      %v4111 = vunpack.c.h.b16 %v3831
      %v4112 = vunpack.c.l.b16 %v3832
      %v4113 = vunpack.c.h.b16 %v3832
      %v4114 = vunpack.c.l.b16 %v3833
      %v4115 = vunpack.c.h.b16 %v3833
      %v4116 = vunpack.c.l.b16 %v3834
      %v4117 = vunpack.c.h.b16 %v3834
      %v4118 = vunpack.c.l.b16 %v3835
      %v4119 = vunpack.c.h.b16 %v3835
      %v4120 = vunpack.c.l.b16 %v3836
      %v4121 = vunpack.c.h.b16 %v3836
      %v4122 = vunpack.c.l.b16 %v3837
      %v4123 = vunpack.c.h.b16 %v3837
      %v4124 = vunpack.c.l.b16 %v3838
      %v4125 = vunpack.c.h.b16 %v3838
      %v4126 = vunpack.c.l.b16 %v3839
      %v4127 = vunpack.c.h.b16 %v3839
      %v4128 = vunpack.c.l.b16 %v3840
      %v4129 = vunpack.c.h.b16 %v3840
      %v4130 = vunpack.c.l.b16 %v3841
      %v4131 = vunpack.c.h.b16 %v3841
      %v4132 = vunpack.c.l.b16 %v3842
      %v4133 = vunpack.c.h.b16 %v3842
      %v4134 = vunpack.c.l.b16 %v3843
      %v4135 = vunpack.c.h.b16 %v3843
      %v4136 = vunpack.c.l.b16 %v3844
      %v4137 = vunpack.c.h.b16 %v3844
      %v4138 = vunpack.c.l.b16 %v3845
      %v4139 = vunpack.c.h.b16 %v3845
      %v4140 = vunpack.c.l.b16 %v3846
      %v4141 = vunpack.c.h.b16 %v3846
      %v4142 = vunpack.c.l.b16 %v3847
      %v4143 = vunpack.c.h.b16 %v3847
      %v4144 = vunpack.c.l.b16 %v3848
      %v4145 = vunpack.c.h.b16 %v3848
      %v4146 = vunpack.c.l.b16 %v3849
      %v4147 = vunpack.c.h.b16 %v3849
      %v4148 = vunpack.c.l.b16 %v3850
      %v4149 = vunpack.c.h.b16 %v3850
      %v4150 = vunpack.c.l.b16 %v3851
      %v4151 = vunpack.c.h.b16 %v3851
      %v4152 = vpack.c.b16 %v3962, %v3960
      %v4153 = vpack.c.b16 %v3963, %v3961
      %v4154 = vpack.c.b16 %v3966, %v3964
      %v4155 = vpack.c.b16 %v3967, %v3965
      %v4156 = vpack.c.b16 %v3970, %v3968
      %v4157 = vpack.c.b16 %v3971, %v3969
      %v4158 = vpack.c.b16 %v3974, %v3972
      %v4159 = vpack.c.b16 %v3975, %v3973
      %v4160 = vpack.c.b16 %v3978, %v3976
      %v4161 = vpack.c.b16 %v3979, %v3977
      %v4162 = vpack.c.b16 %v3982, %v3980
      %v4163 = vpack.c.b16 %v3983, %v3981
      %v4164 = vpack.c.b16 %v3986, %v3984
      %v4165 = vpack.c.b16 %v3987, %v3985
      %v4166 = vpack.c.b16 %v3990, %v3988
      %v4167 = vpack.c.b16 %v3991, %v3989
      %v4168 = vpack.c.b16 %v3994, %v3992
      %v4169 = vpack.c.b16 %v3995, %v3993
      %v4170 = vpack.c.b16 %v3998, %v3996
      %v4171 = vpack.c.b16 %v3999, %v3997
      %v4172 = vpack.c.b16 %v4002, %v4000
      %v4173 = vpack.c.b16 %v4003, %v4001
      %v4174 = vpack.c.b16 %v4006, %v4004
      %v4175 = vpack.c.b16 %v4007, %v4005
      %v4176 = vpack.c.b16 %v4010, %v4008
      %v4177 = vpack.c.b16 %v4011, %v4009
      %v4178 = vpack.c.b16 %v4014, %v4012
      %v4179 = vpack.c.b16 %v4015, %v4013
      %v4180 = vpack.c.b16 %v4018, %v4016
      %v4181 = vpack.c.b16 %v4019, %v4017
      %v4182 = vpack.c.b16 %v4022, %v4020
      %v4183 = vpack.c.b16 %v4023, %v4021
      %v4184 = vpack.c.b16 %v4026, %v4024
      %v4185 = vpack.c.b16 %v4027, %v4025
      %v4186 = vpack.c.b16 %v4030, %v4028
      %v4187 = vpack.c.b16 %v4031, %v4029
      %v4188 = vpack.c.b16 %v4034, %v4032
      %v4189 = vpack.c.b16 %v4035, %v4033
      %v4190 = vpack.c.b16 %v4038, %v4036
      %v4191 = vpack.c.b16 %v4039, %v4037
      %v4192 = vpack.c.b16 %v4042, %v4040
      %v4193 = vpack.c.b16 %v4043, %v4041
      %v4194 = vpack.c.b16 %v4046, %v4044
      %v4195 = vpack.c.b16 %v4047, %v4045
      %v4196 = vpack.c.b16 %v4050, %v4048
      %v4197 = vpack.c.b16 %v4051, %v4049
      %v4198 = vpack.c.b16 %v4054, %v4052
      %v4199 = vpack.c.b16 %v4055, %v4053
      %v4200 = vpack.c.b16 %v4058, %v4056
      %v4201 = vpack.c.b16 %v4059, %v4057
      %v4202 = vpack.c.b16 %v4062, %v4060
      %v4203 = vpack.c.b16 %v4063, %v4061
      %v4204 = vpack.c.b16 %v4066, %v4064
      %v4205 = vpack.c.b16 %v4067, %v4065
      %v4206 = vpack.c.b16 %v4070, %v4068
      %v4207 = vpack.c.b16 %v4071, %v4069
      %v4208 = vpack.c.b16 %v4074, %v4072
      %v4209 = vpack.c.b16 %v4075, %v4073
      %v4210 = vpack.c.b16 %v4078, %v4076
      %v4211 = vpack.c.b16 %v4079, %v4077
      %v4212 = vpack.c.b16 %v4082, %v4080
      %v4213 = vpack.c.b16 %v4083, %v4081
      %v4214 = vpack.c.b16 %v4086, %v4084
      %v4215 = vpack.c.b16 %v4087, %v4085
      %v4216 = vpack.c.b16 %v4090, %v4088
      %v4217 = vpack.c.b16 %v4091, %v4089
      %v4218 = vpack.c.b16 %v4094, %v4092
      %v4219 = vpack.c.b16 %v4095, %v4093
      %v4220 = vpack.c.b16 %v4098, %v4096
      %v4221 = vpack.c.b16 %v4099, %v4097
      %v4222 = vpack.c.b16 %v4102, %v4100
      %v4223 = vpack.c.b16 %v4103, %v4101
      %v4224 = vpack.c.b16 %v4106, %v4104
      %v4225 = vpack.c.b16 %v4107, %v4105
      %v4226 = vpack.c.b16 %v4110, %v4108
      %v4227 = vpack.c.b16 %v4111, %v4109
      %v4228 = vpack.c.b16 %v4114, %v4112
      %v4229 = vpack.c.b16 %v4115, %v4113
      %v4230 = vpack.c.b16 %v4118, %v4116
      %v4231 = vpack.c.b16 %v4119, %v4117
      %v4232 = vpack.c.b16 %v4122, %v4120
      %v4233 = vpack.c.b16 %v4123, %v4121
      %v4234 = vpack.c.b16 %v4126, %v4124
      %v4235 = vpack.c.b16 %v4127, %v4125
      %v4236 = vpack.c.b16 %v4130, %v4128
      %v4237 = vpack.c.b16 %v4131, %v4129
      %v4238 = vpack.c.b16 %v4134, %v4132
      %v4239 = vpack.c.b16 %v4135, %v4133
      %v4240 = vpack.c.b16 %v4138, %v4136
      %v4241 = vpack.c.b16 %v4139, %v4137
      %v4242 = vpack.c.b16 %v4142, %v4140
      %v4243 = vpack.c.b16 %v4143, %v4141
      %v4244 = vpack.c.b16 %v4146, %v4144
      %v4245 = vpack.c.b16 %v4147, %v4145
      %v4246 = vpack.c.b16 %v4150, %v4148
      %v4247 = vpack.c.b16 %v4151, %v4149
      %4344 = vmatprep.subr.bf16.mxu0 %v4167
      %4345 = vmatpush1.bf16.msra.mxu0 %v4166
      %4346 = vmatprep.subr.bf16.mxu0 %v4165
      %4347 = vmatpush1.bf16.msra.mxu0 %v4164
      %4348 = vmatprep.subr.bf16.mxu0 %v4163
      %4349 = vmatpush1.bf16.msra.mxu0 %v4162
      %4350 = vmatprep.subr.bf16.mxu0 %v4161
      %4351 = vmatpush1.bf16.msra.mxu0 %v4160
      %4352 = vmatprep.subr.bf16.mxu0 %v4159
      %4353 = vmatpush1.bf16.msra.mxu0 %v4158
      %4354 = vmatprep.subr.bf16.mxu0 %v4157
      %4355 = vmatpush1.bf16.msra.mxu0 %v4156
      %4356 = vmatprep.subr.bf16.mxu0 %v4155
      %4357 = vmatpush1.bf16.msra.mxu0 %v4154
      %4358 = vmatprep.subr.bf16.mxu0 %v4153
      %4359 = vmatpush1.bf16.msra.mxu0 %v4152
      %4360 = vmatprep.subr.bf16.mxu0 %v4183
      %4361 = vmatpush2.bf16.msra.mxu0 %v4182
      %4362 = vmatprep.subr.bf16.mxu0 %v4181
      %4363 = vmatpush2.bf16.msra.mxu0 %v4180
      %4364 = vmatprep.subr.bf16.mxu0 %v4179
      %4365 = vmatpush2.bf16.msra.mxu0 %v4178
      %4366 = vmatprep.subr.bf16.mxu0 %v4177
      %4367 = vmatpush2.bf16.msra.mxu0 %v4176
      %4368 = vmatprep.subr.bf16.mxu0 %v4175
      %4369 = vmatpush2.bf16.msra.mxu0 %v4174
      %4370 = vmatprep.subr.bf16.mxu0 %v4173
      %4371 = vmatpush2.bf16.msra.mxu0 %v4172
      %4372 = vmatprep.subr.bf16.mxu0 %v4171
      %4373 = vmatpush2.bf16.msra.mxu0 %v4170
      %4374 = vmatprep.subr.bf16.mxu0 %v4169
      %4375 = vmatpush2.bf16.msra.mxu0 %v4168
      %4376 = vmatprep.mubr.bf16.mxu0 %v3751
      %4377 = vmatmul.mubr.bf16.gmra.mxu0 %v3751
      %v4378 = vpop.f32.mrf.mxu0
      %v4379 = vadd.f32 %v3857, %v4378
      %v4380 = vpop.f32.mrf.mxu0
      %v4381 = vadd.f32 %v3861, %v4380
      %v4382 = vpop.f32.mrf.mxu0
      %v4383 = vpop.f32.mrf.mxu0
      %4384 = vdwg.mxu0
      %4385 = vmatprep.subr.bf16.mxu0 %v4199
      %4386 = vmatpush1.bf16.msra.mxu0 %v4198
      %4387 = vmatprep.subr.bf16.mxu0 %v4197
      %4388 = vmatpush1.bf16.msra.mxu0 %v4196
      %4389 = vmatprep.subr.bf16.mxu0 %v4195
      %4390 = vmatpush1.bf16.msra.mxu0 %v4194
      %4391 = vmatprep.subr.bf16.mxu0 %v4193
      %4392 = vmatpush1.bf16.msra.mxu0 %v4192
      %4393 = vmatprep.subr.bf16.mxu0 %v4191
      %4394 = vmatpush1.bf16.msra.mxu0 %v4190
      %4395 = vmatprep.subr.bf16.mxu0 %v4189
      %4396 = vmatpush1.bf16.msra.mxu0 %v4188
      %4397 = vmatprep.subr.bf16.mxu0 %v4187
      %4398 = vmatpush1.bf16.msra.mxu0 %v4186
      %4399 = vmatprep.subr.bf16.mxu0 %v4185
      %4400 = vmatpush1.bf16.msra.mxu0 %v4184
      %4401 = vmatprep.subr.bf16.mxu0 %v4215
      %4402 = vmatpush2.bf16.msra.mxu0 %v4214
      %4403 = vmatprep.subr.bf16.mxu0 %v4213
      %4404 = vmatpush2.bf16.msra.mxu0 %v4212
      %4405 = vmatprep.subr.bf16.mxu0 %v4211
      %4406 = vmatpush2.bf16.msra.mxu0 %v4210
      %4407 = vmatprep.subr.bf16.mxu0 %v4209
      %4408 = vmatpush2.bf16.msra.mxu0 %v4208
      %4409 = vmatprep.subr.bf16.mxu0 %v4207
      %4410 = vmatpush2.bf16.msra.mxu0 %v4206
      %4411 = vmatprep.subr.bf16.mxu0 %v4205
      %4412 = vmatpush2.bf16.msra.mxu0 %v4204
      %4413 = vmatprep.subr.bf16.mxu0 %v4203
      %4414 = vmatpush2.bf16.msra.mxu0 %v4202
      %4415 = vmatprep.subr.bf16.mxu0 %v4201
      %4416 = vmatpush2.bf16.msra.mxu0 %v4200
      %4417 = vmatprep.mubr.bf16.mxu0 %v3753
      %4418 = vmatmul.mubr.bf16.gmra.mxu0 %v3752
      %v4419 = vpop.f32.mrf.mxu0
      %v4420 = vadd.f32 %v4379, %v4419
      %v4421 = vpop.f32.mrf.mxu0
      %v4422 = vadd.f32 %v4381, %v4421
      %v4423 = vpop.f32.mrf.mxu0
      %v4424 = vpop.f32.mrf.mxu0
      %4425 = vdwg.mxu0
      %4426 = vmatprep.subr.bf16.mxu0 %v4231
      %4427 = vmatpush1.bf16.msra.mxu0 %v4230
      %4428 = vmatprep.subr.bf16.mxu0 %v4229
      %4429 = vmatpush1.bf16.msra.mxu0 %v4228
      %4430 = vmatprep.subr.bf16.mxu0 %v4227
      %4431 = vmatpush1.bf16.msra.mxu0 %v4226
      %4432 = vmatprep.subr.bf16.mxu0 %v4225
      %4433 = vmatpush1.bf16.msra.mxu0 %v4224
      %4434 = vmatprep.subr.bf16.mxu0 %v4223
      %4435 = vmatpush1.bf16.msra.mxu0 %v4222
      %4436 = vmatprep.subr.bf16.mxu0 %v4221
      %4437 = vmatpush1.bf16.msra.mxu0 %v4220
      %4438 = vmatprep.subr.bf16.mxu0 %v4219
      %4439 = vmatpush1.bf16.msra.mxu0 %v4218
      %4440 = vmatprep.subr.bf16.mxu0 %v4217
      %4441 = vmatpush1.bf16.msra.mxu0 %v4216
      %4442 = vmatprep.subr.bf16.mxu0 %v4247
      %4443 = vmatpush2.bf16.msra.mxu0 %v4246
      %4444 = vmatprep.subr.bf16.mxu0 %v4245
      %4445 = vmatpush2.bf16.msra.mxu0 %v4244
      %4446 = vmatprep.subr.bf16.mxu0 %v4243
      %4447 = vmatpush2.bf16.msra.mxu0 %v4242
      %4448 = vmatprep.subr.bf16.mxu0 %v4241
      %4449 = vmatpush2.bf16.msra.mxu0 %v4240
      %4450 = vmatprep.subr.bf16.mxu0 %v4239
      %4451 = vmatpush2.bf16.msra.mxu0 %v4238
      %4452 = vmatprep.subr.bf16.mxu0 %v4237
      %4453 = vmatpush2.bf16.msra.mxu0 %v4236
      %4454 = vmatprep.subr.bf16.mxu0 %v4235
      %4455 = vmatpush2.bf16.msra.mxu0 %v4234
      %4456 = vmatprep.subr.bf16.mxu0 %v4233
      %4457 = vmatpush2.bf16.msra.mxu0 %v4232
      %4458 = vmatprep.mubr.bf16.mxu0 %v3755
      %4459 = vmatmul.mubr.bf16.gmra.mxu0 %v3754
      %v4460 = vpop.f32.mrf.mxu0
      %v4461 = vadd.f32 %v4420, %v4460
      %v4462 = vpop.f32.mrf.mxu0
      %v4463 = vadd.f32 %v4422, %v4462
      %v4464 = vpop.f32.mrf.mxu0
      %v4465 = vpop.f32.mrf.mxu0
      %4466 = vdwg.mxu0
      %v4467 = vmax.f32 %v4461, 0.0
      %v4468 = vmax.f32 %v4463, 0.0
      %v4469 = vpack.c.bf16 %v4467, %v4467
      %v4470 = vpack.c.bf16 %v4468, %v4468
      %v4471 = vld [vmem:[%s11] sm:$0xff]
      %v4472 = vld [vmem:[%s11 + $0x8] sm:$0xff]
      %v4473 = vld [vmem:[%s11 + $0x10] sm:$0xff]
      %v4474 = vld [vmem:[%s11 + $0x18] sm:$0xff]
      %v4475 = vld [vmem:[%s11 + $0x20] sm:$0xff]
      %v4476 = vld [vmem:[%s11 + $0x28] sm:$0xff]
      %v4477 = vld [vmem:[%s11 + $0x30] sm:$0xff]
      %v4478 = vld [vmem:[%s11 + $0x38] sm:$0xff]
      %v4479 = vld [vmem:[%s11 + $0x40] sm:$0xff]
      %v4480 = vld [vmem:[%s11 + $0x48] sm:$0xff]
      %v4481 = vld [vmem:[%s11 + $0x50] sm:$0xff]
      %v4482 = vld [vmem:[%s11 + $0x58] sm:$0xff]
      %v4483 = vld [vmem:[%s11 + $0x60] sm:$0xff]
      %v4484 = vld [vmem:[%s11 + $0x68] sm:$0xff]
      %v4485 = vld [vmem:[%s11 + $0x70] sm:$0xff]
      %v4486 = vld [vmem:[%s11 + $0x78] sm:$0xff]
      %v4487 = vld [vmem:[%s11 + $0x80] sm:$0xff]
      %v4488 = vld [vmem:[%s11 + $0x88] sm:$0xff]
      %v4489 = vld [vmem:[%s11 + $0x90] sm:$0xff]
      %v4490 = vld [vmem:[%s11 + $0x98] sm:$0xff]
      %v4491 = vld [vmem:[%s11 + $0xa0] sm:$0xff]
      %v4492 = vld [vmem:[%s11 + $0xa8] sm:$0xff]
      %v4493 = vld [vmem:[%s11 + $0xb0] sm:$0xff]
      %v4494 = vld [vmem:[%s11 + $0xb8] sm:$0xff]
      %v4495 = vld [vmem:[%s11 + $0xc0] sm:$0xff]
      %v4496 = vld [vmem:[%s11 + $0xc8] sm:$0xff]
      %v4497 = vld [vmem:[%s11 + $0xd0] sm:$0xff]
      %v4498 = vld [vmem:[%s11 + $0xd8] sm:$0xff]
      %v4499 = vld [vmem:[%s11 + $0xe0] sm:$0xff]
      %v4500 = vld [vmem:[%s11 + $0xe8] sm:$0xff]
      %v4501 = vld [vmem:[%s11 + $0xf0] sm:$0xff]
      %v4502 = vld [vmem:[%s11 + $0xf8] sm:$0xff]
      %v4503 = vld [vmem:[%s13] sm:$0x3]
      %v4505 = vlaneseq
      %v4506 = vshrl.u32 %v4505, 7
      %v4507 = vsub.s32 0, %v4506
      %v4508 = vrot.slane %v4503, %v4507
      %v4509 = vlaneseq
      %v4510 = vshrl.u32 %v4509, 7
      %v4511 = vsub.s32 1, %v4510
      %v4512 = vrot.slane %v4503, %v4511
      %v4547 = vunpack.c.l.b16 %v4471
      %v4548 = vunpack.c.h.b16 %v4471
      %v4549 = vunpack.c.l.b16 %v4472
      %v4550 = vunpack.c.h.b16 %v4472
      %v4551 = vunpack.c.l.b16 %v4473
      %v4552 = vunpack.c.h.b16 %v4473
      %v4553 = vunpack.c.l.b16 %v4474
      %v4554 = vunpack.c.h.b16 %v4474
      %v4555 = vunpack.c.l.b16 %v4475
      %v4556 = vunpack.c.h.b16 %v4475
      %v4557 = vunpack.c.l.b16 %v4476
      %v4558 = vunpack.c.h.b16 %v4476
      %v4559 = vunpack.c.l.b16 %v4477
      %v4560 = vunpack.c.h.b16 %v4477
      %v4561 = vunpack.c.l.b16 %v4478
      %v4562 = vunpack.c.h.b16 %v4478
      %v4563 = vunpack.c.l.b16 %v4479
      %v4564 = vunpack.c.h.b16 %v4479
      %v4565 = vunpack.c.l.b16 %v4480
      %v4566 = vunpack.c.h.b16 %v4480
      %v4567 = vunpack.c.l.b16 %v4481
      %v4568 = vunpack.c.h.b16 %v4481
      %v4569 = vunpack.c.l.b16 %v4482
      %v4570 = vunpack.c.h.b16 %v4482
      %v4571 = vunpack.c.l.b16 %v4483
      %v4572 = vunpack.c.h.b16 %v4483
      %v4573 = vunpack.c.l.b16 %v4484
      %v4574 = vunpack.c.h.b16 %v4484
      %v4575 = vunpack.c.l.b16 %v4485
      %v4576 = vunpack.c.h.b16 %v4485
      %v4577 = vunpack.c.l.b16 %v4486
      %v4578 = vunpack.c.h.b16 %v4486
      %v4579 = vunpack.c.l.b16 %v4487
      %v4580 = vunpack.c.h.b16 %v4487
      %v4581 = vunpack.c.l.b16 %v4488
      %v4582 = vunpack.c.h.b16 %v4488
      %v4583 = vunpack.c.l.b16 %v4489
      %v4584 = vunpack.c.h.b16 %v4489
      %v4585 = vunpack.c.l.b16 %v4490
      %v4586 = vunpack.c.h.b16 %v4490
      %v4587 = vunpack.c.l.b16 %v4491
      %v4588 = vunpack.c.h.b16 %v4491
      %v4589 = vunpack.c.l.b16 %v4492
      %v4590 = vunpack.c.h.b16 %v4492
      %v4591 = vunpack.c.l.b16 %v4493
      %v4592 = vunpack.c.h.b16 %v4493
      %v4593 = vunpack.c.l.b16 %v4494
      %v4594 = vunpack.c.h.b16 %v4494
      %v4595 = vunpack.c.l.b16 %v4495
      %v4596 = vunpack.c.h.b16 %v4495
      %v4597 = vunpack.c.l.b16 %v4496
      %v4598 = vunpack.c.h.b16 %v4496
      %v4599 = vunpack.c.l.b16 %v4497
      %v4600 = vunpack.c.h.b16 %v4497
      %v4601 = vunpack.c.l.b16 %v4498
      %v4602 = vunpack.c.h.b16 %v4498
      %v4603 = vunpack.c.l.b16 %v4499
      %v4604 = vunpack.c.h.b16 %v4499
      %v4605 = vunpack.c.l.b16 %v4500
      %v4606 = vunpack.c.h.b16 %v4500
      %v4607 = vunpack.c.l.b16 %v4501
      %v4608 = vunpack.c.h.b16 %v4501
      %v4609 = vunpack.c.l.b16 %v4502
      %v4610 = vunpack.c.h.b16 %v4502
      %v4611 = vpack.c.b16 %v4549, %v4547
      %v4612 = vpack.c.b16 %v4550, %v4548
      %v4613 = vpack.c.b16 %v4553, %v4551
      %v4614 = vpack.c.b16 %v4554, %v4552
      %v4615 = vpack.c.b16 %v4557, %v4555
      %v4616 = vpack.c.b16 %v4558, %v4556
      %v4617 = vpack.c.b16 %v4561, %v4559
      %v4618 = vpack.c.b16 %v4562, %v4560
      %v4619 = vpack.c.b16 %v4565, %v4563
      %v4620 = vpack.c.b16 %v4566, %v4564
      %v4621 = vpack.c.b16 %v4569, %v4567
      %v4622 = vpack.c.b16 %v4570, %v4568
      %v4623 = vpack.c.b16 %v4573, %v4571
      %v4624 = vpack.c.b16 %v4574, %v4572
      %v4625 = vpack.c.b16 %v4577, %v4575
      %v4626 = vpack.c.b16 %v4578, %v4576
      %v4627 = vpack.c.b16 %v4581, %v4579
      %v4628 = vpack.c.b16 %v4582, %v4580
      %v4629 = vpack.c.b16 %v4585, %v4583
      %v4630 = vpack.c.b16 %v4586, %v4584
      %v4631 = vpack.c.b16 %v4589, %v4587
      %v4632 = vpack.c.b16 %v4590, %v4588
      %v4633 = vpack.c.b16 %v4593, %v4591
      %v4634 = vpack.c.b16 %v4594, %v4592
      %v4635 = vpack.c.b16 %v4597, %v4595
      %v4636 = vpack.c.b16 %v4598, %v4596
      %v4637 = vpack.c.b16 %v4601, %v4599
      %v4638 = vpack.c.b16 %v4602, %v4600
      %v4639 = vpack.c.b16 %v4605, %v4603
      %v4640 = vpack.c.b16 %v4606, %v4604
      %v4641 = vpack.c.b16 %v4609, %v4607
      %v4642 = vpack.c.b16 %v4610, %v4608
      %4675 = vmatprep.subr.bf16.mxu0 %v4626
      %4676 = vmatpush1.bf16.msra.mxu0 %v4625
      %4677 = vmatprep.subr.bf16.mxu0 %v4624
      %4678 = vmatpush1.bf16.msra.mxu0 %v4623
      %4679 = vmatprep.subr.bf16.mxu0 %v4622
      %4680 = vmatpush1.bf16.msra.mxu0 %v4621
      %4681 = vmatprep.subr.bf16.mxu0 %v4620
      %4682 = vmatpush1.bf16.msra.mxu0 %v4619
      %4683 = vmatprep.subr.bf16.mxu0 %v4618
      %4684 = vmatpush1.bf16.msra.mxu0 %v4617
      %4685 = vmatprep.subr.bf16.mxu0 %v4616
      %4686 = vmatpush1.bf16.msra.mxu0 %v4615
      %4687 = vmatprep.subr.bf16.mxu0 %v4614
      %4688 = vmatpush1.bf16.msra.mxu0 %v4613
      %4689 = vmatprep.subr.bf16.mxu0 %v4612
      %4690 = vmatpush1.bf16.msra.mxu0 %v4611
      %4691 = vmatprep.subr.bf16.mxu0 %v4642
      %4692 = vmatpush2.bf16.msra.mxu0 %v4641
      %4693 = vmatprep.subr.bf16.mxu0 %v4640
      %4694 = vmatpush2.bf16.msra.mxu0 %v4639
      %4695 = vmatprep.subr.bf16.mxu0 %v4638
      %4696 = vmatpush2.bf16.msra.mxu0 %v4637
      %4697 = vmatprep.subr.bf16.mxu0 %v4636
      %4698 = vmatpush2.bf16.msra.mxu0 %v4635
      %4699 = vmatprep.subr.bf16.mxu0 %v4634
      %4700 = vmatpush2.bf16.msra.mxu0 %v4633
      %4701 = vmatprep.subr.bf16.mxu0 %v4632
      %4702 = vmatpush2.bf16.msra.mxu0 %v4631
      %4703 = vmatprep.subr.bf16.mxu0 %v4630
      %4704 = vmatpush2.bf16.msra.mxu0 %v4629
      %4705 = vmatprep.subr.bf16.mxu0 %v4628
      %4706 = vmatpush2.bf16.msra.mxu0 %v4627
      %4707 = vmatprep.mubr.bf16.mxu0 %v4470
      %4708 = vmatmul.mubr.bf16.gmra.mxu0 %v4469
      %v4709 = vpop.f32.mrf.mxu0
      %v4710 = vadd.f32 %v4508, %v4709
      %v4711 = vpop.f32.mrf.mxu0
      %v4712 = vadd.f32 %v4512, %v4711
      %v4713 = vpop.f32.mrf.mxu0
      %v4714 = vpop.f32.mrf.mxu0
      %4715 = vdwg.mxu0
      %v4716 = vld [vmem:[%s12] sm:$0xff]
      %v4717 = vld [vmem:[%s12 + $0x8] sm:$0xff]
      %v4718 = vld [vmem:[%s12 + $0x10] sm:$0xff]
      %v4719 = vld [vmem:[%s12 + $0x18] sm:$0xff]
      %v4720 = vld [vmem:[%s12 + $0x20] sm:$0xff]
      %v4721 = vld [vmem:[%s12 + $0x28] sm:$0xff]
      %v4722 = vld [vmem:[%s12 + $0x30] sm:$0xff]
      %v4723 = vld [vmem:[%s12 + $0x38] sm:$0xff]
      %v4724 = vld [vmem:[%s12 + $0x40] sm:$0xff]
      %v4725 = vld [vmem:[%s12 + $0x48] sm:$0xff]
      %v4726 = vld [vmem:[%s12 + $0x50] sm:$0xff]
      %v4727 = vld [vmem:[%s12 + $0x58] sm:$0xff]
      %v4728 = vld [vmem:[%s12 + $0x60] sm:$0xff]
      %v4729 = vld [vmem:[%s12 + $0x68] sm:$0xff]
      %v4730 = vld [vmem:[%s12 + $0x70] sm:$0xff]
      %v4731 = vld [vmem:[%s12 + $0x78] sm:$0xff]
      %v4732 = vld [vmem:[%s12 + $0x80] sm:$0xff]
      %v4733 = vld [vmem:[%s12 + $0x88] sm:$0xff]
      %v4734 = vld [vmem:[%s12 + $0x90] sm:$0xff]
      %v4735 = vld [vmem:[%s12 + $0x98] sm:$0xff]
      %v4736 = vld [vmem:[%s12 + $0xa0] sm:$0xff]
      %v4737 = vld [vmem:[%s12 + $0xa8] sm:$0xff]
      %v4738 = vld [vmem:[%s12 + $0xb0] sm:$0xff]
      %v4739 = vld [vmem:[%s12 + $0xb8] sm:$0xff]
      %v4740 = vld [vmem:[%s12 + $0xc0] sm:$0xff]
      %v4741 = vld [vmem:[%s12 + $0xc8] sm:$0xff]
      %v4742 = vld [vmem:[%s12 + $0xd0] sm:$0xff]
      %v4743 = vld [vmem:[%s12 + $0xd8] sm:$0xff]
      %v4744 = vld [vmem:[%s12 + $0xe0] sm:$0xff]
      %v4745 = vld [vmem:[%s12 + $0xe8] sm:$0xff]
      %v4746 = vld [vmem:[%s12 + $0xf0] sm:$0xff]
      %v4747 = vld [vmem:[%s12 + $0xf8] sm:$0xff]
      %v4748 = vld [vmem:[%s12 + $0x100] sm:$0xff]
      %v4749 = vld [vmem:[%s12 + $0x108] sm:$0xff]
      %v4750 = vld [vmem:[%s12 + $0x110] sm:$0xff]
      %v4751 = vld [vmem:[%s12 + $0x118] sm:$0xff]
      %v4752 = vld [vmem:[%s12 + $0x120] sm:$0xff]
      %v4753 = vld [vmem:[%s12 + $0x128] sm:$0xff]
      %v4754 = vld [vmem:[%s12 + $0x130] sm:$0xff]
      %v4755 = vld [vmem:[%s12 + $0x138] sm:$0xff]
      %v4756 = vld [vmem:[%s12 + $0x140] sm:$0xff]
      %v4757 = vld [vmem:[%s12 + $0x148] sm:$0xff]
      %v4758 = vld [vmem:[%s12 + $0x150] sm:$0xff]
      %v4759 = vld [vmem:[%s12 + $0x158] sm:$0xff]
      %v4760 = vld [vmem:[%s12 + $0x160] sm:$0xff]
      %v4761 = vld [vmem:[%s12 + $0x168] sm:$0xff]
      %v4762 = vld [vmem:[%s12 + $0x170] sm:$0xff]
      %v4763 = vld [vmem:[%s12 + $0x178] sm:$0xff]
      %v4764 = vld [vmem:[%s12 + $0x180] sm:$0xff]
      %v4765 = vld [vmem:[%s12 + $0x188] sm:$0xff]
      %v4766 = vld [vmem:[%s12 + $0x190] sm:$0xff]
      %v4767 = vld [vmem:[%s12 + $0x198] sm:$0xff]
      %v4768 = vld [vmem:[%s12 + $0x1a0] sm:$0xff]
      %v4769 = vld [vmem:[%s12 + $0x1a8] sm:$0xff]
      %v4770 = vld [vmem:[%s12 + $0x1b0] sm:$0xff]
      %v4771 = vld [vmem:[%s12 + $0x1b8] sm:$0xff]
      %v4772 = vld [vmem:[%s12 + $0x1c0] sm:$0xff]
      %v4773 = vld [vmem:[%s12 + $0x1c8] sm:$0xff]
      %v4774 = vld [vmem:[%s12 + $0x1d0] sm:$0xff]
      %v4775 = vld [vmem:[%s12 + $0x1d8] sm:$0xff]
      %v4776 = vld [vmem:[%s12 + $0x1e0] sm:$0xff]
      %v4777 = vld [vmem:[%s12 + $0x1e8] sm:$0xff]
      %v4778 = vld [vmem:[%s12 + $0x1f0] sm:$0xff]
      %v4779 = vld [vmem:[%s12 + $0x1f8] sm:$0xff]
      %v4844 = vunpack.c.l.b16 %v4716
      %v4845 = vunpack.c.h.b16 %v4716
      %v4846 = vunpack.c.l.b16 %v4717
      %v4847 = vunpack.c.h.b16 %v4717
      %v4848 = vunpack.c.l.b16 %v4718
      %v4849 = vunpack.c.h.b16 %v4718
      %v4850 = vunpack.c.l.b16 %v4719
      %v4851 = vunpack.c.h.b16 %v4719
      %v4852 = vunpack.c.l.b16 %v4720
      %v4853 = vunpack.c.h.b16 %v4720
      %v4854 = vunpack.c.l.b16 %v4721
      %v4855 = vunpack.c.h.b16 %v4721
      %v4856 = vunpack.c.l.b16 %v4722
      %v4857 = vunpack.c.h.b16 %v4722
      %v4858 = vunpack.c.l.b16 %v4723
      %v4859 = vunpack.c.h.b16 %v4723
      %v4860 = vunpack.c.l.b16 %v4724
      %v4861 = vunpack.c.h.b16 %v4724
      %v4862 = vunpack.c.l.b16 %v4725
      %v4863 = vunpack.c.h.b16 %v4725
      %v4864 = vunpack.c.l.b16 %v4726
      %v4865 = vunpack.c.h.b16 %v4726
      %v4866 = vunpack.c.l.b16 %v4727
      %v4867 = vunpack.c.h.b16 %v4727
      %v4868 = vunpack.c.l.b16 %v4728
      %v4869 = vunpack.c.h.b16 %v4728
      %v4870 = vunpack.c.l.b16 %v4729
      %v4871 = vunpack.c.h.b16 %v4729
      %v4872 = vunpack.c.l.b16 %v4730
      %v4873 = vunpack.c.h.b16 %v4730
      %v4874 = vunpack.c.l.b16 %v4731
      %v4875 = vunpack.c.h.b16 %v4731
      %v4876 = vunpack.c.l.b16 %v4732
      %v4877 = vunpack.c.h.b16 %v4732
      %v4878 = vunpack.c.l.b16 %v4733
      %v4879 = vunpack.c.h.b16 %v4733
      %v4880 = vunpack.c.l.b16 %v4734
      %v4881 = vunpack.c.h.b16 %v4734
      %v4882 = vunpack.c.l.b16 %v4735
      %v4883 = vunpack.c.h.b16 %v4735
      %v4884 = vunpack.c.l.b16 %v4736
      %v4885 = vunpack.c.h.b16 %v4736
      %v4886 = vunpack.c.l.b16 %v4737
      %v4887 = vunpack.c.h.b16 %v4737
      %v4888 = vunpack.c.l.b16 %v4738
      %v4889 = vunpack.c.h.b16 %v4738
      %v4890 = vunpack.c.l.b16 %v4739
      %v4891 = vunpack.c.h.b16 %v4739
      %v4892 = vunpack.c.l.b16 %v4740
      %v4893 = vunpack.c.h.b16 %v4740
      %v4894 = vunpack.c.l.b16 %v4741
      %v4895 = vunpack.c.h.b16 %v4741
      %v4896 = vunpack.c.l.b16 %v4742
      %v4897 = vunpack.c.h.b16 %v4742
      %v4898 = vunpack.c.l.b16 %v4743
      %v4899 = vunpack.c.h.b16 %v4743
      %v4900 = vunpack.c.l.b16 %v4744
      %v4901 = vunpack.c.h.b16 %v4744
      %v4902 = vunpack.c.l.b16 %v4745
      %v4903 = vunpack.c.h.b16 %v4745
      %v4904 = vunpack.c.l.b16 %v4746
      %v4905 = vunpack.c.h.b16 %v4746
      %v4906 = vunpack.c.l.b16 %v4747
      %v4907 = vunpack.c.h.b16 %v4747
      %v4908 = vunpack.c.l.b16 %v4748
      %v4909 = vunpack.c.h.b16 %v4748
      %v4910 = vunpack.c.l.b16 %v4749
      %v4911 = vunpack.c.h.b16 %v4749
      %v4912 = vunpack.c.l.b16 %v4750
      %v4913 = vunpack.c.h.b16 %v4750
      %v4914 = vunpack.c.l.b16 %v4751
      %v4915 = vunpack.c.h.b16 %v4751
      %v4916 = vunpack.c.l.b16 %v4752
      %v4917 = vunpack.c.h.b16 %v4752
      %v4918 = vunpack.c.l.b16 %v4753
      %v4919 = vunpack.c.h.b16 %v4753
      %v4920 = vunpack.c.l.b16 %v4754
      %v4921 = vunpack.c.h.b16 %v4754
      %v4922 = vunpack.c.l.b16 %v4755
      %v4923 = vunpack.c.h.b16 %v4755
      %v4924 = vunpack.c.l.b16 %v4756
      %v4925 = vunpack.c.h.b16 %v4756
      %v4926 = vunpack.c.l.b16 %v4757
      %v4927 = vunpack.c.h.b16 %v4757
      %v4928 = vunpack.c.l.b16 %v4758
      %v4929 = vunpack.c.h.b16 %v4758
      %v4930 = vunpack.c.l.b16 %v4759
      %v4931 = vunpack.c.h.b16 %v4759
      %v4932 = vunpack.c.l.b16 %v4760
      %v4933 = vunpack.c.h.b16 %v4760
      %v4934 = vunpack.c.l.b16 %v4761
      %v4935 = vunpack.c.h.b16 %v4761
      %v4936 = vunpack.c.l.b16 %v4762
      %v4937 = vunpack.c.h.b16 %v4762
      %v4938 = vunpack.c.l.b16 %v4763
      %v4939 = vunpack.c.h.b16 %v4763
      %v4940 = vunpack.c.l.b16 %v4764
      %v4941 = vunpack.c.h.b16 %v4764
      %v4942 = vunpack.c.l.b16 %v4765
      %v4943 = vunpack.c.h.b16 %v4765
      %v4944 = vunpack.c.l.b16 %v4766
      %v4945 = vunpack.c.h.b16 %v4766
      %v4946 = vunpack.c.l.b16 %v4767
      %v4947 = vunpack.c.h.b16 %v4767
      %v4948 = vunpack.c.l.b16 %v4768
      %v4949 = vunpack.c.h.b16 %v4768
      %v4950 = vunpack.c.l.b16 %v4769
      %v4951 = vunpack.c.h.b16 %v4769
      %v4952 = vunpack.c.l.b16 %v4770
      %v4953 = vunpack.c.h.b16 %v4770
      %v4954 = vunpack.c.l.b16 %v4771
      %v4955 = vunpack.c.h.b16 %v4771
      %v4956 = vunpack.c.l.b16 %v4772
      %v4957 = vunpack.c.h.b16 %v4772
      %v4958 = vunpack.c.l.b16 %v4773
      %v4959 = vunpack.c.h.b16 %v4773
      %v4960 = vunpack.c.l.b16 %v4774
      %v4961 = vunpack.c.h.b16 %v4774
      %v4962 = vunpack.c.l.b16 %v4775
      %v4963 = vunpack.c.h.b16 %v4775
      %v4964 = vunpack.c.l.b16 %v4776
      %v4965 = vunpack.c.h.b16 %v4776
      %v4966 = vunpack.c.l.b16 %v4777
      %v4967 = vunpack.c.h.b16 %v4777
      %v4968 = vunpack.c.l.b16 %v4778
      %v4969 = vunpack.c.h.b16 %v4778
      %v4970 = vunpack.c.l.b16 %v4779
      %v4971 = vunpack.c.h.b16 %v4779
      %v4972 = vpack.c.b16 %v4846, %v4844
      %v4973 = vpack.c.b16 %v4847, %v4845
      %v4974 = vpack.c.b16 %v4850, %v4848
      %v4975 = vpack.c.b16 %v4851, %v4849
      %v4976 = vpack.c.b16 %v4854, %v4852
      %v4977 = vpack.c.b16 %v4855, %v4853
      %v4978 = vpack.c.b16 %v4858, %v4856
      %v4979 = vpack.c.b16 %v4859, %v4857
      %v4980 = vpack.c.b16 %v4862, %v4860
      %v4981 = vpack.c.b16 %v4863, %v4861
      %v4982 = vpack.c.b16 %v4866, %v4864
      %v4983 = vpack.c.b16 %v4867, %v4865
      %v4984 = vpack.c.b16 %v4870, %v4868
      %v4985 = vpack.c.b16 %v4871, %v4869
      %v4986 = vpack.c.b16 %v4874, %v4872
      %v4987 = vpack.c.b16 %v4875, %v4873
      %v4988 = vpack.c.b16 %v4878, %v4876
      %v4989 = vpack.c.b16 %v4879, %v4877
      %v4990 = vpack.c.b16 %v4882, %v4880
      %v4991 = vpack.c.b16 %v4883, %v4881
      %v4992 = vpack.c.b16 %v4886, %v4884
      %v4993 = vpack.c.b16 %v4887, %v4885
      %v4994 = vpack.c.b16 %v4890, %v4888
      %v4995 = vpack.c.b16 %v4891, %v4889
      %v4996 = vpack.c.b16 %v4894, %v4892
      %v4997 = vpack.c.b16 %v4895, %v4893
      %v4998 = vpack.c.b16 %v4898, %v4896
      %v4999 = vpack.c.b16 %v4899, %v4897
      %v5000 = vpack.c.b16 %v4902, %v4900
      %v5001 = vpack.c.b16 %v4903, %v4901
      %v5002 = vpack.c.b16 %v4906, %v4904
      %v5003 = vpack.c.b16 %v4907, %v4905
      %v5004 = vpack.c.b16 %v4910, %v4908
      %v5005 = vpack.c.b16 %v4911, %v4909
      %v5006 = vpack.c.b16 %v4914, %v4912
      %v5007 = vpack.c.b16 %v4915, %v4913
      %v5008 = vpack.c.b16 %v4918, %v4916
      %v5009 = vpack.c.b16 %v4919, %v4917
      %v5010 = vpack.c.b16 %v4922, %v4920
      %v5011 = vpack.c.b16 %v4923, %v4921
      %v5012 = vpack.c.b16 %v4926, %v4924
      %v5013 = vpack.c.b16 %v4927, %v4925
      %v5014 = vpack.c.b16 %v4930, %v4928
      %v5015 = vpack.c.b16 %v4931, %v4929
      %v5016 = vpack.c.b16 %v4934, %v4932
      %v5017 = vpack.c.b16 %v4935, %v4933
      %v5018 = vpack.c.b16 %v4938, %v4936
      %v5019 = vpack.c.b16 %v4939, %v4937
      %v5020 = vpack.c.b16 %v4942, %v4940
      %v5021 = vpack.c.b16 %v4943, %v4941
      %v5022 = vpack.c.b16 %v4946, %v4944
      %v5023 = vpack.c.b16 %v4947, %v4945
      %v5024 = vpack.c.b16 %v4950, %v4948
      %v5025 = vpack.c.b16 %v4951, %v4949
      %v5026 = vpack.c.b16 %v4954, %v4952
      %v5027 = vpack.c.b16 %v4955, %v4953
      %v5028 = vpack.c.b16 %v4958, %v4956
      %v5029 = vpack.c.b16 %v4959, %v4957
      %v5030 = vpack.c.b16 %v4962, %v4960
      %v5031 = vpack.c.b16 %v4963, %v4961
      %v5032 = vpack.c.b16 %v4966, %v4964
      %v5033 = vpack.c.b16 %v4967, %v4965
      %v5034 = vpack.c.b16 %v4970, %v4968
      %v5035 = vpack.c.b16 %v4971, %v4969
      %5100 = vmatprep.subr.bf16.mxu0 %v4987
      %5101 = vmatpush1.bf16.msra.mxu0 %v4986
      %5102 = vmatprep.subr.bf16.mxu0 %v4985
      %5103 = vmatpush1.bf16.msra.mxu0 %v4984
      %5104 = vmatprep.subr.bf16.mxu0 %v4983
      %5105 = vmatpush1.bf16.msra.mxu0 %v4982
      %5106 = vmatprep.subr.bf16.mxu0 %v4981
      %5107 = vmatpush1.bf16.msra.mxu0 %v4980
      %5108 = vmatprep.subr.bf16.mxu0 %v4979
      %5109 = vmatpush1.bf16.msra.mxu0 %v4978
      %5110 = vmatprep.subr.bf16.mxu0 %v4977
      %5111 = vmatpush1.bf16.msra.mxu0 %v4976
      %5112 = vmatprep.subr.bf16.mxu0 %v4975
      %5113 = vmatpush1.bf16.msra.mxu0 %v4974
      %5114 = vmatprep.subr.bf16.mxu0 %v4973
      %5115 = vmatpush1.bf16.msra.mxu0 %v4972
      %5116 = vmatprep.subr.bf16.mxu0 %v5003
      %5117 = vmatpush2.bf16.msra.mxu0 %v5002
      %5118 = vmatprep.subr.bf16.mxu0 %v5001
      %5119 = vmatpush2.bf16.msra.mxu0 %v5000
      %5120 = vmatprep.subr.bf16.mxu0 %v4999
      %5121 = vmatpush2.bf16.msra.mxu0 %v4998
      %5122 = vmatprep.subr.bf16.mxu0 %v4997
      %5123 = vmatpush2.bf16.msra.mxu0 %v4996
      %5124 = vmatprep.subr.bf16.mxu0 %v4995
      %5125 = vmatpush2.bf16.msra.mxu0 %v4994
      %5126 = vmatprep.subr.bf16.mxu0 %v4993
      %5127 = vmatpush2.bf16.msra.mxu0 %v4992
      %5128 = vmatprep.subr.bf16.mxu0 %v4991
      %5129 = vmatpush2.bf16.msra.mxu0 %v4990
      %5130 = vmatprep.subr.bf16.mxu0 %v4989
      %5131 = vmatpush2.bf16.msra.mxu0 %v4988
      %5132 = vmatprep.mubr.bf16.mxu0 %v3751
      %5133 = vmatmul.mubr.bf16.gmra.mxu0 %v3751
      %v5134 = vpop.f32.mrf.mxu0
      %v5135 = vadd.f32 %v4508, %v5134
      %v5136 = vpop.f32.mrf.mxu0
      %v5137 = vadd.f32 %v4512, %v5136
      %v5138 = vpop.f32.mrf.mxu0
      %v5139 = vpop.f32.mrf.mxu0
      %5140 = vdwg.mxu0
      %5141 = vmatprep.subr.bf16.mxu0 %v5019
      %5142 = vmatpush1.bf16.msra.mxu0 %v5018
      %5143 = vmatprep.subr.bf16.mxu0 %v5017
      %5144 = vmatpush1.bf16.msra.mxu0 %v5016
      %5145 = vmatprep.subr.bf16.mxu0 %v5015
      %5146 = vmatpush1.bf16.msra.mxu0 %v5014
      %5147 = vmatprep.subr.bf16.mxu0 %v5013
      %5148 = vmatpush1.bf16.msra.mxu0 %v5012
      %5149 = vmatprep.subr.bf16.mxu0 %v5011
      %5150 = vmatpush1.bf16.msra.mxu0 %v5010
      %5151 = vmatprep.subr.bf16.mxu0 %v5009
      %5152 = vmatpush1.bf16.msra.mxu0 %v5008
      %5153 = vmatprep.subr.bf16.mxu0 %v5007
      %5154 = vmatpush1.bf16.msra.mxu0 %v5006
      %5155 = vmatprep.subr.bf16.mxu0 %v5005
      %5156 = vmatpush1.bf16.msra.mxu0 %v5004
      %5157 = vmatprep.subr.bf16.mxu0 %v5035
      %5158 = vmatpush2.bf16.msra.mxu0 %v5034
      %5159 = vmatprep.subr.bf16.mxu0 %v5033
      %5160 = vmatpush2.bf16.msra.mxu0 %v5032
      %5161 = vmatprep.subr.bf16.mxu0 %v5031
      %5162 = vmatpush2.bf16.msra.mxu0 %v5030
      %5163 = vmatprep.subr.bf16.mxu0 %v5029
      %5164 = vmatpush2.bf16.msra.mxu0 %v5028
      %5165 = vmatprep.subr.bf16.mxu0 %v5027
      %5166 = vmatpush2.bf16.msra.mxu0 %v5026
      %5167 = vmatprep.subr.bf16.mxu0 %v5025
      %5168 = vmatpush2.bf16.msra.mxu0 %v5024
      %5169 = vmatprep.subr.bf16.mxu0 %v5023
      %5170 = vmatpush2.bf16.msra.mxu0 %v5022
      %5171 = vmatprep.subr.bf16.mxu0 %v5021
      %5172 = vmatpush2.bf16.msra.mxu0 %v5020
      %5173 = vmatprep.mubr.bf16.mxu0 %v4470
      %5174 = vmatmul.mubr.bf16.gmra.mxu0 %v4469
      %v5175 = vpop.f32.mrf.mxu0
      %v5176 = vadd.f32 %v5135, %v5175
      %v5177 = vpop.f32.mrf.mxu0
      %v5178 = vadd.f32 %v5137, %v5177
      %v5179 = vpop.f32.mrf.mxu0
      %v5180 = vpop.f32.mrf.mxu0
      %5181 = vdwg.mxu0
      %v5182 = vmax.f32 %v4710, 0.0
      %v5183 = vmax.f32 %v4712, 0.0
      %v5184 = vmax.f32 %v5176, 0.0
      %v5185 = vmax.f32 %v5178, 0.0
      %v5186 = vpack.c.bf16 %v5184, %v5182
      %v5187 = vpack.c.bf16 %v5185, %v5183
      %v5188 = vpack.c.bf16 0.0, %v5184
      %v5189 = vpack.c.bf16 0.0, %v5185
      %v5190 = vld [vmem:[%s14] sm:$0xff]
      %v5191 = vld [vmem:[%s14 + $0x8] sm:$0xff]
      %v5192 = vld [vmem:[%s14 + $0x10] sm:$0xff]
      %v5193 = vld [vmem:[%s14 + $0x18] sm:$0xff]
      %v5194 = vld [vmem:[%s14 + $0x20] sm:$0xff]
      %v5195 = vld [vmem:[%s14 + $0x28] sm:$0xff]
      %v5196 = vld [vmem:[%s14 + $0x30] sm:$0xff]
      %v5197 = vld [vmem:[%s14 + $0x38] sm:$0xff]
      %v5198 = vld [vmem:[%s14 + $0x40] sm:$0xff]
      %v5199 = vld [vmem:[%s14 + $0x48] sm:$0xff]
      %v5200 = vld [vmem:[%s14 + $0x50] sm:$0xff]
      %v5201 = vld [vmem:[%s14 + $0x58] sm:$0xff]
      %v5202 = vld [vmem:[%s14 + $0x60] sm:$0xff]
      %v5203 = vld [vmem:[%s14 + $0x68] sm:$0xff]
      %v5204 = vld [vmem:[%s14 + $0x70] sm:$0xff]
      %v5205 = vld [vmem:[%s14 + $0x78] sm:$0xff]
      %v5206 = vld [vmem:[%s14 + $0x80] sm:$0xff]
      %v5207 = vld [vmem:[%s14 + $0x88] sm:$0xff]
      %v5208 = vld [vmem:[%s14 + $0x90] sm:$0xff]
      %v5209 = vld [vmem:[%s14 + $0x98] sm:$0xff]
      %v5210 = vld [vmem:[%s14 + $0xa0] sm:$0xff]
      %v5211 = vld [vmem:[%s14 + $0xa8] sm:$0xff]
      %v5212 = vld [vmem:[%s14 + $0xb0] sm:$0xff]
      %v5213 = vld [vmem:[%s14 + $0xb8] sm:$0xff]
      %v5214 = vld [vmem:[%s14 + $0xc0] sm:$0xff]
      %v5215 = vld [vmem:[%s14 + $0xc8] sm:$0xff]
      %v5216 = vld [vmem:[%s14 + $0xd0] sm:$0xff]
      %v5217 = vld [vmem:[%s14 + $0xd8] sm:$0xff]
      %v5218 = vld [vmem:[%s14 + $0xe0] sm:$0xff]
      %v5219 = vld [vmem:[%s14 + $0xe8] sm:$0xff]
      %v5220 = vld [vmem:[%s14 + $0xf0] sm:$0xff]
      %v5221 = vld [vmem:[%s14 + $0xf8] sm:$0xff]
      %v5222 = vld [vmem:[%s16] sm:$0x3]
      %v5224 = vlaneseq
      %v5225 = vshrl.u32 %v5224, 7
      %v5226 = vsub.s32 0, %v5225
      %v5227 = vrot.slane %v5222, %v5226
      %v5228 = vlaneseq
      %v5229 = vshrl.u32 %v5228, 7
      %v5230 = vsub.s32 1, %v5229
      %v5231 = vrot.slane %v5222, %v5230
      %v5266 = vunpack.c.l.b16 %v5190
      %v5267 = vunpack.c.h.b16 %v5190
      %v5268 = vunpack.c.l.b16 %v5191
      %v5269 = vunpack.c.h.b16 %v5191
      %v5270 = vunpack.c.l.b16 %v5192
      %v5271 = vunpack.c.h.b16 %v5192
      %v5272 = vunpack.c.l.b16 %v5193
      %v5273 = vunpack.c.h.b16 %v5193
      %v5274 = vunpack.c.l.b16 %v5194
      %v5275 = vunpack.c.h.b16 %v5194
      %v5276 = vunpack.c.l.b16 %v5195
      %v5277 = vunpack.c.h.b16 %v5195
      %v5278 = vunpack.c.l.b16 %v5196
      %v5279 = vunpack.c.h.b16 %v5196
      %v5280 = vunpack.c.l.b16 %v5197
      %v5281 = vunpack.c.h.b16 %v5197
      %v5282 = vunpack.c.l.b16 %v5198
      %v5283 = vunpack.c.h.b16 %v5198
      %v5284 = vunpack.c.l.b16 %v5199
      %v5285 = vunpack.c.h.b16 %v5199
      %v5286 = vunpack.c.l.b16 %v5200
      %v5287 = vunpack.c.h.b16 %v5200
      %v5288 = vunpack.c.l.b16 %v5201
      %v5289 = vunpack.c.h.b16 %v5201
      %v5290 = vunpack.c.l.b16 %v5202
      %v5291 = vunpack.c.h.b16 %v5202
      %v5292 = vunpack.c.l.b16 %v5203
      %v5293 = vunpack.c.h.b16 %v5203
      %v5294 = vunpack.c.l.b16 %v5204
      %v5295 = vunpack.c.h.b16 %v5204
      %v5296 = vunpack.c.l.b16 %v5205
      %v5297 = vunpack.c.h.b16 %v5205
      %v5298 = vunpack.c.l.b16 %v5206
      %v5299 = vunpack.c.h.b16 %v5206
      %v5300 = vunpack.c.l.b16 %v5207
      %v5301 = vunpack.c.h.b16 %v5207
      %v5302 = vunpack.c.l.b16 %v5208
      %v5303 = vunpack.c.h.b16 %v5208
      %v5304 = vunpack.c.l.b16 %v5209
      %v5305 = vunpack.c.h.b16 %v5209
      %v5306 = vunpack.c.l.b16 %v5210
      %v5307 = vunpack.c.h.b16 %v5210
      %v5308 = vunpack.c.l.b16 %v5211
      %v5309 = vunpack.c.h.b16 %v5211
      %v5310 = vunpack.c.l.b16 %v5212
      %v5311 = vunpack.c.h.b16 %v5212
      %v5312 = vunpack.c.l.b16 %v5213
      %v5313 = vunpack.c.h.b16 %v5213
      %v5314 = vunpack.c.l.b16 %v5214
      %v5315 = vunpack.c.h.b16 %v5214
      %v5316 = vunpack.c.l.b16 %v5215
      %v5317 = vunpack.c.h.b16 %v5215
      %v5318 = vunpack.c.l.b16 %v5216
      %v5319 = vunpack.c.h.b16 %v5216
      %v5320 = vunpack.c.l.b16 %v5217
      %v5321 = vunpack.c.h.b16 %v5217
      %v5322 = vunpack.c.l.b16 %v5218
      %v5323 = vunpack.c.h.b16 %v5218
      %v5324 = vunpack.c.l.b16 %v5219
      %v5325 = vunpack.c.h.b16 %v5219
      %v5326 = vunpack.c.l.b16 %v5220
      %v5327 = vunpack.c.h.b16 %v5220
      %v5328 = vunpack.c.l.b16 %v5221
      %v5329 = vunpack.c.h.b16 %v5221
      %v5330 = vpack.c.b16 %v5268, %v5266
      %v5331 = vpack.c.b16 %v5269, %v5267
      %v5332 = vpack.c.b16 %v5272, %v5270
      %v5333 = vpack.c.b16 %v5273, %v5271
      %v5334 = vpack.c.b16 %v5276, %v5274
      %v5335 = vpack.c.b16 %v5277, %v5275
      %v5336 = vpack.c.b16 %v5280, %v5278
      %v5337 = vpack.c.b16 %v5281, %v5279
      %v5338 = vpack.c.b16 %v5284, %v5282
      %v5339 = vpack.c.b16 %v5285, %v5283
      %v5340 = vpack.c.b16 %v5288, %v5286
      %v5341 = vpack.c.b16 %v5289, %v5287
      %v5342 = vpack.c.b16 %v5292, %v5290
      %v5343 = vpack.c.b16 %v5293, %v5291
      %v5344 = vpack.c.b16 %v5296, %v5294
      %v5345 = vpack.c.b16 %v5297, %v5295
      %v5346 = vpack.c.b16 %v5300, %v5298
      %v5347 = vpack.c.b16 %v5301, %v5299
      %v5348 = vpack.c.b16 %v5304, %v5302
      %v5349 = vpack.c.b16 %v5305, %v5303
      %v5350 = vpack.c.b16 %v5308, %v5306
      %v5351 = vpack.c.b16 %v5309, %v5307
      %v5352 = vpack.c.b16 %v5312, %v5310
      %v5353 = vpack.c.b16 %v5313, %v5311
      %v5354 = vpack.c.b16 %v5316, %v5314
      %v5355 = vpack.c.b16 %v5317, %v5315
      %v5356 = vpack.c.b16 %v5320, %v5318
      %v5357 = vpack.c.b16 %v5321, %v5319
      %v5358 = vpack.c.b16 %v5324, %v5322
      %v5359 = vpack.c.b16 %v5325, %v5323
      %v5360 = vpack.c.b16 %v5328, %v5326
      %v5361 = vpack.c.b16 %v5329, %v5327
      %5394 = vmatprep.subr.bf16.mxu0 %v5345
      %5395 = vmatpush1.bf16.msra.mxu0 %v5344
      %5396 = vmatprep.subr.bf16.mxu0 %v5343
      %5397 = vmatpush1.bf16.msra.mxu0 %v5342
      %5398 = vmatprep.subr.bf16.mxu0 %v5341
      %5399 = vmatpush1.bf16.msra.mxu0 %v5340
      %5400 = vmatprep.subr.bf16.mxu0 %v5339
      %5401 = vmatpush1.bf16.msra.mxu0 %v5338
      %5402 = vmatprep.subr.bf16.mxu0 %v5337
      %5403 = vmatpush1.bf16.msra.mxu0 %v5336
      %5404 = vmatprep.subr.bf16.mxu0 %v5335
      %5405 = vmatpush1.bf16.msra.mxu0 %v5334
      %5406 = vmatprep.subr.bf16.mxu0 %v5333
      %5407 = vmatpush1.bf16.msra.mxu0 %v5332
      %5408 = vmatprep.subr.bf16.mxu0 %v5331
      %5409 = vmatpush1.bf16.msra.mxu0 %v5330
      %5410 = vmatprep.subr.bf16.mxu0 %v5361
      %5411 = vmatpush2.bf16.msra.mxu0 %v5360
      %5412 = vmatprep.subr.bf16.mxu0 %v5359
      %5413 = vmatpush2.bf16.msra.mxu0 %v5358
      %5414 = vmatprep.subr.bf16.mxu0 %v5357
      %5415 = vmatpush2.bf16.msra.mxu0 %v5356
      %5416 = vmatprep.subr.bf16.mxu0 %v5355
      %5417 = vmatpush2.bf16.msra.mxu0 %v5354
      %5418 = vmatprep.subr.bf16.mxu0 %v5353
      %5419 = vmatpush2.bf16.msra.mxu0 %v5352
      %5420 = vmatprep.subr.bf16.mxu0 %v5351
      %5421 = vmatpush2.bf16.msra.mxu0 %v5350
      %5422 = vmatprep.subr.bf16.mxu0 %v5349
      %5423 = vmatpush2.bf16.msra.mxu0 %v5348
      %5424 = vmatprep.subr.bf16.mxu0 %v5347
      %5425 = vmatpush2.bf16.msra.mxu0 %v5346
      %5426 = vmatprep.mubr.bf16.mxu0 %v5187
      %5427 = vmatmul.mubr.bf16.gmra.mxu0 %v5186
      %v5428 = vpop.f32.mrf.mxu0
      %v5429 = vadd.f32 %v5227, %v5428
      %v5430 = vpop.f32.mrf.mxu0
      %v5431 = vadd.f32 %v5231, %v5430
      %v5432 = vpop.f32.mrf.mxu0
      %v5433 = vadd.f32 %v5227, %v5432
      %v5434 = vpop.f32.mrf.mxu0
      %v5435 = vadd.f32 %v5231, %v5434
      %5436 = vdwg.mxu0
      %v5437 = vld [vmem:[%s15] sm:$0xff]
      %v5438 = vld [vmem:[%s15 + $0x8] sm:$0xff]
      %v5439 = vld [vmem:[%s15 + $0x10] sm:$0xff]
      %v5440 = vld [vmem:[%s15 + $0x18] sm:$0xff]
      %v5441 = vld [vmem:[%s15 + $0x20] sm:$0xff]
      %v5442 = vld [vmem:[%s15 + $0x28] sm:$0xff]
      %v5443 = vld [vmem:[%s15 + $0x30] sm:$0xff]
      %v5444 = vld [vmem:[%s15 + $0x38] sm:$0xff]
      %v5445 = vld [vmem:[%s15 + $0x40] sm:$0xff]
      %v5446 = vld [vmem:[%s15 + $0x48] sm:$0xff]
      %v5447 = vld [vmem:[%s15 + $0x50] sm:$0xff]
      %v5448 = vld [vmem:[%s15 + $0x58] sm:$0xff]
      %v5449 = vld [vmem:[%s15 + $0x60] sm:$0xff]
      %v5450 = vld [vmem:[%s15 + $0x68] sm:$0xff]
      %v5451 = vld [vmem:[%s15 + $0x70] sm:$0xff]
      %v5452 = vld [vmem:[%s15 + $0x78] sm:$0xff]
      %v5453 = vld [vmem:[%s15 + $0x80] sm:$0xff]
      %v5454 = vld [vmem:[%s15 + $0x88] sm:$0xff]
      %v5455 = vld [vmem:[%s15 + $0x90] sm:$0xff]
      %v5456 = vld [vmem:[%s15 + $0x98] sm:$0xff]
      %v5457 = vld [vmem:[%s15 + $0xa0] sm:$0xff]
      %v5458 = vld [vmem:[%s15 + $0xa8] sm:$0xff]
      %v5459 = vld [vmem:[%s15 + $0xb0] sm:$0xff]
      %v5460 = vld [vmem:[%s15 + $0xb8] sm:$0xff]
      %v5461 = vld [vmem:[%s15 + $0xc0] sm:$0xff]
      %v5462 = vld [vmem:[%s15 + $0xc8] sm:$0xff]
      %v5463 = vld [vmem:[%s15 + $0xd0] sm:$0xff]
      %v5464 = vld [vmem:[%s15 + $0xd8] sm:$0xff]
      %v5465 = vld [vmem:[%s15 + $0xe0] sm:$0xff]
      %v5466 = vld [vmem:[%s15 + $0xe8] sm:$0xff]
      %v5467 = vld [vmem:[%s15 + $0xf0] sm:$0xff]
      %v5468 = vld [vmem:[%s15 + $0xf8] sm:$0xff]
      %v5469 = vld [vmem:[%s15 + $0x100] sm:$0xff]
      %v5470 = vld [vmem:[%s15 + $0x108] sm:$0xff]
      %v5471 = vld [vmem:[%s15 + $0x110] sm:$0xff]
      %v5472 = vld [vmem:[%s15 + $0x118] sm:$0xff]
      %v5473 = vld [vmem:[%s15 + $0x120] sm:$0xff]
      %v5474 = vld [vmem:[%s15 + $0x128] sm:$0xff]
      %v5475 = vld [vmem:[%s15 + $0x130] sm:$0xff]
      %v5476 = vld [vmem:[%s15 + $0x138] sm:$0xff]
      %v5477 = vld [vmem:[%s15 + $0x140] sm:$0xff]
      %v5478 = vld [vmem:[%s15 + $0x148] sm:$0xff]
      %v5479 = vld [vmem:[%s15 + $0x150] sm:$0xff]
      %v5480 = vld [vmem:[%s15 + $0x158] sm:$0xff]
      %v5481 = vld [vmem:[%s15 + $0x160] sm:$0xff]
      %v5482 = vld [vmem:[%s15 + $0x168] sm:$0xff]
      %v5483 = vld [vmem:[%s15 + $0x170] sm:$0xff]
      %v5484 = vld [vmem:[%s15 + $0x178] sm:$0xff]
      %v5485 = vld [vmem:[%s15 + $0x180] sm:$0xff]
      %v5486 = vld [vmem:[%s15 + $0x188] sm:$0xff]
      %v5487 = vld [vmem:[%s15 + $0x190] sm:$0xff]
      %v5488 = vld [vmem:[%s15 + $0x198] sm:$0xff]
      %v5489 = vld [vmem:[%s15 + $0x1a0] sm:$0xff]
      %v5490 = vld [vmem:[%s15 + $0x1a8] sm:$0xff]
      %v5491 = vld [vmem:[%s15 + $0x1b0] sm:$0xff]
      %v5492 = vld [vmem:[%s15 + $0x1b8] sm:$0xff]
      %v5493 = vld [vmem:[%s15 + $0x1c0] sm:$0xff]
      %v5494 = vld [vmem:[%s15 + $0x1c8] sm:$0xff]
      %v5495 = vld [vmem:[%s15 + $0x1d0] sm:$0xff]
      %v5496 = vld [vmem:[%s15 + $0x1d8] sm:$0xff]
      %v5497 = vld [vmem:[%s15 + $0x1e0] sm:$0xff]
      %v5498 = vld [vmem:[%s15 + $0x1e8] sm:$0xff]
      %v5499 = vld [vmem:[%s15 + $0x1f0] sm:$0xff]
      %v5500 = vld [vmem:[%s15 + $0x1f8] sm:$0xff]
      %v5565 = vunpack.c.l.b16 %v5437
      %v5566 = vunpack.c.h.b16 %v5437
      %v5567 = vunpack.c.l.b16 %v5438
      %v5568 = vunpack.c.h.b16 %v5438
      %v5569 = vunpack.c.l.b16 %v5439
      %v5570 = vunpack.c.h.b16 %v5439
      %v5571 = vunpack.c.l.b16 %v5440
      %v5572 = vunpack.c.h.b16 %v5440
      %v5573 = vunpack.c.l.b16 %v5441
      %v5574 = vunpack.c.h.b16 %v5441
      %v5575 = vunpack.c.l.b16 %v5442
      %v5576 = vunpack.c.h.b16 %v5442
      %v5577 = vunpack.c.l.b16 %v5443
      %v5578 = vunpack.c.h.b16 %v5443
      %v5579 = vunpack.c.l.b16 %v5444
      %v5580 = vunpack.c.h.b16 %v5444
      %v5581 = vunpack.c.l.b16 %v5445
      %v5582 = vunpack.c.h.b16 %v5445
      %v5583 = vunpack.c.l.b16 %v5446
      %v5584 = vunpack.c.h.b16 %v5446
      %v5585 = vunpack.c.l.b16 %v5447
      %v5586 = vunpack.c.h.b16 %v5447
      %v5587 = vunpack.c.l.b16 %v5448
      %v5588 = vunpack.c.h.b16 %v5448
      %v5589 = vunpack.c.l.b16 %v5449
      %v5590 = vunpack.c.h.b16 %v5449
      %v5591 = vunpack.c.l.b16 %v5450
      %v5592 = vunpack.c.h.b16 %v5450
      %v5593 = vunpack.c.l.b16 %v5451
      %v5594 = vunpack.c.h.b16 %v5451
      %v5595 = vunpack.c.l.b16 %v5452
      %v5596 = vunpack.c.h.b16 %v5452
      %v5597 = vunpack.c.l.b16 %v5453
      %v5598 = vunpack.c.h.b16 %v5453
      %v5599 = vunpack.c.l.b16 %v5454
      %v5600 = vunpack.c.h.b16 %v5454
      %v5601 = vunpack.c.l.b16 %v5455
      %v5602 = vunpack.c.h.b16 %v5455
      %v5603 = vunpack.c.l.b16 %v5456
      %v5604 = vunpack.c.h.b16 %v5456
      %v5605 = vunpack.c.l.b16 %v5457
      %v5606 = vunpack.c.h.b16 %v5457
      %v5607 = vunpack.c.l.b16 %v5458
      %v5608 = vunpack.c.h.b16 %v5458
      %v5609 = vunpack.c.l.b16 %v5459
      %v5610 = vunpack.c.h.b16 %v5459
      %v5611 = vunpack.c.l.b16 %v5460
      %v5612 = vunpack.c.h.b16 %v5460
      %v5613 = vunpack.c.l.b16 %v5461
      %v5614 = vunpack.c.h.b16 %v5461
      %v5615 = vunpack.c.l.b16 %v5462
      %v5616 = vunpack.c.h.b16 %v5462
      %v5617 = vunpack.c.l.b16 %v5463
      %v5618 = vunpack.c.h.b16 %v5463
      %v5619 = vunpack.c.l.b16 %v5464
      %v5620 = vunpack.c.h.b16 %v5464
      %v5621 = vunpack.c.l.b16 %v5465
      %v5622 = vunpack.c.h.b16 %v5465
      %v5623 = vunpack.c.l.b16 %v5466
      %v5624 = vunpack.c.h.b16 %v5466
      %v5625 = vunpack.c.l.b16 %v5467
      %v5626 = vunpack.c.h.b16 %v5467
      %v5627 = vunpack.c.l.b16 %v5468
      %v5628 = vunpack.c.h.b16 %v5468
      %v5629 = vunpack.c.l.b16 %v5469
      %v5630 = vunpack.c.h.b16 %v5469
      %v5631 = vunpack.c.l.b16 %v5470
      %v5632 = vunpack.c.h.b16 %v5470
      %v5633 = vunpack.c.l.b16 %v5471
      %v5634 = vunpack.c.h.b16 %v5471
      %v5635 = vunpack.c.l.b16 %v5472
      %v5636 = vunpack.c.h.b16 %v5472
      %v5637 = vunpack.c.l.b16 %v5473
      %v5638 = vunpack.c.h.b16 %v5473
      %v5639 = vunpack.c.l.b16 %v5474
      %v5640 = vunpack.c.h.b16 %v5474
      %v5641 = vunpack.c.l.b16 %v5475
      %v5642 = vunpack.c.h.b16 %v5475
      %v5643 = vunpack.c.l.b16 %v5476
      %v5644 = vunpack.c.h.b16 %v5476
      %v5645 = vunpack.c.l.b16 %v5477
      %v5646 = vunpack.c.h.b16 %v5477
      %v5647 = vunpack.c.l.b16 %v5478
      %v5648 = vunpack.c.h.b16 %v5478
      %v5649 = vunpack.c.l.b16 %v5479
      %v5650 = vunpack.c.h.b16 %v5479
      %v5651 = vunpack.c.l.b16 %v5480
      %v5652 = vunpack.c.h.b16 %v5480
      %v5653 = vunpack.c.l.b16 %v5481
      %v5654 = vunpack.c.h.b16 %v5481
      %v5655 = vunpack.c.l.b16 %v5482
      %v5656 = vunpack.c.h.b16 %v5482
      %v5657 = vunpack.c.l.b16 %v5483
      %v5658 = vunpack.c.h.b16 %v5483
      %v5659 = vunpack.c.l.b16 %v5484
      %v5660 = vunpack.c.h.b16 %v5484
      %v5661 = vunpack.c.l.b16 %v5485
      %v5662 = vunpack.c.h.b16 %v5485
      %v5663 = vunpack.c.l.b16 %v5486
      %v5664 = vunpack.c.h.b16 %v5486
      %v5665 = vunpack.c.l.b16 %v5487
      %v5666 = vunpack.c.h.b16 %v5487
      %v5667 = vunpack.c.l.b16 %v5488
      %v5668 = vunpack.c.h.b16 %v5488
      %v5669 = vunpack.c.l.b16 %v5489
      %v5670 = vunpack.c.h.b16 %v5489
      %v5671 = vunpack.c.l.b16 %v5490
      %v5672 = vunpack.c.h.b16 %v5490
      %v5673 = vunpack.c.l.b16 %v5491
      %v5674 = vunpack.c.h.b16 %v5491
      %v5675 = vunpack.c.l.b16 %v5492
      %v5676 = vunpack.c.h.b16 %v5492
      %v5677 = vunpack.c.l.b16 %v5493
      %v5678 = vunpack.c.h.b16 %v5493
      %v5679 = vunpack.c.l.b16 %v5494
      %v5680 = vunpack.c.h.b16 %v5494
      %v5681 = vunpack.c.l.b16 %v5495
      %v5682 = vunpack.c.h.b16 %v5495
      %v5683 = vunpack.c.l.b16 %v5496
      %v5684 = vunpack.c.h.b16 %v5496
      %v5685 = vunpack.c.l.b16 %v5497
      %v5686 = vunpack.c.h.b16 %v5497
      %v5687 = vunpack.c.l.b16 %v5498
      %v5688 = vunpack.c.h.b16 %v5498
      %v5689 = vunpack.c.l.b16 %v5499
      %v5690 = vunpack.c.h.b16 %v5499
      %v5691 = vunpack.c.l.b16 %v5500
      %v5692 = vunpack.c.h.b16 %v5500
      %v5693 = vpack.c.b16 %v5567, %v5565
      %v5694 = vpack.c.b16 %v5568, %v5566
      %v5695 = vpack.c.b16 %v5571, %v5569
      %v5696 = vpack.c.b16 %v5572, %v5570
      %v5697 = vpack.c.b16 %v5575, %v5573
      %v5698 = vpack.c.b16 %v5576, %v5574
      %v5699 = vpack.c.b16 %v5579, %v5577
      %v5700 = vpack.c.b16 %v5580, %v5578
      %v5701 = vpack.c.b16 %v5583, %v5581
      %v5702 = vpack.c.b16 %v5584, %v5582
      %v5703 = vpack.c.b16 %v5587, %v5585
      %v5704 = vpack.c.b16 %v5588, %v5586
      %v5705 = vpack.c.b16 %v5591, %v5589
      %v5706 = vpack.c.b16 %v5592, %v5590
      %v5707 = vpack.c.b16 %v5595, %v5593
      %v5708 = vpack.c.b16 %v5596, %v5594
      %v5709 = vpack.c.b16 %v5599, %v5597
      %v5710 = vpack.c.b16 %v5600, %v5598
      %v5711 = vpack.c.b16 %v5603, %v5601
      %v5712 = vpack.c.b16 %v5604, %v5602
      %v5713 = vpack.c.b16 %v5607, %v5605
      %v5714 = vpack.c.b16 %v5608, %v5606
      %v5715 = vpack.c.b16 %v5611, %v5609
      %v5716 = vpack.c.b16 %v5612, %v5610
      %v5717 = vpack.c.b16 %v5615, %v5613
      %v5718 = vpack.c.b16 %v5616, %v5614
      %v5719 = vpack.c.b16 %v5619, %v5617
      %v5720 = vpack.c.b16 %v5620, %v5618
      %v5721 = vpack.c.b16 %v5623, %v5621
      %v5722 = vpack.c.b16 %v5624, %v5622
      %v5723 = vpack.c.b16 %v5627, %v5625
      %v5724 = vpack.c.b16 %v5628, %v5626
      %v5725 = vpack.c.b16 %v5631, %v5629
      %v5726 = vpack.c.b16 %v5632, %v5630
      %v5727 = vpack.c.b16 %v5635, %v5633
      %v5728 = vpack.c.b16 %v5636, %v5634
      %v5729 = vpack.c.b16 %v5639, %v5637
      %v5730 = vpack.c.b16 %v5640, %v5638
      %v5731 = vpack.c.b16 %v5643, %v5641
      %v5732 = vpack.c.b16 %v5644, %v5642
      %v5733 = vpack.c.b16 %v5647, %v5645
      %v5734 = vpack.c.b16 %v5648, %v5646
      %v5735 = vpack.c.b16 %v5651, %v5649
      %v5736 = vpack.c.b16 %v5652, %v5650
      %v5737 = vpack.c.b16 %v5655, %v5653
      %v5738 = vpack.c.b16 %v5656, %v5654
      %v5739 = vpack.c.b16 %v5659, %v5657
      %v5740 = vpack.c.b16 %v5660, %v5658
      %v5741 = vpack.c.b16 %v5663, %v5661
      %v5742 = vpack.c.b16 %v5664, %v5662
      %v5743 = vpack.c.b16 %v5667, %v5665
      %v5744 = vpack.c.b16 %v5668, %v5666
      %v5745 = vpack.c.b16 %v5671, %v5669
      %v5746 = vpack.c.b16 %v5672, %v5670
      %v5747 = vpack.c.b16 %v5675, %v5673
      %v5748 = vpack.c.b16 %v5676, %v5674
      %v5749 = vpack.c.b16 %v5679, %v5677
      %v5750 = vpack.c.b16 %v5680, %v5678
      %v5751 = vpack.c.b16 %v5683, %v5681
      %v5752 = vpack.c.b16 %v5684, %v5682
      %v5753 = vpack.c.b16 %v5687, %v5685
      %v5754 = vpack.c.b16 %v5688, %v5686
      %v5755 = vpack.c.b16 %v5691, %v5689
      %v5756 = vpack.c.b16 %v5692, %v5690
      %5821 = vmatprep.subr.bf16.mxu0 %v5708
      %5822 = vmatpush1.bf16.msra.mxu0 %v5707
      %5823 = vmatprep.subr.bf16.mxu0 %v5706
      %5824 = vmatpush1.bf16.msra.mxu0 %v5705
      %5825 = vmatprep.subr.bf16.mxu0 %v5704
      %5826 = vmatpush1.bf16.msra.mxu0 %v5703
      %5827 = vmatprep.subr.bf16.mxu0 %v5702
      %5828 = vmatpush1.bf16.msra.mxu0 %v5701
      %5829 = vmatprep.subr.bf16.mxu0 %v5700
      %5830 = vmatpush1.bf16.msra.mxu0 %v5699
      %5831 = vmatprep.subr.bf16.mxu0 %v5698
      %5832 = vmatpush1.bf16.msra.mxu0 %v5697
      %5833 = vmatprep.subr.bf16.mxu0 %v5696
      %5834 = vmatpush1.bf16.msra.mxu0 %v5695
      %5835 = vmatprep.subr.bf16.mxu0 %v5694
      %5836 = vmatpush1.bf16.msra.mxu0 %v5693
      %5837 = vmatprep.subr.bf16.mxu0 %v5724
      %5838 = vmatpush2.bf16.msra.mxu0 %v5723
      %5839 = vmatprep.subr.bf16.mxu0 %v5722
      %5840 = vmatpush2.bf16.msra.mxu0 %v5721
      %5841 = vmatprep.subr.bf16.mxu0 %v5720
      %5842 = vmatpush2.bf16.msra.mxu0 %v5719
      %5843 = vmatprep.subr.bf16.mxu0 %v5718
      %5844 = vmatpush2.bf16.msra.mxu0 %v5717
      %5845 = vmatprep.subr.bf16.mxu0 %v5716
      %5846 = vmatpush2.bf16.msra.mxu0 %v5715
      %5847 = vmatprep.subr.bf16.mxu0 %v5714
      %5848 = vmatpush2.bf16.msra.mxu0 %v5713
      %5849 = vmatprep.subr.bf16.mxu0 %v5712
      %5850 = vmatpush2.bf16.msra.mxu0 %v5711
      %5851 = vmatprep.subr.bf16.mxu0 %v5710
      %5852 = vmatpush2.bf16.msra.mxu0 %v5709
      %5853 = vmatprep.mubr.bf16.mxu0 %v5189
      %5854 = vmatmul.mubr.bf16.gmra.mxu0 %v5188
      %v5855 = vpop.f32.mrf.mxu0
      %v5856 = vadd.f32 %v5227, %v5855
      %v5857 = vpop.f32.mrf.mxu0
      %v5858 = vadd.f32 %v5231, %v5857
      %v5859 = vpop.f32.mrf.mxu0
      %v5860 = vadd.f32 %v5227, %v5859
      %v5861 = vpop.f32.mrf.mxu0
      %v5862 = vadd.f32 %v5231, %v5861
      %5863 = vdwg.mxu0
      %5864 = vmatprep.subr.bf16.mxu0 %v5740
      %5865 = vmatpush1.bf16.msra.mxu0 %v5739
      %5866 = vmatprep.subr.bf16.mxu0 %v5738
      %5867 = vmatpush1.bf16.msra.mxu0 %v5737
      %5868 = vmatprep.subr.bf16.mxu0 %v5736
      %5869 = vmatpush1.bf16.msra.mxu0 %v5735
      %5870 = vmatprep.subr.bf16.mxu0 %v5734
      %5871 = vmatpush1.bf16.msra.mxu0 %v5733
      %5872 = vmatprep.subr.bf16.mxu0 %v5732
      %5873 = vmatpush1.bf16.msra.mxu0 %v5731
      %5874 = vmatprep.subr.bf16.mxu0 %v5730
      %5875 = vmatpush1.bf16.msra.mxu0 %v5729
      %5876 = vmatprep.subr.bf16.mxu0 %v5728
      %5877 = vmatpush1.bf16.msra.mxu0 %v5727
      %5878 = vmatprep.subr.bf16.mxu0 %v5726
      %5879 = vmatpush1.bf16.msra.mxu0 %v5725
      %5880 = vmatprep.subr.bf16.mxu0 %v5756
      %5881 = vmatpush2.bf16.msra.mxu0 %v5755
      %5882 = vmatprep.subr.bf16.mxu0 %v5754
      %5883 = vmatpush2.bf16.msra.mxu0 %v5753
      %5884 = vmatprep.subr.bf16.mxu0 %v5752
      %5885 = vmatpush2.bf16.msra.mxu0 %v5751
      %5886 = vmatprep.subr.bf16.mxu0 %v5750
      %5887 = vmatpush2.bf16.msra.mxu0 %v5749
      %5888 = vmatprep.subr.bf16.mxu0 %v5748
      %5889 = vmatpush2.bf16.msra.mxu0 %v5747
      %5890 = vmatprep.subr.bf16.mxu0 %v5746
      %5891 = vmatpush2.bf16.msra.mxu0 %v5745
      %5892 = vmatprep.subr.bf16.mxu0 %v5744
      %5893 = vmatpush2.bf16.msra.mxu0 %v5743
      %5894 = vmatprep.subr.bf16.mxu0 %v5742
      %5895 = vmatpush2.bf16.msra.mxu0 %v5741
      %5896 = vmatprep.mubr.bf16.mxu0 %v5187
      %5897 = vmatmul.mubr.bf16.gmra.mxu0 %v5186
      %v5898 = vpop.f32.mrf.mxu0
      %v5899 = vadd.f32 %v5856, %v5898
      %v5900 = vpop.f32.mrf.mxu0
      %v5901 = vadd.f32 %v5858, %v5900
      %v5902 = vpop.f32.mrf.mxu0
      %v5903 = vadd.f32 %v5860, %v5902
      %v5904 = vpop.f32.mrf.mxu0
      %v5905 = vadd.f32 %v5862, %v5904
      %5906 = vdwg.mxu0
      %v5907 = vmax.f32 %v5429, 0.0
      %v5908 = vmax.f32 %v5431, 0.0
      %v5909 = vmax.f32 %v5433, 0.0
      %v5910 = vmax.f32 %v5435, 0.0
      %v5911 = vmax.f32 %v5899, 0.0
      %v5912 = vmax.f32 %v5901, 0.0
      %v5913 = vmax.f32 %v5903, 0.0
      %v5914 = vmax.f32 %v5905, 0.0
      %v5915 = vpack.c.bf16 %v5911, %v5907
      %v5916 = vpack.c.bf16 %v5912, %v5908
      %v5917 = vpack.c.bf16 %v5913, %v5909
      %v5918 = vpack.c.bf16 %v5914, %v5910
      %v5919 = vpack.c.bf16 %v5909, %v5911
      %v5920 = vpack.c.bf16 %v5910, %v5912
      %v5921 = vpack.c.bf16 0.0, %v5913
      %v5922 = vpack.c.bf16 0.0, %v5914
      %v5923 = vld [vmem:[%s17] sm:$0xff]
      %v5924 = vld [vmem:[%s17 + $0x8] sm:$0xff]
      %v5925 = vld [vmem:[%s17 + $0x10] sm:$0xff]
      %v5926 = vld [vmem:[%s17 + $0x18] sm:$0xff]
      %v5927 = vld [vmem:[%s17 + $0x20] sm:$0xff]
      %v5928 = vld [vmem:[%s17 + $0x28] sm:$0xff]
      %v5929 = vld [vmem:[%s17 + $0x30] sm:$0xff]
      %v5930 = vld [vmem:[%s17 + $0x38] sm:$0xff]
      %v5931 = vld [vmem:[%s17 + $0x40] sm:$0xff]
      %v5932 = vld [vmem:[%s17 + $0x48] sm:$0xff]
      %v5933 = vld [vmem:[%s17 + $0x50] sm:$0xff]
      %v5934 = vld [vmem:[%s17 + $0x58] sm:$0xff]
      %v5935 = vld [vmem:[%s17 + $0x60] sm:$0xff]
      %v5936 = vld [vmem:[%s17 + $0x68] sm:$0xff]
      %v5937 = vld [vmem:[%s17 + $0x70] sm:$0xff]
      %v5938 = vld [vmem:[%s17 + $0x78] sm:$0xff]
      %v5939 = vld [vmem:[%s17 + $0x80] sm:$0xff]
      %v5940 = vld [vmem:[%s17 + $0x88] sm:$0xff]
      %v5941 = vld [vmem:[%s17 + $0x90] sm:$0xff]
      %v5942 = vld [vmem:[%s17 + $0x98] sm:$0xff]
      %v5943 = vld [vmem:[%s17 + $0xa0] sm:$0xff]
      %v5944 = vld [vmem:[%s17 + $0xa8] sm:$0xff]
      %v5945 = vld [vmem:[%s17 + $0xb0] sm:$0xff]
      %v5946 = vld [vmem:[%s17 + $0xb8] sm:$0xff]
      %v5947 = vld [vmem:[%s17 + $0xc0] sm:$0xff]
      %v5948 = vld [vmem:[%s17 + $0xc8] sm:$0xff]
      %v5949 = vld [vmem:[%s17 + $0xd0] sm:$0xff]
      %v5950 = vld [vmem:[%s17 + $0xd8] sm:$0xff]
      %v5951 = vld [vmem:[%s17 + $0xe0] sm:$0xff]
      %v5952 = vld [vmem:[%s17 + $0xe8] sm:$0xff]
      %v5953 = vld [vmem:[%s17 + $0xf0] sm:$0xff]
      %v5954 = vld [vmem:[%s17 + $0xf8] sm:$0xff]
      %v5955 = vld [vmem:[%s19] sm:$0x3]
      %v5957 = vlaneseq
      %v5958 = vshrl.u32 %v5957, 7
      %v5959 = vsub.s32 0, %v5958
      %v5960 = vrot.slane %v5955, %v5959
      %v5961 = vlaneseq
      %v5962 = vshrl.u32 %v5961, 7
      %v5963 = vsub.s32 1, %v5962
      %v5964 = vrot.slane %v5955, %v5963
      %v5999 = vunpack.c.l.b16 %v5923
      %v6000 = vunpack.c.h.b16 %v5923
      %v6001 = vunpack.c.l.b16 %v5924
      %v6002 = vunpack.c.h.b16 %v5924
      %v6003 = vunpack.c.l.b16 %v5925
      %v6004 = vunpack.c.h.b16 %v5925
      %v6005 = vunpack.c.l.b16 %v5926
      %v6006 = vunpack.c.h.b16 %v5926
      %v6007 = vunpack.c.l.b16 %v5927
      %v6008 = vunpack.c.h.b16 %v5927
      %v6009 = vunpack.c.l.b16 %v5928
      %v6010 = vunpack.c.h.b16 %v5928
      %v6011 = vunpack.c.l.b16 %v5929
      %v6012 = vunpack.c.h.b16 %v5929
      %v6013 = vunpack.c.l.b16 %v5930
      %v6014 = vunpack.c.h.b16 %v5930
      %v6015 = vunpack.c.l.b16 %v5931
      %v6016 = vunpack.c.h.b16 %v5931
      %v6017 = vunpack.c.l.b16 %v5932
      %v6018 = vunpack.c.h.b16 %v5932
      %v6019 = vunpack.c.l.b16 %v5933
      %v6020 = vunpack.c.h.b16 %v5933
      %v6021 = vunpack.c.l.b16 %v5934
      %v6022 = vunpack.c.h.b16 %v5934
      %v6023 = vunpack.c.l.b16 %v5935
      %v6024 = vunpack.c.h.b16 %v5935
      %v6025 = vunpack.c.l.b16 %v5936
      %v6026 = vunpack.c.h.b16 %v5936
      %v6027 = vunpack.c.l.b16 %v5937
      %v6028 = vunpack.c.h.b16 %v5937
      %v6029 = vunpack.c.l.b16 %v5938
      %v6030 = vunpack.c.h.b16 %v5938
      %v6031 = vunpack.c.l.b16 %v5939
      %v6032 = vunpack.c.h.b16 %v5939
      %v6033 = vunpack.c.l.b16 %v5940
      %v6034 = vunpack.c.h.b16 %v5940
      %v6035 = vunpack.c.l.b16 %v5941
      %v6036 = vunpack.c.h.b16 %v5941
      %v6037 = vunpack.c.l.b16 %v5942
      %v6038 = vunpack.c.h.b16 %v5942
      %v6039 = vunpack.c.l.b16 %v5943
      %v6040 = vunpack.c.h.b16 %v5943
      %v6041 = vunpack.c.l.b16 %v5944
      %v6042 = vunpack.c.h.b16 %v5944
      %v6043 = vunpack.c.l.b16 %v5945
      %v6044 = vunpack.c.h.b16 %v5945
      %v6045 = vunpack.c.l.b16 %v5946
      %v6046 = vunpack.c.h.b16 %v5946
      %v6047 = vunpack.c.l.b16 %v5947
      %v6048 = vunpack.c.h.b16 %v5947
      %v6049 = vunpack.c.l.b16 %v5948
      %v6050 = vunpack.c.h.b16 %v5948
      %v6051 = vunpack.c.l.b16 %v5949
      %v6052 = vunpack.c.h.b16 %v5949
      %v6053 = vunpack.c.l.b16 %v5950
      %v6054 = vunpack.c.h.b16 %v5950
      %v6055 = vunpack.c.l.b16 %v5951
      %v6056 = vunpack.c.h.b16 %v5951
      %v6057 = vunpack.c.l.b16 %v5952
      %v6058 = vunpack.c.h.b16 %v5952
      %v6059 = vunpack.c.l.b16 %v5953
      %v6060 = vunpack.c.h.b16 %v5953
      %v6061 = vunpack.c.l.b16 %v5954
      %v6062 = vunpack.c.h.b16 %v5954
      %v6063 = vpack.c.b16 %v6001, %v5999
      %v6064 = vpack.c.b16 %v6002, %v6000
      %v6065 = vpack.c.b16 %v6005, %v6003
      %v6066 = vpack.c.b16 %v6006, %v6004
      %v6067 = vpack.c.b16 %v6009, %v6007
      %v6068 = vpack.c.b16 %v6010, %v6008
      %v6069 = vpack.c.b16 %v6013, %v6011
      %v6070 = vpack.c.b16 %v6014, %v6012
      %v6071 = vpack.c.b16 %v6017, %v6015
      %v6072 = vpack.c.b16 %v6018, %v6016
      %v6073 = vpack.c.b16 %v6021, %v6019
      %v6074 = vpack.c.b16 %v6022, %v6020
      %v6075 = vpack.c.b16 %v6025, %v6023
      %v6076 = vpack.c.b16 %v6026, %v6024
      %v6077 = vpack.c.b16 %v6029, %v6027
      %v6078 = vpack.c.b16 %v6030, %v6028
      %v6079 = vpack.c.b16 %v6033, %v6031
      %v6080 = vpack.c.b16 %v6034, %v6032
      %v6081 = vpack.c.b16 %v6037, %v6035
      %v6082 = vpack.c.b16 %v6038, %v6036
      %v6083 = vpack.c.b16 %v6041, %v6039
      %v6084 = vpack.c.b16 %v6042, %v6040
      %v6085 = vpack.c.b16 %v6045, %v6043
      %v6086 = vpack.c.b16 %v6046, %v6044
      %v6087 = vpack.c.b16 %v6049, %v6047
      %v6088 = vpack.c.b16 %v6050, %v6048
      %v6089 = vpack.c.b16 %v6053, %v6051
      %v6090 = vpack.c.b16 %v6054, %v6052
      %v6091 = vpack.c.b16 %v6057, %v6055
      %v6092 = vpack.c.b16 %v6058, %v6056
      %v6093 = vpack.c.b16 %v6061, %v6059
      %v6094 = vpack.c.b16 %v6062, %v6060
      %6127 = vmatprep.subr.bf16.mxu0 %v6078
      %6128 = vmatpush1.bf16.msra.mxu0 %v6077
      %6129 = vmatprep.subr.bf16.mxu0 %v6076
      %6130 = vmatpush1.bf16.msra.mxu0 %v6075
      %6131 = vmatprep.subr.bf16.mxu0 %v6074
      %6132 = vmatpush1.bf16.msra.mxu0 %v6073
      %6133 = vmatprep.subr.bf16.mxu0 %v6072
      %6134 = vmatpush1.bf16.msra.mxu0 %v6071
      %6135 = vmatprep.subr.bf16.mxu0 %v6070
      %6136 = vmatpush1.bf16.msra.mxu0 %v6069
      %6137 = vmatprep.subr.bf16.mxu0 %v6068
      %6138 = vmatpush1.bf16.msra.mxu0 %v6067
      %6139 = vmatprep.subr.bf16.mxu0 %v6066
      %6140 = vmatpush1.bf16.msra.mxu0 %v6065
      %6141 = vmatprep.subr.bf16.mxu0 %v6064
      %6142 = vmatpush1.bf16.msra.mxu0 %v6063
      %6143 = vmatprep.subr.bf16.mxu0 %v6094
      %6144 = vmatpush2.bf16.msra.mxu0 %v6093
      %6145 = vmatprep.subr.bf16.mxu0 %v6092
      %6146 = vmatpush2.bf16.msra.mxu0 %v6091
      %6147 = vmatprep.subr.bf16.mxu0 %v6090
      %6148 = vmatpush2.bf16.msra.mxu0 %v6089
      %6149 = vmatprep.subr.bf16.mxu0 %v6088
      %6150 = vmatpush2.bf16.msra.mxu0 %v6087
      %6151 = vmatprep.subr.bf16.mxu0 %v6086
      %6152 = vmatpush2.bf16.msra.mxu0 %v6085
      %6153 = vmatprep.subr.bf16.mxu0 %v6084
      %6154 = vmatpush2.bf16.msra.mxu0 %v6083
      %6155 = vmatprep.subr.bf16.mxu0 %v6082
      %6156 = vmatpush2.bf16.msra.mxu0 %v6081
      %6157 = vmatprep.subr.bf16.mxu0 %v6080
      %6158 = vmatpush2.bf16.msra.mxu0 %v6079
      %6159 = vmatprep.mubr.bf16.mxu0 %v5916
      %6160 = vmatmul.mubr.bf16.gmra.mxu0 %v5915
      %v6161 = vpop.f32.mrf.mxu0
      %v6162 = vadd.f32 %v5960, %v6161
      %v6163 = vpop.f32.mrf.mxu0
      %v6164 = vadd.f32 %v5964, %v6163
      %v6165 = vpop.f32.mrf.mxu0
      %v6166 = vadd.f32 %v5960, %v6165
      %v6167 = vpop.f32.mrf.mxu0
      %v6168 = vadd.f32 %v5964, %v6167
      %6169 = vmatprep.mubr.bf16.mxu0 %v5918
      %6170 = vmatmul.mubr.bf16.gmra.mxu0 %v5917
      %v6171 = vpop.f32.mrf.mxu0
      %v6172 = vadd.f32 %v5960, %v6171
      %v6173 = vpop.f32.mrf.mxu0
      %v6174 = vadd.f32 %v5964, %v6173
      %v6175 = vpop.f32.mrf.mxu0
      %v6176 = vadd.f32 %v5960, %v6175
      %v6177 = vpop.f32.mrf.mxu0
      %v6178 = vadd.f32 %v5964, %v6177
      %6179 = vdwg.mxu0
      %v6180 = vld [vmem:[%s18] sm:$0xff]
      %v6181 = vld [vmem:[%s18 + $0x8] sm:$0xff]
      %v6182 = vld [vmem:[%s18 + $0x10] sm:$0xff]
      %v6183 = vld [vmem:[%s18 + $0x18] sm:$0xff]
      %v6184 = vld [vmem:[%s18 + $0x20] sm:$0xff]
      %v6185 = vld [vmem:[%s18 + $0x28] sm:$0xff]
      %v6186 = vld [vmem:[%s18 + $0x30] sm:$0xff]
      %v6187 = vld [vmem:[%s18 + $0x38] sm:$0xff]
      %v6188 = vld [vmem:[%s18 + $0x40] sm:$0xff]
      %v6189 = vld [vmem:[%s18 + $0x48] sm:$0xff]
      %v6190 = vld [vmem:[%s18 + $0x50] sm:$0xff]
      %v6191 = vld [vmem:[%s18 + $0x58] sm:$0xff]
      %v6192 = vld [vmem:[%s18 + $0x60] sm:$0xff]
      %v6193 = vld [vmem:[%s18 + $0x68] sm:$0xff]
      %v6194 = vld [vmem:[%s18 + $0x70] sm:$0xff]
      %v6195 = vld [vmem:[%s18 + $0x78] sm:$0xff]
      %v6196 = vld [vmem:[%s18 + $0x80] sm:$0xff]
      %v6197 = vld [vmem:[%s18 + $0x88] sm:$0xff]
      %v6198 = vld [vmem:[%s18 + $0x90] sm:$0xff]
      %v6199 = vld [vmem:[%s18 + $0x98] sm:$0xff]
      %v6200 = vld [vmem:[%s18 + $0xa0] sm:$0xff]
      %v6201 = vld [vmem:[%s18 + $0xa8] sm:$0xff]
      %v6202 = vld [vmem:[%s18 + $0xb0] sm:$0xff]
      %v6203 = vld [vmem:[%s18 + $0xb8] sm:$0xff]
      %v6204 = vld [vmem:[%s18 + $0xc0] sm:$0xff]
      %v6205 = vld [vmem:[%s18 + $0xc8] sm:$0xff]
      %v6206 = vld [vmem:[%s18 + $0xd0] sm:$0xff]
      %v6207 = vld [vmem:[%s18 + $0xd8] sm:$0xff]
      %v6208 = vld [vmem:[%s18 + $0xe0] sm:$0xff]
      %v6209 = vld [vmem:[%s18 + $0xe8] sm:$0xff]
      %v6210 = vld [vmem:[%s18 + $0xf0] sm:$0xff]
      %v6211 = vld [vmem:[%s18 + $0xf8] sm:$0xff]
      %v6212 = vld [vmem:[%s18 + $0x100] sm:$0xff]
      %v6213 = vld [vmem:[%s18 + $0x108] sm:$0xff]
      %v6214 = vld [vmem:[%s18 + $0x110] sm:$0xff]
      %v6215 = vld [vmem:[%s18 + $0x118] sm:$0xff]
      %v6216 = vld [vmem:[%s18 + $0x120] sm:$0xff]
      %v6217 = vld [vmem:[%s18 + $0x128] sm:$0xff]
      %v6218 = vld [vmem:[%s18 + $0x130] sm:$0xff]
      %v6219 = vld [vmem:[%s18 + $0x138] sm:$0xff]
      %v6220 = vld [vmem:[%s18 + $0x140] sm:$0xff]
      %v6221 = vld [vmem:[%s18 + $0x148] sm:$0xff]
      %v6222 = vld [vmem:[%s18 + $0x150] sm:$0xff]
      %v6223 = vld [vmem:[%s18 + $0x158] sm:$0xff]
      %v6224 = vld [vmem:[%s18 + $0x160] sm:$0xff]
      %v6225 = vld [vmem:[%s18 + $0x168] sm:$0xff]
      %v6226 = vld [vmem:[%s18 + $0x170] sm:$0xff]
      %v6227 = vld [vmem:[%s18 + $0x178] sm:$0xff]
      %v6228 = vld [vmem:[%s18 + $0x180] sm:$0xff]
      %v6229 = vld [vmem:[%s18 + $0x188] sm:$0xff]
      %v6230 = vld [vmem:[%s18 + $0x190] sm:$0xff]
      %v6231 = vld [vmem:[%s18 + $0x198] sm:$0xff]
      %v6232 = vld [vmem:[%s18 + $0x1a0] sm:$0xff]
      %v6233 = vld [vmem:[%s18 + $0x1a8] sm:$0xff]
      %v6234 = vld [vmem:[%s18 + $0x1b0] sm:$0xff]
      %v6235 = vld [vmem:[%s18 + $0x1b8] sm:$0xff]
      %v6236 = vld [vmem:[%s18 + $0x1c0] sm:$0xff]
      %v6237 = vld [vmem:[%s18 + $0x1c8] sm:$0xff]
      %v6238 = vld [vmem:[%s18 + $0x1d0] sm:$0xff]
      %v6239 = vld [vmem:[%s18 + $0x1d8] sm:$0xff]
      %v6240 = vld [vmem:[%s18 + $0x1e0] sm:$0xff]
      %v6241 = vld [vmem:[%s18 + $0x1e8] sm:$0xff]
      %v6242 = vld [vmem:[%s18 + $0x1f0] sm:$0xff]
      %v6243 = vld [vmem:[%s18 + $0x1f8] sm:$0xff]
      %v6308 = vunpack.c.l.b16 %v6180
      %v6309 = vunpack.c.h.b16 %v6180
      %v6310 = vunpack.c.l.b16 %v6181
      %v6311 = vunpack.c.h.b16 %v6181
      %v6312 = vunpack.c.l.b16 %v6182
      %v6313 = vunpack.c.h.b16 %v6182
      %v6314 = vunpack.c.l.b16 %v6183
      %v6315 = vunpack.c.h.b16 %v6183
      %v6316 = vunpack.c.l.b16 %v6184
      %v6317 = vunpack.c.h.b16 %v6184
      %v6318 = vunpack.c.l.b16 %v6185
      %v6319 = vunpack.c.h.b16 %v6185
      %v6320 = vunpack.c.l.b16 %v6186
      %v6321 = vunpack.c.h.b16 %v6186
      %v6322 = vunpack.c.l.b16 %v6187
      %v6323 = vunpack.c.h.b16 %v6187
      %v6324 = vunpack.c.l.b16 %v6188
      %v6325 = vunpack.c.h.b16 %v6188
      %v6326 = vunpack.c.l.b16 %v6189
      %v6327 = vunpack.c.h.b16 %v6189
      %v6328 = vunpack.c.l.b16 %v6190
      %v6329 = vunpack.c.h.b16 %v6190
      %v6330 = vunpack.c.l.b16 %v6191
      %v6331 = vunpack.c.h.b16 %v6191
      %v6332 = vunpack.c.l.b16 %v6192
      %v6333 = vunpack.c.h.b16 %v6192
      %v6334 = vunpack.c.l.b16 %v6193
      %v6335 = vunpack.c.h.b16 %v6193
      %v6336 = vunpack.c.l.b16 %v6194
      %v6337 = vunpack.c.h.b16 %v6194
      %v6338 = vunpack.c.l.b16 %v6195
      %v6339 = vunpack.c.h.b16 %v6195
      %v6340 = vunpack.c.l.b16 %v6196
      %v6341 = vunpack.c.h.b16 %v6196
      %v6342 = vunpack.c.l.b16 %v6197
      %v6343 = vunpack.c.h.b16 %v6197
      %v6344 = vunpack.c.l.b16 %v6198
      %v6345 = vunpack.c.h.b16 %v6198
      %v6346 = vunpack.c.l.b16 %v6199
      %v6347 = vunpack.c.h.b16 %v6199
      %v6348 = vunpack.c.l.b16 %v6200
      %v6349 = vunpack.c.h.b16 %v6200
      %v6350 = vunpack.c.l.b16 %v6201
      %v6351 = vunpack.c.h.b16 %v6201
      %v6352 = vunpack.c.l.b16 %v6202
      %v6353 = vunpack.c.h.b16 %v6202
      %v6354 = vunpack.c.l.b16 %v6203
      %v6355 = vunpack.c.h.b16 %v6203
      %v6356 = vunpack.c.l.b16 %v6204
      %v6357 = vunpack.c.h.b16 %v6204
      %v6358 = vunpack.c.l.b16 %v6205
      %v6359 = vunpack.c.h.b16 %v6205
      %v6360 = vunpack.c.l.b16 %v6206
      %v6361 = vunpack.c.h.b16 %v6206
      %v6362 = vunpack.c.l.b16 %v6207
      %v6363 = vunpack.c.h.b16 %v6207
      %v6364 = vunpack.c.l.b16 %v6208
      %v6365 = vunpack.c.h.b16 %v6208
      %v6366 = vunpack.c.l.b16 %v6209
      %v6367 = vunpack.c.h.b16 %v6209
      %v6368 = vunpack.c.l.b16 %v6210
      %v6369 = vunpack.c.h.b16 %v6210
      %v6370 = vunpack.c.l.b16 %v6211
      %v6371 = vunpack.c.h.b16 %v6211
      %v6372 = vunpack.c.l.b16 %v6212
      %v6373 = vunpack.c.h.b16 %v6212
      %v6374 = vunpack.c.l.b16 %v6213
      %v6375 = vunpack.c.h.b16 %v6213
      %v6376 = vunpack.c.l.b16 %v6214
      %v6377 = vunpack.c.h.b16 %v6214
      %v6378 = vunpack.c.l.b16 %v6215
      %v6379 = vunpack.c.h.b16 %v6215
      %v6380 = vunpack.c.l.b16 %v6216
      %v6381 = vunpack.c.h.b16 %v6216
      %v6382 = vunpack.c.l.b16 %v6217
      %v6383 = vunpack.c.h.b16 %v6217
      %v6384 = vunpack.c.l.b16 %v6218
      %v6385 = vunpack.c.h.b16 %v6218
      %v6386 = vunpack.c.l.b16 %v6219
      %v6387 = vunpack.c.h.b16 %v6219
      %v6388 = vunpack.c.l.b16 %v6220
      %v6389 = vunpack.c.h.b16 %v6220
      %v6390 = vunpack.c.l.b16 %v6221
      %v6391 = vunpack.c.h.b16 %v6221
      %v6392 = vunpack.c.l.b16 %v6222
      %v6393 = vunpack.c.h.b16 %v6222
      %v6394 = vunpack.c.l.b16 %v6223
      %v6395 = vunpack.c.h.b16 %v6223
      %v6396 = vunpack.c.l.b16 %v6224
      %v6397 = vunpack.c.h.b16 %v6224
      %v6398 = vunpack.c.l.b16 %v6225
      %v6399 = vunpack.c.h.b16 %v6225
      %v6400 = vunpack.c.l.b16 %v6226
      %v6401 = vunpack.c.h.b16 %v6226
      %v6402 = vunpack.c.l.b16 %v6227
      %v6403 = vunpack.c.h.b16 %v6227
      %v6404 = vunpack.c.l.b16 %v6228
      %v6405 = vunpack.c.h.b16 %v6228
      %v6406 = vunpack.c.l.b16 %v6229
      %v6407 = vunpack.c.h.b16 %v6229
      %v6408 = vunpack.c.l.b16 %v6230
      %v6409 = vunpack.c.h.b16 %v6230
      %v6410 = vunpack.c.l.b16 %v6231
      %v6411 = vunpack.c.h.b16 %v6231
      %v6412 = vunpack.c.l.b16 %v6232
      %v6413 = vunpack.c.h.b16 %v6232
      %v6414 = vunpack.c.l.b16 %v6233
      %v6415 = vunpack.c.h.b16 %v6233
      %v6416 = vunpack.c.l.b16 %v6234
      %v6417 = vunpack.c.h.b16 %v6234
      %v6418 = vunpack.c.l.b16 %v6235
      %v6419 = vunpack.c.h.b16 %v6235
      %v6420 = vunpack.c.l.b16 %v6236
      %v6421 = vunpack.c.h.b16 %v6236
      %v6422 = vunpack.c.l.b16 %v6237
      %v6423 = vunpack.c.h.b16 %v6237
      %v6424 = vunpack.c.l.b16 %v6238
      %v6425 = vunpack.c.h.b16 %v6238
      %v6426 = vunpack.c.l.b16 %v6239
      %v6427 = vunpack.c.h.b16 %v6239
      %v6428 = vunpack.c.l.b16 %v6240
      %v6429 = vunpack.c.h.b16 %v6240
      %v6430 = vunpack.c.l.b16 %v6241
      %v6431 = vunpack.c.h.b16 %v6241
      %v6432 = vunpack.c.l.b16 %v6242
      %v6433 = vunpack.c.h.b16 %v6242
      %v6434 = vunpack.c.l.b16 %v6243
      %v6435 = vunpack.c.h.b16 %v6243
      %v6436 = vpack.c.b16 %v6310, %v6308
      %v6437 = vpack.c.b16 %v6311, %v6309
      %v6438 = vpack.c.b16 %v6314, %v6312
      %v6439 = vpack.c.b16 %v6315, %v6313
      %v6440 = vpack.c.b16 %v6318, %v6316
      %v6441 = vpack.c.b16 %v6319, %v6317
      %v6442 = vpack.c.b16 %v6322, %v6320
      %v6443 = vpack.c.b16 %v6323, %v6321
      %v6444 = vpack.c.b16 %v6326, %v6324
      %v6445 = vpack.c.b16 %v6327, %v6325
      %v6446 = vpack.c.b16 %v6330, %v6328
      %v6447 = vpack.c.b16 %v6331, %v6329
      %v6448 = vpack.c.b16 %v6334, %v6332
      %v6449 = vpack.c.b16 %v6335, %v6333
      %v6450 = vpack.c.b16 %v6338, %v6336
      %v6451 = vpack.c.b16 %v6339, %v6337
      %v6452 = vpack.c.b16 %v6342, %v6340
      %v6453 = vpack.c.b16 %v6343, %v6341
      %v6454 = vpack.c.b16 %v6346, %v6344
      %v6455 = vpack.c.b16 %v6347, %v6345
      %v6456 = vpack.c.b16 %v6350, %v6348
      %v6457 = vpack.c.b16 %v6351, %v6349
      %v6458 = vpack.c.b16 %v6354, %v6352
      %v6459 = vpack.c.b16 %v6355, %v6353
      %v6460 = vpack.c.b16 %v6358, %v6356
      %v6461 = vpack.c.b16 %v6359, %v6357
      %v6462 = vpack.c.b16 %v6362, %v6360
      %v6463 = vpack.c.b16 %v6363, %v6361
      %v6464 = vpack.c.b16 %v6366, %v6364
      %v6465 = vpack.c.b16 %v6367, %v6365
      %v6466 = vpack.c.b16 %v6370, %v6368
      %v6467 = vpack.c.b16 %v6371, %v6369
      %v6468 = vpack.c.b16 %v6374, %v6372
      %v6469 = vpack.c.b16 %v6375, %v6373
      %v6470 = vpack.c.b16 %v6378, %v6376
      %v6471 = vpack.c.b16 %v6379, %v6377
      %v6472 = vpack.c.b16 %v6382, %v6380
      %v6473 = vpack.c.b16 %v6383, %v6381
      %v6474 = vpack.c.b16 %v6386, %v6384
      %v6475 = vpack.c.b16 %v6387, %v6385
      %v6476 = vpack.c.b16 %v6390, %v6388
      %v6477 = vpack.c.b16 %v6391, %v6389
      %v6478 = vpack.c.b16 %v6394, %v6392
      %v6479 = vpack.c.b16 %v6395, %v6393
      %v6480 = vpack.c.b16 %v6398, %v6396
      %v6481 = vpack.c.b16 %v6399, %v6397
      %v6482 = vpack.c.b16 %v6402, %v6400
      %v6483 = vpack.c.b16 %v6403, %v6401
      %v6484 = vpack.c.b16 %v6406, %v6404
      %v6485 = vpack.c.b16 %v6407, %v6405
      %v6486 = vpack.c.b16 %v6410, %v6408
      %v6487 = vpack.c.b16 %v6411, %v6409
      %v6488 = vpack.c.b16 %v6414, %v6412
      %v6489 = vpack.c.b16 %v6415, %v6413
      %v6490 = vpack.c.b16 %v6418, %v6416
      %v6491 = vpack.c.b16 %v6419, %v6417
      %v6492 = vpack.c.b16 %v6422, %v6420
      %v6493 = vpack.c.b16 %v6423, %v6421
      %v6494 = vpack.c.b16 %v6426, %v6424
      %v6495 = vpack.c.b16 %v6427, %v6425
      %v6496 = vpack.c.b16 %v6430, %v6428
      %v6497 = vpack.c.b16 %v6431, %v6429
      %v6498 = vpack.c.b16 %v6434, %v6432
      %v6499 = vpack.c.b16 %v6435, %v6433
      %6564 = vmatprep.subr.bf16.mxu0 %v6451
      %6565 = vmatpush1.bf16.msra.mxu0 %v6450
      %6566 = vmatprep.subr.bf16.mxu0 %v6449
      %6567 = vmatpush1.bf16.msra.mxu0 %v6448
      %6568 = vmatprep.subr.bf16.mxu0 %v6447
      %6569 = vmatpush1.bf16.msra.mxu0 %v6446
      %6570 = vmatprep.subr.bf16.mxu0 %v6445
      %6571 = vmatpush1.bf16.msra.mxu0 %v6444
      %6572 = vmatprep.subr.bf16.mxu0 %v6443
      %6573 = vmatpush1.bf16.msra.mxu0 %v6442
      %6574 = vmatprep.subr.bf16.mxu0 %v6441
      %6575 = vmatpush1.bf16.msra.mxu0 %v6440
      %6576 = vmatprep.subr.bf16.mxu0 %v6439
      %6577 = vmatpush1.bf16.msra.mxu0 %v6438
      %6578 = vmatprep.subr.bf16.mxu0 %v6437
      %6579 = vmatpush1.bf16.msra.mxu0 %v6436
      %6580 = vmatprep.subr.bf16.mxu0 %v6467
      %6581 = vmatpush2.bf16.msra.mxu0 %v6466
      %6582 = vmatprep.subr.bf16.mxu0 %v6465
      %6583 = vmatpush2.bf16.msra.mxu0 %v6464
      %6584 = vmatprep.subr.bf16.mxu0 %v6463
      %6585 = vmatpush2.bf16.msra.mxu0 %v6462
      %6586 = vmatprep.subr.bf16.mxu0 %v6461
      %6587 = vmatpush2.bf16.msra.mxu0 %v6460
      %6588 = vmatprep.subr.bf16.mxu0 %v6459
      %6589 = vmatpush2.bf16.msra.mxu0 %v6458
      %6590 = vmatprep.subr.bf16.mxu0 %v6457
      %6591 = vmatpush2.bf16.msra.mxu0 %v6456
      %6592 = vmatprep.subr.bf16.mxu0 %v6455
      %6593 = vmatpush2.bf16.msra.mxu0 %v6454
      %6594 = vmatprep.subr.bf16.mxu0 %v6453
      %6595 = vmatpush2.bf16.msra.mxu0 %v6452
      %6596 = vmatprep.mubr.bf16.mxu0 %v5920
      %6597 = vmatmul.mubr.bf16.gmra.mxu0 %v5919
      %v6598 = vpop.f32.mrf.mxu0
      %v6599 = vadd.f32 %v5960, %v6598
      %v6600 = vpop.f32.mrf.mxu0
      %v6601 = vadd.f32 %v5964, %v6600
      %v6602 = vpop.f32.mrf.mxu0
      %v6603 = vadd.f32 %v5960, %v6602
      %v6604 = vpop.f32.mrf.mxu0
      %v6605 = vadd.f32 %v5964, %v6604
      %6606 = vmatprep.mubr.bf16.mxu0 %v5922
      %6607 = vmatmul.mubr.bf16.gmra.mxu0 %v5921
      %v6608 = vpop.f32.mrf.mxu0
      %v6609 = vadd.f32 %v5960, %v6608
      %v6610 = vpop.f32.mrf.mxu0
      %v6611 = vadd.f32 %v5964, %v6610
      %v6612 = vpop.f32.mrf.mxu0
      %v6613 = vadd.f32 %v5960, %v6612
      %v6614 = vpop.f32.mrf.mxu0
      %v6615 = vadd.f32 %v5964, %v6614
      %6616 = vdwg.mxu0
      %6617 = vmatprep.subr.bf16.mxu0 %v6483
      %6618 = vmatpush1.bf16.msra.mxu0 %v6482
      %6619 = vmatprep.subr.bf16.mxu0 %v6481
      %6620 = vmatpush1.bf16.msra.mxu0 %v6480
      %6621 = vmatprep.subr.bf16.mxu0 %v6479
      %6622 = vmatpush1.bf16.msra.mxu0 %v6478
      %6623 = vmatprep.subr.bf16.mxu0 %v6477
      %6624 = vmatpush1.bf16.msra.mxu0 %v6476
      %6625 = vmatprep.subr.bf16.mxu0 %v6475
      %6626 = vmatpush1.bf16.msra.mxu0 %v6474
      %6627 = vmatprep.subr.bf16.mxu0 %v6473
      %6628 = vmatpush1.bf16.msra.mxu0 %v6472
      %6629 = vmatprep.subr.bf16.mxu0 %v6471
      %6630 = vmatpush1.bf16.msra.mxu0 %v6470
      %6631 = vmatprep.subr.bf16.mxu0 %v6469
      %6632 = vmatpush1.bf16.msra.mxu0 %v6468
      %6633 = vmatprep.subr.bf16.mxu0 %v6499
      %6634 = vmatpush2.bf16.msra.mxu0 %v6498
      %6635 = vmatprep.subr.bf16.mxu0 %v6497
      %6636 = vmatpush2.bf16.msra.mxu0 %v6496
      %6637 = vmatprep.subr.bf16.mxu0 %v6495
      %6638 = vmatpush2.bf16.msra.mxu0 %v6494
      %6639 = vmatprep.subr.bf16.mxu0 %v6493
      %6640 = vmatpush2.bf16.msra.mxu0 %v6492
      %6641 = vmatprep.subr.bf16.mxu0 %v6491
      %6642 = vmatpush2.bf16.msra.mxu0 %v6490
      %6643 = vmatprep.subr.bf16.mxu0 %v6489
      %6644 = vmatpush2.bf16.msra.mxu0 %v6488
      %6645 = vmatprep.subr.bf16.mxu0 %v6487
      %6646 = vmatpush2.bf16.msra.mxu0 %v6486
      %6647 = vmatprep.subr.bf16.mxu0 %v6485
      %6648 = vmatpush2.bf16.msra.mxu0 %v6484
      %6649 = vmatprep.mubr.bf16.mxu0 %v5916
      %6650 = vmatmul.mubr.bf16.gmra.mxu0 %v5915
      %v6651 = vpop.f32.mrf.mxu0
      %v6652 = vadd.f32 %v6599, %v6651
      %v6653 = vpop.f32.mrf.mxu0
      %v6654 = vadd.f32 %v6601, %v6653
      %v6655 = vpop.f32.mrf.mxu0
      %v6656 = vadd.f32 %v6603, %v6655
      %v6657 = vpop.f32.mrf.mxu0
      %v6658 = vadd.f32 %v6605, %v6657
      %6659 = vmatprep.mubr.bf16.mxu0 %v5918
      %6660 = vmatmul.mubr.bf16.gmra.mxu0 %v5917
      %v6661 = vpop.f32.mrf.mxu0
      %v6662 = vadd.f32 %v6609, %v6661
      %v6663 = vpop.f32.mrf.mxu0
      %v6664 = vadd.f32 %v6611, %v6663
      %v6665 = vpop.f32.mrf.mxu0
      %v6666 = vadd.f32 %v6613, %v6665
      %v6667 = vpop.f32.mrf.mxu0
      %v6668 = vadd.f32 %v6615, %v6667
      %6669 = vdwg.mxu0
      %v6670 = vmax.f32 %v6162, 0.0
      %v6671 = vmax.f32 %v6164, 0.0
      %v6672 = vmax.f32 %v6166, 0.0
      %v6673 = vmax.f32 %v6168, 0.0
      %v6674 = vmax.f32 %v6172, 0.0
      %v6675 = vmax.f32 %v6174, 0.0
      %v6676 = vmax.f32 %v6176, 0.0
      %v6677 = vmax.f32 %v6178, 0.0
      %v6678 = vmax.f32 %v6652, 0.0
      %v6679 = vmax.f32 %v6654, 0.0
      %v6680 = vmax.f32 %v6656, 0.0
      %v6681 = vmax.f32 %v6658, 0.0
      %v6682 = vmax.f32 %v6662, 0.0
      %v6683 = vmax.f32 %v6664, 0.0
      %v6684 = vmax.f32 %v6666, 0.0
      %v6685 = vmax.f32 %v6668, 0.0
      %v6686 = vpack.c.bf16 %v6678, %v6670
      %v6687 = vpack.c.bf16 %v6679, %v6671
      %v6688 = vpack.c.bf16 %v6680, %v6672
      %v6689 = vpack.c.bf16 %v6681, %v6673
      %v6690 = vpack.c.bf16 %v6682, %v6674
      %v6691 = vpack.c.bf16 %v6683, %v6675
      %v6692 = vpack.c.bf16 %v6684, %v6676
      %v6693 = vpack.c.bf16 %v6685, %v6677
      %v6694 = vpack.c.bf16 %v6672, %v6678
      %v6695 = vpack.c.bf16 %v6673, %v6679
      %v6696 = vpack.c.bf16 %v6674, %v6680
      %v6697 = vpack.c.bf16 %v6675, %v6681
      %v6698 = vpack.c.bf16 %v6676, %v6682
      %v6699 = vpack.c.bf16 %v6677, %v6683
      %v6700 = vpack.c.bf16 0.0, %v6684
      %v6701 = vpack.c.bf16 0.0, %v6685
      %v6702 = vld [vmem:[%s20] sm:$0xff]
      %v6703 = vld [vmem:[%s20 + $0x8] sm:$0xff]
      %v6704 = vld [vmem:[%s20 + $0x10] sm:$0xff]
      %v6705 = vld [vmem:[%s20 + $0x18] sm:$0xff]
      %v6706 = vld [vmem:[%s20 + $0x20] sm:$0xff]
      %v6707 = vld [vmem:[%s20 + $0x28] sm:$0xff]
      %v6708 = vld [vmem:[%s20 + $0x30] sm:$0xff]
      %v6709 = vld [vmem:[%s20 + $0x38] sm:$0xff]
      %v6710 = vld [vmem:[%s20 + $0x40] sm:$0xff]
      %v6711 = vld [vmem:[%s20 + $0x48] sm:$0xff]
      %v6712 = vld [vmem:[%s20 + $0x50] sm:$0xff]
      %v6713 = vld [vmem:[%s20 + $0x58] sm:$0xff]
      %v6714 = vld [vmem:[%s20 + $0x60] sm:$0xff]
      %v6715 = vld [vmem:[%s20 + $0x68] sm:$0xff]
      %v6716 = vld [vmem:[%s20 + $0x70] sm:$0xff]
      %v6717 = vld [vmem:[%s20 + $0x78] sm:$0xff]
      %v6718 = vld [vmem:[%s20 + $0x80] sm:$0xff]
      %v6719 = vld [vmem:[%s20 + $0x88] sm:$0xff]
      %v6720 = vld [vmem:[%s20 + $0x90] sm:$0xff]
      %v6721 = vld [vmem:[%s20 + $0x98] sm:$0xff]
      %v6722 = vld [vmem:[%s20 + $0xa0] sm:$0xff]
      %v6723 = vld [vmem:[%s20 + $0xa8] sm:$0xff]
      %v6724 = vld [vmem:[%s20 + $0xb0] sm:$0xff]
      %v6725 = vld [vmem:[%s20 + $0xb8] sm:$0xff]
      %v6726 = vld [vmem:[%s20 + $0xc0] sm:$0xff]
      %v6727 = vld [vmem:[%s20 + $0xc8] sm:$0xff]
      %v6728 = vld [vmem:[%s20 + $0xd0] sm:$0xff]
      %v6729 = vld [vmem:[%s20 + $0xd8] sm:$0xff]
      %v6730 = vld [vmem:[%s20 + $0xe0] sm:$0xff]
      %v6731 = vld [vmem:[%s20 + $0xe8] sm:$0xff]
      %v6732 = vld [vmem:[%s20 + $0xf0] sm:$0xff]
      %v6733 = vld [vmem:[%s20 + $0xf8] sm:$0xff]
      %v6734 = vld [vmem:[%s22] sm:$0x3]
      %v6736 = vlaneseq
      %v6737 = vshrl.u32 %v6736, 7
      %v6738 = vsub.s32 0, %v6737
      %v6739 = vrot.slane %v6734, %v6738
      %v6740 = vlaneseq
      %v6741 = vshrl.u32 %v6740, 7
      %v6742 = vsub.s32 1, %v6741
      %v6743 = vrot.slane %v6734, %v6742
      %v6778 = vunpack.c.l.b16 %v6702
      %v6779 = vunpack.c.h.b16 %v6702
      %v6780 = vunpack.c.l.b16 %v6703
      %v6781 = vunpack.c.h.b16 %v6703
      %v6782 = vunpack.c.l.b16 %v6704
      %v6783 = vunpack.c.h.b16 %v6704
      %v6784 = vunpack.c.l.b16 %v6705
      %v6785 = vunpack.c.h.b16 %v6705
      %v6786 = vunpack.c.l.b16 %v6706
      %v6787 = vunpack.c.h.b16 %v6706
      %v6788 = vunpack.c.l.b16 %v6707
      %v6789 = vunpack.c.h.b16 %v6707
      %v6790 = vunpack.c.l.b16 %v6708
      %v6791 = vunpack.c.h.b16 %v6708
      %v6792 = vunpack.c.l.b16 %v6709
      %v6793 = vunpack.c.h.b16 %v6709
      %v6794 = vunpack.c.l.b16 %v6710
      %v6795 = vunpack.c.h.b16 %v6710
      %v6796 = vunpack.c.l.b16 %v6711
      %v6797 = vunpack.c.h.b16 %v6711
      %v6798 = vunpack.c.l.b16 %v6712
      %v6799 = vunpack.c.h.b16 %v6712
      %v6800 = vunpack.c.l.b16 %v6713
      %v6801 = vunpack.c.h.b16 %v6713
      %v6802 = vunpack.c.l.b16 %v6714
      %v6803 = vunpack.c.h.b16 %v6714
      %v6804 = vunpack.c.l.b16 %v6715
      %v6805 = vunpack.c.h.b16 %v6715
      %v6806 = vunpack.c.l.b16 %v6716
      %v6807 = vunpack.c.h.b16 %v6716
      %v6808 = vunpack.c.l.b16 %v6717
      %v6809 = vunpack.c.h.b16 %v6717
      %v6810 = vunpack.c.l.b16 %v6718
      %v6811 = vunpack.c.h.b16 %v6718
      %v6812 = vunpack.c.l.b16 %v6719
      %v6813 = vunpack.c.h.b16 %v6719
      %v6814 = vunpack.c.l.b16 %v6720
      %v6815 = vunpack.c.h.b16 %v6720
      %v6816 = vunpack.c.l.b16 %v6721
      %v6817 = vunpack.c.h.b16 %v6721
      %v6818 = vunpack.c.l.b16 %v6722
      %v6819 = vunpack.c.h.b16 %v6722
      %v6820 = vunpack.c.l.b16 %v6723
      %v6821 = vunpack.c.h.b16 %v6723
      %v6822 = vunpack.c.l.b16 %v6724
      %v6823 = vunpack.c.h.b16 %v6724
      %v6824 = vunpack.c.l.b16 %v6725
      %v6825 = vunpack.c.h.b16 %v6725
      %v6826 = vunpack.c.l.b16 %v6726
      %v6827 = vunpack.c.h.b16 %v6726
      %v6828 = vunpack.c.l.b16 %v6727
      %v6829 = vunpack.c.h.b16 %v6727
      %v6830 = vunpack.c.l.b16 %v6728
      %v6831 = vunpack.c.h.b16 %v6728
      %v6832 = vunpack.c.l.b16 %v6729
      %v6833 = vunpack.c.h.b16 %v6729
      %v6834 = vunpack.c.l.b16 %v6730
      %v6835 = vunpack.c.h.b16 %v6730
      %v6836 = vunpack.c.l.b16 %v6731
      %v6837 = vunpack.c.h.b16 %v6731
      %v6838 = vunpack.c.l.b16 %v6732
      %v6839 = vunpack.c.h.b16 %v6732
      %v6840 = vunpack.c.l.b16 %v6733
      %v6841 = vunpack.c.h.b16 %v6733
      %v6842 = vpack.c.b16 %v6780, %v6778
      %v6843 = vpack.c.b16 %v6781, %v6779
      %v6844 = vpack.c.b16 %v6784, %v6782
      %v6845 = vpack.c.b16 %v6785, %v6783
      %v6846 = vpack.c.b16 %v6788, %v6786
      %v6847 = vpack.c.b16 %v6789, %v6787
      %v6848 = vpack.c.b16 %v6792, %v6790
      %v6849 = vpack.c.b16 %v6793, %v6791
      %v6850 = vpack.c.b16 %v6796, %v6794
      %v6851 = vpack.c.b16 %v6797, %v6795
      %v6852 = vpack.c.b16 %v6800, %v6798
      %v6853 = vpack.c.b16 %v6801, %v6799
      %v6854 = vpack.c.b16 %v6804, %v6802
      %v6855 = vpack.c.b16 %v6805, %v6803
      %v6856 = vpack.c.b16 %v6808, %v6806
      %v6857 = vpack.c.b16 %v6809, %v6807
      %v6858 = vpack.c.b16 %v6812, %v6810
      %v6859 = vpack.c.b16 %v6813, %v6811
      %v6860 = vpack.c.b16 %v6816, %v6814
      %v6861 = vpack.c.b16 %v6817, %v6815
      %v6862 = vpack.c.b16 %v6820, %v6818
      %v6863 = vpack.c.b16 %v6821, %v6819
      %v6864 = vpack.c.b16 %v6824, %v6822
      %v6865 = vpack.c.b16 %v6825, %v6823
      %v6866 = vpack.c.b16 %v6828, %v6826
      %v6867 = vpack.c.b16 %v6829, %v6827
      %v6868 = vpack.c.b16 %v6832, %v6830
      %v6869 = vpack.c.b16 %v6833, %v6831
      %v6870 = vpack.c.b16 %v6836, %v6834
      %v6871 = vpack.c.b16 %v6837, %v6835
      %v6872 = vpack.c.b16 %v6840, %v6838
      %v6873 = vpack.c.b16 %v6841, %v6839
      %6906 = vmatprep.subr.bf16.mxu0 %v6857
      %6907 = vmatpush1.bf16.msra.mxu0 %v6856
      %6908 = vmatprep.subr.bf16.mxu0 %v6855
      %6909 = vmatpush1.bf16.msra.mxu0 %v6854
      %6910 = vmatprep.subr.bf16.mxu0 %v6853
      %6911 = vmatpush1.bf16.msra.mxu0 %v6852
      %6912 = vmatprep.subr.bf16.mxu0 %v6851
      %6913 = vmatpush1.bf16.msra.mxu0 %v6850
      %6914 = vmatprep.subr.bf16.mxu0 %v6849
      %6915 = vmatpush1.bf16.msra.mxu0 %v6848
      %6916 = vmatprep.subr.bf16.mxu0 %v6847
      %6917 = vmatpush1.bf16.msra.mxu0 %v6846
      %6918 = vmatprep.subr.bf16.mxu0 %v6845
      %6919 = vmatpush1.bf16.msra.mxu0 %v6844
      %6920 = vmatprep.subr.bf16.mxu0 %v6843
      %6921 = vmatpush1.bf16.msra.mxu0 %v6842
      %6922 = vmatprep.subr.bf16.mxu0 %v6873
      %6923 = vmatpush2.bf16.msra.mxu0 %v6872
      %6924 = vmatprep.subr.bf16.mxu0 %v6871
      %6925 = vmatpush2.bf16.msra.mxu0 %v6870
      %6926 = vmatprep.subr.bf16.mxu0 %v6869
      %6927 = vmatpush2.bf16.msra.mxu0 %v6868
      %6928 = vmatprep.subr.bf16.mxu0 %v6867
      %6929 = vmatpush2.bf16.msra.mxu0 %v6866
      %6930 = vmatprep.subr.bf16.mxu0 %v6865
      %6931 = vmatpush2.bf16.msra.mxu0 %v6864
      %6932 = vmatprep.subr.bf16.mxu0 %v6863
      %6933 = vmatpush2.bf16.msra.mxu0 %v6862
      %6934 = vmatprep.subr.bf16.mxu0 %v6861
      %6935 = vmatpush2.bf16.msra.mxu0 %v6860
      %6936 = vmatprep.subr.bf16.mxu0 %v6859
      %6937 = vmatpush2.bf16.msra.mxu0 %v6858
      %6938 = vmatprep.mubr.bf16.mxu0 %v6687
      %6939 = vmatmul.mubr.bf16.gmra.mxu0 %v6686
      %v6940 = vpop.f32.mrf.mxu0
      %v6941 = vadd.f32 %v6739, %v6940
      %v6942 = vpop.f32.mrf.mxu0
      %v6943 = vadd.f32 %v6743, %v6942
      %v6944 = vpop.f32.mrf.mxu0
      %v6945 = vadd.f32 %v6739, %v6944
      %v6946 = vpop.f32.mrf.mxu0
      %v6947 = vadd.f32 %v6743, %v6946
      %6948 = vmatprep.mubr.bf16.mxu0 %v6689
      %6949 = vmatmul.mubr.bf16.gmra.mxu0 %v6688
      %v6950 = vpop.f32.mrf.mxu0
      %v6951 = vadd.f32 %v6739, %v6950
      %v6952 = vpop.f32.mrf.mxu0
      %v6953 = vadd.f32 %v6743, %v6952
      %v6954 = vpop.f32.mrf.mxu0
      %v6955 = vadd.f32 %v6739, %v6954
      %v6956 = vpop.f32.mrf.mxu0
      %v6957 = vadd.f32 %v6743, %v6956
      %6958 = vmatprep.mubr.bf16.mxu0 %v6691
      %6959 = vmatmul.mubr.bf16.gmra.mxu0 %v6690
      %v6960 = vpop.f32.mrf.mxu0
      %v6961 = vadd.f32 %v6739, %v6960
      %v6962 = vpop.f32.mrf.mxu0
      %v6963 = vadd.f32 %v6743, %v6962
      %v6964 = vpop.f32.mrf.mxu0
      %v6965 = vadd.f32 %v6739, %v6964
      %v6966 = vpop.f32.mrf.mxu0
      %v6967 = vadd.f32 %v6743, %v6966
      %6968 = vmatprep.mubr.bf16.mxu0 %v6693
      %6969 = vmatmul.mubr.bf16.gmra.mxu0 %v6692
      %v6970 = vpop.f32.mrf.mxu0
      %v6971 = vadd.f32 %v6739, %v6970
      %v6972 = vpop.f32.mrf.mxu0
      %v6973 = vadd.f32 %v6743, %v6972
      %v6974 = vpop.f32.mrf.mxu0
      %v6975 = vadd.f32 %v6739, %v6974
      %v6976 = vpop.f32.mrf.mxu0
      %v6977 = vadd.f32 %v6743, %v6976
      %6978 = vdwg.mxu0
      %v6979 = vld [vmem:[%s21] sm:$0xff]
      %v6980 = vld [vmem:[%s21 + $0x8] sm:$0xff]
      %v6981 = vld [vmem:[%s21 + $0x10] sm:$0xff]
      %v6982 = vld [vmem:[%s21 + $0x18] sm:$0xff]
      %v6983 = vld [vmem:[%s21 + $0x20] sm:$0xff]
      %v6984 = vld [vmem:[%s21 + $0x28] sm:$0xff]
      %v6985 = vld [vmem:[%s21 + $0x30] sm:$0xff]
      %v6986 = vld [vmem:[%s21 + $0x38] sm:$0xff]
      %v6987 = vld [vmem:[%s21 + $0x40] sm:$0xff]
      %v6988 = vld [vmem:[%s21 + $0x48] sm:$0xff]
      %v6989 = vld [vmem:[%s21 + $0x50] sm:$0xff]
      %v6990 = vld [vmem:[%s21 + $0x58] sm:$0xff]
      %v6991 = vld [vmem:[%s21 + $0x60] sm:$0xff]
      %v6992 = vld [vmem:[%s21 + $0x68] sm:$0xff]
      %v6993 = vld [vmem:[%s21 + $0x70] sm:$0xff]
      %v6994 = vld [vmem:[%s21 + $0x78] sm:$0xff]
      %v6995 = vld [vmem:[%s21 + $0x80] sm:$0xff]
      %v6996 = vld [vmem:[%s21 + $0x88] sm:$0xff]
      %v6997 = vld [vmem:[%s21 + $0x90] sm:$0xff]
      %v6998 = vld [vmem:[%s21 + $0x98] sm:$0xff]
      %v6999 = vld [vmem:[%s21 + $0xa0] sm:$0xff]
      %v7000 = vld [vmem:[%s21 + $0xa8] sm:$0xff]
      %v7001 = vld [vmem:[%s21 + $0xb0] sm:$0xff]
      %v7002 = vld [vmem:[%s21 + $0xb8] sm:$0xff]
      %v7003 = vld [vmem:[%s21 + $0xc0] sm:$0xff]
      %v7004 = vld [vmem:[%s21 + $0xc8] sm:$0xff]
      %v7005 = vld [vmem:[%s21 + $0xd0] sm:$0xff]
      %v7006 = vld [vmem:[%s21 + $0xd8] sm:$0xff]
      %v7007 = vld [vmem:[%s21 + $0xe0] sm:$0xff]
      %v7008 = vld [vmem:[%s21 + $0xe8] sm:$0xff]
      %v7009 = vld [vmem:[%s21 + $0xf0] sm:$0xff]
      %v7010 = vld [vmem:[%s21 + $0xf8] sm:$0xff]
      %v7011 = vld [vmem:[%s21 + $0x100] sm:$0xff]
      %v7012 = vld [vmem:[%s21 + $0x108] sm:$0xff]
      %v7013 = vld [vmem:[%s21 + $0x110] sm:$0xff]
      %v7014 = vld [vmem:[%s21 + $0x118] sm:$0xff]
      %v7015 = vld [vmem:[%s21 + $0x120] sm:$0xff]
      %v7016 = vld [vmem:[%s21 + $0x128] sm:$0xff]
      %v7017 = vld [vmem:[%s21 + $0x130] sm:$0xff]
      %v7018 = vld [vmem:[%s21 + $0x138] sm:$0xff]
      %v7019 = vld [vmem:[%s21 + $0x140] sm:$0xff]
      %v7020 = vld [vmem:[%s21 + $0x148] sm:$0xff]
      %v7021 = vld [vmem:[%s21 + $0x150] sm:$0xff]
      %v7022 = vld [vmem:[%s21 + $0x158] sm:$0xff]
      %v7023 = vld [vmem:[%s21 + $0x160] sm:$0xff]
      %v7024 = vld [vmem:[%s21 + $0x168] sm:$0xff]
      %v7025 = vld [vmem:[%s21 + $0x170] sm:$0xff]
      %v7026 = vld [vmem:[%s21 + $0x178] sm:$0xff]
      %v7027 = vld [vmem:[%s21 + $0x180] sm:$0xff]
      %v7028 = vld [vmem:[%s21 + $0x188] sm:$0xff]
      %v7029 = vld [vmem:[%s21 + $0x190] sm:$0xff]
      %v7030 = vld [vmem:[%s21 + $0x198] sm:$0xff]
      %v7031 = vld [vmem:[%s21 + $0x1a0] sm:$0xff]
      %v7032 = vld [vmem:[%s21 + $0x1a8] sm:$0xff]
      %v7033 = vld [vmem:[%s21 + $0x1b0] sm:$0xff]
      %v7034 = vld [vmem:[%s21 + $0x1b8] sm:$0xff]
      %v7035 = vld [vmem:[%s21 + $0x1c0] sm:$0xff]
      %v7036 = vld [vmem:[%s21 + $0x1c8] sm:$0xff]
      %v7037 = vld [vmem:[%s21 + $0x1d0] sm:$0xff]
      %v7038 = vld [vmem:[%s21 + $0x1d8] sm:$0xff]
      %v7039 = vld [vmem:[%s21 + $0x1e0] sm:$0xff]
      %v7040 = vld [vmem:[%s21 + $0x1e8] sm:$0xff]
      %v7041 = vld [vmem:[%s21 + $0x1f0] sm:$0xff]
      %v7042 = vld [vmem:[%s21 + $0x1f8] sm:$0xff]
      %v7107 = vunpack.c.l.b16 %v6979
      %v7108 = vunpack.c.h.b16 %v6979
      %v7109 = vunpack.c.l.b16 %v6980
      %v7110 = vunpack.c.h.b16 %v6980
      %v7111 = vunpack.c.l.b16 %v6981
      %v7112 = vunpack.c.h.b16 %v6981
      %v7113 = vunpack.c.l.b16 %v6982
      %v7114 = vunpack.c.h.b16 %v6982
      %v7115 = vunpack.c.l.b16 %v6983
      %v7116 = vunpack.c.h.b16 %v6983
      %v7117 = vunpack.c.l.b16 %v6984
      %v7118 = vunpack.c.h.b16 %v6984
      %v7119 = vunpack.c.l.b16 %v6985
      %v7120 = vunpack.c.h.b16 %v6985
      %v7121 = vunpack.c.l.b16 %v6986
      %v7122 = vunpack.c.h.b16 %v6986
      %v7123 = vunpack.c.l.b16 %v6987
      %v7124 = vunpack.c.h.b16 %v6987
      %v7125 = vunpack.c.l.b16 %v6988
      %v7126 = vunpack.c.h.b16 %v6988
      %v7127 = vunpack.c.l.b16 %v6989
      %v7128 = vunpack.c.h.b16 %v6989
      %v7129 = vunpack.c.l.b16 %v6990
      %v7130 = vunpack.c.h.b16 %v6990
      %v7131 = vunpack.c.l.b16 %v6991
      %v7132 = vunpack.c.h.b16 %v6991
      %v7133 = vunpack.c.l.b16 %v6992
      %v7134 = vunpack.c.h.b16 %v6992
      %v7135 = vunpack.c.l.b16 %v6993
      %v7136 = vunpack.c.h.b16 %v6993
      %v7137 = vunpack.c.l.b16 %v6994
      %v7138 = vunpack.c.h.b16 %v6994
      %v7139 = vunpack.c.l.b16 %v6995
      %v7140 = vunpack.c.h.b16 %v6995
      %v7141 = vunpack.c.l.b16 %v6996
      %v7142 = vunpack.c.h.b16 %v6996
      %v7143 = vunpack.c.l.b16 %v6997
      %v7144 = vunpack.c.h.b16 %v6997
      %v7145 = vunpack.c.l.b16 %v6998
      %v7146 = vunpack.c.h.b16 %v6998
      %v7147 = vunpack.c.l.b16 %v6999
      %v7148 = vunpack.c.h.b16 %v6999
      %v7149 = vunpack.c.l.b16 %v7000
      %v7150 = vunpack.c.h.b16 %v7000
      %v7151 = vunpack.c.l.b16 %v7001
      %v7152 = vunpack.c.h.b16 %v7001
      %v7153 = vunpack.c.l.b16 %v7002
      %v7154 = vunpack.c.h.b16 %v7002
      %v7155 = vunpack.c.l.b16 %v7003
      %v7156 = vunpack.c.h.b16 %v7003
      %v7157 = vunpack.c.l.b16 %v7004
      %v7158 = vunpack.c.h.b16 %v7004
      %v7159 = vunpack.c.l.b16 %v7005
      %v7160 = vunpack.c.h.b16 %v7005
      %v7161 = vunpack.c.l.b16 %v7006
      %v7162 = vunpack.c.h.b16 %v7006
      %v7163 = vunpack.c.l.b16 %v7007
      %v7164 = vunpack.c.h.b16 %v7007
      %v7165 = vunpack.c.l.b16 %v7008
      %v7166 = vunpack.c.h.b16 %v7008
      %v7167 = vunpack.c.l.b16 %v7009
      %v7168 = vunpack.c.h.b16 %v7009
      %v7169 = vunpack.c.l.b16 %v7010
      %v7170 = vunpack.c.h.b16 %v7010
      %v7171 = vunpack.c.l.b16 %v7011
      %v7172 = vunpack.c.h.b16 %v7011
      %v7173 = vunpack.c.l.b16 %v7012
      %v7174 = vunpack.c.h.b16 %v7012
      %v7175 = vunpack.c.l.b16 %v7013
      %v7176 = vunpack.c.h.b16 %v7013
      %v7177 = vunpack.c.l.b16 %v7014
      %v7178 = vunpack.c.h.b16 %v7014
      %v7179 = vunpack.c.l.b16 %v7015
      %v7180 = vunpack.c.h.b16 %v7015
      %v7181 = vunpack.c.l.b16 %v7016
      %v7182 = vunpack.c.h.b16 %v7016
      %v7183 = vunpack.c.l.b16 %v7017
      %v7184 = vunpack.c.h.b16 %v7017
      %v7185 = vunpack.c.l.b16 %v7018
      %v7186 = vunpack.c.h.b16 %v7018
      %v7187 = vunpack.c.l.b16 %v7019
      %v7188 = vunpack.c.h.b16 %v7019
      %v7189 = vunpack.c.l.b16 %v7020
      %v7190 = vunpack.c.h.b16 %v7020
      %v7191 = vunpack.c.l.b16 %v7021
      %v7192 = vunpack.c.h.b16 %v7021
      %v7193 = vunpack.c.l.b16 %v7022
      %v7194 = vunpack.c.h.b16 %v7022
      %v7195 = vunpack.c.l.b16 %v7023
      %v7196 = vunpack.c.h.b16 %v7023
      %v7197 = vunpack.c.l.b16 %v7024
      %v7198 = vunpack.c.h.b16 %v7024
      %v7199 = vunpack.c.l.b16 %v7025
      %v7200 = vunpack.c.h.b16 %v7025
      %v7201 = vunpack.c.l.b16 %v7026
      %v7202 = vunpack.c.h.b16 %v7026
      %v7203 = vunpack.c.l.b16 %v7027
      %v7204 = vunpack.c.h.b16 %v7027
      %v7205 = vunpack.c.l.b16 %v7028
      %v7206 = vunpack.c.h.b16 %v7028
      %v7207 = vunpack.c.l.b16 %v7029
      %v7208 = vunpack.c.h.b16 %v7029
      %v7209 = vunpack.c.l.b16 %v7030
      %v7210 = vunpack.c.h.b16 %v7030
      %v7211 = vunpack.c.l.b16 %v7031
      %v7212 = vunpack.c.h.b16 %v7031
      %v7213 = vunpack.c.l.b16 %v7032
      %v7214 = vunpack.c.h.b16 %v7032
      %v7215 = vunpack.c.l.b16 %v7033
      %v7216 = vunpack.c.h.b16 %v7033
      %v7217 = vunpack.c.l.b16 %v7034
      %v7218 = vunpack.c.h.b16 %v7034
      %v7219 = vunpack.c.l.b16 %v7035
      %v7220 = vunpack.c.h.b16 %v7035
      %v7221 = vunpack.c.l.b16 %v7036
      %v7222 = vunpack.c.h.b16 %v7036
      %v7223 = vunpack.c.l.b16 %v7037
      %v7224 = vunpack.c.h.b16 %v7037
      %v7225 = vunpack.c.l.b16 %v7038
      %v7226 = vunpack.c.h.b16 %v7038
      %v7227 = vunpack.c.l.b16 %v7039
      %v7228 = vunpack.c.h.b16 %v7039
      %v7229 = vunpack.c.l.b16 %v7040
      %v7230 = vunpack.c.h.b16 %v7040
      %v7231 = vunpack.c.l.b16 %v7041
      %v7232 = vunpack.c.h.b16 %v7041
      %v7233 = vunpack.c.l.b16 %v7042
      %v7234 = vunpack.c.h.b16 %v7042
      %v7235 = vpack.c.b16 %v7109, %v7107
      %v7236 = vpack.c.b16 %v7110, %v7108
      %v7237 = vpack.c.b16 %v7113, %v7111
      %v7238 = vpack.c.b16 %v7114, %v7112
      %v7239 = vpack.c.b16 %v7117, %v7115
      %v7240 = vpack.c.b16 %v7118, %v7116
      %v7241 = vpack.c.b16 %v7121, %v7119
      %v7242 = vpack.c.b16 %v7122, %v7120
      %v7243 = vpack.c.b16 %v7125, %v7123
      %v7244 = vpack.c.b16 %v7126, %v7124
      %v7245 = vpack.c.b16 %v7129, %v7127
      %v7246 = vpack.c.b16 %v7130, %v7128
      %v7247 = vpack.c.b16 %v7133, %v7131
      %v7248 = vpack.c.b16 %v7134, %v7132
      %v7249 = vpack.c.b16 %v7137, %v7135
      %v7250 = vpack.c.b16 %v7138, %v7136
      %v7251 = vpack.c.b16 %v7141, %v7139
      %v7252 = vpack.c.b16 %v7142, %v7140
      %v7253 = vpack.c.b16 %v7145, %v7143
      %v7254 = vpack.c.b16 %v7146, %v7144
      %v7255 = vpack.c.b16 %v7149, %v7147
      %v7256 = vpack.c.b16 %v7150, %v7148
      %v7257 = vpack.c.b16 %v7153, %v7151
      %v7258 = vpack.c.b16 %v7154, %v7152
      %v7259 = vpack.c.b16 %v7157, %v7155
      %v7260 = vpack.c.b16 %v7158, %v7156
      %v7261 = vpack.c.b16 %v7161, %v7159
      %v7262 = vpack.c.b16 %v7162, %v7160
      %v7263 = vpack.c.b16 %v7165, %v7163
      %v7264 = vpack.c.b16 %v7166, %v7164
      %v7265 = vpack.c.b16 %v7169, %v7167
      %v7266 = vpack.c.b16 %v7170, %v7168
      %v7267 = vpack.c.b16 %v7173, %v7171
      %v7268 = vpack.c.b16 %v7174, %v7172
      %v7269 = vpack.c.b16 %v7177, %v7175
      %v7270 = vpack.c.b16 %v7178, %v7176
      %v7271 = vpack.c.b16 %v7181, %v7179
      %v7272 = vpack.c.b16 %v7182, %v7180
      %v7273 = vpack.c.b16 %v7185, %v7183
      %v7274 = vpack.c.b16 %v7186, %v7184
      %v7275 = vpack.c.b16 %v7189, %v7187
      %v7276 = vpack.c.b16 %v7190, %v7188
      %v7277 = vpack.c.b16 %v7193, %v7191
      %v7278 = vpack.c.b16 %v7194, %v7192
      %v7279 = vpack.c.b16 %v7197, %v7195
      %v7280 = vpack.c.b16 %v7198, %v7196
      %v7281 = vpack.c.b16 %v7201, %v7199
      %v7282 = vpack.c.b16 %v7202, %v7200
      %v7283 = vpack.c.b16 %v7205, %v7203
      %v7284 = vpack.c.b16 %v7206, %v7204
      %v7285 = vpack.c.b16 %v7209, %v7207
      %v7286 = vpack.c.b16 %v7210, %v7208
      %v7287 = vpack.c.b16 %v7213, %v7211
      %v7288 = vpack.c.b16 %v7214, %v7212
      %v7289 = vpack.c.b16 %v7217, %v7215
      %v7290 = vpack.c.b16 %v7218, %v7216
      %v7291 = vpack.c.b16 %v7221, %v7219
      %v7292 = vpack.c.b16 %v7222, %v7220
      %v7293 = vpack.c.b16 %v7225, %v7223
      %v7294 = vpack.c.b16 %v7226, %v7224
      %v7295 = vpack.c.b16 %v7229, %v7227
      %v7296 = vpack.c.b16 %v7230, %v7228
      %v7297 = vpack.c.b16 %v7233, %v7231
      %v7298 = vpack.c.b16 %v7234, %v7232
      %7363 = vmatprep.subr.bf16.mxu0 %v7250
      %7364 = vmatpush1.bf16.msra.mxu0 %v7249
      %7365 = vmatprep.subr.bf16.mxu0 %v7248
      %7366 = vmatpush1.bf16.msra.mxu0 %v7247
      %7367 = vmatprep.subr.bf16.mxu0 %v7246
      %7368 = vmatpush1.bf16.msra.mxu0 %v7245
      %7369 = vmatprep.subr.bf16.mxu0 %v7244
      %7370 = vmatpush1.bf16.msra.mxu0 %v7243
      %7371 = vmatprep.subr.bf16.mxu0 %v7242
      %7372 = vmatpush1.bf16.msra.mxu0 %v7241
      %7373 = vmatprep.subr.bf16.mxu0 %v7240
      %7374 = vmatpush1.bf16.msra.mxu0 %v7239
      %7375 = vmatprep.subr.bf16.mxu0 %v7238
      %7376 = vmatpush1.bf16.msra.mxu0 %v7237
      %7377 = vmatprep.subr.bf16.mxu0 %v7236
      %7378 = vmatpush1.bf16.msra.mxu0 %v7235
      %7379 = vmatprep.subr.bf16.mxu0 %v7266
      %7380 = vmatpush2.bf16.msra.mxu0 %v7265
      %7381 = vmatprep.subr.bf16.mxu0 %v7264
      %7382 = vmatpush2.bf16.msra.mxu0 %v7263
      %7383 = vmatprep.subr.bf16.mxu0 %v7262
      %7384 = vmatpush2.bf16.msra.mxu0 %v7261
      %7385 = vmatprep.subr.bf16.mxu0 %v7260
      %7386 = vmatpush2.bf16.msra.mxu0 %v7259
      %7387 = vmatprep.subr.bf16.mxu0 %v7258
      %7388 = vmatpush2.bf16.msra.mxu0 %v7257
      %7389 = vmatprep.subr.bf16.mxu0 %v7256
      %7390 = vmatpush2.bf16.msra.mxu0 %v7255
      %7391 = vmatprep.subr.bf16.mxu0 %v7254
      %7392 = vmatpush2.bf16.msra.mxu0 %v7253
      %7393 = vmatprep.subr.bf16.mxu0 %v7252
      %7394 = vmatpush2.bf16.msra.mxu0 %v7251
      %7395 = vmatprep.mubr.bf16.mxu0 %v6695
      %7396 = vmatmul.mubr.bf16.gmra.mxu0 %v6694
      %v7397 = vpop.f32.mrf.mxu0
      %v7398 = vadd.f32 %v6739, %v7397
      %v7399 = vpop.f32.mrf.mxu0
      %v7400 = vadd.f32 %v6743, %v7399
      %v7401 = vpop.f32.mrf.mxu0
      %v7402 = vadd.f32 %v6739, %v7401
      %v7403 = vpop.f32.mrf.mxu0
      %v7404 = vadd.f32 %v6743, %v7403
      %7405 = vmatprep.mubr.bf16.mxu0 %v6697
      %7406 = vmatmul.mubr.bf16.gmra.mxu0 %v6696
      %v7407 = vpop.f32.mrf.mxu0
      %v7408 = vadd.f32 %v6739, %v7407
      %v7409 = vpop.f32.mrf.mxu0
      %v7410 = vadd.f32 %v6743, %v7409
      %v7411 = vpop.f32.mrf.mxu0
      %v7412 = vadd.f32 %v6739, %v7411
      %v7413 = vpop.f32.mrf.mxu0
      %v7414 = vadd.f32 %v6743, %v7413
      %7415 = vmatprep.mubr.bf16.mxu0 %v6699
      %7416 = vmatmul.mubr.bf16.gmra.mxu0 %v6698
      %v7417 = vpop.f32.mrf.mxu0
      %v7418 = vadd.f32 %v6739, %v7417
      %v7419 = vpop.f32.mrf.mxu0
      %v7420 = vadd.f32 %v6743, %v7419
      %v7421 = vpop.f32.mrf.mxu0
      %v7422 = vadd.f32 %v6739, %v7421
      %v7423 = vpop.f32.mrf.mxu0
      %v7424 = vadd.f32 %v6743, %v7423
      %7425 = vmatprep.mubr.bf16.mxu0 %v6701
      %7426 = vmatmul.mubr.bf16.gmra.mxu0 %v6700
      %v7427 = vpop.f32.mrf.mxu0
      %v7428 = vadd.f32 %v6739, %v7427
      %v7429 = vpop.f32.mrf.mxu0
      %v7430 = vadd.f32 %v6743, %v7429
      %v7431 = vpop.f32.mrf.mxu0
      %v7432 = vadd.f32 %v6739, %v7431
      %v7433 = vpop.f32.mrf.mxu0
      %v7434 = vadd.f32 %v6743, %v7433
      %7435 = vdwg.mxu0
      %7436 = vmatprep.subr.bf16.mxu0 %v7282
      %7437 = vmatpush1.bf16.msra.mxu0 %v7281
      %7438 = vmatprep.subr.bf16.mxu0 %v7280
      %7439 = vmatpush1.bf16.msra.mxu0 %v7279
      %7440 = vmatprep.subr.bf16.mxu0 %v7278
      %7441 = vmatpush1.bf16.msra.mxu0 %v7277
      %7442 = vmatprep.subr.bf16.mxu0 %v7276
      %7443 = vmatpush1.bf16.msra.mxu0 %v7275
      %7444 = vmatprep.subr.bf16.mxu0 %v7274
      %7445 = vmatpush1.bf16.msra.mxu0 %v7273
      %7446 = vmatprep.subr.bf16.mxu0 %v7272
      %7447 = vmatpush1.bf16.msra.mxu0 %v7271
      %7448 = vmatprep.subr.bf16.mxu0 %v7270
      %7449 = vmatpush1.bf16.msra.mxu0 %v7269
      %7450 = vmatprep.subr.bf16.mxu0 %v7268
      %7451 = vmatpush1.bf16.msra.mxu0 %v7267
      %7452 = vmatprep.subr.bf16.mxu0 %v7298
      %7453 = vmatpush2.bf16.msra.mxu0 %v7297
      %7454 = vmatprep.subr.bf16.mxu0 %v7296
      %7455 = vmatpush2.bf16.msra.mxu0 %v7295
      %7456 = vmatprep.subr.bf16.mxu0 %v7294
      %7457 = vmatpush2.bf16.msra.mxu0 %v7293
      %7458 = vmatprep.subr.bf16.mxu0 %v7292
      %7459 = vmatpush2.bf16.msra.mxu0 %v7291
      %7460 = vmatprep.subr.bf16.mxu0 %v7290
      %7461 = vmatpush2.bf16.msra.mxu0 %v7289
      %7462 = vmatprep.subr.bf16.mxu0 %v7288
      %7463 = vmatpush2.bf16.msra.mxu0 %v7287
      %7464 = vmatprep.subr.bf16.mxu0 %v7286
      %7465 = vmatpush2.bf16.msra.mxu0 %v7285
      %7466 = vmatprep.subr.bf16.mxu0 %v7284
      %7467 = vmatpush2.bf16.msra.mxu0 %v7283
      %7468 = vmatprep.mubr.bf16.mxu0 %v6687
      %7469 = vmatmul.mubr.bf16.gmra.mxu0 %v6686
      %v7470 = vpop.f32.mrf.mxu0
      %v7471 = vadd.f32 %v7398, %v7470
      %v7472 = vpop.f32.mrf.mxu0
      %v7473 = vadd.f32 %v7400, %v7472
      %v7474 = vpop.f32.mrf.mxu0
      %v7475 = vadd.f32 %v7402, %v7474
      %v7476 = vpop.f32.mrf.mxu0
      %v7477 = vadd.f32 %v7404, %v7476
      %7478 = vmatprep.mubr.bf16.mxu0 %v6689
      %7479 = vmatmul.mubr.bf16.gmra.mxu0 %v6688
      %v7480 = vpop.f32.mrf.mxu0
      %v7481 = vadd.f32 %v7408, %v7480
      %v7482 = vpop.f32.mrf.mxu0
      %v7483 = vadd.f32 %v7410, %v7482
      %v7484 = vpop.f32.mrf.mxu0
      %v7485 = vadd.f32 %v7412, %v7484
      %v7486 = vpop.f32.mrf.mxu0
      %v7487 = vadd.f32 %v7414, %v7486
      %7488 = vmatprep.mubr.bf16.mxu0 %v6691
      %7489 = vmatmul.mubr.bf16.gmra.mxu0 %v6690
      %v7490 = vpop.f32.mrf.mxu0
      %v7491 = vadd.f32 %v7418, %v7490
      %v7492 = vpop.f32.mrf.mxu0
      %v7493 = vadd.f32 %v7420, %v7492
      %v7494 = vpop.f32.mrf.mxu0
      %v7495 = vadd.f32 %v7422, %v7494
      %v7496 = vpop.f32.mrf.mxu0
      %v7497 = vadd.f32 %v7424, %v7496
      %7498 = vmatprep.mubr.bf16.mxu0 %v6693
      %7499 = vmatmul.mubr.bf16.gmra.mxu0 %v6692
      %v7500 = vpop.f32.mrf.mxu0
      %v7501 = vadd.f32 %v7428, %v7500
      %v7502 = vpop.f32.mrf.mxu0
      %v7503 = vadd.f32 %v7430, %v7502
      %v7504 = vpop.f32.mrf.mxu0
      %v7505 = vadd.f32 %v7432, %v7504
      %v7506 = vpop.f32.mrf.mxu0
      %v7507 = vadd.f32 %v7434, %v7506
      %7508 = vdwg.mxu0
      %v7509 = vmax.f32 %v6941, 0.0
      %v7510 = vmax.f32 %v6943, 0.0
      %v7511 = vmax.f32 %v6945, 0.0
      %v7512 = vmax.f32 %v6947, 0.0
      %v7513 = vmax.f32 %v6951, 0.0
      %v7514 = vmax.f32 %v6953, 0.0
      %v7515 = vmax.f32 %v6955, 0.0
      %v7516 = vmax.f32 %v6957, 0.0
      %v7517 = vmax.f32 %v6961, 0.0
      %v7518 = vmax.f32 %v6963, 0.0
      %v7519 = vmax.f32 %v6965, 0.0
      %v7520 = vmax.f32 %v6967, 0.0
      %v7521 = vmax.f32 %v6971, 0.0
      %v7522 = vmax.f32 %v6973, 0.0
      %v7523 = vmax.f32 %v6975, 0.0
      %v7524 = vmax.f32 %v6977, 0.0
      %v7525 = vmax.f32 %v7471, 0.0
      %v7526 = vmax.f32 %v7473, 0.0
      %v7527 = vmax.f32 %v7475, 0.0
      %v7528 = vmax.f32 %v7477, 0.0
      %v7529 = vmax.f32 %v7481, 0.0
      %v7530 = vmax.f32 %v7483, 0.0
      %v7531 = vmax.f32 %v7485, 0.0
      %v7532 = vmax.f32 %v7487, 0.0
      %v7533 = vmax.f32 %v7491, 0.0
      %v7534 = vmax.f32 %v7493, 0.0
      %v7535 = vmax.f32 %v7495, 0.0
      %v7536 = vmax.f32 %v7497, 0.0
      %v7537 = vmax.f32 %v7501, 0.0
      %v7538 = vmax.f32 %v7503, 0.0
      %v7539 = vmax.f32 %v7505, 0.0
      %v7540 = vmax.f32 %v7507, 0.0
      %v7541 = vpack.c.bf16 %v7525, %v7509
      %v7542 = vpack.c.bf16 %v7526, %v7510
      %v7543 = vpack.c.bf16 %v7527, %v7511
      %v7544 = vpack.c.bf16 %v7528, %v7512
      %v7545 = vpack.c.bf16 %v7529, %v7513
      %v7546 = vpack.c.bf16 %v7530, %v7514
      %v7547 = vpack.c.bf16 %v7531, %v7515
      %v7548 = vpack.c.bf16 %v7532, %v7516
      %v7549 = vpack.c.bf16 %v7533, %v7517
      %v7550 = vpack.c.bf16 %v7534, %v7518
      %v7551 = vpack.c.bf16 %v7535, %v7519
      %v7552 = vpack.c.bf16 %v7536, %v7520
      %v7553 = vpack.c.bf16 %v7537, %v7521
      %v7554 = vpack.c.bf16 %v7538, %v7522
      %v7555 = vpack.c.bf16 %v7539, %v7523
      %v7556 = vpack.c.bf16 %v7540, %v7524
      %v7557 = vpack.c.bf16 %v7511, %v7525
      %v7558 = vpack.c.bf16 %v7512, %v7526
      %v7559 = vpack.c.bf16 %v7513, %v7527
      %v7560 = vpack.c.bf16 %v7514, %v7528
      %v7561 = vpack.c.bf16 %v7515, %v7529
      %v7562 = vpack.c.bf16 %v7516, %v7530
      %v7563 = vpack.c.bf16 %v7517, %v7531
      %v7564 = vpack.c.bf16 %v7518, %v7532
      %v7565 = vpack.c.bf16 %v7519, %v7533
      %v7566 = vpack.c.bf16 %v7520, %v7534
      %v7567 = vpack.c.bf16 %v7521, %v7535
      %v7568 = vpack.c.bf16 %v7522, %v7536
      %v7569 = vpack.c.bf16 %v7523, %v7537
      %v7570 = vpack.c.bf16 %v7524, %v7538
      %v7571 = vpack.c.bf16 0.0, %v7539
      %v7572 = vpack.c.bf16 0.0, %v7540
      %v7573 = vld [vmem:[%s23] sm:$0xf]
      %v7574 = vld [vmem:[%s23 + $0x4] sm:$0xf]
      %v7575 = vld [vmem:[%s23 + $0x8] sm:$0xf]
      %v7576 = vld [vmem:[%s23 + $0xc] sm:$0xf]
      %v7577 = vld [vmem:[%s23 + $0x10] sm:$0xf]
      %v7578 = vld [vmem:[%s23 + $0x14] sm:$0xf]
      %v7579 = vld [vmem:[%s23 + $0x18] sm:$0xf]
      %v7580 = vld [vmem:[%s23 + $0x1c] sm:$0xf]
      %v7581 = vld [vmem:[%s23 + $0x20] sm:$0xf]
      %v7582 = vld [vmem:[%s23 + $0x24] sm:$0xf]
      %v7583 = vld [vmem:[%s23 + $0x28] sm:$0xf]
      %v7584 = vld [vmem:[%s23 + $0x2c] sm:$0xf]
      %v7585 = vld [vmem:[%s23 + $0x30] sm:$0xf]
      %v7586 = vld [vmem:[%s23 + $0x34] sm:$0xf]
      %v7587 = vld [vmem:[%s23 + $0x38] sm:$0xf]
      %v7588 = vld [vmem:[%s23 + $0x3c] sm:$0xf]
      %v7589 = vld [vmem:[%s23 + $0x40] sm:$0xf]
      %v7590 = vld [vmem:[%s23 + $0x44] sm:$0xf]
      %v7591 = vld [vmem:[%s23 + $0x48] sm:$0xf]
      %v7592 = vld [vmem:[%s23 + $0x4c] sm:$0xf]
      %v7593 = vld [vmem:[%s23 + $0x50] sm:$0xf]
      %v7594 = vld [vmem:[%s23 + $0x54] sm:$0xf]
      %v7595 = vld [vmem:[%s23 + $0x58] sm:$0xf]
      %v7596 = vld [vmem:[%s23 + $0x5c] sm:$0xf]
      %v7597 = vld [vmem:[%s23 + $0x60] sm:$0xf]
      %v7598 = vld [vmem:[%s23 + $0x64] sm:$0xf]
      %v7599 = vld [vmem:[%s23 + $0x68] sm:$0xf]
      %v7600 = vld [vmem:[%s23 + $0x6c] sm:$0xf]
      %v7601 = vld [vmem:[%s23 + $0x70] sm:$0xf]
      %v7602 = vld [vmem:[%s23 + $0x74] sm:$0xf]
      %v7603 = vld [vmem:[%s23 + $0x78] sm:$0xf]
      %v7604 = vld [vmem:[%s23 + $0x7c] sm:$0xf]
      %v7605 = vld [vmem:[%s25] sm:$0x1]
      %v7607 = vlaneseq
      %v7608 = vshrl.u32 %v7607, 7
      %v7609 = vsub.s32 0, %v7608
      %v7610 = vrot.slane %v7605, %v7609
      %v7644 = vunpack.c.l.b16 %v7573
      %v7645 = vunpack.c.l.b16 %v7574
      %v7646 = vunpack.c.l.b16 %v7575
      %v7647 = vunpack.c.l.b16 %v7576
      %v7648 = vunpack.c.l.b16 %v7577
      %v7649 = vunpack.c.l.b16 %v7578
      %v7650 = vunpack.c.l.b16 %v7579
      %v7651 = vunpack.c.l.b16 %v7580
      %v7652 = vunpack.c.l.b16 %v7581
      %v7653 = vunpack.c.l.b16 %v7582
      %v7654 = vunpack.c.l.b16 %v7583
      %v7655 = vunpack.c.l.b16 %v7584
      %v7656 = vunpack.c.l.b16 %v7585
      %v7657 = vunpack.c.l.b16 %v7586
      %v7658 = vunpack.c.l.b16 %v7587
      %v7659 = vunpack.c.l.b16 %v7588
      %v7660 = vunpack.c.l.b16 %v7589
      %v7661 = vunpack.c.l.b16 %v7590
      %v7662 = vunpack.c.l.b16 %v7591
      %v7663 = vunpack.c.l.b16 %v7592
      %v7664 = vunpack.c.l.b16 %v7593
      %v7665 = vunpack.c.l.b16 %v7594
      %v7666 = vunpack.c.l.b16 %v7595
      %v7667 = vunpack.c.l.b16 %v7596
      %v7668 = vunpack.c.l.b16 %v7597
      %v7669 = vunpack.c.l.b16 %v7598
      %v7670 = vunpack.c.l.b16 %v7599
      %v7671 = vunpack.c.l.b16 %v7600
      %v7672 = vunpack.c.l.b16 %v7601
      %v7673 = vunpack.c.l.b16 %v7602
      %v7674 = vunpack.c.l.b16 %v7603
      %v7675 = vunpack.c.l.b16 %v7604
      %v7676 = vpack.c.b16 %v7645, %v7644
      %v7677 = vpack.c.b16 %v7647, %v7646
      %v7678 = vpack.c.b16 %v7649, %v7648
      %v7679 = vpack.c.b16 %v7651, %v7650
      %v7680 = vpack.c.b16 %v7653, %v7652
      %v7681 = vpack.c.b16 %v7655, %v7654
      %v7682 = vpack.c.b16 %v7657, %v7656
      %v7683 = vpack.c.b16 %v7659, %v7658
      %v7684 = vpack.c.b16 %v7661, %v7660
      %v7685 = vpack.c.b16 %v7663, %v7662
      %v7686 = vpack.c.b16 %v7665, %v7664
      %v7687 = vpack.c.b16 %v7667, %v7666
      %v7688 = vpack.c.b16 %v7669, %v7668
      %v7689 = vpack.c.b16 %v7671, %v7670
      %v7690 = vpack.c.b16 %v7673, %v7672
      %v7691 = vpack.c.b16 %v7675, %v7674
      %7708 = vmatprep.subr.bf16.mxu0 0
      %7709 = vmatpush1.bf16.msra.mxu0 %v7683
      %7710 = vmatprep.subr.bf16.mxu0 0
      %7711 = vmatpush1.bf16.msra.mxu0 %v7682
      %7712 = vmatprep.subr.bf16.mxu0 0
      %7713 = vmatpush1.bf16.msra.mxu0 %v7681
      %7714 = vmatprep.subr.bf16.mxu0 0
      %7715 = vmatpush1.bf16.msra.mxu0 %v7680
      %7716 = vmatprep.subr.bf16.mxu0 0
      %7717 = vmatpush1.bf16.msra.mxu0 %v7679
      %7718 = vmatprep.subr.bf16.mxu0 0
      %7719 = vmatpush1.bf16.msra.mxu0 %v7678
      %7720 = vmatprep.subr.bf16.mxu0 0
      %7721 = vmatpush1.bf16.msra.mxu0 %v7677
      %7722 = vmatprep.subr.bf16.mxu0 0
      %7723 = vmatpush1.bf16.msra.mxu0 %v7676
      %7724 = vmatprep.subr.bf16.mxu0 0
      %7725 = vmatpush2.bf16.msra.mxu0 %v7691
      %7726 = vmatprep.subr.bf16.mxu0 0
      %7727 = vmatpush2.bf16.msra.mxu0 %v7690
      %7728 = vmatprep.subr.bf16.mxu0 0
      %7729 = vmatpush2.bf16.msra.mxu0 %v7689
      %7730 = vmatprep.subr.bf16.mxu0 0
      %7731 = vmatpush2.bf16.msra.mxu0 %v7688
      %7732 = vmatprep.subr.bf16.mxu0 0
      %7733 = vmatpush2.bf16.msra.mxu0 %v7687
      %7734 = vmatprep.subr.bf16.mxu0 0
      %7735 = vmatpush2.bf16.msra.mxu0 %v7686
      %7736 = vmatprep.subr.bf16.mxu0 0
      %7737 = vmatpush2.bf16.msra.mxu0 %v7685
      %7738 = vmatprep.subr.bf16.mxu0 0
      %7739 = vmatpush2.bf16.msra.mxu0 %v7684
      %7740 = vmatprep.mubr.bf16.mxu0 %v7542
      %7741 = vmatmul.mubr.bf16.gmra.mxu0 %v7541
      %v7742 = vpop.f32.mrf.mxu0
      %v7743 = vadd.f32 %v7610, %v7742
      %v7744 = vpop.f32.mrf.mxu0
      %v7745 = vpop.f32.mrf.mxu0
      %v7746 = vadd.f32 %v7610, %v7745
      %v7747 = vpop.f32.mrf.mxu0
      %7748 = vmatprep.mubr.bf16.mxu0 %v7544
      %7749 = vmatmul.mubr.bf16.gmra.mxu0 %v7543
      %v7750 = vpop.f32.mrf.mxu0
      %v7751 = vadd.f32 %v7610, %v7750
      %v7752 = vpop.f32.mrf.mxu0
      %v7753 = vpop.f32.mrf.mxu0
      %v7754 = vadd.f32 %v7610, %v7753
      %v7755 = vpop.f32.mrf.mxu0
      %7756 = vmatprep.mubr.bf16.mxu0 %v7546
      %7757 = vmatmul.mubr.bf16.gmra.mxu0 %v7545
      %v7758 = vpop.f32.mrf.mxu0
      %v7759 = vadd.f32 %v7610, %v7758
      %v7760 = vpop.f32.mrf.mxu0
      %v7761 = vpop.f32.mrf.mxu0
      %v7762 = vadd.f32 %v7610, %v7761
      %v7763 = vpop.f32.mrf.mxu0
      %7764 = vmatprep.mubr.bf16.mxu0 %v7548
      %7765 = vmatmul.mubr.bf16.gmra.mxu0 %v7547
      %v7766 = vpop.f32.mrf.mxu0
      %v7767 = vadd.f32 %v7610, %v7766
      %v7768 = vpop.f32.mrf.mxu0
      %v7769 = vpop.f32.mrf.mxu0
      %v7770 = vadd.f32 %v7610, %v7769
      %v7771 = vpop.f32.mrf.mxu0
      %7772 = vmatprep.mubr.bf16.mxu0 %v7550
      %7773 = vmatmul.mubr.bf16.gmra.mxu0 %v7549
      %v7774 = vpop.f32.mrf.mxu0
      %v7775 = vadd.f32 %v7610, %v7774
      %v7776 = vpop.f32.mrf.mxu0
      %v7777 = vpop.f32.mrf.mxu0
      %v7778 = vadd.f32 %v7610, %v7777
      %v7779 = vpop.f32.mrf.mxu0
      %7780 = vmatprep.mubr.bf16.mxu0 %v7552
      %7781 = vmatmul.mubr.bf16.gmra.mxu0 %v7551
      %v7782 = vpop.f32.mrf.mxu0
      %v7783 = vadd.f32 %v7610, %v7782
      %v7784 = vpop.f32.mrf.mxu0
      %v7785 = vpop.f32.mrf.mxu0
      %v7786 = vadd.f32 %v7610, %v7785
      %v7787 = vpop.f32.mrf.mxu0
      %7788 = vmatprep.mubr.bf16.mxu0 %v7554
      %7789 = vmatmul.mubr.bf16.gmra.mxu0 %v7553
      %v7790 = vpop.f32.mrf.mxu0
      %v7791 = vadd.f32 %v7610, %v7790
      %v7792 = vpop.f32.mrf.mxu0
      %v7793 = vpop.f32.mrf.mxu0
      %v7794 = vadd.f32 %v7610, %v7793
      %v7795 = vpop.f32.mrf.mxu0
      %7796 = vmatprep.mubr.bf16.mxu0 %v7556
      %7797 = vmatmul.mubr.bf16.gmra.mxu0 %v7555
      %v7798 = vpop.f32.mrf.mxu0
      %v7799 = vadd.f32 %v7610, %v7798
      %v7800 = vpop.f32.mrf.mxu0
      %v7801 = vpop.f32.mrf.mxu0
      %v7802 = vadd.f32 %v7610, %v7801
      %v7803 = vpop.f32.mrf.mxu0
      %7804 = vdwg.mxu0
      %v7805 = vld [vmem:[%s24] sm:$0xf]
      %v7806 = vld [vmem:[%s24 + $0x4] sm:$0xf]
      %v7807 = vld [vmem:[%s24 + $0x8] sm:$0xf]
      %v7808 = vld [vmem:[%s24 + $0xc] sm:$0xf]
      %v7809 = vld [vmem:[%s24 + $0x10] sm:$0xf]
      %v7810 = vld [vmem:[%s24 + $0x14] sm:$0xf]
      %v7811 = vld [vmem:[%s24 + $0x18] sm:$0xf]
      %v7812 = vld [vmem:[%s24 + $0x1c] sm:$0xf]
      %v7813 = vld [vmem:[%s24 + $0x20] sm:$0xf]
      %v7814 = vld [vmem:[%s24 + $0x24] sm:$0xf]
      %v7815 = vld [vmem:[%s24 + $0x28] sm:$0xf]
      %v7816 = vld [vmem:[%s24 + $0x2c] sm:$0xf]
      %v7817 = vld [vmem:[%s24 + $0x30] sm:$0xf]
      %v7818 = vld [vmem:[%s24 + $0x34] sm:$0xf]
      %v7819 = vld [vmem:[%s24 + $0x38] sm:$0xf]
      %v7820 = vld [vmem:[%s24 + $0x3c] sm:$0xf]
      %v7821 = vld [vmem:[%s24 + $0x40] sm:$0xf]
      %v7822 = vld [vmem:[%s24 + $0x44] sm:$0xf]
      %v7823 = vld [vmem:[%s24 + $0x48] sm:$0xf]
      %v7824 = vld [vmem:[%s24 + $0x4c] sm:$0xf]
      %v7825 = vld [vmem:[%s24 + $0x50] sm:$0xf]
      %v7826 = vld [vmem:[%s24 + $0x54] sm:$0xf]
      %v7827 = vld [vmem:[%s24 + $0x58] sm:$0xf]
      %v7828 = vld [vmem:[%s24 + $0x5c] sm:$0xf]
      %v7829 = vld [vmem:[%s24 + $0x60] sm:$0xf]
      %v7830 = vld [vmem:[%s24 + $0x64] sm:$0xf]
      %v7831 = vld [vmem:[%s24 + $0x68] sm:$0xf]
      %v7832 = vld [vmem:[%s24 + $0x6c] sm:$0xf]
      %v7833 = vld [vmem:[%s24 + $0x70] sm:$0xf]
      %v7834 = vld [vmem:[%s24 + $0x74] sm:$0xf]
      %v7835 = vld [vmem:[%s24 + $0x78] sm:$0xf]
      %v7836 = vld [vmem:[%s24 + $0x7c] sm:$0xf]
      %v7837 = vld [vmem:[%s24 + $0x80] sm:$0xf]
      %v7838 = vld [vmem:[%s24 + $0x84] sm:$0xf]
      %v7839 = vld [vmem:[%s24 + $0x88] sm:$0xf]
      %v7840 = vld [vmem:[%s24 + $0x8c] sm:$0xf]
      %v7841 = vld [vmem:[%s24 + $0x90] sm:$0xf]
      %v7842 = vld [vmem:[%s24 + $0x94] sm:$0xf]
      %v7843 = vld [vmem:[%s24 + $0x98] sm:$0xf]
      %v7844 = vld [vmem:[%s24 + $0x9c] sm:$0xf]
      %v7845 = vld [vmem:[%s24 + $0xa0] sm:$0xf]
      %v7846 = vld [vmem:[%s24 + $0xa4] sm:$0xf]
      %v7847 = vld [vmem:[%s24 + $0xa8] sm:$0xf]
      %v7848 = vld [vmem:[%s24 + $0xac] sm:$0xf]
      %v7849 = vld [vmem:[%s24 + $0xb0] sm:$0xf]
      %v7850 = vld [vmem:[%s24 + $0xb4] sm:$0xf]
      %v7851 = vld [vmem:[%s24 + $0xb8] sm:$0xf]
      %v7852 = vld [vmem:[%s24 + $0xbc] sm:$0xf]
      %v7853 = vld [vmem:[%s24 + $0xc0] sm:$0xf]
      %v7854 = vld [vmem:[%s24 + $0xc4] sm:$0xf]
      %v7855 = vld [vmem:[%s24 + $0xc8] sm:$0xf]
      %v7856 = vld [vmem:[%s24 + $0xcc] sm:$0xf]
      %v7857 = vld [vmem:[%s24 + $0xd0] sm:$0xf]
      %v7858 = vld [vmem:[%s24 + $0xd4] sm:$0xf]
      %v7859 = vld [vmem:[%s24 + $0xd8] sm:$0xf]
      %v7860 = vld [vmem:[%s24 + $0xdc] sm:$0xf]
      %v7861 = vld [vmem:[%s24 + $0xe0] sm:$0xf]
      %v7862 = vld [vmem:[%s24 + $0xe4] sm:$0xf]
      %v7863 = vld [vmem:[%s24 + $0xe8] sm:$0xf]
      %v7864 = vld [vmem:[%s24 + $0xec] sm:$0xf]
      %v7865 = vld [vmem:[%s24 + $0xf0] sm:$0xf]
      %v7866 = vld [vmem:[%s24 + $0xf4] sm:$0xf]
      %v7867 = vld [vmem:[%s24 + $0xf8] sm:$0xf]
      %v7868 = vld [vmem:[%s24 + $0xfc] sm:$0xf]
      %v7933 = vunpack.c.l.b16 %v7805
      %v7934 = vunpack.c.l.b16 %v7806
      %v7935 = vunpack.c.l.b16 %v7807
      %v7936 = vunpack.c.l.b16 %v7808
      %v7937 = vunpack.c.l.b16 %v7809
      %v7938 = vunpack.c.l.b16 %v7810
      %v7939 = vunpack.c.l.b16 %v7811
      %v7940 = vunpack.c.l.b16 %v7812
      %v7941 = vunpack.c.l.b16 %v7813
      %v7942 = vunpack.c.l.b16 %v7814
      %v7943 = vunpack.c.l.b16 %v7815
      %v7944 = vunpack.c.l.b16 %v7816
      %v7945 = vunpack.c.l.b16 %v7817
      %v7946 = vunpack.c.l.b16 %v7818
      %v7947 = vunpack.c.l.b16 %v7819
      %v7948 = vunpack.c.l.b16 %v7820
      %v7949 = vunpack.c.l.b16 %v7821
      %v7950 = vunpack.c.l.b16 %v7822
      %v7951 = vunpack.c.l.b16 %v7823
      %v7952 = vunpack.c.l.b16 %v7824
      %v7953 = vunpack.c.l.b16 %v7825
      %v7954 = vunpack.c.l.b16 %v7826
      %v7955 = vunpack.c.l.b16 %v7827
      %v7956 = vunpack.c.l.b16 %v7828
      %v7957 = vunpack.c.l.b16 %v7829
      %v7958 = vunpack.c.l.b16 %v7830
      %v7959 = vunpack.c.l.b16 %v7831
      %v7960 = vunpack.c.l.b16 %v7832
      %v7961 = vunpack.c.l.b16 %v7833
      %v7962 = vunpack.c.l.b16 %v7834
      %v7963 = vunpack.c.l.b16 %v7835
      %v7964 = vunpack.c.l.b16 %v7836
      %v7965 = vunpack.c.l.b16 %v7837
      %v7966 = vunpack.c.l.b16 %v7838
      %v7967 = vunpack.c.l.b16 %v7839
      %v7968 = vunpack.c.l.b16 %v7840
      %v7969 = vunpack.c.l.b16 %v7841
      %v7970 = vunpack.c.l.b16 %v7842
      %v7971 = vunpack.c.l.b16 %v7843
      %v7972 = vunpack.c.l.b16 %v7844
      %v7973 = vunpack.c.l.b16 %v7845
      %v7974 = vunpack.c.l.b16 %v7846
      %v7975 = vunpack.c.l.b16 %v7847
      %v7976 = vunpack.c.l.b16 %v7848
      %v7977 = vunpack.c.l.b16 %v7849
      %v7978 = vunpack.c.l.b16 %v7850
      %v7979 = vunpack.c.l.b16 %v7851
      %v7980 = vunpack.c.l.b16 %v7852
      %v7981 = vunpack.c.l.b16 %v7853
      %v7982 = vunpack.c.l.b16 %v7854
      %v7983 = vunpack.c.l.b16 %v7855
      %v7984 = vunpack.c.l.b16 %v7856
      %v7985 = vunpack.c.l.b16 %v7857
      %v7986 = vunpack.c.l.b16 %v7858
      %v7987 = vunpack.c.l.b16 %v7859
      %v7988 = vunpack.c.l.b16 %v7860
      %v7989 = vunpack.c.l.b16 %v7861
      %v7990 = vunpack.c.l.b16 %v7862
      %v7991 = vunpack.c.l.b16 %v7863
      %v7992 = vunpack.c.l.b16 %v7864
      %v7993 = vunpack.c.l.b16 %v7865
      %v7994 = vunpack.c.l.b16 %v7866
      %v7995 = vunpack.c.l.b16 %v7867
      %v7996 = vunpack.c.l.b16 %v7868
      %v7997 = vpack.c.b16 %v7934, %v7933
      %v7998 = vpack.c.b16 %v7936, %v7935
      %v7999 = vpack.c.b16 %v7938, %v7937
      %v8000 = vpack.c.b16 %v7940, %v7939
      %v8001 = vpack.c.b16 %v7942, %v7941
      %v8002 = vpack.c.b16 %v7944, %v7943
      %v8003 = vpack.c.b16 %v7946, %v7945
      %v8004 = vpack.c.b16 %v7948, %v7947
      %v8005 = vpack.c.b16 %v7950, %v7949
      %v8006 = vpack.c.b16 %v7952, %v7951
      %v8007 = vpack.c.b16 %v7954, %v7953
      %v8008 = vpack.c.b16 %v7956, %v7955
      %v8009 = vpack.c.b16 %v7958, %v7957
      %v8010 = vpack.c.b16 %v7960, %v7959
      %v8011 = vpack.c.b16 %v7962, %v7961
      %v8012 = vpack.c.b16 %v7964, %v7963
      %v8013 = vpack.c.b16 %v7966, %v7965
      %v8014 = vpack.c.b16 %v7968, %v7967
      %v8015 = vpack.c.b16 %v7970, %v7969
      %v8016 = vpack.c.b16 %v7972, %v7971
      %v8017 = vpack.c.b16 %v7974, %v7973
      %v8018 = vpack.c.b16 %v7976, %v7975
      %v8019 = vpack.c.b16 %v7978, %v7977
      %v8020 = vpack.c.b16 %v7980, %v7979
      %v8021 = vpack.c.b16 %v7982, %v7981
      %v8022 = vpack.c.b16 %v7984, %v7983
      %v8023 = vpack.c.b16 %v7986, %v7985
      %v8024 = vpack.c.b16 %v7988, %v7987
      %v8025 = vpack.c.b16 %v7990, %v7989
      %v8026 = vpack.c.b16 %v7992, %v7991
      %v8027 = vpack.c.b16 %v7994, %v7993
      %v8028 = vpack.c.b16 %v7996, %v7995
      %8061 = vmatprep.subr.bf16.mxu0 0
      %8062 = vmatpush1.bf16.msra.mxu0 %v8004
      %8063 = vmatprep.subr.bf16.mxu0 0
      %8064 = vmatpush1.bf16.msra.mxu0 %v8003
      %8065 = vmatprep.subr.bf16.mxu0 0
      %8066 = vmatpush1.bf16.msra.mxu0 %v8002
      %8067 = vmatprep.subr.bf16.mxu0 0
      %8068 = vmatpush1.bf16.msra.mxu0 %v8001
      %8069 = vmatprep.subr.bf16.mxu0 0
      %8070 = vmatpush1.bf16.msra.mxu0 %v8000
      %8071 = vmatprep.subr.bf16.mxu0 0
      %8072 = vmatpush1.bf16.msra.mxu0 %v7999
      %8073 = vmatprep.subr.bf16.mxu0 0
      %8074 = vmatpush1.bf16.msra.mxu0 %v7998
      %8075 = vmatprep.subr.bf16.mxu0 0
      %8076 = vmatpush1.bf16.msra.mxu0 %v7997
      %8077 = vmatprep.subr.bf16.mxu0 0
      %8078 = vmatpush2.bf16.msra.mxu0 %v8012
      %8079 = vmatprep.subr.bf16.mxu0 0
      %8080 = vmatpush2.bf16.msra.mxu0 %v8011
      %8081 = vmatprep.subr.bf16.mxu0 0
      %8082 = vmatpush2.bf16.msra.mxu0 %v8010
      %8083 = vmatprep.subr.bf16.mxu0 0
      %8084 = vmatpush2.bf16.msra.mxu0 %v8009
      %8085 = vmatprep.subr.bf16.mxu0 0
      %8086 = vmatpush2.bf16.msra.mxu0 %v8008
      %8087 = vmatprep.subr.bf16.mxu0 0
      %8088 = vmatpush2.bf16.msra.mxu0 %v8007
      %8089 = vmatprep.subr.bf16.mxu0 0
      %8090 = vmatpush2.bf16.msra.mxu0 %v8006
      %8091 = vmatprep.subr.bf16.mxu0 0
      %8092 = vmatpush2.bf16.msra.mxu0 %v8005
      %8093 = vmatprep.mubr.bf16.mxu0 %v7558
      %8094 = vmatmul.mubr.bf16.gmra.mxu0 %v7557
      %v8095 = vpop.f32.mrf.mxu0
      %v8096 = vadd.f32 %v7610, %v8095
      %v8097 = vpop.f32.mrf.mxu0
      %v8098 = vpop.f32.mrf.mxu0
      %v8099 = vadd.f32 %v7610, %v8098
      %v8100 = vpop.f32.mrf.mxu0
      %8101 = vmatprep.mubr.bf16.mxu0 %v7560
      %8102 = vmatmul.mubr.bf16.gmra.mxu0 %v7559
      %v8103 = vpop.f32.mrf.mxu0
      %v8104 = vadd.f32 %v7610, %v8103
      %v8105 = vpop.f32.mrf.mxu0
      %v8106 = vpop.f32.mrf.mxu0
      %v8107 = vadd.f32 %v7610, %v8106
      %v8108 = vpop.f32.mrf.mxu0
      %8109 = vmatprep.mubr.bf16.mxu0 %v7562
      %8110 = vmatmul.mubr.bf16.gmra.mxu0 %v7561
      %v8111 = vpop.f32.mrf.mxu0
      %v8112 = vadd.f32 %v7610, %v8111
      %v8113 = vpop.f32.mrf.mxu0
      %v8114 = vpop.f32.mrf.mxu0
      %v8115 = vadd.f32 %v7610, %v8114
      %v8116 = vpop.f32.mrf.mxu0
      %8117 = vmatprep.mubr.bf16.mxu0 %v7564
      %8118 = vmatmul.mubr.bf16.gmra.mxu0 %v7563
      %v8119 = vpop.f32.mrf.mxu0
      %v8120 = vadd.f32 %v7610, %v8119
      %v8121 = vpop.f32.mrf.mxu0
      %v8122 = vpop.f32.mrf.mxu0
      %v8123 = vadd.f32 %v7610, %v8122
      %v8124 = vpop.f32.mrf.mxu0
      %8125 = vmatprep.mubr.bf16.mxu0 %v7566
      %8126 = vmatmul.mubr.bf16.gmra.mxu0 %v7565
      %v8127 = vpop.f32.mrf.mxu0
      %v8128 = vadd.f32 %v7610, %v8127
      %v8129 = vpop.f32.mrf.mxu0
      %v8130 = vpop.f32.mrf.mxu0
      %v8131 = vadd.f32 %v7610, %v8130
      %v8132 = vpop.f32.mrf.mxu0
      %8133 = vmatprep.mubr.bf16.mxu0 %v7568
      %8134 = vmatmul.mubr.bf16.gmra.mxu0 %v7567
      %v8135 = vpop.f32.mrf.mxu0
      %v8136 = vadd.f32 %v7610, %v8135
      %v8137 = vpop.f32.mrf.mxu0
      %v8138 = vpop.f32.mrf.mxu0
      %v8139 = vadd.f32 %v7610, %v8138
      %v8140 = vpop.f32.mrf.mxu0
      %8141 = vmatprep.mubr.bf16.mxu0 %v7570
      %8142 = vmatmul.mubr.bf16.gmra.mxu0 %v7569
      %v8143 = vpop.f32.mrf.mxu0
      %v8144 = vadd.f32 %v7610, %v8143
      %v8145 = vpop.f32.mrf.mxu0
      %v8146 = vpop.f32.mrf.mxu0
      %v8147 = vadd.f32 %v7610, %v8146
      %v8148 = vpop.f32.mrf.mxu0
      %8149 = vmatprep.mubr.bf16.mxu0 %v7572
      %8150 = vmatmul.mubr.bf16.gmra.mxu0 %v7571
      %v8151 = vpop.f32.mrf.mxu0
      %v8152 = vadd.f32 %v7610, %v8151
      %v8153 = vpop.f32.mrf.mxu0
      %v8154 = vpop.f32.mrf.mxu0
      %v8155 = vadd.f32 %v7610, %v8154
      %v8156 = vpop.f32.mrf.mxu0
      %8157 = vdwg.mxu0
      %8158 = vmatprep.subr.bf16.mxu0 0
      %8159 = vmatpush1.bf16.msra.mxu0 %v8020
      %8160 = vmatprep.subr.bf16.mxu0 0
      %8161 = vmatpush1.bf16.msra.mxu0 %v8019
      %8162 = vmatprep.subr.bf16.mxu0 0
      %8163 = vmatpush1.bf16.msra.mxu0 %v8018
      %8164 = vmatprep.subr.bf16.mxu0 0
      %8165 = vmatpush1.bf16.msra.mxu0 %v8017
      %8166 = vmatprep.subr.bf16.mxu0 0
      %8167 = vmatpush1.bf16.msra.mxu0 %v8016
      %8168 = vmatprep.subr.bf16.mxu0 0
      %8169 = vmatpush1.bf16.msra.mxu0 %v8015
      %8170 = vmatprep.subr.bf16.mxu0 0
      %8171 = vmatpush1.bf16.msra.mxu0 %v8014
      %8172 = vmatprep.subr.bf16.mxu0 0
      %8173 = vmatpush1.bf16.msra.mxu0 %v8013
      %8174 = vmatprep.subr.bf16.mxu0 0
      %8175 = vmatpush2.bf16.msra.mxu0 %v8028
      %8176 = vmatprep.subr.bf16.mxu0 0
      %8177 = vmatpush2.bf16.msra.mxu0 %v8027
      %8178 = vmatprep.subr.bf16.mxu0 0
      %8179 = vmatpush2.bf16.msra.mxu0 %v8026
      %8180 = vmatprep.subr.bf16.mxu0 0
      %8181 = vmatpush2.bf16.msra.mxu0 %v8025
      %8182 = vmatprep.subr.bf16.mxu0 0
      %8183 = vmatpush2.bf16.msra.mxu0 %v8024
      %8184 = vmatprep.subr.bf16.mxu0 0
      %8185 = vmatpush2.bf16.msra.mxu0 %v8023
      %8186 = vmatprep.subr.bf16.mxu0 0
      %8187 = vmatpush2.bf16.msra.mxu0 %v8022
      %8188 = vmatprep.subr.bf16.mxu0 0
      %8189 = vmatpush2.bf16.msra.mxu0 %v8021
      %8190 = vmatprep.mubr.bf16.mxu0 %v7542
      %8191 = vmatmul.mubr.bf16.gmra.mxu0 %v7541
      %v8192 = vpop.f32.mrf.mxu0
      %v8193 = vadd.f32 %v8096, %v8192
      %v8194 = vpop.f32.mrf.mxu0
      %v8195 = vpop.f32.mrf.mxu0
      %v8196 = vadd.f32 %v8099, %v8195
      %v8197 = vpop.f32.mrf.mxu0
      %8198 = vmatprep.mubr.bf16.mxu0 %v7544
      %8199 = vmatmul.mubr.bf16.gmra.mxu0 %v7543
      %v8200 = vpop.f32.mrf.mxu0
      %v8201 = vadd.f32 %v8104, %v8200
      %v8202 = vpop.f32.mrf.mxu0
      %v8203 = vpop.f32.mrf.mxu0
      %v8204 = vadd.f32 %v8107, %v8203
      %v8205 = vpop.f32.mrf.mxu0
      %8206 = vmatprep.mubr.bf16.mxu0 %v7546
      %8207 = vmatmul.mubr.bf16.gmra.mxu0 %v7545
      %v8208 = vpop.f32.mrf.mxu0
      %v8209 = vadd.f32 %v8112, %v8208
      %v8210 = vpop.f32.mrf.mxu0
      %v8211 = vpop.f32.mrf.mxu0
      %v8212 = vadd.f32 %v8115, %v8211
      %v8213 = vpop.f32.mrf.mxu0
      %8214 = vmatprep.mubr.bf16.mxu0 %v7548
      %8215 = vmatmul.mubr.bf16.gmra.mxu0 %v7547
      %v8216 = vpop.f32.mrf.mxu0
      %v8217 = vadd.f32 %v8120, %v8216
      %v8218 = vpop.f32.mrf.mxu0
      %v8219 = vpop.f32.mrf.mxu0
      %v8220 = vadd.f32 %v8123, %v8219
      %v8221 = vpop.f32.mrf.mxu0
      %8222 = vmatprep.mubr.bf16.mxu0 %v7550
      %8223 = vmatmul.mubr.bf16.gmra.mxu0 %v7549
      %v8224 = vpop.f32.mrf.mxu0
      %v8225 = vadd.f32 %v8128, %v8224
      %v8226 = vpop.f32.mrf.mxu0
      %v8227 = vpop.f32.mrf.mxu0
      %v8228 = vadd.f32 %v8131, %v8227
      %v8229 = vpop.f32.mrf.mxu0
      %8230 = vmatprep.mubr.bf16.mxu0 %v7552
      %8231 = vmatmul.mubr.bf16.gmra.mxu0 %v7551
      %v8232 = vpop.f32.mrf.mxu0
      %v8233 = vadd.f32 %v8136, %v8232
      %v8234 = vpop.f32.mrf.mxu0
      %v8235 = vpop.f32.mrf.mxu0
      %v8236 = vadd.f32 %v8139, %v8235
      %v8237 = vpop.f32.mrf.mxu0
      %8238 = vmatprep.mubr.bf16.mxu0 %v7554
      %8239 = vmatmul.mubr.bf16.gmra.mxu0 %v7553
      %v8240 = vpop.f32.mrf.mxu0
      %v8241 = vadd.f32 %v8144, %v8240
      %v8242 = vpop.f32.mrf.mxu0
      %v8243 = vpop.f32.mrf.mxu0
      %v8244 = vadd.f32 %v8147, %v8243
      %v8245 = vpop.f32.mrf.mxu0
      %8246 = vmatprep.mubr.bf16.mxu0 %v7556
      %8247 = vmatmul.mubr.bf16.gmra.mxu0 %v7555
      %v8248 = vpop.f32.mrf.mxu0
      %v8249 = vadd.f32 %v8152, %v8248
      %v8250 = vpop.f32.mrf.mxu0
      %v8251 = vpop.f32.mrf.mxu0
      %v8252 = vadd.f32 %v8155, %v8251
      %v8253 = vpop.f32.mrf.mxu0
      %8254 = vdwg.mxu0
      %v8255 = vxor.u32 %v7743, 2147483648
      %v8256 = vxor.u32 %v7746, 2147483648
      %v8257 = vxor.u32 %v7751, 2147483648
      %v8258 = vxor.u32 %v7754, 2147483648
      %v8259 = vxor.u32 %v7759, 2147483648
      %v8260 = vxor.u32 %v7762, 2147483648
      %v8261 = vxor.u32 %v7767, 2147483648
      %v8262 = vxor.u32 %v7770, 2147483648
      %v8263 = vxor.u32 %v7775, 2147483648
      %v8264 = vxor.u32 %v7778, 2147483648
      %v8265 = vxor.u32 %v7783, 2147483648
      %v8266 = vxor.u32 %v7786, 2147483648
      %v8267 = vxor.u32 %v7791, 2147483648
      %v8268 = vxor.u32 %v7794, 2147483648
      %v8269 = vxor.u32 %v7799, 2147483648
      %v8270 = vxor.u32 %v7802, 2147483648
      %v8271 = vmul.f32 %v8255, 1.442695
      %v8272 = vpow.pop %v8271
      %v8273 = vmul.f32 %v8256, 1.442695
      %v8274 = vpow.pop %v8273
      %v8275 = vmul.f32 %v8257, 1.442695
      %v8276 = vpow.pop %v8275
      %v8277 = vmul.f32 %v8258, 1.442695
      %v8278 = vpow.pop %v8277
      %v8279 = vmul.f32 %v8259, 1.442695
      %v8280 = vpow.pop %v8279
      %v8281 = vmul.f32 %v8260, 1.442695
      %v8282 = vpow.pop %v8281
      %v8283 = vmul.f32 %v8261, 1.442695
      %v8284 = vpow.pop %v8283
      %v8285 = vmul.f32 %v8262, 1.442695
      %v8286 = vpow.pop %v8285
      %v8287 = vmul.f32 %v8263, 1.442695
      %v8288 = vpow.pop %v8287
      %v8289 = vmul.f32 %v8264, 1.442695
      %v8290 = vpow.pop %v8289
      %v8291 = vmul.f32 %v8265, 1.442695
      %v8292 = vpow.pop %v8291
      %v8293 = vmul.f32 %v8266, 1.442695
      %v8294 = vpow.pop %v8293
      %v8295 = vmul.f32 %v8267, 1.442695
      %v8296 = vpow.pop %v8295
      %v8297 = vmul.f32 %v8268, 1.442695
      %v8298 = vpow.pop %v8297
      %v8299 = vmul.f32 %v8269, 1.442695
      %v8300 = vpow.pop %v8299
      %v8301 = vmul.f32 %v8270, 1.442695
      %v8302 = vpow.pop %v8301
      %v8303 = vadd.f32 %v8272, 1.0
      %v8304 = vadd.f32 %v8274, 1.0
      %v8305 = vadd.f32 %v8276, 1.0
      %v8306 = vadd.f32 %v8278, 1.0
      %v8307 = vadd.f32 %v8280, 1.0
      %v8308 = vadd.f32 %v8282, 1.0
      %v8309 = vadd.f32 %v8284, 1.0
      %v8310 = vadd.f32 %v8286, 1.0
      %v8311 = vadd.f32 %v8288, 1.0
      %v8312 = vadd.f32 %v8290, 1.0
      %v8313 = vadd.f32 %v8292, 1.0
      %v8314 = vadd.f32 %v8294, 1.0
      %v8315 = vadd.f32 %v8296, 1.0
      %v8316 = vadd.f32 %v8298, 1.0
      %v8317 = vadd.f32 %v8300, 1.0
      %v8318 = vadd.f32 %v8302, 1.0
      %v8319 = vrcp.pop %v8303
      %v8320 = vmul.f32 1.0, %v8319
      %v8321 = vrcp.pop %v8304
      %v8322 = vmul.f32 1.0, %v8321
      %v8323 = vrcp.pop %v8305
      %v8324 = vmul.f32 1.0, %v8323
      %v8325 = vrcp.pop %v8306
      %v8326 = vmul.f32 1.0, %v8325
      %v8327 = vrcp.pop %v8307
      %v8328 = vmul.f32 1.0, %v8327
      %v8329 = vrcp.pop %v8308
      %v8330 = vmul.f32 1.0, %v8329
      %v8331 = vrcp.pop %v8309
      %v8332 = vmul.f32 1.0, %v8331
      %v8333 = vrcp.pop %v8310
      %v8334 = vmul.f32 1.0, %v8333
      %v8335 = vrcp.pop %v8311
      %v8336 = vmul.f32 1.0, %v8335
      %v8337 = vrcp.pop %v8312
      %v8338 = vmul.f32 1.0, %v8337
      %v8339 = vrcp.pop %v8313
      %v8340 = vmul.f32 1.0, %v8339
      %v8341 = vrcp.pop %v8314
      %v8342 = vmul.f32 1.0, %v8341
      %v8343 = vrcp.pop %v8315
      %v8344 = vmul.f32 1.0, %v8343
      %v8345 = vrcp.pop %v8316
      %v8346 = vmul.f32 1.0, %v8345
      %v8347 = vrcp.pop %v8317
      %v8348 = vmul.f32 1.0, %v8347
      %v8349 = vrcp.pop %v8318
      %v8350 = vmul.f32 1.0, %v8349
      %v8351 = vxor.u32 %v8193, 2147483648
      %v8352 = vxor.u32 %v8196, 2147483648
      %v8353 = vxor.u32 %v8201, 2147483648
      %v8354 = vxor.u32 %v8204, 2147483648
      %v8355 = vxor.u32 %v8209, 2147483648
      %v8356 = vxor.u32 %v8212, 2147483648
      %v8357 = vxor.u32 %v8217, 2147483648
      %v8358 = vxor.u32 %v8220, 2147483648
      %v8359 = vxor.u32 %v8225, 2147483648
      %v8360 = vxor.u32 %v8228, 2147483648
      %v8361 = vxor.u32 %v8233, 2147483648
      %v8362 = vxor.u32 %v8236, 2147483648
      %v8363 = vxor.u32 %v8241, 2147483648
      %v8364 = vxor.u32 %v8244, 2147483648
      %v8365 = vxor.u32 %v8249, 2147483648
      %v8366 = vxor.u32 %v8252, 2147483648
      %v8367 = vmul.f32 %v8351, 1.442695
      %v8368 = vpow.pop %v8367
      %v8369 = vmul.f32 %v8352, 1.442695
      %v8370 = vpow.pop %v8369
      %v8371 = vmul.f32 %v8353, 1.442695
      %v8372 = vpow.pop %v8371
      %v8373 = vmul.f32 %v8354, 1.442695
      %v8374 = vpow.pop %v8373
      %v8375 = vmul.f32 %v8355, 1.442695
      %v8376 = vpow.pop %v8375
      %v8377 = vmul.f32 %v8356, 1.442695
      %v8378 = vpow.pop %v8377
      %v8379 = vmul.f32 %v8357, 1.442695
      %v8380 = vpow.pop %v8379
      %v8381 = vmul.f32 %v8358, 1.442695
      %v8382 = vpow.pop %v8381
      %v8383 = vmul.f32 %v8359, 1.442695
      %v8384 = vpow.pop %v8383
      %v8385 = vmul.f32 %v8360, 1.442695
      %v8386 = vpow.pop %v8385
      %v8387 = vmul.f32 %v8361, 1.442695
      %v8388 = vpow.pop %v8387
      %v8389 = vmul.f32 %v8362, 1.442695
      %v8390 = vpow.pop %v8389
      %v8391 = vmul.f32 %v8363, 1.442695
      %v8392 = vpow.pop %v8391
      %v8393 = vmul.f32 %v8364, 1.442695
      %v8394 = vpow.pop %v8393
      %v8395 = vmul.f32 %v8365, 1.442695
      %v8396 = vpow.pop %v8395
      %v8397 = vmul.f32 %v8366, 1.442695
      %v8398 = vpow.pop %v8397
      %v8399 = vadd.f32 %v8368, 1.0
      %v8400 = vadd.f32 %v8370, 1.0
      %v8401 = vadd.f32 %v8372, 1.0
      %v8402 = vadd.f32 %v8374, 1.0
      %v8403 = vadd.f32 %v8376, 1.0
      %v8404 = vadd.f32 %v8378, 1.0
      %v8405 = vadd.f32 %v8380, 1.0
      %v8406 = vadd.f32 %v8382, 1.0
      %v8407 = vadd.f32 %v8384, 1.0
      %v8408 = vadd.f32 %v8386, 1.0
      %v8409 = vadd.f32 %v8388, 1.0
      %v8410 = vadd.f32 %v8390, 1.0
      %v8411 = vadd.f32 %v8392, 1.0
      %v8412 = vadd.f32 %v8394, 1.0
      %v8413 = vadd.f32 %v8396, 1.0
      %v8414 = vadd.f32 %v8398, 1.0
      %v8415 = vrcp.pop %v8399
      %v8416 = vmul.f32 1.0, %v8415
      %v8417 = vrcp.pop %v8400
      %v8418 = vmul.f32 1.0, %v8417
      %v8419 = vrcp.pop %v8401
      %v8420 = vmul.f32 1.0, %v8419
      %v8421 = vrcp.pop %v8402
      %v8422 = vmul.f32 1.0, %v8421
      %v8423 = vrcp.pop %v8403
      %v8424 = vmul.f32 1.0, %v8423
      %v8425 = vrcp.pop %v8404
      %v8426 = vmul.f32 1.0, %v8425
      %v8427 = vrcp.pop %v8405
      %v8428 = vmul.f32 1.0, %v8427
      %v8429 = vrcp.pop %v8406
      %v8430 = vmul.f32 1.0, %v8429
      %v8431 = vrcp.pop %v8407
      %v8432 = vmul.f32 1.0, %v8431
      %v8433 = vrcp.pop %v8408
      %v8434 = vmul.f32 1.0, %v8433
      %v8435 = vrcp.pop %v8409
      %v8436 = vmul.f32 1.0, %v8435
      %v8437 = vrcp.pop %v8410
      %v8438 = vmul.f32 1.0, %v8437
      %v8439 = vrcp.pop %v8411
      %v8440 = vmul.f32 1.0, %v8439
      %v8441 = vrcp.pop %v8412
      %v8442 = vmul.f32 1.0, %v8441
      %v8443 = vrcp.pop %v8413
      %v8444 = vmul.f32 1.0, %v8443
      %v8445 = vrcp.pop %v8414
      %v8446 = vmul.f32 1.0, %v8445
      %8447 = vst [vmem:[%s793] sm:$0xff] %v8320
      %8448 = vst [vmem:[%s793 + $0x8] sm:$0xff] %v8322
      %8449 = vst [vmem:[%s793 + $0x10] sm:$0xff] %v8324
      %8450 = vst [vmem:[%s793 + $0x18] sm:$0xff] %v8326
      %8451 = vst [vmem:[%s793 + $0x20] sm:$0xff] %v8328
      %8452 = vst [vmem:[%s793 + $0x28] sm:$0xff] %v8330
      %8453 = vst [vmem:[%s793 + $0x30] sm:$0xff] %v8332
      %8454 = vst [vmem:[%s793 + $0x38] sm:$0xff] %v8334
      %8455 = vst [vmem:[%s793 + $0x40] sm:$0xff] %v8336
      %8456 = vst [vmem:[%s793 + $0x48] sm:$0xff] %v8338
      %8457 = vst [vmem:[%s793 + $0x50] sm:$0xff] %v8340
      %8458 = vst [vmem:[%s793 + $0x58] sm:$0xff] %v8342
      %8459 = vst [vmem:[%s793 + $0x60] sm:$0xff] %v8344
      %8460 = vst [vmem:[%s793 + $0x68] sm:$0xff] %v8346
      %8461 = vst [vmem:[%s793 + $0x70] sm:$0xff] %v8348
      %8462 = vst [vmem:[%s793 + $0x78] sm:$0xff] %v8350
      %8463 = vst [vmem:[%s793 + $0x80] sm:$0xff] %v8416
      %8464 = vst [vmem:[%s793 + $0x88] sm:$0xff] %v8418
      %8465 = vst [vmem:[%s793 + $0x90] sm:$0xff] %v8420
      %8466 = vst [vmem:[%s793 + $0x98] sm:$0xff] %v8422
      %8467 = vst [vmem:[%s793 + $0xa0] sm:$0xff] %v8424
      %8468 = vst [vmem:[%s793 + $0xa8] sm:$0xff] %v8426
      %8469 = vst [vmem:[%s793 + $0xb0] sm:$0xff] %v8428
      %8470 = vst [vmem:[%s793 + $0xb8] sm:$0xff] %v8430
      %8471 = vst [vmem:[%s793 + $0xc0] sm:$0xff] %v8432
      %8472 = vst [vmem:[%s793 + $0xc8] sm:$0xff] %v8434
      %8473 = vst [vmem:[%s793 + $0xd0] sm:$0xff] %v8436
      %8474 = vst [vmem:[%s793 + $0xd8] sm:$0xff] %v8438
      %8475 = vst [vmem:[%s793 + $0xe0] sm:$0xff] %v8440
      %8476 = vst [vmem:[%s793 + $0xe8] sm:$0xff] %v8442
      %8477 = vst [vmem:[%s793 + $0xf0] sm:$0xff] %v8444
      %8478 = vst [vmem:[%s793 + $0xf8] sm:$0xff] %v8446
      %s8479 = smul.u32 32, %s37
      %p8480 = scmp.lt.s32.totalorder %s8479, 63
      %s8481 = scalar_select %p8480, %s8479, 63
      %s8482 = smul.addr %s8481, 8
      %s8483 = scalar_lea.vmem %s26, %s8482
      // Predicated region
      $region125: #{forward.1} parent=123 // pred_check
        %p8484 = pneg %p606
      $region126: #{forward.1} parent=123 // pred_check_branch
        %8486 = sbr.rel (%p8484) target = $region128
      $region127: #{forward.1} parent=123 // pred_region
        %s8487 = smul.u32 32, %s37
      $region128: #{forward.1} parent=123 // pred_fallthru
        _
    $region124: #{forward.1} parent=5 // pred_fallthru
      _
    %p8488 = scmp.le.s32.totalorder 2, %s32
    // Predicated region
    $region129: #{forward.1} parent=5 // pred_check
      %p8489 = pneg %p8488
    $region130: #{forward.1} parent=5 // pred_check_branch
      %8491 = sbr.rel (%p8489) target = $region132
    $region131: #{forward.1} parent=5 // pred_region
      %s8492 = ssub.s32 %s32, 2
      // Predicated region
      $region133: #{forward.1} parent=131 // pred_check
        %p8493 = pneg %p612
      $region134: #{forward.1} parent=131 // pred_check_branch
        %8495 = sbr.rel (%p8493) target = $region136
      $region135: #{forward.1} parent=131 // pred_region
        %s8496 = smul.u32 32, %s38
        %p8497 = scmp.lt.s32.totalorder %s8496, 63
        %s8498 = scalar_select %p8497, %s8496, 63
        %s8499 = smul.addr %s8498, 8
        %s8500 = scalar_lea.vmem %s26, %s8499
      $region136: #{forward.1} parent=131 // pred_fallthru
        _
    $region132: #{forward.1} parent=5 // pred_fallthru
      _
  $region6: #{forward.1} parent=0 // loop_footer
    %s36 = sadd.s32 1, %s32
  $region7: #{forward.1} parent=0 // loop_footer_branch
    %31 = sbr.rel target = $region3
  $region8: #{forward.1} parent=0 // loop_exit
    _

</llo_original>
